<compile_context>
chip_gen: v7x
topology: tpu7x:2x2x1
jax: 0.10.0
libtpu: 0.0.40
codegen_flags: <defaults>
</compile_context>

<pallas_src>
import jax
import jax.numpy as jnp
from jax import lax
from jax.experimental import pallas as pl
from jax.experimental.pallas import tpu as pltpu

# ----------------------------------------------------------------------------
# Geometry (input spatial size 32x32 is forced by fc1 expecting 3*3*16 feats)
# ----------------------------------------------------------------------------
H0 = 32
K1, C1_IN = 5, 3
H1 = H0 - K1 + 1          # 28 : conv1 valid output
HP1 = H1 // 2             # 14 : after pool1
HP2 = (HP1 - 2) // 2      # 6  : after pool2 (conv2 is 3x3 valid -> 12)
HPAD3 = HP2 + 2           # 8  : zero-padded grid fed to conv3 (padding=1)
HP3 = HP2 // 2            # 3  : after pool3
LANES = 128

P1 = H1 * H1              # 784 rows of conv1 output per sample
PP1 = HP1 * HP1           # 196 rows of pooled-1 grid per sample
P3 = HPAD3 * HPAD3        # 64  rows of the padded conv3 grid per sample
KCOLS = K1 * K1 * C1_IN   # 75  im2col K for conv1

# per-sample scratch row counts, padded so every static tap slice is in range
A1_ROWS = P1                       # 784
A1P_ROWS = PP1 + 36                # 232 >= 196 + max conv2 tap offset (2*14+2)
A2_ROWS = PP1                      # 196 (conv2 computed on the full 14x14 grid)
A2P_ROWS = P3 + 24                 # 88  >= 64 + max conv3 tap offset (2*8+2)
A3R_ROWS = P3                      # 64
FC_M = 16                          # fc "full-grid" rows (only row 0 is valid)
A3_ROWS = FC_M + 8                 # 24  >= max fc tap offset (8) + FC_M


# ----------------------------------------------------------------------------
# The fused kernel (one grid step == one batch element)
# ----------------------------------------------------------------------------
def _net_kernel(cols_ref, w1_ref, b1_ref, w2_ref, b2_ref, w3_ref, b3_ref,
                wfc_ref, bfc_ref, out_ref,
                a1, a1p, a2, a2p, a3r, a3):
    f32 = jnp.float32

    # ---- conv1 + ReLU: single lane-dense MXU matmul on the im2col'd input --
    a1[...] = jnp.maximum(
        jnp.dot(cols_ref[...], w1_ref[...], preferred_element_type=f32)
        + b1_ref[...], 0.0)

    # ---- avgpool1 (2x2 / stride 2): 28x28 -> 14x14 --------------------------
    # a1 row (oh*28 + ow) holds conv1(oh, ow); pooled rows are strided reads.
    for a in range(HP1):
        s = 2 * a * H1
        r = (a1[pl.ds(s,          HP1, stride=2), :] +
             a1[pl.ds(s + 1,      HP1, stride=2), :] +
             a1[pl.ds(s + H1,     HP1, stride=2), :] +
             a1[pl.ds(s + H1 + 1, HP1, stride=2), :])
        a1p[a * HP1:(a + 1) * HP1, :] = 0.25 * r
    # zero the tail pad rows (only ever read by discarded "full-grid" outputs)
    a1p[PP1:A1P_ROWS, :] = jnp.zeros((A1P_ROWS - PP1, LANES), f32)

    # ---- conv2 + ReLU on the full 14x14 grid (valid region is 12x12) --------
    # full-grid trick: output grid == input grid, so tap (di,dj) is a single
    # contiguous row-slice at offset di*14+dj.
    for t in range(9):
        di, dj = divmod(t, 3)
        off = di * HP1 + dj
        c = jnp.dot(a1p[off:off + PP1, :], w2_ref[t],
                    preferred_element_type=f32)
        if t == 0:
            a2[...] = c
        else:
            a2[...] = a2[...] + c
    a2[...] = jnp.maximum(a2[...] + b2_ref[...], 0.0)

    # ---- avgpool2: (valid 12x12) -> 6x6, written into the interior of the
    #      zero-padded 8x8 grid that implements conv3's padding=1. ------------
    a2p[...] = jnp.zeros((A2P_ROWS, LANES), f32)
    for a in range(HP2):
        s = 2 * a * HP1
        r = (a2[pl.ds(s,           HP2, stride=2), :] +
             a2[pl.ds(s + 1,       HP2, stride=2), :] +
             a2[pl.ds(s + HP1,     HP2, stride=2), :] +
             a2[pl.ds(s + HP1 + 1, HP2, stride=2), :])
        base = (1 + a) * HPAD3 + 1
        a2p[base:base + HP2, :] = 0.25 * r

    # ---- conv3 (padding=1) + ReLU + fused residual add, on the 8x8 grid -----
    for t in range(9):
        di, dj = divmod(t, 3)
        off = di * HPAD3 + dj
        c = jnp.dot(a2p[off:off + P3, :], w3_ref[t],
                    preferred_element_type=f32)
        if t == 0:
            a3r[...] = c
        else:
            a3r[...] = a3r[...] + c
    # residual: pooled input at grid (oh,ow) lives at padded row (oh+1, ow+1),
    # i.e. a uniform row shift of HPAD3+1 = 9.
    a3r[...] = (jnp.maximum(a3r[...] + b3_ref[...], 0.0)
                + a2p[HPAD3 + 1:HPAD3 + 1 + P3, :])

    # ---- avgpool3: 6x6 -> 3x3 ------------------------------------------------
    a3[...] = jnp.zeros((A3_ROWS, LANES), f32)
    for a in range(HP3):
        s = 2 * a * HPAD3
        r = (a3r[pl.ds(s,             HP3, stride=2), :] +
             a3r[pl.ds(s + 1,         HP3, stride=2), :] +
             a3r[pl.ds(s + HPAD3,     HP3, stride=2), :] +
             a3r[pl.ds(s + HPAD3 + 1, HP3, stride=2), :])
        a3[a * HP3:a * HP3 + HP3, :] = 0.25 * r

    # ---- fc1 as a 3x3 "conv" over the 3x3 grid (torch's NCHW flatten is
    #      folded into the weight packing); only output row 0 is valid. -------
    acc = None
    for t in range(9):
        di, dj = divmod(t, 3)
        off = di * HP3 + dj
        c = jnp.dot(a3[off:off + FC_M, :], wfc_ref[t],
                    preferred_element_type=f32)
        acc = c if acc is None else acc + c
    out_ref[0] = acc[0:1, :] + bfc_ref[...]


# ----------------------------------------------------------------------------
# Host-side packing (tiny; can be hoisted out of the per-call path)
# ----------------------------------------------------------------------------
def _prep_inputs(params, x_nchw):
    n = x_nchw.shape[0]
    x = jnp.transpose(x_nchw, (0, 2, 3, 1)).astype(jnp.float32)   # NHWC
    # conv1 im2col (only host-side gather; raw input has just 3 channels).
    patches = [x[:, i:i + H1, j:j + H1, :]
               for i in range(K1) for j in range(K1)]
    cols = jnp.stack(patches, axis=3).reshape(n * P1, KCOLS)      # (N*784, 75)

    def pad2(w, rows, cols_):
        return jnp.zeros((rows, cols_), jnp.float32).at[:w.shape[0],
                                                        :w.shape[1]].set(w)

    w1 = jnp.transpose(params["conv1_w"], (2, 3, 1, 0)).reshape(KCOLS, 8)
    w1p = pad2(w1, KCOLS, LANES)
    b1p = pad2(params["conv1_b"][None, :], 1, LANES)

    def pack_taps(w):  # (Cout, Cin, 3, 3) -> (9, 128, 128), tap = di*3 + dj
        cout, cin = w.shape[0], w.shape[1]
        wt = jnp.transpose(w, (2, 3, 1, 0)).reshape(9, cin, cout)
        return jnp.zeros((9, LANES, LANES),
                         jnp.float32).at[:, :cin, :cout].set(wt)

    w2p = pack_taps(params["conv2_w"])
    b2p = pad2(params["conv2_b"][None, :], 1, LANES)
    w3p = pack_taps(params["conv3_w"])
    b3p = pad2(params["conv3_b"][None, :], 1, LANES)

    # fc1 weight (10, 144) with torch NCHW-flatten ordering: feat = c*9+a*3+b
    fc_w = params["fc1_w"].reshape(10, 16, HP3, HP3)
    wfct = jnp.transpose(fc_w, (2, 3, 1, 0)).reshape(9, 16, 10)
    wfcp = jnp.zeros((9, LANES, LANES), jnp.float32).at[:, :16, :10].set(wfct)
    bfcp = pad2(params["fc1_b"][None, :], 1, LANES)
    return cols, (w1p, b1p, w2p, b2p, w3p, b3p, wfcp, bfcp)


def example_net9_forward(params, x_nchw):
    n = x_nchw.shape[0]
    cols, weights = _prep_inputs(params, x_nchw)

    grid_spec = pltpu.PrefetchScalarGridSpec(
        num_scalar_prefetch=0,
        grid=(n,),
        in_specs=[
            pl.BlockSpec((P1, KCOLS), lambda i: (i, 0)),          # im2col rows
            pl.BlockSpec((KCOLS, LANES), lambda i: (0, 0)),        # w1
            pl.BlockSpec((1, LANES), lambda i: (0, 0)),            # b1
            pl.BlockSpec((9, LANES, LANES), lambda i: (0, 0, 0)),  # w2 taps
            pl.BlockSpec((1, LANES), lambda i: (0, 0)),            # b2
            pl.BlockSpec((9, LANES, LANES), lambda i: (0, 0, 0)),  # w3 taps
            pl.BlockSpec((1, LANES), lambda i: (0, 0)),            # b3
            pl.BlockSpec((9, LANES, LANES), lambda i: (0, 0, 0)),  # fc taps
            pl.BlockSpec((1, LANES), lambda i: (0, 0)),            # fc bias
        ],
        out_specs=pl.BlockSpec((1, 1, LANES), lambda i: (i, 0, 0)),
        scratch_shapes=[
            pltpu.VMEM((A1_ROWS, LANES), jnp.float32),
            pltpu.VMEM((A1P_ROWS, LANES), jnp.float32),
            pltpu.VMEM((A2_ROWS, LANES), jnp.float32),
            pltpu.VMEM((A2P_ROWS, LANES), jnp.float32),
            pltpu.VMEM((A3R_ROWS, LANES), jnp.float32),
            pltpu.VMEM((A3_ROWS, LANES), jnp.float32),
        ],
    )
    out = pl.pallas_call(
        _net_kernel,
        out_shape=jax.ShapeDtypeStruct((n, 1, LANES), jnp.float32),
        grid_spec=grid_spec,
        compiler_params=pltpu.CompilerParams(
            dimension_semantics=("parallel",)),
    )(cols, *weights)
    return out[:, 0, :10]


# ----------------------------------------------------------------------------
# Pure-JAX reference (for correctness check) and parameter init
# ----------------------------------------------------------------------------
def reference_forward(params, x):
    dn = ("NCHW", "OIHW", "NCHW")

    def conv(z, w, b, pad):
        y = lax.conv_general_dilated(z, w, (1, 1), [(pad, pad), (pad, pad)],
                                     dimension_numbers=dn)
        return y + b[None, :, None, None]

    def pool(z):
        return lax.reduce_window(z, 0.0, lax.add, (1, 1, 2, 2), (1, 1, 2, 2),
                                 "VALID") * 0.25

    out = jnp.maximum(conv(x, params["conv1_w"], params["conv1_b"], 0), 0.0)
    out = pool(out)
    out = jnp.maximum(conv(out, params["conv2_w"], params["conv2_b"], 0), 0.0)
    out = pool(out)
    p = jnp.maximum(conv(out, params["conv3_w"], params["conv3_b"], 1), 0.0)
    out = p + out
    out = pool(out)
    flat = out.reshape(out.shape[0], -1)          # NCHW flatten, matches torch
    return flat @ params["fc1_w"].T + params["fc1_b"]


def init_params(key):
    ks = jax.random.split(key, 8)

    def uni(k, shape, fan_in):
        bound = 1.0 / (fan_in ** 0.5)
        return jax.random.uniform(k, shape, jnp.float32, -bound, bound)

    return {
        "conv1_w": uni(ks[0], (8, 3, 5, 5), 3 * 5 * 5),
        "conv1_b": uni(ks[1], (8,), 3 * 5 * 5),
        "conv2_w": uni(ks[2], (16, 8, 3, 3), 8 * 3 * 3),
        "conv2_b": uni(ks[3], (16,), 8 * 3 * 3),
        "conv3_w": uni(ks[4], (16, 16, 3, 3), 16 * 3 * 3),
        "conv3_b": uni(ks[5], (16,), 16 * 3 * 3),
        "fc1_w": uni(ks[6], (10, 3 * 3 * 16), 3 * 3 * 16),
        "fc1_b": uni(ks[7], (10,), 3 * 3 * 16),
    }


if __name__ == "__main__":
    key = jax.random.PRNGKey(0)
    pkey, xkey = jax.random.split(key)
    params = init_params(pkey)
    x = jax.random.normal(xkey, (2, 3, 32, 32), jnp.float32)

    fwd = jax.jit(example_net9_forward)
    y = jax.block_until_ready(fwd(params, x))
    assert y.shape == (2, 10), y.shape
    assert bool(jnp.all(jnp.isfinite(y)))

    # correctness vs. a plain-XLA reference (tolerance covers MXU default
    # matmul precision on both paths)
    y_ref = jax.block_until_ready(jax.jit(reference_forward)(params, x))
    assert bool(jnp.allclose(y, y_ref, rtol=5e-2, atol=5e-2)), (y, y_ref)

    print("KERNEL_OK")
</pallas_src>

<mosaic_0001>
module attributes {stable_mosaic.version = 11 : i64} {
  func.func @_net_kernel(%arg0: i32, %arg1: memref<784x75xf32, #tpu.memory_space<vmem>>, %arg2: memref<75x128xf32, #tpu.memory_space<vmem>>, %arg3: memref<1x128xf32, #tpu.memory_space<vmem>>, %arg4: memref<9x128x128xf32, #tpu.memory_space<vmem>>, %arg5: memref<1x128xf32, #tpu.memory_space<vmem>>, %arg6: memref<9x128x128xf32, #tpu.memory_space<vmem>>, %arg7: memref<1x128xf32, #tpu.memory_space<vmem>>, %arg8: memref<9x128x128xf32, #tpu.memory_space<vmem>>, %arg9: memref<1x128xf32, #tpu.memory_space<vmem>>, %arg10: memref<1x1x128xf32, #tpu.memory_space<vmem>>, %arg11: memref<784x128xf32, #tpu.memory_space<vmem>>, %arg12: memref<232x128xf32, #tpu.memory_space<vmem>>, %arg13: memref<196x128xf32, #tpu.memory_space<vmem>>, %arg14: memref<88x128xf32, #tpu.memory_space<vmem>>, %arg15: memref<64x128xf32, #tpu.memory_space<vmem>>, %arg16: memref<24x128xf32, #tpu.memory_space<vmem>>) attributes {dimension_semantics = [#tpu.dimension_semantics<parallel>], iteration_bounds = array<i64: 2>, scalar_prefetch = 0 : i64, scratch_operands = 6 : i64, tpu.core_type = #tpu.core_type<tc>, window_params = [{transform_indices = @transform_0, window_bounds = array<i64: 784, 75>}, {pipeline_mode = #tpu.pipeline_mode<synchronous>, transform_indices = @transform_1, window_bounds = array<i64: 75, 128>}, {pipeline_mode = #tpu.pipeline_mode<synchronous>, transform_indices = @transform_2, window_bounds = array<i64: 1, 128>}, {pipeline_mode = #tpu.pipeline_mode<synchronous>, transform_indices = @transform_3, window_bounds = array<i64: 9, 128, 128>}, {pipeline_mode = #tpu.pipeline_mode<synchronous>, transform_indices = @transform_4, window_bounds = array<i64: 1, 128>}, {pipeline_mode = #tpu.pipeline_mode<synchronous>, transform_indices = @transform_5, window_bounds = array<i64: 9, 128, 128>}, {pipeline_mode = #tpu.pipeline_mode<synchronous>, transform_indices = @transform_6, window_bounds = array<i64: 1, 128>}, {pipeline_mode = #tpu.pipeline_mode<synchronous>, transform_indices = @transform_7, window_bounds = array<i64: 9, 128, 128>}, {pipeline_mode = #tpu.pipeline_mode<synchronous>, transform_indices = @transform_8, window_bounds = array<i64: 1, 128>}, {transform_indices = @transform_9, window_bounds = array<i64: 1, 1, 128>}]} {
    %c0 = arith.constant 0 : index
    %c0_0 = arith.constant 0 : index
    %0 = vector.load %arg1[%c0, %c0_0] : memref<784x75xf32, #tpu.memory_space<vmem>>, vector<784x75xf32>
    %c0_1 = arith.constant 0 : index
    %c0_2 = arith.constant 0 : index
    %1 = vector.load %arg2[%c0_1, %c0_2] : memref<75x128xf32, #tpu.memory_space<vmem>>, vector<75x128xf32>
    %cst = arith.constant dense<0.000000e+00> : vector<784x128xf32>
    %2 = tpu.matmul %0, %1, %cst {dimension_numbers = #tpu.dot_dimension_numbers<[1], [0], [0], [1], [0, 0, 1, 1], [], []>} : vector<784x75xf32>, vector<75x128xf32>, vector<784x128xf32> -> vector<784x128xf32>
    %c0_3 = arith.constant 0 : index
    %c0_4 = arith.constant 0 : index
    %3 = vector.load %arg3[%c0_3, %c0_4] : memref<1x128xf32, #tpu.memory_space<vmem>>, vector<1x128xf32>
    %4 = vector.broadcast %3 : vector<1x128xf32> to vector<784x128xf32>
    %5 = arith.addf %2, %4 : vector<784x128xf32>
    %cst_5 = arith.constant 0.000000e+00 : f32
    %6 = vector.broadcast %cst_5 : f32 to vector<784x128xf32>
    %7 = arith.maximumf %5, %6 : vector<784x128xf32>
    %c0_6 = arith.constant 0 : index
    %c0_7 = arith.constant 0 : index
    %8 = vector.load %arg11[%c0_6, %c0_7] : memref<784x128xf32, #tpu.memory_space<vmem>>, vector<784x128xf32>
    tpu.vector_store %arg11[%c0_6, %c0_7], %7 {strides = array<i32>} : memref<784x128xf32, #tpu.memory_space<vmem>>, vector<784x128xf32>,
    %c0_8 = arith.constant 0 : index
    %c0_9 = arith.constant 0 : index
    %9 = tpu.strided_load %arg11[%c0_8, %c0_9] {strides = array<i32: 2, 1>} : memref<784x128xf32, #tpu.memory_space<vmem>>, vector<14x128xf32>
    %c1 = arith.constant 1 : index
    %c0_10 = arith.constant 0 : index
    %10 = tpu.strided_load %arg11[%c1, %c0_10] {strides = array<i32: 2, 1>} : memref<784x128xf32, #tpu.memory_space<vmem>>, vector<14x128xf32>
    %11 = arith.addf %9, %10 : vector<14x128xf32>
    %c28 = arith.constant 28 : index
    %c0_11 = arith.constant 0 : index
    %12 = tpu.strided_load %arg11[%c28, %c0_11] {strides = array<i32: 2, 1>} : memref<784x128xf32, #tpu.memory_space<vmem>>, vector<14x128xf32>
    %13 = arith.addf %11, %12 : vector<14x128xf32>
    %c29 = arith.constant 29 : index
    %c0_12 = arith.constant 0 : index
    %14 = tpu.strided_load %arg11[%c29, %c0_12] {strides = array<i32: 2, 1>} : memref<784x128xf32, #tpu.memory_space<vmem>>, vector<14x128xf32>
    %15 = arith.addf %13, %14 : vector<14x128xf32>
    %cst_13 = arith.constant 2.500000e-01 : f32
    %16 = vector.broadcast %cst_13 : f32 to vector<14x128xf32>
    %17 = arith.mulf %16, %15 : vector<14x128xf32>
    %c0_14 = arith.constant 0 : index
    %c0_15 = arith.constant 0 : index
    %18 = vector.load %arg12[%c0_14, %c0_15] : memref<232x128xf32, #tpu.memory_space<vmem>>, vector<14x128xf32>
    tpu.vector_store %arg12[%c0_14, %c0_15], %17 {strides = array<i32>} : memref<232x128xf32, #tpu.memory_space<vmem>>, vector<14x128xf32>,
    %c56 = arith.constant 56 : index
    %c0_16 = arith.constant 0 : index
    %19 = tpu.strided_load %arg11[%c56, %c0_16] {strides = array<i32: 2, 1>} : memref<784x128xf32, #tpu.memory_space<vmem>>, vector<14x128xf32>
    %c57 = arith.constant 57 : index
    %c0_17 = arith.constant 0 : index
    %20 = tpu.strided_load %arg11[%c57, %c0_17] {strides = array<i32: 2, 1>} : memref<784x128xf32, #tpu.memory_space<vmem>>, vector<14x128xf32>
    %21 = arith.addf %19, %20 : vector<14x128xf32>
    %c84 = arith.constant 84 : index
    %c0_18 = arith.constant 0 : index
    %22 = tpu.strided_load %arg11[%c84, %c0_18] {strides = array<i32: 2, 1>} : memref<784x128xf32, #tpu.memory_space<vmem>>, vector<14x128xf32>
    %23 = arith.addf %21, %22 : vector<14x128xf32>
    %c85 = arith.constant 85 : index
    %c0_19 = arith.constant 0 : index
    %24 = tpu.strided_load %arg11[%c85, %c0_19] {strides = array<i32: 2, 1>} : memref<784x128xf32, #tpu.memory_space<vmem>>, vector<14x128xf32>
    %25 = arith.addf %23, %24 : vector<14x128xf32>
    %cst_20 = arith.constant 2.500000e-01 : f32
    %26 = vector.broadcast %cst_20 : f32 to vector<14x128xf32>
    %27 = arith.mulf %26, %25 : vector<14x128xf32>
    %c14 = arith.constant 14 : index
    %c0_21 = arith.constant 0 : index
    %28 = vector.load %arg12[%c14, %c0_21] : memref<232x128xf32, #tpu.memory_space<vmem>>, vector<14x128xf32>
    tpu.vector_store %arg12[%c14, %c0_21], %27 {strides = array<i32>} : memref<232x128xf32, #tpu.memory_space<vmem>>, vector<14x128xf32>,
    %c112 = arith.constant 112 : index
    %c0_22 = arith.constant 0 : index
    %29 = tpu.strided_load %arg11[%c112, %c0_22] {strides = array<i32: 2, 1>} : memref<784x128xf32, #tpu.memory_space<vmem>>, vector<14x128xf32>
    %c113 = arith.constant 113 : index
    %c0_23 = arith.constant 0 : index
    %30 = tpu.strided_load %arg11[%c113, %c0_23] {strides = array<i32: 2, 1>} : memref<784x128xf32, #tpu.memory_space<vmem>>, vector<14x128xf32>
    %31 = arith.addf %29, %30 : vector<14x128xf32>
    %c140 = arith.constant 140 : index
    %c0_24 = arith.constant 0 : index
    %32 = tpu.strided_load %arg11[%c140, %c0_24] {strides = array<i32: 2, 1>} : memref<784x128xf32, #tpu.memory_space<vmem>>, vector<14x128xf32>
    %33 = arith.addf %31, %32 : vector<14x128xf32>
    %c141 = arith.constant 141 : index
    %c0_25 = arith.constant 0 : index
    %34 = tpu.strided_load %arg11[%c141, %c0_25] {strides = array<i32: 2, 1>} : memref<784x128xf32, #tpu.memory_space<vmem>>, vector<14x128xf32>
    %35 = arith.addf %33, %34 : vector<14x128xf32>
    %cst_26 = arith.constant 2.500000e-01 : f32
    %36 = vector.broadcast %cst_26 : f32 to vector<14x128xf32>
    %37 = arith.mulf %36, %35 : vector<14x128xf32>
    %c28_27 = arith.constant 28 : index
    %c0_28 = arith.constant 0 : index
    %38 = vector.load %arg12[%c28_27, %c0_28] : memref<232x128xf32, #tpu.memory_space<vmem>>, vector<14x128xf32>
    tpu.vector_store %arg12[%c28_27, %c0_28], %37 {strides = array<i32>} : memref<232x128xf32, #tpu.memory_space<vmem>>, vector<14x128xf32>,
    %c168 = arith.constant 168 : index
    %c0_29 = arith.constant 0 : index
    %39 = tpu.strided_load %arg11[%c168, %c0_29] {strides = array<i32: 2, 1>} : memref<784x128xf32, #tpu.memory_space<vmem>>, vector<14x128xf32>
    %c169 = arith.constant 169 : index
    %c0_30 = arith.constant 0 : index
    %40 = tpu.strided_load %arg11[%c169, %c0_30] {strides = array<i32: 2, 1>} : memref<784x128xf32, #tpu.memory_space<vmem>>, vector<14x128xf32>
    %41 = arith.addf %39, %40 : vector<14x128xf32>
    %c196 = arith.constant 196 : index
    %c0_31 = arith.constant 0 : index
    %42 = tpu.strided_load %arg11[%c196, %c0_31] {strides = array<i32: 2, 1>} : memref<784x128xf32, #tpu.memory_space<vmem>>, vector<14x128xf32>
    %43 = arith.addf %41, %42 : vector<14x128xf32>
    %c197 = arith.constant 197 : index
    %c0_32 = arith.constant 0 : index
    %44 = tpu.strided_load %arg11[%c197, %c0_32] {strides = array<i32: 2, 1>} : memref<784x128xf32, #tpu.memory_space<vmem>>, vector<14x128xf32>
    %45 = arith.addf %43, %44 : vector<14x128xf32>
    %cst_33 = arith.constant 2.500000e-01 : f32
    %46 = vector.broadcast %cst_33 : f32 to vector<14x128xf32>
    %47 = arith.mulf %46, %45 : vector<14x128xf32>
    %c42 = arith.constant 42 : index
    %c0_34 = arith.constant 0 : index
    %48 = vector.load %arg12[%c42, %c0_34] : memref<232x128xf32, #tpu.memory_space<vmem>>, vector<14x128xf32>
    tpu.vector_store %arg12[%c42, %c0_34], %47 {strides = array<i32>} : memref<232x128xf32, #tpu.memory_space<vmem>>, vector<14x128xf32>,
    %c224 = arith.constant 224 : index
    %c0_35 = arith.constant 0 : index
    %49 = tpu.strided_load %arg11[%c224, %c0_35] {strides = array<i32: 2, 1>} : memref<784x128xf32, #tpu.memory_space<vmem>>, vector<14x128xf32>
    %c225 = arith.constant 225 : index
    %c0_36 = arith.constant 0 : index
    %50 = tpu.strided_load %arg11[%c225, %c0_36] {strides = array<i32: 2, 1>} : memref<784x128xf32, #tpu.memory_space<vmem>>, vector<14x128xf32>
    %51 = arith.addf %49, %50 : vector<14x128xf32>
    %c252 = arith.constant 252 : index
    %c0_37 = arith.constant 0 : index
    %52 = tpu.strided_load %arg11[%c252, %c0_37] {strides = array<i32: 2, 1>} : memref<784x128xf32, #tpu.memory_space<vmem>>, vector<14x128xf32>
    %53 = arith.addf %51, %52 : vector<14x128xf32>
    %c253 = arith.constant 253 : index
    %c0_38 = arith.constant 0 : index
    %54 = tpu.strided_load %arg11[%c253, %c0_38] {strides = array<i32: 2, 1>} : memref<784x128xf32, #tpu.memory_space<vmem>>, vector<14x128xf32>
    %55 = arith.addf %53, %54 : vector<14x128xf32>
    %cst_39 = arith.constant 2.500000e-01 : f32
    %56 = vector.broadcast %cst_39 : f32 to vector<14x128xf32>
    %57 = arith.mulf %56, %55 : vector<14x128xf32>
    %c56_40 = arith.constant 56 : index
    %c0_41 = arith.constant 0 : index
    %58 = vector.load %arg12[%c56_40, %c0_41] : memref<232x128xf32, #tpu.memory_space<vmem>>, vector<14x128xf32>
    tpu.vector_store %arg12[%c56_40, %c0_41], %57 {strides = array<i32>} : memref<232x128xf32, #tpu.memory_space<vmem>>, vector<14x128xf32>,
    %c280 = arith.constant 280 : index
    %c0_42 = arith.constant 0 : index
    %59 = tpu.strided_load %arg11[%c280, %c0_42] {strides = array<i32: 2, 1>} : memref<784x128xf32, #tpu.memory_space<vmem>>, vector<14x128xf32>
    %c281 = arith.constant 281 : index
    %c0_43 = arith.constant 0 : index
    %60 = tpu.strided_load %arg11[%c281, %c0_43] {strides = array<i32: 2, 1>} : memref<784x128xf32, #tpu.memory_space<vmem>>, vector<14x128xf32>
    %61 = arith.addf %59, %60 : vector<14x128xf32>
    %c308 = arith.constant 308 : index
    %c0_44 = arith.constant 0 : index
    %62 = tpu.strided_load %arg11[%c308, %c0_44] {strides = array<i32: 2, 1>} : memref<784x128xf32, #tpu.memory_space<vmem>>, vector<14x128xf32>
    %63 = arith.addf %61, %62 : vector<14x128xf32>
    %c309 = arith.constant 309 : index
    %c0_45 = arith.constant 0 : index
    %64 = tpu.strided_load %arg11[%c309, %c0_45] {strides = array<i32: 2, 1>} : memref<784x128xf32, #tpu.memory_space<vmem>>, vector<14x128xf32>
    %65 = arith.addf %63, %64 : vector<14x128xf32>
    %cst_46 = arith.constant 2.500000e-01 : f32
    %66 = vector.broadcast %cst_46 : f32 to vector<14x128xf32>
    %67 = arith.mulf %66, %65 : vector<14x128xf32>
    %c70 = arith.constant 70 : index
    %c0_47 = arith.constant 0 : index
    %68 = vector.load %arg12[%c70, %c0_47] : memref<232x128xf32, #tpu.memory_space<vmem>>, vector<14x128xf32>
    tpu.vector_store %arg12[%c70, %c0_47], %67 {strides = array<i32>} : memref<232x128xf32, #tpu.memory_space<vmem>>, vector<14x128xf32>,
    %c336 = arith.constant 336 : index
    %c0_48 = arith.constant 0 : index
    %69 = tpu.strided_load %arg11[%c336, %c0_48] {strides = array<i32: 2, 1>} : memref<784x128xf32, #tpu.memory_space<vmem>>, vector<14x128xf32>
    %c337 = arith.constant 337 : index
    %c0_49 = arith.constant 0 : index
    %70 = tpu.strided_load %arg11[%c337, %c0_49] {strides = array<i32: 2, 1>} : memref<784x128xf32, #tpu.memory_space<vmem>>, vector<14x128xf32>
    %71 = arith.addf %69, %70 : vector<14x128xf32>
    %c364 = arith.constant 364 : index
    %c0_50 = arith.constant 0 : index
    %72 = tpu.strided_load %arg11[%c364, %c0_50] {strides = array<i32: 2, 1>} : memref<784x128xf32, #tpu.memory_space<vmem>>, vector<14x128xf32>
    %73 = arith.addf %71, %72 : vector<14x128xf32>
    %c365 = arith.constant 365 : index
    %c0_51 = arith.constant 0 : index
    %74 = tpu.strided_load %arg11[%c365, %c0_51] {strides = array<i32: 2, 1>} : memref<784x128xf32, #tpu.memory_space<vmem>>, vector<14x128xf32>
    %75 = arith.addf %73, %74 : vector<14x128xf32>
    %cst_52 = arith.constant 2.500000e-01 : f32
    %76 = vector.broadcast %cst_52 : f32 to vector<14x128xf32>
    %77 = arith.mulf %76, %75 : vector<14x128xf32>
    %c84_53 = arith.constant 84 : index
    %c0_54 = arith.constant 0 : index
    %78 = vector.load %arg12[%c84_53, %c0_54] : memref<232x128xf32, #tpu.memory_space<vmem>>, vector<14x128xf32>
    tpu.vector_store %arg12[%c84_53, %c0_54], %77 {strides = array<i32>} : memref<232x128xf32, #tpu.memory_space<vmem>>, vector<14x128xf32>,
    %c392 = arith.constant 392 : index
    %c0_55 = arith.constant 0 : index
    %79 = tpu.strided_load %arg11[%c392, %c0_55] {strides = array<i32: 2, 1>} : memref<784x128xf32, #tpu.memory_space<vmem>>, vector<14x128xf32>
    %c393 = arith.constant 393 : index
    %c0_56 = arith.constant 0 : index
    %80 = tpu.strided_load %arg11[%c393, %c0_56] {strides = array<i32: 2, 1>} : memref<784x128xf32, #tpu.memory_space<vmem>>, vector<14x128xf32>
    %81 = arith.addf %79, %80 : vector<14x128xf32>
    %c420 = arith.constant 420 : index
    %c0_57 = arith.constant 0 : index
    %82 = tpu.strided_load %arg11[%c420, %c0_57] {strides = array<i32: 2, 1>} : memref<784x128xf32, #tpu.memory_space<vmem>>, vector<14x128xf32>
    %83 = arith.addf %81, %82 : vector<14x128xf32>
    %c421 = arith.constant 421 : index
    %c0_58 = arith.constant 0 : index
    %84 = tpu.strided_load %arg11[%c421, %c0_58] {strides = array<i32: 2, 1>} : memref<784x128xf32, #tpu.memory_space<vmem>>, vector<14x128xf32>
    %85 = arith.addf %83, %84 : vector<14x128xf32>
    %cst_59 = arith.constant 2.500000e-01 : f32
    %86 = vector.broadcast %cst_59 : f32 to vector<14x128xf32>
    %87 = arith.mulf %86, %85 : vector<14x128xf32>
    %c98 = arith.constant 98 : index
    %c0_60 = arith.constant 0 : index
    %88 = vector.load %arg12[%c98, %c0_60] : memref<232x128xf32, #tpu.memory_space<vmem>>, vector<14x128xf32>
    tpu.vector_store %arg12[%c98, %c0_60], %87 {strides = array<i32>} : memref<232x128xf32, #tpu.memory_space<vmem>>, vector<14x128xf32>,
    %c448 = arith.constant 448 : index
    %c0_61 = arith.constant 0 : index
    %89 = tpu.strided_load %arg11[%c448, %c0_61] {strides = array<i32: 2, 1>} : memref<784x128xf32, #tpu.memory_space<vmem>>, vector<14x128xf32>
    %c449 = arith.constant 449 : index
    %c0_62 = arith.constant 0 : index
    %90 = tpu.strided_load %arg11[%c449, %c0_62] {strides = array<i32: 2, 1>} : memref<784x128xf32, #tpu.memory_space<vmem>>, vector<14x128xf32>
    %91 = arith.addf %89, %90 : vector<14x128xf32>
    %c476 = arith.constant 476 : index
    %c0_63 = arith.constant 0 : index
    %92 = tpu.strided_load %arg11[%c476, %c0_63] {strides = array<i32: 2, 1>} : memref<784x128xf32, #tpu.memory_space<vmem>>, vector<14x128xf32>
    %93 = arith.addf %91, %92 : vector<14x128xf32>
    %c477 = arith.constant 477 : index
    %c0_64 = arith.constant 0 : index
    %94 = tpu.strided_load %arg11[%c477, %c0_64] {strides = array<i32: 2, 1>} : memref<784x128xf32, #tpu.memory_space<vmem>>, vector<14x128xf32>
    %95 = arith.addf %93, %94 : vector<14x128xf32>
    %cst_65 = arith.constant 2.500000e-01 : f32
    %96 = vector.broadcast %cst_65 : f32 to vector<14x128xf32>
    %97 = arith.mulf %96, %95 : vector<14x128xf32>
    %c112_66 = arith.constant 112 : index
    %c0_67 = arith.constant 0 : index
    %98 = vector.load %arg12[%c112_66, %c0_67] : memref<232x128xf32, #tpu.memory_space<vmem>>, vector<14x128xf32>
    tpu.vector_store %arg12[%c112_66, %c0_67], %97 {strides = array<i32>} : memref<232x128xf32, #tpu.memory_space<vmem>>, vector<14x128xf32>,
    %c504 = arith.constant 504 : index
    %c0_68 = arith.constant 0 : index
    %99 = tpu.strided_load %arg11[%c504, %c0_68] {strides = array<i32: 2, 1>} : memref<784x128xf32, #tpu.memory_space<vmem>>, vector<14x128xf32>
    %c505 = arith.constant 505 : index
    %c0_69 = arith.constant 0 : index
    %100 = tpu.strided_load %arg11[%c505, %c0_69] {strides = array<i32: 2, 1>} : memref<784x128xf32, #tpu.memory_space<vmem>>, vector<14x128xf32>
    %101 = arith.addf %99, %100 : vector<14x128xf32>
    %c532 = arith.constant 532 : index
    %c0_70 = arith.constant 0 : index
    %102 = tpu.strided_load %arg11[%c532, %c0_70] {strides = array<i32: 2, 1>} : memref<784x128xf32, #tpu.memory_space<vmem>>, vector<14x128xf32>
    %103 = arith.addf %101, %102 : vector<14x128xf32>
    %c533 = arith.constant 533 : index
    %c0_71 = arith.constant 0 : index
    %104 = tpu.strided_load %arg11[%c533, %c0_71] {strides = array<i32: 2, 1>} : memref<784x128xf32, #tpu.memory_space<vmem>>, vector<14x128xf32>
    %105 = arith.addf %103, %104 : vector<14x128xf32>
    %cst_72 = arith.constant 2.500000e-01 : f32
    %106 = vector.broadcast %cst_72 : f32 to vector<14x128xf32>
    %107 = arith.mulf %106, %105 : vector<14x128xf32>
    %c126 = arith.constant 126 : index
    %c0_73 = arith.constant 0 : index
    %108 = vector.load %arg12[%c126, %c0_73] : memref<232x128xf32, #tpu.memory_space<vmem>>, vector<14x128xf32>
    tpu.vector_store %arg12[%c126, %c0_73], %107 {strides = array<i32>} : memref<232x128xf32, #tpu.memory_space<vmem>>, vector<14x128xf32>,
    %c560 = arith.constant 560 : index
    %c0_74 = arith.constant 0 : index
    %109 = tpu.strided_load %arg11[%c560, %c0_74] {strides = array<i32: 2, 1>} : memref<784x128xf32, #tpu.memory_space<vmem>>, vector<14x128xf32>
    %c561 = arith.constant 561 : index
    %c0_75 = arith.constant 0 : index
    %110 = tpu.strided_load %arg11[%c561, %c0_75] {strides = array<i32: 2, 1>} : memref<784x128xf32, #tpu.memory_space<vmem>>, vector<14x128xf32>
    %111 = arith.addf %109, %110 : vector<14x128xf32>
    %c588 = arith.constant 588 : index
    %c0_76 = arith.constant 0 : index
    %112 = tpu.strided_load %arg11[%c588, %c0_76] {strides = array<i32: 2, 1>} : memref<784x128xf32, #tpu.memory_space<vmem>>, vector<14x128xf32>
    %113 = arith.addf %111, %112 : vector<14x128xf32>
    %c589 = arith.constant 589 : index
    %c0_77 = arith.constant 0 : index
    %114 = tpu.strided_load %arg11[%c589, %c0_77] {strides = array<i32: 2, 1>} : memref<784x128xf32, #tpu.memory_space<vmem>>, vector<14x128xf32>
    %115 = arith.addf %113, %114 : vector<14x128xf32>
    %cst_78 = arith.constant 2.500000e-01 : f32
    %116 = vector.broadcast %cst_78 : f32 to vector<14x128xf32>
    %117 = arith.mulf %116, %115 : vector<14x128xf32>
    %c140_79 = arith.constant 140 : index
    %c0_80 = arith.constant 0 : index
    %118 = vector.load %arg12[%c140_79, %c0_80] : memref<232x128xf32, #tpu.memory_space<vmem>>, vector<14x128xf32>
    tpu.vector_store %arg12[%c140_79, %c0_80], %117 {strides = array<i32>} : memref<232x128xf32, #tpu.memory_space<vmem>>, vector<14x128xf32>,
    %c616 = arith.constant 616 : index
    %c0_81 = arith.constant 0 : index
    %119 = tpu.strided_load %arg11[%c616, %c0_81] {strides = array<i32: 2, 1>} : memref<784x128xf32, #tpu.memory_space<vmem>>, vector<14x128xf32>
    %c617 = arith.constant 617 : index
    %c0_82 = arith.constant 0 : index
    %120 = tpu.strided_load %arg11[%c617, %c0_82] {strides = array<i32: 2, 1>} : memref<784x128xf32, #tpu.memory_space<vmem>>, vector<14x128xf32>
    %121 = arith.addf %119, %120 : vector<14x128xf32>
    %c644 = arith.constant 644 : index
    %c0_83 = arith.constant 0 : index
    %122 = tpu.strided_load %arg11[%c644, %c0_83] {strides = array<i32: 2, 1>} : memref<784x128xf32, #tpu.memory_space<vmem>>, vector<14x128xf32>
    %123 = arith.addf %121, %122 : vector<14x128xf32>
    %c645 = arith.constant 645 : index
    %c0_84 = arith.constant 0 : index
    %124 = tpu.strided_load %arg11[%c645, %c0_84] {strides = array<i32: 2, 1>} : memref<784x128xf32, #tpu.memory_space<vmem>>, vector<14x128xf32>
    %125 = arith.addf %123, %124 : vector<14x128xf32>
    %cst_85 = arith.constant 2.500000e-01 : f32
    %126 = vector.broadcast %cst_85 : f32 to vector<14x128xf32>
    %127 = arith.mulf %126, %125 : vector<14x128xf32>
    %c154 = arith.constant 154 : index
    %c0_86 = arith.constant 0 : index
    %128 = vector.load %arg12[%c154, %c0_86] : memref<232x128xf32, #tpu.memory_space<vmem>>, vector<14x128xf32>
    tpu.vector_store %arg12[%c154, %c0_86], %127 {strides = array<i32>} : memref<232x128xf32, #tpu.memory_space<vmem>>, vector<14x128xf32>,
    %c672 = arith.constant 672 : index
    %c0_87 = arith.constant 0 : index
    %129 = tpu.strided_load %arg11[%c672, %c0_87] {strides = array<i32: 2, 1>} : memref<784x128xf32, #tpu.memory_space<vmem>>, vector<14x128xf32>
    %c673 = arith.constant 673 : index
    %c0_88 = arith.constant 0 : index
    %130 = tpu.strided_load %arg11[%c673, %c0_88] {strides = array<i32: 2, 1>} : memref<784x128xf32, #tpu.memory_space<vmem>>, vector<14x128xf32>
    %131 = arith.addf %129, %130 : vector<14x128xf32>
    %c700 = arith.constant 700 : index
    %c0_89 = arith.constant 0 : index
    %132 = tpu.strided_load %arg11[%c700, %c0_89] {strides = array<i32: 2, 1>} : memref<784x128xf32, #tpu.memory_space<vmem>>, vector<14x128xf32>
    %133 = arith.addf %131, %132 : vector<14x128xf32>
    %c701 = arith.constant 701 : index
    %c0_90 = arith.constant 0 : index
    %134 = tpu.strided_load %arg11[%c701, %c0_90] {strides = array<i32: 2, 1>} : memref<784x128xf32, #tpu.memory_space<vmem>>, vector<14x128xf32>
    %135 = arith.addf %133, %134 : vector<14x128xf32>
    %cst_91 = arith.constant 2.500000e-01 : f32
    %136 = vector.broadcast %cst_91 : f32 to vector<14x128xf32>
    %137 = arith.mulf %136, %135 : vector<14x128xf32>
    %c168_92 = arith.constant 168 : index
    %c0_93 = arith.constant 0 : index
    %138 = vector.load %arg12[%c168_92, %c0_93] : memref<232x128xf32, #tpu.memory_space<vmem>>, vector<14x128xf32>
    tpu.vector_store %arg12[%c168_92, %c0_93], %137 {strides = array<i32>} : memref<232x128xf32, #tpu.memory_space<vmem>>, vector<14x128xf32>,
    %c728 = arith.constant 728 : index
    %c0_94 = arith.constant 0 : index
    %139 = tpu.strided_load %arg11[%c728, %c0_94] {strides = array<i32: 2, 1>} : memref<784x128xf32, #tpu.memory_space<vmem>>, vector<14x128xf32>
    %c729 = arith.constant 729 : index
    %c0_95 = arith.constant 0 : index
    %140 = tpu.strided_load %arg11[%c729, %c0_95] {strides = array<i32: 2, 1>} : memref<784x128xf32, #tpu.memory_space<vmem>>, vector<14x128xf32>
    %141 = arith.addf %139, %140 : vector<14x128xf32>
    %c756 = arith.constant 756 : index
    %c0_96 = arith.constant 0 : index
    %142 = tpu.strided_load %arg11[%c756, %c0_96] {strides = array<i32: 2, 1>} : memref<784x128xf32, #tpu.memory_space<vmem>>, vector<14x128xf32>
    %143 = arith.addf %141, %142 : vector<14x128xf32>
    %c757 = arith.constant 757 : index
    %c0_97 = arith.constant 0 : index
    %144 = tpu.strided_load %arg11[%c757, %c0_97] {strides = array<i32: 2, 1>} : memref<784x128xf32, #tpu.memory_space<vmem>>, vector<14x128xf32>
    %145 = arith.addf %143, %144 : vector<14x128xf32>
    %cst_98 = arith.constant 2.500000e-01 : f32
    %146 = vector.broadcast %cst_98 : f32 to vector<14x128xf32>
    %147 = arith.mulf %146, %145 : vector<14x128xf32>
    %c182 = arith.constant 182 : index
    %c0_99 = arith.constant 0 : index
    %148 = vector.load %arg12[%c182, %c0_99] : memref<232x128xf32, #tpu.memory_space<vmem>>, vector<14x128xf32>
    tpu.vector_store %arg12[%c182, %c0_99], %147 {strides = array<i32>} : memref<232x128xf32, #tpu.memory_space<vmem>>, vector<14x128xf32>,
    %cst_100 = arith.constant 0.000000e+00 : f32
    %149 = vector.broadcast %cst_100 : f32 to vector<36x128xf32>
    %c196_101 = arith.constant 196 : index
    %c0_102 = arith.constant 0 : index
    %150 = vector.load %arg12[%c196_101, %c0_102] : memref<232x128xf32, #tpu.memory_space<vmem>>, vector<36x128xf32>
    tpu.vector_store %arg12[%c196_101, %c0_102], %149 {strides = array<i32>} : memref<232x128xf32, #tpu.memory_space<vmem>>, vector<36x128xf32>,
    %c0_103 = arith.constant 0 : index
    %c0_104 = arith.constant 0 : index
    %151 = vector.load %arg12[%c0_103, %c0_104] : memref<232x128xf32, #tpu.memory_space<vmem>>, vector<196x128xf32>
    %c0_105 = arith.constant 0 : index
    %c0_106 = arith.constant 0 : index
    %c0_107 = arith.constant 0 : index
    %152 = vector.load %arg4[%c0_105, %c0_106, %c0_107] : memref<9x128x128xf32, #tpu.memory_space<vmem>>, vector<1x128x128xf32>
    %153 = vector.shape_cast %152 : vector<1x128x128xf32> to vector<128x128xf32>
    %cst_108 = arith.constant dense<0.000000e+00> : vector<196x128xf32>
    %154 = tpu.matmul %151, %153, %cst_108 {dimension_numbers = #tpu.dot_dimension_numbers<[1], [0], [0], [1], [0, 0, 1, 1], [], []>} : vector<196x128xf32>, vector<128x128xf32>, vector<196x128xf32> -> vector<196x128xf32>
    %c0_109 = arith.constant 0 : index
    %c0_110 = arith.constant 0 : index
    %155 = vector.load %arg13[%c0_109, %c0_110] : memref<196x128xf32, #tpu.memory_space<vmem>>, vector<196x128xf32>
    tpu.vector_store %arg13[%c0_109, %c0_110], %154 {strides = array<i32>} : memref<196x128xf32, #tpu.memory_space<vmem>>, vector<196x128xf32>,
    %c1_111 = arith.constant 1 : index
    %c0_112 = arith.constant 0 : index
    %156 = vector.load %arg12[%c1_111, %c0_112] : memref<232x128xf32, #tpu.memory_space<vmem>>, vector<196x128xf32>
    %c1_113 = arith.constant 1 : index
    %c0_114 = arith.constant 0 : index
    %c0_115 = arith.constant 0 : index
    %157 = vector.load %arg4[%c1_113, %c0_114, %c0_115] : memref<9x128x128xf32, #tpu.memory_space<vmem>>, vector<1x128x128xf32>
    %158 = vector.shape_cast %157 : vector<1x128x128xf32> to vector<128x128xf32>
    %cst_116 = arith.constant dense<0.000000e+00> : vector<196x128xf32>
    %159 = tpu.matmul %156, %158, %cst_116 {dimension_numbers = #tpu.dot_dimension_numbers<[1], [0], [0], [1], [0, 0, 1, 1], [], []>} : vector<196x128xf32>, vector<128x128xf32>, vector<196x128xf32> -> vector<196x128xf32>
    %c0_117 = arith.constant 0 : index
    %c0_118 = arith.constant 0 : index
    %160 = vector.load %arg13[%c0_117, %c0_118] : memref<196x128xf32, #tpu.memory_space<vmem>>, vector<196x128xf32>
    %161 = arith.addf %160, %159 : vector<196x128xf32>
    %c0_119 = arith.constant 0 : index
    %c0_120 = arith.constant 0 : index
    %162 = vector.load %arg13[%c0_119, %c0_120] : memref<196x128xf32, #tpu.memory_space<vmem>>, vector<196x128xf32>
    tpu.vector_store %arg13[%c0_119, %c0_120], %161 {strides = array<i32>} : memref<196x128xf32, #tpu.memory_space<vmem>>, vector<196x128xf32>,
    %c2 = arith.constant 2 : index
    %c0_121 = arith.constant 0 : index
    %163 = vector.load %arg12[%c2, %c0_121] : memref<232x128xf32, #tpu.memory_space<vmem>>, vector<196x128xf32>
    %c2_122 = arith.constant 2 : index
    %c0_123 = arith.constant 0 : index
    %c0_124 = arith.constant 0 : index
    %164 = vector.load %arg4[%c2_122, %c0_123, %c0_124] : memref<9x128x128xf32, #tpu.memory_space<vmem>>, vector<1x128x128xf32>
    %165 = vector.shape_cast %164 : vector<1x128x128xf32> to vector<128x128xf32>
    %cst_125 = arith.constant dense<0.000000e+00> : vector<196x128xf32>
    %166 = tpu.matmul %163, %165, %cst_125 {dimension_numbers = #tpu.dot_dimension_numbers<[1], [0], [0], [1], [0, 0, 1, 1], [], []>} : vector<196x128xf32>, vector<128x128xf32>, vector<196x128xf32> -> vector<196x128xf32>
    %c0_126 = arith.constant 0 : index
    %c0_127 = arith.constant 0 : index
    %167 = vector.load %arg13[%c0_126, %c0_127] : memref<196x128xf32, #tpu.memory_space<vmem>>, vector<196x128xf32>
    %168 = arith.addf %167, %166 : vector<196x128xf32>
    %c0_128 = arith.constant 0 : index
    %c0_129 = arith.constant 0 : index
    %169 = vector.load %arg13[%c0_128, %c0_129] : memref<196x128xf32, #tpu.memory_space<vmem>>, vector<196x128xf32>
    tpu.vector_store %arg13[%c0_128, %c0_129], %168 {strides = array<i32>} : memref<196x128xf32, #tpu.memory_space<vmem>>, vector<196x128xf32>,
    %c14_130 = arith.constant 14 : index
    %c0_131 = arith.constant 0 : index
    %170 = vector.load %arg12[%c14_130, %c0_131] : memref<232x128xf32, #tpu.memory_space<vmem>>, vector<196x128xf32>
    %c3 = arith.constant 3 : index
    %c0_132 = arith.constant 0 : index
    %c0_133 = arith.constant 0 : index
    %171 = vector.load %arg4[%c3, %c0_132, %c0_133] : memref<9x128x128xf32, #tpu.memory_space<vmem>>, vector<1x128x128xf32>
    %172 = vector.shape_cast %171 : vector<1x128x128xf32> to vector<128x128xf32>
    %cst_134 = arith.constant dense<0.000000e+00> : vector<196x128xf32>
    %173 = tpu.matmul %170, %172, %cst_134 {dimension_numbers = #tpu.dot_dimension_numbers<[1], [0], [0], [1], [0, 0, 1, 1], [], []>} : vector<196x128xf32>, vector<128x128xf32>, vector<196x128xf32> -> vector<196x128xf32>
    %c0_135 = arith.constant 0 : index
    %c0_136 = arith.constant 0 : index
    %174 = vector.load %arg13[%c0_135, %c0_136] : memref<196x128xf32, #tpu.memory_space<vmem>>, vector<196x128xf32>
    %175 = arith.addf %174, %173 : vector<196x128xf32>
    %c0_137 = arith.constant 0 : index
    %c0_138 = arith.constant 0 : index
    %176 = vector.load %arg13[%c0_137, %c0_138] : memref<196x128xf32, #tpu.memory_space<vmem>>, vector<196x128xf32>
    tpu.vector_store %arg13[%c0_137, %c0_138], %175 {strides = array<i32>} : memref<196x128xf32, #tpu.memory_space<vmem>>, vector<196x128xf32>,
    %c15 = arith.constant 15 : index
    %c0_139 = arith.constant 0 : index
    %177 = vector.load %arg12[%c15, %c0_139] : memref<232x128xf32, #tpu.memory_space<vmem>>, vector<196x128xf32>
    %c4 = arith.constant 4 : index
    %c0_140 = arith.constant 0 : index
    %c0_141 = arith.constant 0 : index
    %178 = vector.load %arg4[%c4, %c0_140, %c0_141] : memref<9x128x128xf32, #tpu.memory_space<vmem>>, vector<1x128x128xf32>
    %179 = vector.shape_cast %178 : vector<1x128x128xf32> to vector<128x128xf32>
    %cst_142 = arith.constant dense<0.000000e+00> : vector<196x128xf32>
    %180 = tpu.matmul %177, %179, %cst_142 {dimension_numbers = #tpu.dot_dimension_numbers<[1], [0], [0], [1], [0, 0, 1, 1], [], []>} : vector<196x128xf32>, vector<128x128xf32>, vector<196x128xf32> -> vector<196x128xf32>
    %c0_143 = arith.constant 0 : index
    %c0_144 = arith.constant 0 : index
    %181 = vector.load %arg13[%c0_143, %c0_144] : memref<196x128xf32, #tpu.memory_space<vmem>>, vector<196x128xf32>
    %182 = arith.addf %181, %180 : vector<196x128xf32>
    %c0_145 = arith.constant 0 : index
    %c0_146 = arith.constant 0 : index
    %183 = vector.load %arg13[%c0_145, %c0_146] : memref<196x128xf32, #tpu.memory_space<vmem>>, vector<196x128xf32>
    tpu.vector_store %arg13[%c0_145, %c0_146], %182 {strides = array<i32>} : memref<196x128xf32, #tpu.memory_space<vmem>>, vector<196x128xf32>,
    %c16 = arith.constant 16 : index
    %c0_147 = arith.constant 0 : index
    %184 = vector.load %arg12[%c16, %c0_147] : memref<232x128xf32, #tpu.memory_space<vmem>>, vector<196x128xf32>
    %c5 = arith.constant 5 : index
    %c0_148 = arith.constant 0 : index
    %c0_149 = arith.constant 0 : index
    %185 = vector.load %arg4[%c5, %c0_148, %c0_149] : memref<9x128x128xf32, #tpu.memory_space<vmem>>, vector<1x128x128xf32>
    %186 = vector.shape_cast %185 : vector<1x128x128xf32> to vector<128x128xf32>
    %cst_150 = arith.constant dense<0.000000e+00> : vector<196x128xf32>
    %187 = tpu.matmul %184, %186, %cst_150 {dimension_numbers = #tpu.dot_dimension_numbers<[1], [0], [0], [1], [0, 0, 1, 1], [], []>} : vector<196x128xf32>, vector<128x128xf32>, vector<196x128xf32> -> vector<196x128xf32>
    %c0_151 = arith.constant 0 : index
    %c0_152 = arith.constant 0 : index
    %188 = vector.load %arg13[%c0_151, %c0_152] : memref<196x128xf32, #tpu.memory_space<vmem>>, vector<196x128xf32>
    %189 = arith.addf %188, %187 : vector<196x128xf32>
    %c0_153 = arith.constant 0 : index
    %c0_154 = arith.constant 0 : index
    %190 = vector.load %arg13[%c0_153, %c0_154] : memref<196x128xf32, #tpu.memory_space<vmem>>, vector<196x128xf32>
    tpu.vector_store %arg13[%c0_153, %c0_154], %189 {strides = array<i32>} : memref<196x128xf32, #tpu.memory_space<vmem>>, vector<196x128xf32>,
    %c28_155 = arith.constant 28 : index
    %c0_156 = arith.constant 0 : index
    %191 = vector.load %arg12[%c28_155, %c0_156] : memref<232x128xf32, #tpu.memory_space<vmem>>, vector<196x128xf32>
    %c6 = arith.constant 6 : index
    %c0_157 = arith.constant 0 : index
    %c0_158 = arith.constant 0 : index
    %192 = vector.load %arg4[%c6, %c0_157, %c0_158] : memref<9x128x128xf32, #tpu.memory_space<vmem>>, vector<1x128x128xf32>
    %193 = vector.shape_cast %192 : vector<1x128x128xf32> to vector<128x128xf32>
    %cst_159 = arith.constant dense<0.000000e+00> : vector<196x128xf32>
    %194 = tpu.matmul %191, %193, %cst_159 {dimension_numbers = #tpu.dot_dimension_numbers<[1], [0], [0], [1], [0, 0, 1, 1], [], []>} : vector<196x128xf32>, vector<128x128xf32>, vector<196x128xf32> -> vector<196x128xf32>
    %c0_160 = arith.constant 0 : index
    %c0_161 = arith.constant 0 : index
    %195 = vector.load %arg13[%c0_160, %c0_161] : memref<196x128xf32, #tpu.memory_space<vmem>>, vector<196x128xf32>
    %196 = arith.addf %195, %194 : vector<196x128xf32>
    %c0_162 = arith.constant 0 : index
    %c0_163 = arith.constant 0 : index
    %197 = vector.load %arg13[%c0_162, %c0_163] : memref<196x128xf32, #tpu.memory_space<vmem>>, vector<196x128xf32>
    tpu.vector_store %arg13[%c0_162, %c0_163], %196 {strides = array<i32>} : memref<196x128xf32, #tpu.memory_space<vmem>>, vector<196x128xf32>,
    %c29_164 = arith.constant 29 : index
    %c0_165 = arith.constant 0 : index
    %198 = vector.load %arg12[%c29_164, %c0_165] : memref<232x128xf32, #tpu.memory_space<vmem>>, vector<196x128xf32>
    %c7 = arith.constant 7 : index
    %c0_166 = arith.constant 0 : index
    %c0_167 = arith.constant 0 : index
    %199 = vector.load %arg4[%c7, %c0_166, %c0_167] : memref<9x128x128xf32, #tpu.memory_space<vmem>>, vector<1x128x128xf32>
    %200 = vector.shape_cast %199 : vector<1x128x128xf32> to vector<128x128xf32>
    %cst_168 = arith.constant dense<0.000000e+00> : vector<196x128xf32>
    %201 = tpu.matmul %198, %200, %cst_168 {dimension_numbers = #tpu.dot_dimension_numbers<[1], [0], [0], [1], [0, 0, 1, 1], [], []>} : vector<196x128xf32>, vector<128x128xf32>, vector<196x128xf32> -> vector<196x128xf32>
    %c0_169 = arith.constant 0 : index
    %c0_170 = arith.constant 0 : index
    %202 = vector.load %arg13[%c0_169, %c0_170] : memref<196x128xf32, #tpu.memory_space<vmem>>, vector<196x128xf32>
    %203 = arith.addf %202, %201 : vector<196x128xf32>
    %c0_171 = arith.constant 0 : index
    %c0_172 = arith.constant 0 : index
    %204 = vector.load %arg13[%c0_171, %c0_172] : memref<196x128xf32, #tpu.memory_space<vmem>>, vector<196x128xf32>
    tpu.vector_store %arg13[%c0_171, %c0_172], %203 {strides = array<i32>} : memref<196x128xf32, #tpu.memory_space<vmem>>, vector<196x128xf32>,
    %c30 = arith.constant 30 : index
    %c0_173 = arith.constant 0 : index
    %205 = vector.load %arg12[%c30, %c0_173] : memref<232x128xf32, #tpu.memory_space<vmem>>, vector<196x128xf32>
    %c8 = arith.constant 8 : index
    %c0_174 = arith.constant 0 : index
    %c0_175 = arith.constant 0 : index
    %206 = vector.load %arg4[%c8, %c0_174, %c0_175] : memref<9x128x128xf32, #tpu.memory_space<vmem>>, vector<1x128x128xf32>
    %207 = vector.shape_cast %206 : vector<1x128x128xf32> to vector<128x128xf32>
    %cst_176 = arith.constant dense<0.000000e+00> : vector<196x128xf32>
    %208 = tpu.matmul %205, %207, %cst_176 {dimension_numbers = #tpu.dot_dimension_numbers<[1], [0], [0], [1], [0, 0, 1, 1], [], []>} : vector<196x128xf32>, vector<128x128xf32>, vector<196x128xf32> -> vector<196x128xf32>
    %c0_177 = arith.constant 0 : index
    %c0_178 = arith.constant 0 : index
    %209 = vector.load %arg13[%c0_177, %c0_178] : memref<196x128xf32, #tpu.memory_space<vmem>>, vector<196x128xf32>
    %210 = arith.addf %209, %208 : vector<196x128xf32>
    %c0_179 = arith.constant 0 : index
    %c0_180 = arith.constant 0 : index
    %211 = vector.load %arg13[%c0_179, %c0_180] : memref<196x128xf32, #tpu.memory_space<vmem>>, vector<196x128xf32>
    tpu.vector_store %arg13[%c0_179, %c0_180], %210 {strides = array<i32>} : memref<196x128xf32, #tpu.memory_space<vmem>>, vector<196x128xf32>,
    %c0_181 = arith.constant 0 : index
    %c0_182 = arith.constant 0 : index
    %212 = vector.load %arg13[%c0_181, %c0_182] : memref<196x128xf32, #tpu.memory_space<vmem>>, vector<196x128xf32>
    %c0_183 = arith.constant 0 : index
    %c0_184 = arith.constant 0 : index
    %213 = vector.load %arg5[%c0_183, %c0_184] : memref<1x128xf32, #tpu.memory_space<vmem>>, vector<1x128xf32>
    %214 = vector.broadcast %213 : vector<1x128xf32> to vector<196x128xf32>
    %215 = arith.addf %212, %214 : vector<196x128xf32>
    %cst_185 = arith.constant 0.000000e+00 : f32
    %216 = vector.broadcast %cst_185 : f32 to vector<196x128xf32>
    %217 = arith.maximumf %215, %216 : vector<196x128xf32>
    %c0_186 = arith.constant 0 : index
    %c0_187 = arith.constant 0 : index
    %218 = vector.load %arg13[%c0_186, %c0_187] : memref<196x128xf32, #tpu.memory_space<vmem>>, vector<196x128xf32>
    tpu.vector_store %arg13[%c0_186, %c0_187], %217 {strides = array<i32>} : memref<196x128xf32, #tpu.memory_space<vmem>>, vector<196x128xf32>,
    %cst_188 = arith.constant 0.000000e+00 : f32
    %219 = vector.broadcast %cst_188 : f32 to vector<88x128xf32>
    %c0_189 = arith.constant 0 : index
    %c0_190 = arith.constant 0 : index
    %220 = vector.load %arg14[%c0_189, %c0_190] : memref<88x128xf32, #tpu.memory_space<vmem>>, vector<88x128xf32>
    tpu.vector_store %arg14[%c0_189, %c0_190], %219 {strides = array<i32>} : memref<88x128xf32, #tpu.memory_space<vmem>>, vector<88x128xf32>,
    %c0_191 = arith.constant 0 : index
    %c0_192 = arith.constant 0 : index
    %221 = tpu.strided_load %arg13[%c0_191, %c0_192] {strides = array<i32: 2, 1>} : memref<196x128xf32, #tpu.memory_space<vmem>>, vector<6x128xf32>
    %c1_193 = arith.constant 1 : index
    %c0_194 = arith.constant 0 : index
    %222 = tpu.strided_load %arg13[%c1_193, %c0_194] {strides = array<i32: 2, 1>} : memref<196x128xf32, #tpu.memory_space<vmem>>, vector<6x128xf32>
    %223 = arith.addf %221, %222 : vector<6x128xf32>
    %c14_195 = arith.constant 14 : index
    %c0_196 = arith.constant 0 : index
    %224 = tpu.strided_load %arg13[%c14_195, %c0_196] {strides = array<i32: 2, 1>} : memref<196x128xf32, #tpu.memory_space<vmem>>, vector<6x128xf32>
    %225 = arith.addf %223, %224 : vector<6x128xf32>
    %c15_197 = arith.constant 15 : index
    %c0_198 = arith.constant 0 : index
    %226 = tpu.strided_load %arg13[%c15_197, %c0_198] {strides = array<i32: 2, 1>} : memref<196x128xf32, #tpu.memory_space<vmem>>, vector<6x128xf32>
    %227 = arith.addf %225, %226 : vector<6x128xf32>
    %cst_199 = arith.constant 2.500000e-01 : f32
    %228 = vector.broadcast %cst_199 : f32 to vector<6x128xf32>
    %229 = arith.mulf %228, %227 : vector<6x128xf32>
    %c9 = arith.constant 9 : index
    %c0_200 = arith.constant 0 : index
    %230 = vector.load %arg14[%c9, %c0_200] : memref<88x128xf32, #tpu.memory_space<vmem>>, vector<6x128xf32>
    tpu.vector_store %arg14[%c9, %c0_200], %229 {strides = array<i32>} : memref<88x128xf32, #tpu.memory_space<vmem>>, vector<6x128xf32>,
    %c28_201 = arith.constant 28 : index
    %c0_202 = arith.constant 0 : index
    %231 = tpu.strided_load %arg13[%c28_201, %c0_202] {strides = array<i32: 2, 1>} : memref<196x128xf32, #tpu.memory_space<vmem>>, vector<6x128xf32>
    %c29_203 = arith.constant 29 : index
    %c0_204 = arith.constant 0 : index
    %232 = tpu.strided_load %arg13[%c29_203, %c0_204] {strides = array<i32: 2, 1>} : memref<196x128xf32, #tpu.memory_space<vmem>>, vector<6x128xf32>
    %233 = arith.addf %231, %232 : vector<6x128xf32>
    %c42_205 = arith.constant 42 : index
    %c0_206 = arith.constant 0 : index
    %234 = tpu.strided_load %arg13[%c42_205, %c0_206] {strides = array<i32: 2, 1>} : memref<196x128xf32, #tpu.memory_space<vmem>>, vector<6x128xf32>
    %235 = arith.addf %233, %234 : vector<6x128xf32>
    %c43 = arith.constant 43 : index
    %c0_207 = arith.constant 0 : index
    %236 = tpu.strided_load %arg13[%c43, %c0_207] {strides = array<i32: 2, 1>} : memref<196x128xf32, #tpu.memory_space<vmem>>, vector<6x128xf32>
    %237 = arith.addf %235, %236 : vector<6x128xf32>
    %cst_208 = arith.constant 2.500000e-01 : f32
    %238 = vector.broadcast %cst_208 : f32 to vector<6x128xf32>
    %239 = arith.mulf %238, %237 : vector<6x128xf32>
    %c17 = arith.constant 17 : index
    %c0_209 = arith.constant 0 : index
    %240 = vector.load %arg14[%c17, %c0_209] : memref<88x128xf32, #tpu.memory_space<vmem>>, vector<6x128xf32>
    tpu.vector_store %arg14[%c17, %c0_209], %239 {strides = array<i32>} : memref<88x128xf32, #tpu.memory_space<vmem>>, vector<6x128xf32>,
    %c56_210 = arith.constant 56 : index
    %c0_211 = arith.constant 0 : index
    %241 = tpu.strided_load %arg13[%c56_210, %c0_211] {strides = array<i32: 2, 1>} : memref<196x128xf32, #tpu.memory_space<vmem>>, vector<6x128xf32>
    %c57_212 = arith.constant 57 : index
    %c0_213 = arith.constant 0 : index
    %242 = tpu.strided_load %arg13[%c57_212, %c0_213] {strides = array<i32: 2, 1>} : memref<196x128xf32, #tpu.memory_space<vmem>>, vector<6x128xf32>
    %243 = arith.addf %241, %242 : vector<6x128xf32>
    %c70_214 = arith.constant 70 : index
    %c0_215 = arith.constant 0 : index
    %244 = tpu.strided_load %arg13[%c70_214, %c0_215] {strides = array<i32: 2, 1>} : memref<196x128xf32, #tpu.memory_space<vmem>>, vector<6x128xf32>
    %245 = arith.addf %243, %244 : vector<6x128xf32>
    %c71 = arith.constant 71 : index
    %c0_216 = arith.constant 0 : index
    %246 = tpu.strided_load %arg13[%c71, %c0_216] {strides = array<i32: 2, 1>} : memref<196x128xf32, #tpu.memory_space<vmem>>, vector<6x128xf32>
    %247 = arith.addf %245, %246 : vector<6x128xf32>
    %cst_217 = arith.constant 2.500000e-01 : f32
    %248 = vector.broadcast %cst_217 : f32 to vector<6x128xf32>
    %249 = arith.mulf %248, %247 : vector<6x128xf32>
    %c25 = arith.constant 25 : index
    %c0_218 = arith.constant 0 : index
    %250 = vector.load %arg14[%c25, %c0_218] : memref<88x128xf32, #tpu.memory_space<vmem>>, vector<6x128xf32>
    tpu.vector_store %arg14[%c25, %c0_218], %249 {strides = array<i32>} : memref<88x128xf32, #tpu.memory_space<vmem>>, vector<6x128xf32>,
    %c84_219 = arith.constant 84 : index
    %c0_220 = arith.constant 0 : index
    %251 = tpu.strided_load %arg13[%c84_219, %c0_220] {strides = array<i32: 2, 1>} : memref<196x128xf32, #tpu.memory_space<vmem>>, vector<6x128xf32>
    %c85_221 = arith.constant 85 : index
    %c0_222 = arith.constant 0 : index
    %252 = tpu.strided_load %arg13[%c85_221, %c0_222] {strides = array<i32: 2, 1>} : memref<196x128xf32, #tpu.memory_space<vmem>>, vector<6x128xf32>
    %253 = arith.addf %251, %252 : vector<6x128xf32>
    %c98_223 = arith.constant 98 : index
    %c0_224 = arith.constant 0 : index
    %254 = tpu.strided_load %arg13[%c98_223, %c0_224] {strides = array<i32: 2, 1>} : memref<196x128xf32, #tpu.memory_space<vmem>>, vector<6x128xf32>
    %255 = arith.addf %253, %254 : vector<6x128xf32>
    %c99 = arith.constant 99 : index
    %c0_225 = arith.constant 0 : index
    %256 = tpu.strided_load %arg13[%c99, %c0_225] {strides = array<i32: 2, 1>} : memref<196x128xf32, #tpu.memory_space<vmem>>, vector<6x128xf32>
    %257 = arith.addf %255, %256 : vector<6x128xf32>
    %cst_226 = arith.constant 2.500000e-01 : f32
    %258 = vector.broadcast %cst_226 : f32 to vector<6x128xf32>
    %259 = arith.mulf %258, %257 : vector<6x128xf32>
    %c33 = arith.constant 33 : index
    %c0_227 = arith.constant 0 : index
    %260 = vector.load %arg14[%c33, %c0_227] : memref<88x128xf32, #tpu.memory_space<vmem>>, vector<6x128xf32>
    tpu.vector_store %arg14[%c33, %c0_227], %259 {strides = array<i32>} : memref<88x128xf32, #tpu.memory_space<vmem>>, vector<6x128xf32>,
    %c112_228 = arith.constant 112 : index
    %c0_229 = arith.constant 0 : index
    %261 = tpu.strided_load %arg13[%c112_228, %c0_229] {strides = array<i32: 2, 1>} : memref<196x128xf32, #tpu.memory_space<vmem>>, vector<6x128xf32>
    %c113_230 = arith.constant 113 : index
    %c0_231 = arith.constant 0 : index
    %262 = tpu.strided_load %arg13[%c113_230, %c0_231] {strides = array<i32: 2, 1>} : memref<196x128xf32, #tpu.memory_space<vmem>>, vector<6x128xf32>
    %263 = arith.addf %261, %262 : vector<6x128xf32>
    %c126_232 = arith.constant 126 : index
    %c0_233 = arith.constant 0 : index
    %264 = tpu.strided_load %arg13[%c126_232, %c0_233] {strides = array<i32: 2, 1>} : memref<196x128xf32, #tpu.memory_space<vmem>>, vector<6x128xf32>
    %265 = arith.addf %263, %264 : vector<6x128xf32>
    %c127 = arith.constant 127 : index
    %c0_234 = arith.constant 0 : index
    %266 = tpu.strided_load %arg13[%c127, %c0_234] {strides = array<i32: 2, 1>} : memref<196x128xf32, #tpu.memory_space<vmem>>, vector<6x128xf32>
    %267 = arith.addf %265, %266 : vector<6x128xf32>
    %cst_235 = arith.constant 2.500000e-01 : f32
    %268 = vector.broadcast %cst_235 : f32 to vector<6x128xf32>
    %269 = arith.mulf %268, %267 : vector<6x128xf32>
    %c41 = arith.constant 41 : index
    %c0_236 = arith.constant 0 : index
    %270 = vector.load %arg14[%c41, %c0_236] : memref<88x128xf32, #tpu.memory_space<vmem>>, vector<6x128xf32>
    tpu.vector_store %arg14[%c41, %c0_236], %269 {strides = array<i32>} : memref<88x128xf32, #tpu.memory_space<vmem>>, vector<6x128xf32>,
    %c140_237 = arith.constant 140 : index
    %c0_238 = arith.constant 0 : index
    %271 = tpu.strided_load %arg13[%c140_237, %c0_238] {strides = array<i32: 2, 1>} : memref<196x128xf32, #tpu.memory_space<vmem>>, vector<6x128xf32>
    %c141_239 = arith.constant 141 : index
    %c0_240 = arith.constant 0 : index
    %272 = tpu.strided_load %arg13[%c141_239, %c0_240] {strides = array<i32: 2, 1>} : memref<196x128xf32, #tpu.memory_space<vmem>>, vector<6x128xf32>
    %273 = arith.addf %271, %272 : vector<6x128xf32>
    %c154_241 = arith.constant 154 : index
    %c0_242 = arith.constant 0 : index
    %274 = tpu.strided_load %arg13[%c154_241, %c0_242] {strides = array<i32: 2, 1>} : memref<196x128xf32, #tpu.memory_space<vmem>>, vector<6x128xf32>
    %275 = arith.addf %273, %274 : vector<6x128xf32>
    %c155 = arith.constant 155 : index
    %c0_243 = arith.constant 0 : index
    %276 = tpu.strided_load %arg13[%c155, %c0_243] {strides = array<i32: 2, 1>} : memref<196x128xf32, #tpu.memory_space<vmem>>, vector<6x128xf32>
    %277 = arith.addf %275, %276 : vector<6x128xf32>
    %cst_244 = arith.constant 2.500000e-01 : f32
    %278 = vector.broadcast %cst_244 : f32 to vector<6x128xf32>
    %279 = arith.mulf %278, %277 : vector<6x128xf32>
    %c49 = arith.constant 49 : index
    %c0_245 = arith.constant 0 : index
    %280 = vector.load %arg14[%c49, %c0_245] : memref<88x128xf32, #tpu.memory_space<vmem>>, vector<6x128xf32>
    tpu.vector_store %arg14[%c49, %c0_245], %279 {strides = array<i32>} : memref<88x128xf32, #tpu.memory_space<vmem>>, vector<6x128xf32>,
    %c0_246 = arith.constant 0 : index
    %c0_247 = arith.constant 0 : index
    %281 = vector.load %arg14[%c0_246, %c0_247] : memref<88x128xf32, #tpu.memory_space<vmem>>, vector<64x128xf32>
    %c0_248 = arith.constant 0 : index
    %c0_249 = arith.constant 0 : index
    %c0_250 = arith.constant 0 : index
    %282 = vector.load %arg6[%c0_248, %c0_249, %c0_250] : memref<9x128x128xf32, #tpu.memory_space<vmem>>, vector<1x128x128xf32>
    %283 = vector.shape_cast %282 : vector<1x128x128xf32> to vector<128x128xf32>
    %cst_251 = arith.constant dense<0.000000e+00> : vector<64x128xf32>
    %284 = tpu.matmul %281, %283, %cst_251 {dimension_numbers = #tpu.dot_dimension_numbers<[1], [0], [0], [1], [0, 0, 1, 1], [], []>} : vector<64x128xf32>, vector<128x128xf32>, vector<64x128xf32> -> vector<64x128xf32>
    %c0_252 = arith.constant 0 : index
    %c0_253 = arith.constant 0 : index
    %285 = vector.load %arg15[%c0_252, %c0_253] : memref<64x128xf32, #tpu.memory_space<vmem>>, vector<64x128xf32>
    tpu.vector_store %arg15[%c0_252, %c0_253], %284 {strides = array<i32>} : memref<64x128xf32, #tpu.memory_space<vmem>>, vector<64x128xf32>,
    %c1_254 = arith.constant 1 : index
    %c0_255 = arith.constant 0 : index
    %286 = vector.load %arg14[%c1_254, %c0_255] : memref<88x128xf32, #tpu.memory_space<vmem>>, vector<64x128xf32>
    %c1_256 = arith.constant 1 : index
    %c0_257 = arith.constant 0 : index
    %c0_258 = arith.constant 0 : index
    %287 = vector.load %arg6[%c1_256, %c0_257, %c0_258] : memref<9x128x128xf32, #tpu.memory_space<vmem>>, vector<1x128x128xf32>
    %288 = vector.shape_cast %287 : vector<1x128x128xf32> to vector<128x128xf32>
    %cst_259 = arith.constant dense<0.000000e+00> : vector<64x128xf32>
    %289 = tpu.matmul %286, %288, %cst_259 {dimension_numbers = #tpu.dot_dimension_numbers<[1], [0], [0], [1], [0, 0, 1, 1], [], []>} : vector<64x128xf32>, vector<128x128xf32>, vector<64x128xf32> -> vector<64x128xf32>
    %c0_260 = arith.constant 0 : index
    %c0_261 = arith.constant 0 : index
    %290 = vector.load %arg15[%c0_260, %c0_261] : memref<64x128xf32, #tpu.memory_space<vmem>>, vector<64x128xf32>
    %291 = arith.addf %290, %289 : vector<64x128xf32>
    %c0_262 = arith.constant 0 : index
    %c0_263 = arith.constant 0 : index
    %292 = vector.load %arg15[%c0_262, %c0_263] : memref<64x128xf32, #tpu.memory_space<vmem>>, vector<64x128xf32>
    tpu.vector_store %arg15[%c0_262, %c0_263], %291 {strides = array<i32>} : memref<64x128xf32, #tpu.memory_space<vmem>>, vector<64x128xf32>,
    %c2_264 = arith.constant 2 : index
    %c0_265 = arith.constant 0 : index
    %293 = vector.load %arg14[%c2_264, %c0_265] : memref<88x128xf32, #tpu.memory_space<vmem>>, vector<64x128xf32>
    %c2_266 = arith.constant 2 : index
    %c0_267 = arith.constant 0 : index
    %c0_268 = arith.constant 0 : index
    %294 = vector.load %arg6[%c2_266, %c0_267, %c0_268] : memref<9x128x128xf32, #tpu.memory_space<vmem>>, vector<1x128x128xf32>
    %295 = vector.shape_cast %294 : vector<1x128x128xf32> to vector<128x128xf32>
    %cst_269 = arith.constant dense<0.000000e+00> : vector<64x128xf32>
    %296 = tpu.matmul %293, %295, %cst_269 {dimension_numbers = #tpu.dot_dimension_numbers<[1], [0], [0], [1], [0, 0, 1, 1], [], []>} : vector<64x128xf32>, vector<128x128xf32>, vector<64x128xf32> -> vector<64x128xf32>
    %c0_270 = arith.constant 0 : index
    %c0_271 = arith.constant 0 : index
    %297 = vector.load %arg15[%c0_270, %c0_271] : memref<64x128xf32, #tpu.memory_space<vmem>>, vector<64x128xf32>
    %298 = arith.addf %297, %296 : vector<64x128xf32>
    %c0_272 = arith.constant 0 : index
    %c0_273 = arith.constant 0 : index
    %299 = vector.load %arg15[%c0_272, %c0_273] : memref<64x128xf32, #tpu.memory_space<vmem>>, vector<64x128xf32>
    tpu.vector_store %arg15[%c0_272, %c0_273], %298 {strides = array<i32>} : memref<64x128xf32, #tpu.memory_space<vmem>>, vector<64x128xf32>,
    %c8_274 = arith.constant 8 : index
    %c0_275 = arith.constant 0 : index
    %300 = vector.load %arg14[%c8_274, %c0_275] : memref<88x128xf32, #tpu.memory_space<vmem>>, vector<64x128xf32>
    %c3_276 = arith.constant 3 : index
    %c0_277 = arith.constant 0 : index
    %c0_278 = arith.constant 0 : index
    %301 = vector.load %arg6[%c3_276, %c0_277, %c0_278] : memref<9x128x128xf32, #tpu.memory_space<vmem>>, vector<1x128x128xf32>
    %302 = vector.shape_cast %301 : vector<1x128x128xf32> to vector<128x128xf32>
    %cst_279 = arith.constant dense<0.000000e+00> : vector<64x128xf32>
    %303 = tpu.matmul %300, %302, %cst_279 {dimension_numbers = #tpu.dot_dimension_numbers<[1], [0], [0], [1], [0, 0, 1, 1], [], []>} : vector<64x128xf32>, vector<128x128xf32>, vector<64x128xf32> -> vector<64x128xf32>
    %c0_280 = arith.constant 0 : index
    %c0_281 = arith.constant 0 : index
    %304 = vector.load %arg15[%c0_280, %c0_281] : memref<64x128xf32, #tpu.memory_space<vmem>>, vector<64x128xf32>
    %305 = arith.addf %304, %303 : vector<64x128xf32>
    %c0_282 = arith.constant 0 : index
    %c0_283 = arith.constant 0 : index
    %306 = vector.load %arg15[%c0_282, %c0_283] : memref<64x128xf32, #tpu.memory_space<vmem>>, vector<64x128xf32>
    tpu.vector_store %arg15[%c0_282, %c0_283], %305 {strides = array<i32>} : memref<64x128xf32, #tpu.memory_space<vmem>>, vector<64x128xf32>,
    %c9_284 = arith.constant 9 : index
    %c0_285 = arith.constant 0 : index
    %307 = vector.load %arg14[%c9_284, %c0_285] : memref<88x128xf32, #tpu.memory_space<vmem>>, vector<64x128xf32>
    %c4_286 = arith.constant 4 : index
    %c0_287 = arith.constant 0 : index
    %c0_288 = arith.constant 0 : index
    %308 = vector.load %arg6[%c4_286, %c0_287, %c0_288] : memref<9x128x128xf32, #tpu.memory_space<vmem>>, vector<1x128x128xf32>
    %309 = vector.shape_cast %308 : vector<1x128x128xf32> to vector<128x128xf32>
    %cst_289 = arith.constant dense<0.000000e+00> : vector<64x128xf32>
    %310 = tpu.matmul %307, %309, %cst_289 {dimension_numbers = #tpu.dot_dimension_numbers<[1], [0], [0], [1], [0, 0, 1, 1], [], []>} : vector<64x128xf32>, vector<128x128xf32>, vector<64x128xf32> -> vector<64x128xf32>
    %c0_290 = arith.constant 0 : index
    %c0_291 = arith.constant 0 : index
    %311 = vector.load %arg15[%c0_290, %c0_291] : memref<64x128xf32, #tpu.memory_space<vmem>>, vector<64x128xf32>
    %312 = arith.addf %311, %310 : vector<64x128xf32>
    %c0_292 = arith.constant 0 : index
    %c0_293 = arith.constant 0 : index
    %313 = vector.load %arg15[%c0_292, %c0_293] : memref<64x128xf32, #tpu.memory_space<vmem>>, vector<64x128xf32>
    tpu.vector_store %arg15[%c0_292, %c0_293], %312 {strides = array<i32>} : memref<64x128xf32, #tpu.memory_space<vmem>>, vector<64x128xf32>,
    %c10 = arith.constant 10 : index
    %c0_294 = arith.constant 0 : index
    %314 = vector.load %arg14[%c10, %c0_294] : memref<88x128xf32, #tpu.memory_space<vmem>>, vector<64x128xf32>
    %c5_295 = arith.constant 5 : index
    %c0_296 = arith.constant 0 : index
    %c0_297 = arith.constant 0 : index
    %315 = vector.load %arg6[%c5_295, %c0_296, %c0_297] : memref<9x128x128xf32, #tpu.memory_space<vmem>>, vector<1x128x128xf32>
    %316 = vector.shape_cast %315 : vector<1x128x128xf32> to vector<128x128xf32>
    %cst_298 = arith.constant dense<0.000000e+00> : vector<64x128xf32>
    %317 = tpu.matmul %314, %316, %cst_298 {dimension_numbers = #tpu.dot_dimension_numbers<[1], [0], [0], [1], [0, 0, 1, 1], [], []>} : vector<64x128xf32>, vector<128x128xf32>, vector<64x128xf32> -> vector<64x128xf32>
    %c0_299 = arith.constant 0 : index
    %c0_300 = arith.constant 0 : index
    %318 = vector.load %arg15[%c0_299, %c0_300] : memref<64x128xf32, #tpu.memory_space<vmem>>, vector<64x128xf32>
    %319 = arith.addf %318, %317 : vector<64x128xf32>
    %c0_301 = arith.constant 0 : index
    %c0_302 = arith.constant 0 : index
    %320 = vector.load %arg15[%c0_301, %c0_302] : memref<64x128xf32, #tpu.memory_space<vmem>>, vector<64x128xf32>
    tpu.vector_store %arg15[%c0_301, %c0_302], %319 {strides = array<i32>} : memref<64x128xf32, #tpu.memory_space<vmem>>, vector<64x128xf32>,
    %c16_303 = arith.constant 16 : index
    %c0_304 = arith.constant 0 : index
    %321 = vector.load %arg14[%c16_303, %c0_304] : memref<88x128xf32, #tpu.memory_space<vmem>>, vector<64x128xf32>
    %c6_305 = arith.constant 6 : index
    %c0_306 = arith.constant 0 : index
    %c0_307 = arith.constant 0 : index
    %322 = vector.load %arg6[%c6_305, %c0_306, %c0_307] : memref<9x128x128xf32, #tpu.memory_space<vmem>>, vector<1x128x128xf32>
    %323 = vector.shape_cast %322 : vector<1x128x128xf32> to vector<128x128xf32>
    %cst_308 = arith.constant dense<0.000000e+00> : vector<64x128xf32>
    %324 = tpu.matmul %321, %323, %cst_308 {dimension_numbers = #tpu.dot_dimension_numbers<[1], [0], [0], [1], [0, 0, 1, 1], [], []>} : vector<64x128xf32>, vector<128x128xf32>, vector<64x128xf32> -> vector<64x128xf32>
    %c0_309 = arith.constant 0 : index
    %c0_310 = arith.constant 0 : index
    %325 = vector.load %arg15[%c0_309, %c0_310] : memref<64x128xf32, #tpu.memory_space<vmem>>, vector<64x128xf32>
    %326 = arith.addf %325, %324 : vector<64x128xf32>
    %c0_311 = arith.constant 0 : index
    %c0_312 = arith.constant 0 : index
    %327 = vector.load %arg15[%c0_311, %c0_312] : memref<64x128xf32, #tpu.memory_space<vmem>>, vector<64x128xf32>
    tpu.vector_store %arg15[%c0_311, %c0_312], %326 {strides = array<i32>} : memref<64x128xf32, #tpu.memory_space<vmem>>, vector<64x128xf32>,
    %c17_313 = arith.constant 17 : index
    %c0_314 = arith.constant 0 : index
    %328 = vector.load %arg14[%c17_313, %c0_314] : memref<88x128xf32, #tpu.memory_space<vmem>>, vector<64x128xf32>
    %c7_315 = arith.constant 7 : index
    %c0_316 = arith.constant 0 : index
    %c0_317 = arith.constant 0 : index
    %329 = vector.load %arg6[%c7_315, %c0_316, %c0_317] : memref<9x128x128xf32, #tpu.memory_space<vmem>>, vector<1x128x128xf32>
    %330 = vector.shape_cast %329 : vector<1x128x128xf32> to vector<128x128xf32>
    %cst_318 = arith.constant dense<0.000000e+00> : vector<64x128xf32>
    %331 = tpu.matmul %328, %330, %cst_318 {dimension_numbers = #tpu.dot_dimension_numbers<[1], [0], [0], [1], [0, 0, 1, 1], [], []>} : vector<64x128xf32>, vector<128x128xf32>, vector<64x128xf32> -> vector<64x128xf32>
    %c0_319 = arith.constant 0 : index
    %c0_320 = arith.constant 0 : index
    %332 = vector.load %arg15[%c0_319, %c0_320] : memref<64x128xf32, #tpu.memory_space<vmem>>, vector<64x128xf32>
    %333 = arith.addf %332, %331 : vector<64x128xf32>
    %c0_321 = arith.constant 0 : index
    %c0_322 = arith.constant 0 : index
    %334 = vector.load %arg15[%c0_321, %c0_322] : memref<64x128xf32, #tpu.memory_space<vmem>>, vector<64x128xf32>
    tpu.vector_store %arg15[%c0_321, %c0_322], %333 {strides = array<i32>} : memref<64x128xf32, #tpu.memory_space<vmem>>, vector<64x128xf32>,
    %c18 = arith.constant 18 : index
    %c0_323 = arith.constant 0 : index
    %335 = vector.load %arg14[%c18, %c0_323] : memref<88x128xf32, #tpu.memory_space<vmem>>, vector<64x128xf32>
    %c8_324 = arith.constant 8 : index
    %c0_325 = arith.constant 0 : index
    %c0_326 = arith.constant 0 : index
    %336 = vector.load %arg6[%c8_324, %c0_325, %c0_326] : memref<9x128x128xf32, #tpu.memory_space<vmem>>, vector<1x128x128xf32>
    %337 = vector.shape_cast %336 : vector<1x128x128xf32> to vector<128x128xf32>
    %cst_327 = arith.constant dense<0.000000e+00> : vector<64x128xf32>
    %338 = tpu.matmul %335, %337, %cst_327 {dimension_numbers = #tpu.dot_dimension_numbers<[1], [0], [0], [1], [0, 0, 1, 1], [], []>} : vector<64x128xf32>, vector<128x128xf32>, vector<64x128xf32> -> vector<64x128xf32>
    %c0_328 = arith.constant 0 : index
    %c0_329 = arith.constant 0 : index
    %339 = vector.load %arg15[%c0_328, %c0_329] : memref<64x128xf32, #tpu.memory_space<vmem>>, vector<64x128xf32>
    %340 = arith.addf %339, %338 : vector<64x128xf32>
    %c0_330 = arith.constant 0 : index
    %c0_331 = arith.constant 0 : index
    %341 = vector.load %arg15[%c0_330, %c0_331] : memref<64x128xf32, #tpu.memory_space<vmem>>, vector<64x128xf32>
    tpu.vector_store %arg15[%c0_330, %c0_331], %340 {strides = array<i32>} : memref<64x128xf32, #tpu.memory_space<vmem>>, vector<64x128xf32>,
    %c0_332 = arith.constant 0 : index
    %c0_333 = arith.constant 0 : index
    %342 = vector.load %arg15[%c0_332, %c0_333] : memref<64x128xf32, #tpu.memory_space<vmem>>, vector<64x128xf32>
    %c0_334 = arith.constant 0 : index
    %c0_335 = arith.constant 0 : index
    %343 = vector.load %arg7[%c0_334, %c0_335] : memref<1x128xf32, #tpu.memory_space<vmem>>, vector<1x128xf32>
    %344 = vector.broadcast %343 : vector<1x128xf32> to vector<64x128xf32>
    %345 = arith.addf %342, %344 : vector<64x128xf32>
    %cst_336 = arith.constant 0.000000e+00 : f32
    %346 = vector.broadcast %cst_336 : f32 to vector<64x128xf32>
    %347 = arith.maximumf %345, %346 : vector<64x128xf32>
    %c9_337 = arith.constant 9 : index
    %c0_338 = arith.constant 0 : index
    %348 = vector.load %arg14[%c9_337, %c0_338] : memref<88x128xf32, #tpu.memory_space<vmem>>, vector<64x128xf32>
    %349 = arith.addf %347, %348 : vector<64x128xf32>
    %c0_339 = arith.constant 0 : index
    %c0_340 = arith.constant 0 : index
    %350 = vector.load %arg15[%c0_339, %c0_340] : memref<64x128xf32, #tpu.memory_space<vmem>>, vector<64x128xf32>
    tpu.vector_store %arg15[%c0_339, %c0_340], %349 {strides = array<i32>} : memref<64x128xf32, #tpu.memory_space<vmem>>, vector<64x128xf32>,
    %cst_341 = arith.constant 0.000000e+00 : f32
    %351 = vector.broadcast %cst_341 : f32 to vector<24x128xf32>
    %c0_342 = arith.constant 0 : index
    %c0_343 = arith.constant 0 : index
    %352 = vector.load %arg16[%c0_342, %c0_343] : memref<24x128xf32, #tpu.memory_space<vmem>>, vector<24x128xf32>
    tpu.vector_store %arg16[%c0_342, %c0_343], %351 {strides = array<i32>} : memref<24x128xf32, #tpu.memory_space<vmem>>, vector<24x128xf32>,
    %c0_344 = arith.constant 0 : index
    %c0_345 = arith.constant 0 : index
    %353 = tpu.strided_load %arg15[%c0_344, %c0_345] {strides = array<i32: 2, 1>} : memref<64x128xf32, #tpu.memory_space<vmem>>, vector<3x128xf32>
    %c1_346 = arith.constant 1 : index
    %c0_347 = arith.constant 0 : index
    %354 = tpu.strided_load %arg15[%c1_346, %c0_347] {strides = array<i32: 2, 1>} : memref<64x128xf32, #tpu.memory_space<vmem>>, vector<3x128xf32>
    %355 = arith.addf %353, %354 : vector<3x128xf32>
    %c8_348 = arith.constant 8 : index
    %c0_349 = arith.constant 0 : index
    %356 = tpu.strided_load %arg15[%c8_348, %c0_349] {strides = array<i32: 2, 1>} : memref<64x128xf32, #tpu.memory_space<vmem>>, vector<3x128xf32>
    %357 = arith.addf %355, %356 : vector<3x128xf32>
    %c9_350 = arith.constant 9 : index
    %c0_351 = arith.constant 0 : index
    %358 = tpu.strided_load %arg15[%c9_350, %c0_351] {strides = array<i32: 2, 1>} : memref<64x128xf32, #tpu.memory_space<vmem>>, vector<3x128xf32>
    %359 = arith.addf %357, %358 : vector<3x128xf32>
    %cst_352 = arith.constant 2.500000e-01 : f32
    %360 = vector.broadcast %cst_352 : f32 to vector<3x128xf32>
    %361 = arith.mulf %360, %359 : vector<3x128xf32>
    %c0_353 = arith.constant 0 : index
    %c0_354 = arith.constant 0 : index
    %362 = vector.load %arg16[%c0_353, %c0_354] : memref<24x128xf32, #tpu.memory_space<vmem>>, vector<3x128xf32>
    tpu.vector_store %arg16[%c0_353, %c0_354], %361 {strides = array<i32>} : memref<24x128xf32, #tpu.memory_space<vmem>>, vector<3x128xf32>,
    %c16_355 = arith.constant 16 : index
    %c0_356 = arith.constant 0 : index
    %363 = tpu.strided_load %arg15[%c16_355, %c0_356] {strides = array<i32: 2, 1>} : memref<64x128xf32, #tpu.memory_space<vmem>>, vector<3x128xf32>
    %c17_357 = arith.constant 17 : index
    %c0_358 = arith.constant 0 : index
    %364 = tpu.strided_load %arg15[%c17_357, %c0_358] {strides = array<i32: 2, 1>} : memref<64x128xf32, #tpu.memory_space<vmem>>, vector<3x128xf32>
    %365 = arith.addf %363, %364 : vector<3x128xf32>
    %c24 = arith.constant 24 : index
    %c0_359 = arith.constant 0 : index
    %366 = tpu.strided_load %arg15[%c24, %c0_359] {strides = array<i32: 2, 1>} : memref<64x128xf32, #tpu.memory_space<vmem>>, vector<3x128xf32>
    %367 = arith.addf %365, %366 : vector<3x128xf32>
    %c25_360 = arith.constant 25 : index
    %c0_361 = arith.constant 0 : index
    %368 = tpu.strided_load %arg15[%c25_360, %c0_361] {strides = array<i32: 2, 1>} : memref<64x128xf32, #tpu.memory_space<vmem>>, vector<3x128xf32>
    %369 = arith.addf %367, %368 : vector<3x128xf32>
    %cst_362 = arith.constant 2.500000e-01 : f32
    %370 = vector.broadcast %cst_362 : f32 to vector<3x128xf32>
    %371 = arith.mulf %370, %369 : vector<3x128xf32>
    %c3_363 = arith.constant 3 : index
    %c0_364 = arith.constant 0 : index
    %372 = vector.load %arg16[%c3_363, %c0_364] : memref<24x128xf32, #tpu.memory_space<vmem>>, vector<3x128xf32>
    tpu.vector_store %arg16[%c3_363, %c0_364], %371 {strides = array<i32>} : memref<24x128xf32, #tpu.memory_space<vmem>>, vector<3x128xf32>,
    %c32 = arith.constant 32 : index
    %c0_365 = arith.constant 0 : index
    %373 = tpu.strided_load %arg15[%c32, %c0_365] {strides = array<i32: 2, 1>} : memref<64x128xf32, #tpu.memory_space<vmem>>, vector<3x128xf32>
    %c33_366 = arith.constant 33 : index
    %c0_367 = arith.constant 0 : index
    %374 = tpu.strided_load %arg15[%c33_366, %c0_367] {strides = array<i32: 2, 1>} : memref<64x128xf32, #tpu.memory_space<vmem>>, vector<3x128xf32>
    %375 = arith.addf %373, %374 : vector<3x128xf32>
    %c40 = arith.constant 40 : index
    %c0_368 = arith.constant 0 : index
    %376 = tpu.strided_load %arg15[%c40, %c0_368] {strides = array<i32: 2, 1>} : memref<64x128xf32, #tpu.memory_space<vmem>>, vector<3x128xf32>
    %377 = arith.addf %375, %376 : vector<3x128xf32>
    %c41_369 = arith.constant 41 : index
    %c0_370 = arith.constant 0 : index
    %378 = tpu.strided_load %arg15[%c41_369, %c0_370] {strides = array<i32: 2, 1>} : memref<64x128xf32, #tpu.memory_space<vmem>>, vector<3x128xf32>
    %379 = arith.addf %377, %378 : vector<3x128xf32>
    %cst_371 = arith.constant 2.500000e-01 : f32
    %380 = vector.broadcast %cst_371 : f32 to vector<3x128xf32>
    %381 = arith.mulf %380, %379 : vector<3x128xf32>
    %c6_372 = arith.constant 6 : index
    %c0_373 = arith.constant 0 : index
    %382 = vector.load %arg16[%c6_372, %c0_373] : memref<24x128xf32, #tpu.memory_space<vmem>>, vector<3x128xf32>
    tpu.vector_store %arg16[%c6_372, %c0_373], %381 {strides = array<i32>} : memref<24x128xf32, #tpu.memory_space<vmem>>, vector<3x128xf32>,
    %c0_374 = arith.constant 0 : index
    %c0_375 = arith.constant 0 : index
    %383 = vector.load %arg16[%c0_374, %c0_375] : memref<24x128xf32, #tpu.memory_space<vmem>>, vector<16x128xf32>
    %c0_376 = arith.constant 0 : index
    %c0_377 = arith.constant 0 : index
    %c0_378 = arith.constant 0 : index
    %384 = vector.load %arg8[%c0_376, %c0_377, %c0_378] : memref<9x128x128xf32, #tpu.memory_space<vmem>>, vector<1x128x128xf32>
    %385 = vector.shape_cast %384 : vector<1x128x128xf32> to vector<128x128xf32>
    %cst_379 = arith.constant dense<0.000000e+00> : vector<16x128xf32>
    %386 = tpu.matmul %383, %385, %cst_379 {dimension_numbers = #tpu.dot_dimension_numbers<[1], [0], [0], [1], [0, 0, 1, 1], [], []>} : vector<16x128xf32>, vector<128x128xf32>, vector<16x128xf32> -> vector<16x128xf32>
    %c1_380 = arith.constant 1 : index
    %c0_381 = arith.constant 0 : index
    %387 = vector.load %arg16[%c1_380, %c0_381] : memref<24x128xf32, #tpu.memory_space<vmem>>, vector<16x128xf32>
    %c1_382 = arith.constant 1 : index
    %c0_383 = arith.constant 0 : index
    %c0_384 = arith.constant 0 : index
    %388 = vector.load %arg8[%c1_382, %c0_383, %c0_384] : memref<9x128x128xf32, #tpu.memory_space<vmem>>, vector<1x128x128xf32>
    %389 = vector.shape_cast %388 : vector<1x128x128xf32> to vector<128x128xf32>
    %cst_385 = arith.constant dense<0.000000e+00> : vector<16x128xf32>
    %390 = tpu.matmul %387, %389, %cst_385 {dimension_numbers = #tpu.dot_dimension_numbers<[1], [0], [0], [1], [0, 0, 1, 1], [], []>} : vector<16x128xf32>, vector<128x128xf32>, vector<16x128xf32> -> vector<16x128xf32>
    %391 = arith.addf %386, %390 : vector<16x128xf32>
    %c2_386 = arith.constant 2 : index
    %c0_387 = arith.constant 0 : index
    %392 = vector.load %arg16[%c2_386, %c0_387] : memref<24x128xf32, #tpu.memory_space<vmem>>, vector<16x128xf32>
    %c2_388 = arith.constant 2 : index
    %c0_389 = arith.constant 0 : index
    %c0_390 = arith.constant 0 : index
    %393 = vector.load %arg8[%c2_388, %c0_389, %c0_390] : memref<9x128x128xf32, #tpu.memory_space<vmem>>, vector<1x128x128xf32>
    %394 = vector.shape_cast %393 : vector<1x128x128xf32> to vector<128x128xf32>
    %cst_391 = arith.constant dense<0.000000e+00> : vector<16x128xf32>
    %395 = tpu.matmul %392, %394, %cst_391 {dimension_numbers = #tpu.dot_dimension_numbers<[1], [0], [0], [1], [0, 0, 1, 1], [], []>} : vector<16x128xf32>, vector<128x128xf32>, vector<16x128xf32> -> vector<16x128xf32>
    %396 = arith.addf %391, %395 : vector<16x128xf32>
    %c3_392 = arith.constant 3 : index
    %c0_393 = arith.constant 0 : index
    %397 = vector.load %arg16[%c3_392, %c0_393] : memref<24x128xf32, #tpu.memory_space<vmem>>, vector<16x128xf32>
    %c3_394 = arith.constant 3 : index
    %c0_395 = arith.constant 0 : index
    %c0_396 = arith.constant 0 : index
    %398 = vector.load %arg8[%c3_394, %c0_395, %c0_396] : memref<9x128x128xf32, #tpu.memory_space<vmem>>, vector<1x128x128xf32>
    %399 = vector.shape_cast %398 : vector<1x128x128xf32> to vector<128x128xf32>
    %cst_397 = arith.constant dense<0.000000e+00> : vector<16x128xf32>
    %400 = tpu.matmul %397, %399, %cst_397 {dimension_numbers = #tpu.dot_dimension_numbers<[1], [0], [0], [1], [0, 0, 1, 1], [], []>} : vector<16x128xf32>, vector<128x128xf32>, vector<16x128xf32> -> vector<16x128xf32>
    %401 = arith.addf %396, %400 : vector<16x128xf32>
    %c4_398 = arith.constant 4 : index
    %c0_399 = arith.constant 0 : index
    %402 = vector.load %arg16[%c4_398, %c0_399] : memref<24x128xf32, #tpu.memory_space<vmem>>, vector<16x128xf32>
    %c4_400 = arith.constant 4 : index
    %c0_401 = arith.constant 0 : index
    %c0_402 = arith.constant 0 : index
    %403 = vector.load %arg8[%c4_400, %c0_401, %c0_402] : memref<9x128x128xf32, #tpu.memory_space<vmem>>, vector<1x128x128xf32>
    %404 = vector.shape_cast %403 : vector<1x128x128xf32> to vector<128x128xf32>
    %cst_403 = arith.constant dense<0.000000e+00> : vector<16x128xf32>
    %405 = tpu.matmul %402, %404, %cst_403 {dimension_numbers = #tpu.dot_dimension_numbers<[1], [0], [0], [1], [0, 0, 1, 1], [], []>} : vector<16x128xf32>, vector<128x128xf32>, vector<16x128xf32> -> vector<16x128xf32>
    %406 = arith.addf %401, %405 : vector<16x128xf32>
    %c5_404 = arith.constant 5 : index
    %c0_405 = arith.constant 0 : index
    %407 = vector.load %arg16[%c5_404, %c0_405] : memref<24x128xf32, #tpu.memory_space<vmem>>, vector<16x128xf32>
    %c5_406 = arith.constant 5 : index
    %c0_407 = arith.constant 0 : index
    %c0_408 = arith.constant 0 : index
    %408 = vector.load %arg8[%c5_406, %c0_407, %c0_408] : memref<9x128x128xf32, #tpu.memory_space<vmem>>, vector<1x128x128xf32>
    %409 = vector.shape_cast %408 : vector<1x128x128xf32> to vector<128x128xf32>
    %cst_409 = arith.constant dense<0.000000e+00> : vector<16x128xf32>
    %410 = tpu.matmul %407, %409, %cst_409 {dimension_numbers = #tpu.dot_dimension_numbers<[1], [0], [0], [1], [0, 0, 1, 1], [], []>} : vector<16x128xf32>, vector<128x128xf32>, vector<16x128xf32> -> vector<16x128xf32>
    %411 = arith.addf %406, %410 : vector<16x128xf32>
    %c6_410 = arith.constant 6 : index
    %c0_411 = arith.constant 0 : index
    %412 = vector.load %arg16[%c6_410, %c0_411] : memref<24x128xf32, #tpu.memory_space<vmem>>, vector<16x128xf32>
    %c6_412 = arith.constant 6 : index
    %c0_413 = arith.constant 0 : index
    %c0_414 = arith.constant 0 : index
    %413 = vector.load %arg8[%c6_412, %c0_413, %c0_414] : memref<9x128x128xf32, #tpu.memory_space<vmem>>, vector<1x128x128xf32>
    %414 = vector.shape_cast %413 : vector<1x128x128xf32> to vector<128x128xf32>
    %cst_415 = arith.constant dense<0.000000e+00> : vector<16x128xf32>
    %415 = tpu.matmul %412, %414, %cst_415 {dimension_numbers = #tpu.dot_dimension_numbers<[1], [0], [0], [1], [0, 0, 1, 1], [], []>} : vector<16x128xf32>, vector<128x128xf32>, vector<16x128xf32> -> vector<16x128xf32>
    %416 = arith.addf %411, %415 : vector<16x128xf32>
    %c7_416 = arith.constant 7 : index
    %c0_417 = arith.constant 0 : index
    %417 = vector.load %arg16[%c7_416, %c0_417] : memref<24x128xf32, #tpu.memory_space<vmem>>, vector<16x128xf32>
    %c7_418 = arith.constant 7 : index
    %c0_419 = arith.constant 0 : index
    %c0_420 = arith.constant 0 : index
    %418 = vector.load %arg8[%c7_418, %c0_419, %c0_420] : memref<9x128x128xf32, #tpu.memory_space<vmem>>, vector<1x128x128xf32>
    %419 = vector.shape_cast %418 : vector<1x128x128xf32> to vector<128x128xf32>
    %cst_421 = arith.constant dense<0.000000e+00> : vector<16x128xf32>
    %420 = tpu.matmul %417, %419, %cst_421 {dimension_numbers = #tpu.dot_dimension_numbers<[1], [0], [0], [1], [0, 0, 1, 1], [], []>} : vector<16x128xf32>, vector<128x128xf32>, vector<16x128xf32> -> vector<16x128xf32>
    %421 = arith.addf %416, %420 : vector<16x128xf32>
    %c8_422 = arith.constant 8 : index
    %c0_423 = arith.constant 0 : index
    %422 = vector.load %arg16[%c8_422, %c0_423] : memref<24x128xf32, #tpu.memory_space<vmem>>, vector<16x128xf32>
    %c8_424 = arith.constant 8 : index
    %c0_425 = arith.constant 0 : index
    %c0_426 = arith.constant 0 : index
    %423 = vector.load %arg8[%c8_424, %c0_425, %c0_426] : memref<9x128x128xf32, #tpu.memory_space<vmem>>, vector<1x128x128xf32>
    %424 = vector.shape_cast %423 : vector<1x128x128xf32> to vector<128x128xf32>
    %cst_427 = arith.constant dense<0.000000e+00> : vector<16x128xf32>
    %425 = tpu.matmul %422, %424, %cst_427 {dimension_numbers = #tpu.dot_dimension_numbers<[1], [0], [0], [1], [0, 0, 1, 1], [], []>} : vector<16x128xf32>, vector<128x128xf32>, vector<16x128xf32> -> vector<16x128xf32>
    %426 = arith.addf %421, %425 : vector<16x128xf32>
    %427 = vector.extract_strided_slice %426 {offsets = [0, 0], sizes = [1, 128], strides = [1, 1]} : vector<16x128xf32> to vector<1x128xf32>
    %c0_428 = arith.constant 0 : index
    %c0_429 = arith.constant 0 : index
    %428 = vector.load %arg9[%c0_428, %c0_429] : memref<1x128xf32, #tpu.memory_space<vmem>>, vector<1x128xf32>
    %429 = arith.addf %427, %428 : vector<1x128xf32>
    %c0_430 = arith.constant 0 : index
    %c0_431 = arith.constant 0 : index
    %c0_432 = arith.constant 0 : index
    %430 = vector.load %arg10[%c0_430, %c0_431, %c0_432] : memref<1x1x128xf32, #tpu.memory_space<vmem>>, vector<1x1x128xf32>
    %431 = vector.shape_cast %430 : vector<1x1x128xf32> to vector<1x128xf32>
    %432 = vector.shape_cast %429 : vector<1x128xf32> to vector<1x1x128xf32>
    tpu.vector_store %arg10[%c0_430, %c0_431, %c0_432], %432 {strides = array<i32>} : memref<1x1x128xf32, #tpu.memory_space<vmem>>, vector<1x1x128xf32>,
    return
  }
  func.func @transform_0(%arg0: i32) -> (i32, i32) {
    %c0_i32 = arith.constant 0 : i32
    %c0_i32_0 = arith.constant 0 : i32
    return %arg0, %c0_i32 : i32, i32
  }
  func.func @transform_1(%arg0: i32) -> (i32, i32) {
    %c0_i32 = arith.constant 0 : i32
    %c0_i32_0 = arith.constant 0 : i32
    %c0_i32_1 = arith.constant 0 : i32
    return %c0_i32, %c0_i32_0 : i32, i32
  }
  func.func @transform_2(%arg0: i32) -> (i32, i32) {
    %c0_i32 = arith.constant 0 : i32
    %c0_i32_0 = arith.constant 0 : i32
    %c0_i32_1 = arith.constant 0 : i32
    return %c0_i32, %c0_i32_0 : i32, i32
  }
  func.func @transform_3(%arg0: i32) -> (i32, i32, i32) {
    %c0_i32 = arith.constant 0 : i32
    %c0_i32_0 = arith.constant 0 : i32
    %c0_i32_1 = arith.constant 0 : i32
    %c0_i32_2 = arith.constant 0 : i32
    return %c0_i32, %c0_i32_0, %c0_i32_1 : i32, i32, i32
  }
  func.func @transform_4(%arg0: i32) -> (i32, i32) {
    %c0_i32 = arith.constant 0 : i32
    %c0_i32_0 = arith.constant 0 : i32
    %c0_i32_1 = arith.constant 0 : i32
    return %c0_i32, %c0_i32_0 : i32, i32
  }
  func.func @transform_5(%arg0: i32) -> (i32, i32, i32) {
    %c0_i32 = arith.constant 0 : i32
    %c0_i32_0 = arith.constant 0 : i32
    %c0_i32_1 = arith.constant 0 : i32
    %c0_i32_2 = arith.constant 0 : i32
    return %c0_i32, %c0_i32_0, %c0_i32_1 : i32, i32, i32
  }
  func.func @transform_6(%arg0: i32) -> (i32, i32) {
    %c0_i32 = arith.constant 0 : i32
    %c0_i32_0 = arith.constant 0 : i32
    %c0_i32_1 = arith.constant 0 : i32
    return %c0_i32, %c0_i32_0 : i32, i32
  }
  func.func @transform_7(%arg0: i32) -> (i32, i32, i32) {
    %c0_i32 = arith.constant 0 : i32
    %c0_i32_0 = arith.constant 0 : i32
    %c0_i32_1 = arith.constant 0 : i32
    %c0_i32_2 = arith.constant 0 : i32
    return %c0_i32, %c0_i32_0, %c0_i32_1 : i32, i32, i32
  }
  func.func @transform_8(%arg0: i32) -> (i32, i32) {
    %c0_i32 = arith.constant 0 : i32
    %c0_i32_0 = arith.constant 0 : i32
    %c0_i32_1 = arith.constant 0 : i32
    return %c0_i32, %c0_i32_0 : i32, i32
  }
  func.func @transform_9(%arg0: i32) -> (i32, i32, i32) {
    %c0_i32 = arith.constant 0 : i32
    %c0_i32_0 = arith.constant 0 : i32
    %c0_i32_1 = arith.constant 0 : i32
    return %arg0, %c0_i32, %c0_i32_0 : i32, i32, i32
  }
}

</mosaic_0001>

<llo_original>
// kernel: example_net9_forward.1
$region0: #{example_net9_forward.1}
  #allocation0 [shape = 'u32[]', space=smem, size = 0x4, offset = 0x4, fixed_abs, tag = 'smem constant byte address 0x4 - core index']
  #allocation1 [shape = 'u32[144,128]{1,0:T(1,128)}', space=vmem, size = 0x12000, scoped, tag = 'internal scratch']
  #allocation2 [shape = 'f32[784,128]{1,0:T(8,128)}', space=vmem, size = 0x62000, scoped, tag = 'scratch operand']
  #allocation3 [shape = 'f32[232,128]{1,0:T(8,128)}', space=vmem, size = 0x1d000, scoped, tag = 'scratch operand']
  #allocation4 [shape = 'f32[196,128]{1,0:T(8,128)}', space=vmem, size = 0x19000, scoped, tag = 'scratch operand']
  #allocation5 [shape = 'f32[88,128]{1,0:T(8,128)}', space=vmem, size = 0xb000, scoped, tag = 'scratch operand']
  #allocation6 [shape = 'f32[64,128]{1,0:T(8,128)}', space=vmem, size = 0x8000, scoped, tag = 'scratch operand']
  #allocation7 [shape = 'f32[24,128]{1,0:T(8,128)}', space=vmem, size = 0x3000, scoped, tag = 'scratch operand']
  %s0 = inlined_call_operand.vmem [shape: f32[1568,75], index: 0, kind: input, shape index: {}]
  %s1 = inlined_call_operand.vmem [shape: f32[75,128], index: 1, kind: input, shape index: {}]
  %s2 = inlined_call_operand.vmem [shape: f32[1,128], index: 2, kind: input, shape index: {}]
  %s3 = inlined_call_operand.vmem [shape: f32[9,128,128], index: 3, kind: input, shape index: {}]
  %s4 = inlined_call_operand.vmem [shape: f32[1,128], index: 4, kind: input, shape index: {}]
  %s5 = inlined_call_operand.vmem [shape: f32[9,128,128], index: 5, kind: input, shape index: {}]
  %s6 = inlined_call_operand.vmem [shape: f32[1,128], index: 6, kind: input, shape index: {}]
  %s7 = inlined_call_operand.vmem [shape: f32[9,128,128], index: 7, kind: input, shape index: {}]
  %s8 = inlined_call_operand.vmem [shape: f32[1,128], index: 8, kind: input, shape index: {}]
  %s9 = inlined_call_operand.hbm [shape: f32[2,1,128], index: 9, kind: output, shape index: {}]
  %s10 = sld [smem:[#allocation0]]
  $region69: #{example_net9_forward.1} parent=0
    _
  %s12 = ssub.s32 1, %s10
  %s13 = scalar_select 0, %s12, %s10
  $region1: #{example_net9_forward.1} parent=0
    #allocation8 [shape = 'u8[1024]{0}', space=vmem, size = 0x400, scoped, tag = 'output window, operand 0']
    #allocation9 [shape = 's32[2]{0}', space=sflag, size = 0x8, scoped, tag = 'scoped memory for example_net9_forward.1']
    %14 = vsyncpa [#allocation9], 0
    %s15 = scalar_lea.sflag [#allocation9], 1
    %16 = vsyncpa %s15, 0
    loop: start=0, step=1, limit=4
    $region2: #{example_net9_forward.1} parent=1 // loop_pre_header
      _
    $region3: #{example_net9_forward.1} parent=1 // loop_header
      %s18 = sphi 0, %s22
      %p19 = scmp.ge.s32.totalorder %s18, 4
      %s28 = sphi 0, %s30
      %s31 = sphi 0, %s28
      %s32 = sphi 0, %s31
      %s48 = sphi 0, %s32
      %s52 = sphi 0, %s52
      %s54 = sphi 0, %s52
      %s55 = sphi 0, %s54
      %s69 = sphi 0, %s55
      %s73 = sphi 0, %s73
      %s75 = sphi 0, %s73
      %s76 = sphi 0, %s75
      %s90 = sphi 0, %s76
      %s94 = sphi 0, %s94
      %s96 = sphi 0, %s94
      %s97 = sphi 0, %s96
      %s111 = sphi 0, %s97
      %s115 = sphi 0, %s115
      %s117 = sphi 0, %s115
      %s118 = sphi 0, %s117
      %s132 = sphi 0, %s118
      %s136 = sphi 0, %s136
      %s138 = sphi 0, %s136
      %s139 = sphi 0, %s138
      %s153 = sphi 0, %s139
      %s157 = sphi 0, %s157
      %s159 = sphi 0, %s157
      %s160 = sphi 0, %s159
      %s174 = sphi 0, %s160
      %s178 = sphi 0, %s178
      %s180 = sphi 0, %s178
      %s181 = sphi 0, %s180
      %s195 = sphi 0, %s181
      %s199 = sphi 0, %s199
      %s201 = sphi 0, %s199
      %s202 = sphi 0, %s201
      %s216 = sphi 0, %s202
      %s222 = sphi 0, %s224
      %s225 = sphi 0, %s222
      %s226 = sphi 0, %s225
      %s242 = sphi 0, %s226
    $region4: #{example_net9_forward.1} parent=1 // loop_header_branch
      %21 = sbr.rel (%p19) target = $region8
    $region5: #{example_net9_forward.1} parent=1 // loop_body
      %s23 = ssub.s32 %s18, 1
      %s24 = ssub.s32 %s18, 2
      %s25 = sadd.s32 %s18, 1
      %s26 = ssub.s32 %s18, %s25
      %p27 = scmp.eq.s32.totalorder %s26, 0
      %s29 = sadd.s32 %s28, 1
      %s30 = scalar_select %p27, %s28, %s29
      %p33 = pneg %p27
      %p34 = scmp.eq.s32.totalorder %s18, 1
      %p35 = por %p33, %p34
      %p36 = scmp.ne.s32.totalorder %s28, %s31
      %p37 = scmp.eq.s32.totalorder %s18, 0
      %p38 = por %p36, %p37
      %p39 = scmp.ne.s32.totalorder %s28, %s31
      %p40 = scmp.eq.s32.totalorder %s23, 1
      %p41 = por %p39, %p40
      %p42 = scmp.ne.s32.totalorder %s31, %s32
      %p43 = scmp.eq.s32.totalorder %s23, 0
      %p44 = por %p42, %p43
      %p45 = scmp.ne.s32.totalorder %s31, %s32
      %p46 = scmp.eq.s32.totalorder %s24, 1
      %p47 = por %p45, %p46
      %p49 = scmp.ne.s32.totalorder %s32, %s48
      %p50 = scmp.eq.s32.totalorder %s24, 0
      %p51 = por %p49, %p50
      %s53 = sadd.s32 %s52, 1
      %p56 = scmp.eq.s32.totalorder %s18, 1
      %p57 = scmp.ne.s32.totalorder %s52, %s54
      %p58 = scmp.eq.s32.totalorder %s18, 0
      %p59 = por %p57, %p58
      %p60 = scmp.ne.s32.totalorder %s52, %s54
      %p61 = scmp.eq.s32.totalorder %s23, 1
      %p62 = por %p60, %p61
      %p63 = scmp.ne.s32.totalorder %s54, %s55
      %p64 = scmp.eq.s32.totalorder %s23, 0
      %p65 = por %p63, %p64
      %p66 = scmp.ne.s32.totalorder %s54, %s55
      %p67 = scmp.eq.s32.totalorder %s24, 1
      %p68 = por %p66, %p67
      %p70 = scmp.ne.s32.totalorder %s55, %s69
      %p71 = scmp.eq.s32.totalorder %s24, 0
      %p72 = por %p70, %p71
      %s74 = sadd.s32 %s73, 1
      %p77 = scmp.eq.s32.totalorder %s18, 1
      %p78 = scmp.ne.s32.totalorder %s73, %s75
      %p79 = scmp.eq.s32.totalorder %s18, 0
      %p80 = por %p78, %p79
      %p81 = scmp.ne.s32.totalorder %s73, %s75
      %p82 = scmp.eq.s32.totalorder %s23, 1
      %p83 = por %p81, %p82
      %p84 = scmp.ne.s32.totalorder %s75, %s76
      %p85 = scmp.eq.s32.totalorder %s23, 0
      %p86 = por %p84, %p85
      %p87 = scmp.ne.s32.totalorder %s75, %s76
      %p88 = scmp.eq.s32.totalorder %s24, 1
      %p89 = por %p87, %p88
      %p91 = scmp.ne.s32.totalorder %s76, %s90
      %p92 = scmp.eq.s32.totalorder %s24, 0
      %p93 = por %p91, %p92
      %s95 = sadd.s32 %s94, 1
      %p98 = scmp.eq.s32.totalorder %s18, 1
      %p99 = scmp.ne.s32.totalorder %s94, %s96
      %p100 = scmp.eq.s32.totalorder %s18, 0
      %p101 = por %p99, %p100
      %p102 = scmp.ne.s32.totalorder %s94, %s96
      %p103 = scmp.eq.s32.totalorder %s23, 1
      %p104 = por %p102, %p103
      %p105 = scmp.ne.s32.totalorder %s96, %s97
      %p106 = scmp.eq.s32.totalorder %s23, 0
      %p107 = por %p105, %p106
      %p108 = scmp.ne.s32.totalorder %s96, %s97
      %p109 = scmp.eq.s32.totalorder %s24, 1
      %p110 = por %p108, %p109
      %p112 = scmp.ne.s32.totalorder %s97, %s111
      %p113 = scmp.eq.s32.totalorder %s24, 0
      %p114 = por %p112, %p113
      %s116 = sadd.s32 %s115, 1
      %p119 = scmp.eq.s32.totalorder %s18, 1
      %p120 = scmp.ne.s32.totalorder %s115, %s117
      %p121 = scmp.eq.s32.totalorder %s18, 0
      %p122 = por %p120, %p121
      %p123 = scmp.ne.s32.totalorder %s115, %s117
      %p124 = scmp.eq.s32.totalorder %s23, 1
      %p125 = por %p123, %p124
      %p126 = scmp.ne.s32.totalorder %s117, %s118
      %p127 = scmp.eq.s32.totalorder %s23, 0
      %p128 = por %p126, %p127
      %p129 = scmp.ne.s32.totalorder %s117, %s118
      %p130 = scmp.eq.s32.totalorder %s24, 1
      %p131 = por %p129, %p130
      %p133 = scmp.ne.s32.totalorder %s118, %s132
      %p134 = scmp.eq.s32.totalorder %s24, 0
      %p135 = por %p133, %p134
      %s137 = sadd.s32 %s136, 1
      %p140 = scmp.eq.s32.totalorder %s18, 1
      %p141 = scmp.ne.s32.totalorder %s136, %s138
      %p142 = scmp.eq.s32.totalorder %s18, 0
      %p143 = por %p141, %p142
      %p144 = scmp.ne.s32.totalorder %s136, %s138
      %p145 = scmp.eq.s32.totalorder %s23, 1
      %p146 = por %p144, %p145
      %p147 = scmp.ne.s32.totalorder %s138, %s139
      %p148 = scmp.eq.s32.totalorder %s23, 0
      %p149 = por %p147, %p148
      %p150 = scmp.ne.s32.totalorder %s138, %s139
      %p151 = scmp.eq.s32.totalorder %s24, 1
      %p152 = por %p150, %p151
      %p154 = scmp.ne.s32.totalorder %s139, %s153
      %p155 = scmp.eq.s32.totalorder %s24, 0
      %p156 = por %p154, %p155
      %s158 = sadd.s32 %s157, 1
      %p161 = scmp.eq.s32.totalorder %s18, 1
      %p162 = scmp.ne.s32.totalorder %s157, %s159
      %p163 = scmp.eq.s32.totalorder %s18, 0
      %p164 = por %p162, %p163
      %p165 = scmp.ne.s32.totalorder %s157, %s159
      %p166 = scmp.eq.s32.totalorder %s23, 1
      %p167 = por %p165, %p166
      %p168 = scmp.ne.s32.totalorder %s159, %s160
      %p169 = scmp.eq.s32.totalorder %s23, 0
      %p170 = por %p168, %p169
      %p171 = scmp.ne.s32.totalorder %s159, %s160
      %p172 = scmp.eq.s32.totalorder %s24, 1
      %p173 = por %p171, %p172
      %p175 = scmp.ne.s32.totalorder %s160, %s174
      %p176 = scmp.eq.s32.totalorder %s24, 0
      %p177 = por %p175, %p176
      %s179 = sadd.s32 %s178, 1
      %p182 = scmp.eq.s32.totalorder %s18, 1
      %p183 = scmp.ne.s32.totalorder %s178, %s180
      %p184 = scmp.eq.s32.totalorder %s18, 0
      %p185 = por %p183, %p184
      %p186 = scmp.ne.s32.totalorder %s178, %s180
      %p187 = scmp.eq.s32.totalorder %s23, 1
      %p188 = por %p186, %p187
      %p189 = scmp.ne.s32.totalorder %s180, %s181
      %p190 = scmp.eq.s32.totalorder %s23, 0
      %p191 = por %p189, %p190
      %p192 = scmp.ne.s32.totalorder %s180, %s181
      %p193 = scmp.eq.s32.totalorder %s24, 1
      %p194 = por %p192, %p193
      %p196 = scmp.ne.s32.totalorder %s181, %s195
      %p197 = scmp.eq.s32.totalorder %s24, 0
      %p198 = por %p196, %p197
      %s200 = sadd.s32 %s199, 1
      %p203 = scmp.eq.s32.totalorder %s18, 1
      %p204 = scmp.ne.s32.totalorder %s199, %s201
      %p205 = scmp.eq.s32.totalorder %s18, 0
      %p206 = por %p204, %p205
      %p207 = scmp.ne.s32.totalorder %s199, %s201
      %p208 = scmp.eq.s32.totalorder %s23, 1
      %p209 = por %p207, %p208
      %p210 = scmp.ne.s32.totalorder %s201, %s202
      %p211 = scmp.eq.s32.totalorder %s23, 0
      %p212 = por %p210, %p211
      %p213 = scmp.ne.s32.totalorder %s201, %s202
      %p214 = scmp.eq.s32.totalorder %s24, 1
      %p215 = por %p213, %p214
      %p217 = scmp.ne.s32.totalorder %s202, %s216
      %p218 = scmp.eq.s32.totalorder %s24, 0
      %p219 = por %p217, %p218
      %s220 = ssub.s32 %s18, %s25
      %p221 = scmp.eq.s32.totalorder %s220, 0
      %s223 = sadd.s32 %s222, 1
      %s224 = scalar_select %p221, %s222, %s223
      %p227 = pneg %p221
      %p228 = scmp.eq.s32.totalorder %s18, 1
      %p229 = por %p227, %p228
      %p230 = scmp.ne.s32.totalorder %s222, %s225
      %p231 = scmp.eq.s32.totalorder %s18, 0
      %p232 = por %p230, %p231
      %p233 = scmp.ne.s32.totalorder %s222, %s225
      %p234 = scmp.eq.s32.totalorder %s23, 1
      %p235 = por %p233, %p234
      %p236 = scmp.ne.s32.totalorder %s225, %s226
      %p237 = scmp.eq.s32.totalorder %s23, 0
      %p238 = por %p236, %p237
      %p239 = scmp.ne.s32.totalorder %s225, %s226
      %p240 = scmp.eq.s32.totalorder %s24, 1
      %p241 = por %p239, %p240
      %p243 = scmp.ne.s32.totalorder %s226, %s242
      %p244 = scmp.eq.s32.totalorder %s24, 0
      %p245 = por %p243, %p244
      %p246 = scmp.le.s32.totalorder 1, %s18
      %p247 = scmp.lt.s32.totalorder %s18, 3
      %p248 = pnand %p246, %p247
      %p249 = pneg %p248
      // Predicated region
      $region9: #{example_net9_forward.1} parent=5 // pred_check
        _
      $region10: #{example_net9_forward.1} parent=5 // pred_check_branch
        %251 = sbr.rel (%p248) target = $region12
      $region11: #{example_net9_forward.1} parent=5 // pred_region
        %s252 = ssub.s32 %s18, 1
        // Predicated region
        $region13: #{example_net9_forward.1} parent=11 // pred_check
          %p253 = pneg %p65
        $region14: #{example_net9_forward.1} parent=11 // pred_check_branch
          %255 = sbr.rel (%p253) target = $region16
        $region15: #{example_net9_forward.1} parent=11 // pred_region
          _
        $region16: #{example_net9_forward.1} parent=11 // pred_fallthru
          _
        // Predicated region
        $region17: #{example_net9_forward.1} parent=11 // pred_check
          %p256 = pneg %p86
        $region18: #{example_net9_forward.1} parent=11 // pred_check_branch
          %258 = sbr.rel (%p256) target = $region20
        $region19: #{example_net9_forward.1} parent=11 // pred_region
          _
        $region20: #{example_net9_forward.1} parent=11 // pred_fallthru
          _
        // Predicated region
        $region21: #{example_net9_forward.1} parent=11 // pred_check
          %p259 = pneg %p107
        $region22: #{example_net9_forward.1} parent=11 // pred_check_branch
          %261 = sbr.rel (%p259) target = $region24
        $region23: #{example_net9_forward.1} parent=11 // pred_region
          _
        $region24: #{example_net9_forward.1} parent=11 // pred_fallthru
          _
        // Predicated region
        $region25: #{example_net9_forward.1} parent=11 // pred_check
          %p262 = pneg %p128
        $region26: #{example_net9_forward.1} parent=11 // pred_check_branch
          %264 = sbr.rel (%p262) target = $region28
        $region27: #{example_net9_forward.1} parent=11 // pred_region
          _
        $region28: #{example_net9_forward.1} parent=11 // pred_fallthru
          _
        // Predicated region
        $region29: #{example_net9_forward.1} parent=11 // pred_check
          %p265 = pneg %p149
        $region30: #{example_net9_forward.1} parent=11 // pred_check_branch
          %267 = sbr.rel (%p265) target = $region32
        $region31: #{example_net9_forward.1} parent=11 // pred_region
          _
        $region32: #{example_net9_forward.1} parent=11 // pred_fallthru
          _
        // Predicated region
        $region33: #{example_net9_forward.1} parent=11 // pred_check
          %p268 = pneg %p170
        $region34: #{example_net9_forward.1} parent=11 // pred_check_branch
          %270 = sbr.rel (%p268) target = $region36
        $region35: #{example_net9_forward.1} parent=11 // pred_region
          _
        $region36: #{example_net9_forward.1} parent=11 // pred_fallthru
          _
        // Predicated region
        $region37: #{example_net9_forward.1} parent=11 // pred_check
          %p271 = pneg %p191
        $region38: #{example_net9_forward.1} parent=11 // pred_check_branch
          %273 = sbr.rel (%p271) target = $region40
        $region39: #{example_net9_forward.1} parent=11 // pred_region
          _
        $region40: #{example_net9_forward.1} parent=11 // pred_fallthru
          _
        // Predicated region
        $region41: #{example_net9_forward.1} parent=11 // pred_check
          %p274 = pneg %p212
        $region42: #{example_net9_forward.1} parent=11 // pred_check_branch
          %276 = sbr.rel (%p274) target = $region44
        $region43: #{example_net9_forward.1} parent=11 // pred_region
          _
        $region44: #{example_net9_forward.1} parent=11 // pred_fallthru
          _
      $region12: #{example_net9_forward.1} parent=5 // pred_fallthru
        _
      %p277 = scmp.lt.s32.totalorder %s18, 2
      // Predicated region
      $region45: #{example_net9_forward.1} parent=5 // pred_check
        %p278 = pneg %p277
      $region46: #{example_net9_forward.1} parent=5 // pred_check_branch
        %280 = sbr.rel (%p278) target = $region48
      $region47: #{example_net9_forward.1} parent=5 // pred_region
        // Predicated region
        $region49: #{example_net9_forward.1} parent=47 // pred_check
          %p281 = pneg %p38
        $region50: #{example_net9_forward.1} parent=47 // pred_check_branch
          %283 = sbr.rel (%p281) target = $region52
        $region51: #{example_net9_forward.1} parent=47 // pred_region
          %s284 = smul.u32 98, %s18
          %p285 = scmp.lt.s32.totalorder %s284, 195
          %s286 = scalar_select %p285, %s284, 195
          %s287 = smul.addr %s286, 8
          %s288 = scalar_lea.vmem %s0, %s287
          %s289 = smul.u32 98, %s18
        $region52: #{example_net9_forward.1} parent=47 // pred_fallthru
          _
      $region48: #{example_net9_forward.1} parent=5 // pred_fallthru
        _
      %p290 = scmp.le.s32.totalorder 1, %s18
      %p291 = scmp.lt.s32.totalorder %s18, 3
      %p292 = pnand %p290, %p291
      %p293 = pneg %p292
      // Predicated region
      $region53: #{example_net9_forward.1} parent=5 // pred_check
        _
      $region54: #{example_net9_forward.1} parent=5 // pred_check_branch
        %295 = sbr.rel (%p292) target = $region56
      $region55: #{example_net9_forward.1} parent=5 // pred_region
        %s296 = ssub.s32 %s18, 1
        %s297 = smul.u32 98, %s23
        %p298 = scmp.lt.s32.totalorder %s297, 195
        %s299 = scalar_select %p298, %s297, 195
        %s300 = smul.addr %s299, 8
        %s301 = scalar_lea.vmem %s0, %s300
        %p302 = pneg %p44
        %p303 = pneg %p41
        %p304 = pneg %p65
        %p305 = pneg %p62
        %p306 = pneg %p86
        %p307 = pneg %p83
        %p308 = pneg %p107
        %p309 = pneg %p104
        %p310 = pneg %p128
        %p311 = pneg %p125
        %p312 = pneg %p149
        %p313 = pneg %p146
        %p314 = pneg %p170
        %p315 = pneg %p167
        %p316 = pneg %p191
        %p317 = pneg %p188
        %p318 = pneg %p212
        %p319 = pneg %p209
        %p320 = pneg %p238
        %p321 = pneg %p235
        %s322 = sand.u32 %s225, 1
        %s323 = scalar_lea.sflag [#allocation9], %s322
        %s324 = sand.u32 %s225, 1
        %s325 = scalar_lea.vmem [#allocation8], %s324
        %s326 = smul.u32 98, %s23
        %p327 = scmp.lt.s32.totalorder %s326, 195
        %s328 = scalar_select %p327, %s326, 195
        %s329 = smul.addr %s328, 8
        %s330 = scalar_lea.vmem %s0, %s329
        %s331 = smul.u32 98, %s23
        %v332 = vld [vmem:[%s330] sm:$0xff]
        %v333 = vld [vmem:[%s330 + $0x8] sm:$0xff]
        %v334 = vld [vmem:[%s330 + $0x10] sm:$0xff]
        %v335 = vld [vmem:[%s330 + $0x18] sm:$0xff]
        %v336 = vld [vmem:[%s330 + $0x20] sm:$0xff]
        %v337 = vld [vmem:[%s330 + $0x28] sm:$0xff]
        %v338 = vld [vmem:[%s330 + $0x30] sm:$0xff]
        %v339 = vld [vmem:[%s330 + $0x38] sm:$0xff]
        %v340 = vld [vmem:[%s330 + $0x40] sm:$0xff]
        %v341 = vld [vmem:[%s330 + $0x48] sm:$0xff]
        %v342 = vld [vmem:[%s330 + $0x50] sm:$0xff]
        %v343 = vld [vmem:[%s330 + $0x58] sm:$0xff]
        %v344 = vld [vmem:[%s330 + $0x60] sm:$0xff]
        %v345 = vld [vmem:[%s330 + $0x68] sm:$0xff]
        %v346 = vld [vmem:[%s330 + $0x70] sm:$0xff]
        %v347 = vld [vmem:[%s330 + $0x78] sm:$0xff]
        %v348 = vld [vmem:[%s330 + $0x80] sm:$0xff]
        %v349 = vld [vmem:[%s330 + $0x88] sm:$0xff]
        %v350 = vld [vmem:[%s330 + $0x90] sm:$0xff]
        %v351 = vld [vmem:[%s330 + $0x98] sm:$0xff]
        %v352 = vld [vmem:[%s330 + $0xa0] sm:$0xff]
        %v353 = vld [vmem:[%s330 + $0xa8] sm:$0xff]
        %v354 = vld [vmem:[%s330 + $0xb0] sm:$0xff]
        %v355 = vld [vmem:[%s330 + $0xb8] sm:$0xff]
        %v356 = vld [vmem:[%s330 + $0xc0] sm:$0xff]
        %v357 = vld [vmem:[%s330 + $0xc8] sm:$0xff]
        %v358 = vld [vmem:[%s330 + $0xd0] sm:$0xff]
        %v359 = vld [vmem:[%s330 + $0xd8] sm:$0xff]
        %v360 = vld [vmem:[%s330 + $0xe0] sm:$0xff]
        %v361 = vld [vmem:[%s330 + $0xe8] sm:$0xff]
        %v362 = vld [vmem:[%s330 + $0xf0] sm:$0xff]
        %v363 = vld [vmem:[%s330 + $0xf8] sm:$0xff]
        %v364 = vld [vmem:[%s330 + $0x100] sm:$0xff]
        %v365 = vld [vmem:[%s330 + $0x108] sm:$0xff]
        %v366 = vld [vmem:[%s330 + $0x110] sm:$0xff]
        %v367 = vld [vmem:[%s330 + $0x118] sm:$0xff]
        %v368 = vld [vmem:[%s330 + $0x120] sm:$0xff]
        %v369 = vld [vmem:[%s330 + $0x128] sm:$0xff]
        %v370 = vld [vmem:[%s330 + $0x130] sm:$0xff]
        %v371 = vld [vmem:[%s330 + $0x138] sm:$0xff]
        %v372 = vld [vmem:[%s330 + $0x140] sm:$0xff]
        %v373 = vld [vmem:[%s330 + $0x148] sm:$0xff]
        %v374 = vld [vmem:[%s330 + $0x150] sm:$0xff]
        %v375 = vld [vmem:[%s330 + $0x158] sm:$0xff]
        %v376 = vld [vmem:[%s330 + $0x160] sm:$0xff]
        %v377 = vld [vmem:[%s330 + $0x168] sm:$0xff]
        %v378 = vld [vmem:[%s330 + $0x170] sm:$0xff]
        %v379 = vld [vmem:[%s330 + $0x178] sm:$0xff]
        %v380 = vld [vmem:[%s330 + $0x180] sm:$0xff]
        %v381 = vld [vmem:[%s330 + $0x188] sm:$0xff]
        %v382 = vld [vmem:[%s330 + $0x190] sm:$0xff]
        %v383 = vld [vmem:[%s330 + $0x198] sm:$0xff]
        %v384 = vld [vmem:[%s330 + $0x1a0] sm:$0xff]
        %v385 = vld [vmem:[%s330 + $0x1a8] sm:$0xff]
        %v386 = vld [vmem:[%s330 + $0x1b0] sm:$0xff]
        %v387 = vld [vmem:[%s330 + $0x1b8] sm:$0xff]
        %v388 = vld [vmem:[%s330 + $0x1c0] sm:$0xff]
        %v389 = vld [vmem:[%s330 + $0x1c8] sm:$0xff]
        %v390 = vld [vmem:[%s330 + $0x1d0] sm:$0xff]
        %v391 = vld [vmem:[%s330 + $0x1d8] sm:$0xff]
        %v392 = vld [vmem:[%s330 + $0x1e0] sm:$0xff]
        %v393 = vld [vmem:[%s330 + $0x1e8] sm:$0xff]
        %v394 = vld [vmem:[%s330 + $0x1f0] sm:$0xff]
        %v395 = vld [vmem:[%s330 + $0x1f8] sm:$0xff]
        %v396 = vld [vmem:[%s330 + $0x200] sm:$0xff]
        %v397 = vld [vmem:[%s330 + $0x208] sm:$0xff]
        %v398 = vld [vmem:[%s330 + $0x210] sm:$0xff]
        %v399 = vld [vmem:[%s330 + $0x218] sm:$0xff]
        %v400 = vld [vmem:[%s330 + $0x220] sm:$0xff]
        %v401 = vld [vmem:[%s330 + $0x228] sm:$0xff]
        %v402 = vld [vmem:[%s330 + $0x230] sm:$0xff]
        %v403 = vld [vmem:[%s330 + $0x238] sm:$0xff]
        %v404 = vld [vmem:[%s330 + $0x240] sm:$0xff]
        %v405 = vld [vmem:[%s330 + $0x248] sm:$0xff]
        %v406 = vld [vmem:[%s330 + $0x250] sm:$0xff]
        %v407 = vld [vmem:[%s330 + $0x258] sm:$0xff]
        %v408 = vld [vmem:[%s330 + $0x260] sm:$0xff]
        %v409 = vld [vmem:[%s330 + $0x268] sm:$0xff]
        %v410 = vld [vmem:[%s330 + $0x270] sm:$0xff]
        %v411 = vld [vmem:[%s330 + $0x278] sm:$0xff]
        %v412 = vld [vmem:[%s330 + $0x280] sm:$0xff]
        %v413 = vld [vmem:[%s330 + $0x288] sm:$0xff]
        %v414 = vld [vmem:[%s330 + $0x290] sm:$0xff]
        %v415 = vld [vmem:[%s330 + $0x298] sm:$0xff]
        %v416 = vld [vmem:[%s330 + $0x2a0] sm:$0xff]
        %v417 = vld [vmem:[%s330 + $0x2a8] sm:$0xff]
        %v418 = vld [vmem:[%s330 + $0x2b0] sm:$0xff]
        %v419 = vld [vmem:[%s330 + $0x2b8] sm:$0xff]
        %v420 = vld [vmem:[%s330 + $0x2c0] sm:$0xff]
        %v421 = vld [vmem:[%s330 + $0x2c8] sm:$0xff]
        %v422 = vld [vmem:[%s330 + $0x2d0] sm:$0xff]
        %v423 = vld [vmem:[%s330 + $0x2d8] sm:$0xff]
        %v424 = vld [vmem:[%s330 + $0x2e0] sm:$0xff]
        %v425 = vld [vmem:[%s330 + $0x2e8] sm:$0xff]
        %v426 = vld [vmem:[%s330 + $0x2f0] sm:$0xff]
        %v427 = vld [vmem:[%s330 + $0x2f8] sm:$0xff]
        %v428 = vld [vmem:[%s330 + $0x300] sm:$0xff]
        %v429 = vld [vmem:[%s330 + $0x308] sm:$0xff]
        %v430 = vld [vmem:[%s1] sm:$0xff]
        %v431 = vld [vmem:[%s1 + $0x8] sm:$0xff]
        %v432 = vld [vmem:[%s1 + $0x10] sm:$0xff]
        %v433 = vld [vmem:[%s1 + $0x18] sm:$0xff]
        %v434 = vld [vmem:[%s1 + $0x20] sm:$0xff]
        %v435 = vld [vmem:[%s1 + $0x28] sm:$0xff]
        %v436 = vld [vmem:[%s1 + $0x30] sm:$0xff]
        %v437 = vld [vmem:[%s1 + $0x38] sm:$0xff]
        %v438 = vld [vmem:[%s1 + $0x40] sm:$0xff]
        %v439 = vld [vmem:[%s1 + $0x48] sm:$0x7]
        %v440 = vld [vmem:[%s2] sm:$0x1]
        %v442 = vlaneseq
        %v443 = vshrl.u32 %v442, 7
        %v444 = vsub.s32 0, %v443
        %v445 = vrot.slane %v440, %v444
        %vm447 = vcmask 613376
        %v449 = vsel %vm447, %v332, 0
        %v452 = vsel %vm447, %v333, 0
        %v455 = vsel %vm447, %v334, 0
        %v458 = vsel %vm447, %v335, 0
        %v461 = vsel %vm447, %v336, 0
        %v464 = vsel %vm447, %v337, 0
        %v467 = vsel %vm447, %v338, 0
        %v470 = vsel %vm447, %v339, 0
        %v473 = vsel %vm447, %v340, 0
        %v476 = vsel %vm447, %v341, 0
        %v479 = vsel %vm447, %v342, 0
        %v482 = vsel %vm447, %v343, 0
        %v485 = vsel %vm447, %v344, 0
        %v488 = vsel %vm447, %v345, 0
        %v491 = vsel %vm447, %v346, 0
        %v494 = vsel %vm447, %v347, 0
        %v497 = vsel %vm447, %v348, 0
        %v500 = vsel %vm447, %v349, 0
        %v503 = vsel %vm447, %v350, 0
        %v506 = vsel %vm447, %v351, 0
        %v509 = vsel %vm447, %v352, 0
        %v512 = vsel %vm447, %v353, 0
        %v515 = vsel %vm447, %v354, 0
        %v518 = vsel %vm447, %v355, 0
        %v521 = vsel %vm447, %v356, 0
        %v524 = vsel %vm447, %v357, 0
        %v527 = vsel %vm447, %v358, 0
        %v530 = vsel %vm447, %v359, 0
        %v533 = vsel %vm447, %v360, 0
        %v536 = vsel %vm447, %v361, 0
        %v539 = vsel %vm447, %v362, 0
        %v542 = vsel %vm447, %v363, 0
        %v545 = vsel %vm447, %v364, 0
        %v548 = vsel %vm447, %v365, 0
        %v551 = vsel %vm447, %v366, 0
        %v554 = vsel %vm447, %v367, 0
        %v557 = vsel %vm447, %v368, 0
        %v560 = vsel %vm447, %v369, 0
        %v563 = vsel %vm447, %v370, 0
        %v566 = vsel %vm447, %v371, 0
        %v569 = vsel %vm447, %v372, 0
        %v572 = vsel %vm447, %v373, 0
        %v575 = vsel %vm447, %v374, 0
        %v578 = vsel %vm447, %v375, 0
        %v581 = vsel %vm447, %v376, 0
        %v584 = vsel %vm447, %v377, 0
        %v587 = vsel %vm447, %v378, 0
        %v590 = vsel %vm447, %v379, 0
        %v593 = vsel %vm447, %v380, 0
        %v596 = vsel %vm447, %v381, 0
        %v599 = vsel %vm447, %v382, 0
        %v602 = vsel %vm447, %v383, 0
        %v605 = vsel %vm447, %v384, 0
        %v608 = vsel %vm447, %v385, 0
        %v611 = vsel %vm447, %v386, 0
        %v614 = vsel %vm447, %v387, 0
        %v617 = vsel %vm447, %v388, 0
        %v620 = vsel %vm447, %v389, 0
        %v623 = vsel %vm447, %v390, 0
        %v626 = vsel %vm447, %v391, 0
        %v629 = vsel %vm447, %v392, 0
        %v632 = vsel %vm447, %v393, 0
        %v635 = vsel %vm447, %v394, 0
        %v638 = vsel %vm447, %v395, 0
        %v641 = vsel %vm447, %v396, 0
        %v644 = vsel %vm447, %v397, 0
        %v647 = vsel %vm447, %v398, 0
        %v650 = vsel %vm447, %v399, 0
        %v653 = vsel %vm447, %v400, 0
        %v656 = vsel %vm447, %v401, 0
        %v659 = vsel %vm447, %v402, 0
        %v662 = vsel %vm447, %v403, 0
        %v665 = vsel %vm447, %v404, 0
        %v668 = vsel %vm447, %v405, 0
        %v671 = vsel %vm447, %v406, 0
        %v674 = vsel %vm447, %v407, 0
        %v677 = vsel %vm447, %v408, 0
        %v680 = vsel %vm447, %v409, 0
        %v683 = vsel %vm447, %v410, 0
        %v686 = vsel %vm447, %v411, 0
        %v689 = vsel %vm447, %v412, 0
        %v692 = vsel %vm447, %v413, 0
        %v695 = vsel %vm447, %v414, 0
        %v698 = vsel %vm447, %v415, 0
        %v701 = vsel %vm447, %v416, 0
        %v704 = vsel %vm447, %v417, 0
        %v707 = vsel %vm447, %v418, 0
        %v710 = vsel %vm447, %v419, 0
        %v713 = vsel %vm447, %v420, 0
        %v716 = vsel %vm447, %v421, 0
        %v719 = vsel %vm447, %v422, 0
        %v722 = vsel %vm447, %v423, 0
        %v725 = vsel %vm447, %v424, 0
        %v728 = vsel %vm447, %v425, 0
        %v731 = vsel %vm447, %v426, 0
        %v734 = vsel %vm447, %v427, 0
        %v737 = vsel %vm447, %v428, 0
        %v740 = vsel %vm447, %v429, 0
        %vm742 = vcmask 1042432
        %v744 = vsel %vm742, %v439, 0
        %746 = vmatprep.subr.mxu0 0.0
        %747 = vmatpush1.msra.mxu0 %v430
        %748 = vmatprep.subr.mxu0 0.0
        %749 = vmatpush1.msra.mxu0 %v431
        %750 = vmatprep.subr.mxu0 0.0
        %751 = vmatpush1.msra.mxu0 %v432
        %752 = vmatprep.subr.mxu0 0.0
        %753 = vmatpush1.msra.mxu0 %v433
        %754 = vmatprep.subr.mxu0 0.0
        %755 = vmatpush1.msra.mxu0 %v434
        %756 = vmatprep.subr.mxu0 0.0
        %757 = vmatpush1.msra.mxu0 %v435
        %758 = vmatprep.subr.mxu0 0.0
        %759 = vmatpush1.msra.mxu0 %v436
        %760 = vmatprep.subr.mxu0 0.0
        %761 = vmatpush1.msra.mxu0 %v437
        %762 = vmatprep.subr.mxu0 0.0
        %763 = vmatpush1.msra.mxu0 %v438
        %764 = vmatprep.subr.mxu0 0.0
        %765 = vmatpush1.msra.mxu0 %v744
        %766 = vmatprep.subr.mxu0 0.0
        %767 = vmatpush1.msra.mxu0 0.0
        %768 = vmatprep.subr.mxu0 0.0
        %769 = vmatpush1.msra.mxu0 0.0
        %770 = vmatprep.subr.mxu0 0.0
        %771 = vmatpush1.msra.mxu0 0.0
        %772 = vmatprep.subr.mxu0 0.0
        %773 = vmatpush1.msra.mxu0 0.0
        %774 = vmatprep.subr.mxu0 0.0
        %775 = vmatpush1.msra.mxu0 0.0
        %776 = vmatprep.subr.mxu0 0.0
        %777 = vmatpush1.msra.mxu0 0.0
        %778 = vmatprep.subr.mxu0 0.0
        %779 = vmatpush1.msra.mxu0 0.0
        %780 = vmatprep.subr.mxu0 0.0
        %781 = vmatpush1.msra.mxu0 0.0
        %782 = vmatprep.subr.mxu0 0.0
        %783 = vmatpush1.msra.mxu0 0.0
        %784 = vmatprep.subr.mxu0 0.0
        %785 = vmatpush1.msra.mxu0 0.0
        %786 = vmatprep.subr.mxu0 0.0
        %787 = vmatpush1.msra.mxu0 0.0
        %788 = vmatprep.subr.mxu0 0.0
        %789 = vmatpush1.msra.mxu0 0.0
        %790 = vmatprep.subr.mxu0 0.0
        %791 = vmatpush1.msra.mxu0 0.0
        %792 = vmatprep.subr.mxu0 0.0
        %793 = vmatpush1.msra.mxu0 0.0
        %794 = vmatprep.subr.mxu0 0.0
        %795 = vmatpush1.msra.mxu0 0.0
        %796 = vmatprep.subr.mxu0 0.0
        %797 = vmatpush1.msra.mxu0 0.0
        %798 = vmatprep.subr.mxu0 0.0
        %799 = vmatpush1.msra.mxu0 0.0
        %800 = vmatprep.subr.mxu0 0.0
        %801 = vmatpush1.msra.mxu0 0.0
        %802 = vmatprep.subr.mxu0 0.0
        %803 = vmatpush1.msra.mxu0 0.0
        %804 = vmatprep.subr.mxu0 0.0
        %805 = vmatpush1.msra.mxu0 0.0
        %806 = vmatprep.subr.mxu0 0.0
        %807 = vmatpush1.msra.mxu0 0.0
        %808 = vmatprep.subr.mxu0 0.0
        %809 = vmatpush1.msra.mxu0 0.0
        %810 = vmatprep.mubr.f32.mxu0 0.0
        %811 = vmatmul.mubr.f32.gmra.mrb[0].mxu0 %v449
        %v812 = vpop.f32.mrb[0].mxu0
        %v813 = vadd.f32 %v445, %v812
        %v814 = vpop.f32.mrb[0].mxu0
        %815 = vmatprep.mubr.f32.mxu0 0.0
        %816 = vmatmul.mubr.f32.gmra.mrb[0].mxu0 %v452
        %v817 = vpop.f32.mrb[0].mxu0
        %v818 = vadd.f32 %v445, %v817
        %v819 = vpop.f32.mrb[0].mxu0
        %820 = vmatprep.mubr.f32.mxu0 0.0
        %821 = vmatmul.mubr.f32.gmra.mrb[0].mxu0 %v455
        %v822 = vpop.f32.mrb[0].mxu0
        %v823 = vadd.f32 %v445, %v822
        %v824 = vpop.f32.mrb[0].mxu0
        %825 = vmatprep.mubr.f32.mxu0 0.0
        %826 = vmatmul.mubr.f32.gmra.mrb[0].mxu0 %v458
        %v827 = vpop.f32.mrb[0].mxu0
        %v828 = vadd.f32 %v445, %v827
        %v829 = vpop.f32.mrb[0].mxu0
        %830 = vmatprep.mubr.f32.mxu0 0.0
        %831 = vmatmul.mubr.f32.gmra.mrb[0].mxu0 %v461
        %v832 = vpop.f32.mrb[0].mxu0
        %v833 = vadd.f32 %v445, %v832
        %v834 = vpop.f32.mrb[0].mxu0
        %835 = vmatprep.mubr.f32.mxu0 0.0
        %836 = vmatmul.mubr.f32.gmra.mrb[0].mxu0 %v464
        %v837 = vpop.f32.mrb[0].mxu0
        %v838 = vadd.f32 %v445, %v837
        %v839 = vpop.f32.mrb[0].mxu0
        %840 = vmatprep.mubr.f32.mxu0 0.0
        %841 = vmatmul.mubr.f32.gmra.mrb[0].mxu0 %v467
        %v842 = vpop.f32.mrb[0].mxu0
        %v843 = vadd.f32 %v445, %v842
        %v844 = vpop.f32.mrb[0].mxu0
        %845 = vmatprep.mubr.f32.mxu0 0.0
        %846 = vmatmul.mubr.f32.gmra.mrb[0].mxu0 %v470
        %v847 = vpop.f32.mrb[0].mxu0
        %v848 = vadd.f32 %v445, %v847
        %v849 = vpop.f32.mrb[0].mxu0
        %850 = vmatprep.mubr.f32.mxu0 0.0
        %851 = vmatmul.mubr.f32.gmra.mrb[0].mxu0 %v473
        %v852 = vpop.f32.mrb[0].mxu0
        %v853 = vadd.f32 %v445, %v852
        %v854 = vpop.f32.mrb[0].mxu0
        %855 = vmatprep.mubr.f32.mxu0 0.0
        %856 = vmatmul.mubr.f32.gmra.mrb[0].mxu0 %v476
        %v857 = vpop.f32.mrb[0].mxu0
        %v858 = vadd.f32 %v445, %v857
        %v859 = vpop.f32.mrb[0].mxu0
        %860 = vmatprep.mubr.f32.mxu0 0.0
        %861 = vmatmul.mubr.f32.gmra.mrb[0].mxu0 %v479
        %v862 = vpop.f32.mrb[0].mxu0
        %v863 = vadd.f32 %v445, %v862
        %v864 = vpop.f32.mrb[0].mxu0
        %865 = vmatprep.mubr.f32.mxu0 0.0
        %866 = vmatmul.mubr.f32.gmra.mrb[0].mxu0 %v482
        %v867 = vpop.f32.mrb[0].mxu0
        %v868 = vadd.f32 %v445, %v867
        %v869 = vpop.f32.mrb[0].mxu0
        %870 = vmatprep.mubr.f32.mxu0 0.0
        %871 = vmatmul.mubr.f32.gmra.mrb[0].mxu0 %v485
        %v872 = vpop.f32.mrb[0].mxu0
        %v873 = vadd.f32 %v445, %v872
        %v874 = vpop.f32.mrb[0].mxu0
        %875 = vmatprep.mubr.f32.mxu0 0.0
        %876 = vmatmul.mubr.f32.gmra.mrb[0].mxu0 %v488
        %v877 = vpop.f32.mrb[0].mxu0
        %v878 = vadd.f32 %v445, %v877
        %v879 = vpop.f32.mrb[0].mxu0
        %880 = vmatprep.mubr.f32.mxu0 0.0
        %881 = vmatmul.mubr.f32.gmra.mrb[0].mxu0 %v491
        %v882 = vpop.f32.mrb[0].mxu0
        %v883 = vadd.f32 %v445, %v882
        %v884 = vpop.f32.mrb[0].mxu0
        %885 = vmatprep.mubr.f32.mxu0 0.0
        %886 = vmatmul.mubr.f32.gmra.mrb[0].mxu0 %v494
        %v887 = vpop.f32.mrb[0].mxu0
        %v888 = vadd.f32 %v445, %v887
        %v889 = vpop.f32.mrb[0].mxu0
        %890 = vmatprep.mubr.f32.mxu0 0.0
        %891 = vmatmul.mubr.f32.gmra.mrb[0].mxu0 %v497
        %v892 = vpop.f32.mrb[0].mxu0
        %v893 = vadd.f32 %v445, %v892
        %v894 = vpop.f32.mrb[0].mxu0
        %895 = vmatprep.mubr.f32.mxu0 0.0
        %896 = vmatmul.mubr.f32.gmra.mrb[0].mxu0 %v500
        %v897 = vpop.f32.mrb[0].mxu0
        %v898 = vadd.f32 %v445, %v897
        %v899 = vpop.f32.mrb[0].mxu0
        %900 = vmatprep.mubr.f32.mxu0 0.0
        %901 = vmatmul.mubr.f32.gmra.mrb[0].mxu0 %v503
        %v902 = vpop.f32.mrb[0].mxu0
        %v903 = vadd.f32 %v445, %v902
        %v904 = vpop.f32.mrb[0].mxu0
        %905 = vmatprep.mubr.f32.mxu0 0.0
        %906 = vmatmul.mubr.f32.gmra.mrb[0].mxu0 %v506
        %v907 = vpop.f32.mrb[0].mxu0
        %v908 = vadd.f32 %v445, %v907
        %v909 = vpop.f32.mrb[0].mxu0
        %910 = vmatprep.mubr.f32.mxu0 0.0
        %911 = vmatmul.mubr.f32.gmra.mrb[0].mxu0 %v509
        %v912 = vpop.f32.mrb[0].mxu0
        %v913 = vadd.f32 %v445, %v912
        %v914 = vpop.f32.mrb[0].mxu0
        %915 = vmatprep.mubr.f32.mxu0 0.0
        %916 = vmatmul.mubr.f32.gmra.mrb[0].mxu0 %v512
        %v917 = vpop.f32.mrb[0].mxu0
        %v918 = vadd.f32 %v445, %v917
        %v919 = vpop.f32.mrb[0].mxu0
        %920 = vmatprep.mubr.f32.mxu0 0.0
        %921 = vmatmul.mubr.f32.gmra.mrb[0].mxu0 %v515
        %v922 = vpop.f32.mrb[0].mxu0
        %v923 = vadd.f32 %v445, %v922
        %v924 = vpop.f32.mrb[0].mxu0
        %925 = vmatprep.mubr.f32.mxu0 0.0
        %926 = vmatmul.mubr.f32.gmra.mrb[0].mxu0 %v518
        %v927 = vpop.f32.mrb[0].mxu0
        %v928 = vadd.f32 %v445, %v927
        %v929 = vpop.f32.mrb[0].mxu0
        %930 = vmatprep.mubr.f32.mxu0 0.0
        %931 = vmatmul.mubr.f32.gmra.mrb[0].mxu0 %v521
        %v932 = vpop.f32.mrb[0].mxu0
        %v933 = vadd.f32 %v445, %v932
        %v934 = vpop.f32.mrb[0].mxu0
        %935 = vmatprep.mubr.f32.mxu0 0.0
        %936 = vmatmul.mubr.f32.gmra.mrb[0].mxu0 %v524
        %v937 = vpop.f32.mrb[0].mxu0
        %v938 = vadd.f32 %v445, %v937
        %v939 = vpop.f32.mrb[0].mxu0
        %940 = vmatprep.mubr.f32.mxu0 0.0
        %941 = vmatmul.mubr.f32.gmra.mrb[0].mxu0 %v527
        %v942 = vpop.f32.mrb[0].mxu0
        %v943 = vadd.f32 %v445, %v942
        %v944 = vpop.f32.mrb[0].mxu0
        %945 = vmatprep.mubr.f32.mxu0 0.0
        %946 = vmatmul.mubr.f32.gmra.mrb[0].mxu0 %v530
        %v947 = vpop.f32.mrb[0].mxu0
        %v948 = vadd.f32 %v445, %v947
        %v949 = vpop.f32.mrb[0].mxu0
        %950 = vmatprep.mubr.f32.mxu0 0.0
        %951 = vmatmul.mubr.f32.gmra.mrb[0].mxu0 %v533
        %v952 = vpop.f32.mrb[0].mxu0
        %v953 = vadd.f32 %v445, %v952
        %v954 = vpop.f32.mrb[0].mxu0
        %955 = vmatprep.mubr.f32.mxu0 0.0
        %956 = vmatmul.mubr.f32.gmra.mrb[0].mxu0 %v536
        %v957 = vpop.f32.mrb[0].mxu0
        %v958 = vadd.f32 %v445, %v957
        %v959 = vpop.f32.mrb[0].mxu0
        %960 = vmatprep.mubr.f32.mxu0 0.0
        %961 = vmatmul.mubr.f32.gmra.mrb[0].mxu0 %v539
        %v962 = vpop.f32.mrb[0].mxu0
        %v963 = vadd.f32 %v445, %v962
        %v964 = vpop.f32.mrb[0].mxu0
        %965 = vmatprep.mubr.f32.mxu0 0.0
        %966 = vmatmul.mubr.f32.gmra.mrb[0].mxu0 %v542
        %v967 = vpop.f32.mrb[0].mxu0
        %v968 = vadd.f32 %v445, %v967
        %v969 = vpop.f32.mrb[0].mxu0
        %970 = vmatprep.mubr.f32.mxu0 0.0
        %971 = vmatmul.mubr.f32.gmra.mrb[0].mxu0 %v545
        %v972 = vpop.f32.mrb[0].mxu0
        %v973 = vadd.f32 %v445, %v972
        %v974 = vpop.f32.mrb[0].mxu0
        %975 = vmatprep.mubr.f32.mxu0 0.0
        %976 = vmatmul.mubr.f32.gmra.mrb[0].mxu0 %v548
        %v977 = vpop.f32.mrb[0].mxu0
        %v978 = vadd.f32 %v445, %v977
        %v979 = vpop.f32.mrb[0].mxu0
        %980 = vmatprep.mubr.f32.mxu0 0.0
        %981 = vmatmul.mubr.f32.gmra.mrb[0].mxu0 %v551
        %v982 = vpop.f32.mrb[0].mxu0
        %v983 = vadd.f32 %v445, %v982
        %v984 = vpop.f32.mrb[0].mxu0
        %985 = vmatprep.mubr.f32.mxu0 0.0
        %986 = vmatmul.mubr.f32.gmra.mrb[0].mxu0 %v554
        %v987 = vpop.f32.mrb[0].mxu0
        %v988 = vadd.f32 %v445, %v987
        %v989 = vpop.f32.mrb[0].mxu0
        %990 = vmatprep.mubr.f32.mxu0 0.0
        %991 = vmatmul.mubr.f32.gmra.mrb[0].mxu0 %v557
        %v992 = vpop.f32.mrb[0].mxu0
        %v993 = vadd.f32 %v445, %v992
        %v994 = vpop.f32.mrb[0].mxu0
        %995 = vmatprep.mubr.f32.mxu0 0.0
        %996 = vmatmul.mubr.f32.gmra.mrb[0].mxu0 %v560
        %v997 = vpop.f32.mrb[0].mxu0
        %v998 = vadd.f32 %v445, %v997
        %v999 = vpop.f32.mrb[0].mxu0
        %1000 = vmatprep.mubr.f32.mxu0 0.0
        %1001 = vmatmul.mubr.f32.gmra.mrb[0].mxu0 %v563
        %v1002 = vpop.f32.mrb[0].mxu0
        %v1003 = vadd.f32 %v445, %v1002
        %v1004 = vpop.f32.mrb[0].mxu0
        %1005 = vmatprep.mubr.f32.mxu0 0.0
        %1006 = vmatmul.mubr.f32.gmra.mrb[0].mxu0 %v566
        %v1007 = vpop.f32.mrb[0].mxu0
        %v1008 = vadd.f32 %v445, %v1007
        %v1009 = vpop.f32.mrb[0].mxu0
        %1010 = vmatprep.mubr.f32.mxu0 0.0
        %1011 = vmatmul.mubr.f32.gmra.mrb[0].mxu0 %v569
        %v1012 = vpop.f32.mrb[0].mxu0
        %v1013 = vadd.f32 %v445, %v1012
        %v1014 = vpop.f32.mrb[0].mxu0
        %1015 = vmatprep.mubr.f32.mxu0 0.0
        %1016 = vmatmul.mubr.f32.gmra.mrb[0].mxu0 %v572
        %v1017 = vpop.f32.mrb[0].mxu0
        %v1018 = vadd.f32 %v445, %v1017
        %v1019 = vpop.f32.mrb[0].mxu0
        %1020 = vmatprep.mubr.f32.mxu0 0.0
        %1021 = vmatmul.mubr.f32.gmra.mrb[0].mxu0 %v575
        %v1022 = vpop.f32.mrb[0].mxu0
        %v1023 = vadd.f32 %v445, %v1022
        %v1024 = vpop.f32.mrb[0].mxu0
        %1025 = vmatprep.mubr.f32.mxu0 0.0
        %1026 = vmatmul.mubr.f32.gmra.mrb[0].mxu0 %v578
        %v1027 = vpop.f32.mrb[0].mxu0
        %v1028 = vadd.f32 %v445, %v1027
        %v1029 = vpop.f32.mrb[0].mxu0
        %1030 = vmatprep.mubr.f32.mxu0 0.0
        %1031 = vmatmul.mubr.f32.gmra.mrb[0].mxu0 %v581
        %v1032 = vpop.f32.mrb[0].mxu0
        %v1033 = vadd.f32 %v445, %v1032
        %v1034 = vpop.f32.mrb[0].mxu0
        %1035 = vmatprep.mubr.f32.mxu0 0.0
        %1036 = vmatmul.mubr.f32.gmra.mrb[0].mxu0 %v584
        %v1037 = vpop.f32.mrb[0].mxu0
        %v1038 = vadd.f32 %v445, %v1037
        %v1039 = vpop.f32.mrb[0].mxu0
        %1040 = vmatprep.mubr.f32.mxu0 0.0
        %1041 = vmatmul.mubr.f32.gmra.mrb[0].mxu0 %v587
        %v1042 = vpop.f32.mrb[0].mxu0
        %v1043 = vadd.f32 %v445, %v1042
        %v1044 = vpop.f32.mrb[0].mxu0
        %1045 = vmatprep.mubr.f32.mxu0 0.0
        %1046 = vmatmul.mubr.f32.gmra.mrb[0].mxu0 %v590
        %v1047 = vpop.f32.mrb[0].mxu0
        %v1048 = vadd.f32 %v445, %v1047
        %v1049 = vpop.f32.mrb[0].mxu0
        %1050 = vmatprep.mubr.f32.mxu0 0.0
        %1051 = vmatmul.mubr.f32.gmra.mrb[0].mxu0 %v593
        %v1052 = vpop.f32.mrb[0].mxu0
        %v1053 = vadd.f32 %v445, %v1052
        %v1054 = vpop.f32.mrb[0].mxu0
        %1055 = vmatprep.mubr.f32.mxu0 0.0
        %1056 = vmatmul.mubr.f32.gmra.mrb[0].mxu0 %v596
        %v1057 = vpop.f32.mrb[0].mxu0
        %v1058 = vadd.f32 %v445, %v1057
        %v1059 = vpop.f32.mrb[0].mxu0
        %1060 = vmatprep.mubr.f32.mxu0 0.0
        %1061 = vmatmul.mubr.f32.gmra.mrb[0].mxu0 %v599
        %v1062 = vpop.f32.mrb[0].mxu0
        %v1063 = vadd.f32 %v445, %v1062
        %v1064 = vpop.f32.mrb[0].mxu0
        %1065 = vmatprep.mubr.f32.mxu0 0.0
        %1066 = vmatmul.mubr.f32.gmra.mrb[0].mxu0 %v602
        %v1067 = vpop.f32.mrb[0].mxu0
        %v1068 = vadd.f32 %v445, %v1067
        %v1069 = vpop.f32.mrb[0].mxu0
        %1070 = vmatprep.mubr.f32.mxu0 0.0
        %1071 = vmatmul.mubr.f32.gmra.mrb[0].mxu0 %v605
        %v1072 = vpop.f32.mrb[0].mxu0
        %v1073 = vadd.f32 %v445, %v1072
        %v1074 = vpop.f32.mrb[0].mxu0
        %1075 = vmatprep.mubr.f32.mxu0 0.0
        %1076 = vmatmul.mubr.f32.gmra.mrb[0].mxu0 %v608
        %v1077 = vpop.f32.mrb[0].mxu0
        %v1078 = vadd.f32 %v445, %v1077
        %v1079 = vpop.f32.mrb[0].mxu0
        %1080 = vmatprep.mubr.f32.mxu0 0.0
        %1081 = vmatmul.mubr.f32.gmra.mrb[0].mxu0 %v611
        %v1082 = vpop.f32.mrb[0].mxu0
        %v1083 = vadd.f32 %v445, %v1082
        %v1084 = vpop.f32.mrb[0].mxu0
        %1085 = vmatprep.mubr.f32.mxu0 0.0
        %1086 = vmatmul.mubr.f32.gmra.mrb[0].mxu0 %v614
        %v1087 = vpop.f32.mrb[0].mxu0
        %v1088 = vadd.f32 %v445, %v1087
        %v1089 = vpop.f32.mrb[0].mxu0
        %1090 = vmatprep.mubr.f32.mxu0 0.0
        %1091 = vmatmul.mubr.f32.gmra.mrb[0].mxu0 %v617
        %v1092 = vpop.f32.mrb[0].mxu0
        %v1093 = vadd.f32 %v445, %v1092
        %v1094 = vpop.f32.mrb[0].mxu0
        %1095 = vmatprep.mubr.f32.mxu0 0.0
        %1096 = vmatmul.mubr.f32.gmra.mrb[0].mxu0 %v620
        %v1097 = vpop.f32.mrb[0].mxu0
        %v1098 = vadd.f32 %v445, %v1097
        %v1099 = vpop.f32.mrb[0].mxu0
        %1100 = vmatprep.mubr.f32.mxu0 0.0
        %1101 = vmatmul.mubr.f32.gmra.mrb[0].mxu0 %v623
        %v1102 = vpop.f32.mrb[0].mxu0
        %v1103 = vadd.f32 %v445, %v1102
        %v1104 = vpop.f32.mrb[0].mxu0
        %1105 = vmatprep.mubr.f32.mxu0 0.0
        %1106 = vmatmul.mubr.f32.gmra.mrb[0].mxu0 %v626
        %v1107 = vpop.f32.mrb[0].mxu0
        %v1108 = vadd.f32 %v445, %v1107
        %v1109 = vpop.f32.mrb[0].mxu0
        %1110 = vmatprep.mubr.f32.mxu0 0.0
        %1111 = vmatmul.mubr.f32.gmra.mrb[0].mxu0 %v629
        %v1112 = vpop.f32.mrb[0].mxu0
        %v1113 = vadd.f32 %v445, %v1112
        %v1114 = vpop.f32.mrb[0].mxu0
        %1115 = vmatprep.mubr.f32.mxu0 0.0
        %1116 = vmatmul.mubr.f32.gmra.mrb[0].mxu0 %v632
        %v1117 = vpop.f32.mrb[0].mxu0
        %v1118 = vadd.f32 %v445, %v1117
        %v1119 = vpop.f32.mrb[0].mxu0
        %1120 = vmatprep.mubr.f32.mxu0 0.0
        %1121 = vmatmul.mubr.f32.gmra.mrb[0].mxu0 %v635
        %v1122 = vpop.f32.mrb[0].mxu0
        %v1123 = vadd.f32 %v445, %v1122
        %v1124 = vpop.f32.mrb[0].mxu0
        %1125 = vmatprep.mubr.f32.mxu0 0.0
        %1126 = vmatmul.mubr.f32.gmra.mrb[0].mxu0 %v638
        %v1127 = vpop.f32.mrb[0].mxu0
        %v1128 = vadd.f32 %v445, %v1127
        %v1129 = vpop.f32.mrb[0].mxu0
        %1130 = vmatprep.mubr.f32.mxu0 0.0
        %1131 = vmatmul.mubr.f32.gmra.mrb[0].mxu0 %v641
        %v1132 = vpop.f32.mrb[0].mxu0
        %v1133 = vadd.f32 %v445, %v1132
        %v1134 = vpop.f32.mrb[0].mxu0
        %1135 = vmatprep.mubr.f32.mxu0 0.0
        %1136 = vmatmul.mubr.f32.gmra.mrb[0].mxu0 %v644
        %v1137 = vpop.f32.mrb[0].mxu0
        %v1138 = vadd.f32 %v445, %v1137
        %v1139 = vpop.f32.mrb[0].mxu0
        %1140 = vmatprep.mubr.f32.mxu0 0.0
        %1141 = vmatmul.mubr.f32.gmra.mrb[0].mxu0 %v647
        %v1142 = vpop.f32.mrb[0].mxu0
        %v1143 = vadd.f32 %v445, %v1142
        %v1144 = vpop.f32.mrb[0].mxu0
        %1145 = vmatprep.mubr.f32.mxu0 0.0
        %1146 = vmatmul.mubr.f32.gmra.mrb[0].mxu0 %v650
        %v1147 = vpop.f32.mrb[0].mxu0
        %v1148 = vadd.f32 %v445, %v1147
        %v1149 = vpop.f32.mrb[0].mxu0
        %1150 = vmatprep.mubr.f32.mxu0 0.0
        %1151 = vmatmul.mubr.f32.gmra.mrb[0].mxu0 %v653
        %v1152 = vpop.f32.mrb[0].mxu0
        %v1153 = vadd.f32 %v445, %v1152
        %v1154 = vpop.f32.mrb[0].mxu0
        %1155 = vmatprep.mubr.f32.mxu0 0.0
        %1156 = vmatmul.mubr.f32.gmra.mrb[0].mxu0 %v656
        %v1157 = vpop.f32.mrb[0].mxu0
        %v1158 = vadd.f32 %v445, %v1157
        %v1159 = vpop.f32.mrb[0].mxu0
        %1160 = vmatprep.mubr.f32.mxu0 0.0
        %1161 = vmatmul.mubr.f32.gmra.mrb[0].mxu0 %v659
        %v1162 = vpop.f32.mrb[0].mxu0
        %v1163 = vadd.f32 %v445, %v1162
        %v1164 = vpop.f32.mrb[0].mxu0
        %1165 = vmatprep.mubr.f32.mxu0 0.0
        %1166 = vmatmul.mubr.f32.gmra.mrb[0].mxu0 %v662
        %v1167 = vpop.f32.mrb[0].mxu0
        %v1168 = vadd.f32 %v445, %v1167
        %v1169 = vpop.f32.mrb[0].mxu0
        %1170 = vmatprep.mubr.f32.mxu0 0.0
        %1171 = vmatmul.mubr.f32.gmra.mrb[0].mxu0 %v665
        %v1172 = vpop.f32.mrb[0].mxu0
        %v1173 = vadd.f32 %v445, %v1172
        %v1174 = vpop.f32.mrb[0].mxu0
        %1175 = vmatprep.mubr.f32.mxu0 0.0
        %1176 = vmatmul.mubr.f32.gmra.mrb[0].mxu0 %v668
        %v1177 = vpop.f32.mrb[0].mxu0
        %v1178 = vadd.f32 %v445, %v1177
        %v1179 = vpop.f32.mrb[0].mxu0
        %1180 = vmatprep.mubr.f32.mxu0 0.0
        %1181 = vmatmul.mubr.f32.gmra.mrb[0].mxu0 %v671
        %v1182 = vpop.f32.mrb[0].mxu0
        %v1183 = vadd.f32 %v445, %v1182
        %v1184 = vpop.f32.mrb[0].mxu0
        %1185 = vmatprep.mubr.f32.mxu0 0.0
        %1186 = vmatmul.mubr.f32.gmra.mrb[0].mxu0 %v674
        %v1187 = vpop.f32.mrb[0].mxu0
        %v1188 = vadd.f32 %v445, %v1187
        %v1189 = vpop.f32.mrb[0].mxu0
        %1190 = vmatprep.mubr.f32.mxu0 0.0
        %1191 = vmatmul.mubr.f32.gmra.mrb[0].mxu0 %v677
        %v1192 = vpop.f32.mrb[0].mxu0
        %v1193 = vadd.f32 %v445, %v1192
        %v1194 = vpop.f32.mrb[0].mxu0
        %1195 = vmatprep.mubr.f32.mxu0 0.0
        %1196 = vmatmul.mubr.f32.gmra.mrb[0].mxu0 %v680
        %v1197 = vpop.f32.mrb[0].mxu0
        %v1198 = vadd.f32 %v445, %v1197
        %v1199 = vpop.f32.mrb[0].mxu0
        %1200 = vmatprep.mubr.f32.mxu0 0.0
        %1201 = vmatmul.mubr.f32.gmra.mrb[0].mxu0 %v683
        %v1202 = vpop.f32.mrb[0].mxu0
        %v1203 = vadd.f32 %v445, %v1202
        %v1204 = vpop.f32.mrb[0].mxu0
        %1205 = vmatprep.mubr.f32.mxu0 0.0
        %1206 = vmatmul.mubr.f32.gmra.mrb[0].mxu0 %v686
        %v1207 = vpop.f32.mrb[0].mxu0
        %v1208 = vadd.f32 %v445, %v1207
        %v1209 = vpop.f32.mrb[0].mxu0
        %1210 = vmatprep.mubr.f32.mxu0 0.0
        %1211 = vmatmul.mubr.f32.gmra.mrb[0].mxu0 %v689
        %v1212 = vpop.f32.mrb[0].mxu0
        %v1213 = vadd.f32 %v445, %v1212
        %v1214 = vpop.f32.mrb[0].mxu0
        %1215 = vmatprep.mubr.f32.mxu0 0.0
        %1216 = vmatmul.mubr.f32.gmra.mrb[0].mxu0 %v692
        %v1217 = vpop.f32.mrb[0].mxu0
        %v1218 = vadd.f32 %v445, %v1217
        %v1219 = vpop.f32.mrb[0].mxu0
        %1220 = vmatprep.mubr.f32.mxu0 0.0
        %1221 = vmatmul.mubr.f32.gmra.mrb[0].mxu0 %v695
        %v1222 = vpop.f32.mrb[0].mxu0
        %v1223 = vadd.f32 %v445, %v1222
        %v1224 = vpop.f32.mrb[0].mxu0
        %1225 = vmatprep.mubr.f32.mxu0 0.0
        %1226 = vmatmul.mubr.f32.gmra.mrb[0].mxu0 %v698
        %v1227 = vpop.f32.mrb[0].mxu0
        %v1228 = vadd.f32 %v445, %v1227
        %v1229 = vpop.f32.mrb[0].mxu0
        %1230 = vmatprep.mubr.f32.mxu0 0.0
        %1231 = vmatmul.mubr.f32.gmra.mrb[0].mxu0 %v701
        %v1232 = vpop.f32.mrb[0].mxu0
        %v1233 = vadd.f32 %v445, %v1232
        %v1234 = vpop.f32.mrb[0].mxu0
        %1235 = vmatprep.mubr.f32.mxu0 0.0
        %1236 = vmatmul.mubr.f32.gmra.mrb[0].mxu0 %v704
        %v1237 = vpop.f32.mrb[0].mxu0
        %v1238 = vadd.f32 %v445, %v1237
        %v1239 = vpop.f32.mrb[0].mxu0
        %1240 = vmatprep.mubr.f32.mxu0 0.0
        %1241 = vmatmul.mubr.f32.gmra.mrb[0].mxu0 %v707
        %v1242 = vpop.f32.mrb[0].mxu0
        %v1243 = vadd.f32 %v445, %v1242
        %v1244 = vpop.f32.mrb[0].mxu0
        %1245 = vmatprep.mubr.f32.mxu0 0.0
        %1246 = vmatmul.mubr.f32.gmra.mrb[0].mxu0 %v710
        %v1247 = vpop.f32.mrb[0].mxu0
        %v1248 = vadd.f32 %v445, %v1247
        %v1249 = vpop.f32.mrb[0].mxu0
        %1250 = vmatprep.mubr.f32.mxu0 0.0
        %1251 = vmatmul.mubr.f32.gmra.mrb[0].mxu0 %v713
        %v1252 = vpop.f32.mrb[0].mxu0
        %v1253 = vadd.f32 %v445, %v1252
        %v1254 = vpop.f32.mrb[0].mxu0
        %1255 = vmatprep.mubr.f32.mxu0 0.0
        %1256 = vmatmul.mubr.f32.gmra.mrb[0].mxu0 %v716
        %v1257 = vpop.f32.mrb[0].mxu0
        %v1258 = vadd.f32 %v445, %v1257
        %v1259 = vpop.f32.mrb[0].mxu0
        %1260 = vmatprep.mubr.f32.mxu0 0.0
        %1261 = vmatmul.mubr.f32.gmra.mrb[0].mxu0 %v719
        %v1262 = vpop.f32.mrb[0].mxu0
        %v1263 = vadd.f32 %v445, %v1262
        %v1264 = vpop.f32.mrb[0].mxu0
        %1265 = vmatprep.mubr.f32.mxu0 0.0
        %1266 = vmatmul.mubr.f32.gmra.mrb[0].mxu0 %v722
        %v1267 = vpop.f32.mrb[0].mxu0
        %v1268 = vadd.f32 %v445, %v1267
        %v1269 = vpop.f32.mrb[0].mxu0
        %1270 = vmatprep.mubr.f32.mxu0 0.0
        %1271 = vmatmul.mubr.f32.gmra.mrb[0].mxu0 %v725
        %v1272 = vpop.f32.mrb[0].mxu0
        %v1273 = vadd.f32 %v445, %v1272
        %v1274 = vpop.f32.mrb[0].mxu0
        %1275 = vmatprep.mubr.f32.mxu0 0.0
        %1276 = vmatmul.mubr.f32.gmra.mrb[0].mxu0 %v728
        %v1277 = vpop.f32.mrb[0].mxu0
        %v1278 = vadd.f32 %v445, %v1277
        %v1279 = vpop.f32.mrb[0].mxu0
        %1280 = vmatprep.mubr.f32.mxu0 0.0
        %1281 = vmatmul.mubr.f32.gmra.mrb[0].mxu0 %v731
        %v1282 = vpop.f32.mrb[0].mxu0
        %v1283 = vadd.f32 %v445, %v1282
        %v1284 = vpop.f32.mrb[0].mxu0
        %1285 = vmatprep.mubr.f32.mxu0 0.0
        %1286 = vmatmul.mubr.f32.gmra.mrb[0].mxu0 %v734
        %v1287 = vpop.f32.mrb[0].mxu0
        %v1288 = vadd.f32 %v445, %v1287
        %v1289 = vpop.f32.mrb[0].mxu0
        %1290 = vmatprep.mubr.f32.mxu0 0.0
        %1291 = vmatmul.mubr.f32.gmra.mrb[0].mxu0 %v737
        %v1292 = vpop.f32.mrb[0].mxu0
        %v1293 = vadd.f32 %v445, %v1292
        %v1294 = vpop.f32.mrb[0].mxu0
        %1295 = vmatprep.mubr.f32.mxu0 0.0
        %1296 = vmatmul.mubr.f32.gmra.mrb[0].mxu0 %v740
        %v1297 = vpop.f32.mrb[0].mxu0
        %v1298 = vadd.f32 %v445, %v1297
        %v1299 = vpop.f32.mrb[0].mxu0
        %1300 = vdwg.mxu0
        %v1301 = vmax.f32 %v813, 0.0
        %v1302 = vmax.f32 %v818, 0.0
        %v1303 = vmax.f32 %v823, 0.0
        %v1304 = vmax.f32 %v828, 0.0
        %v1305 = vmax.f32 %v833, 0.0
        %v1306 = vmax.f32 %v838, 0.0
        %v1307 = vmax.f32 %v843, 0.0
        %v1308 = vmax.f32 %v848, 0.0
        %v1309 = vmax.f32 %v853, 0.0
        %v1310 = vmax.f32 %v858, 0.0
        %v1311 = vmax.f32 %v863, 0.0
        %v1312 = vmax.f32 %v868, 0.0
        %v1313 = vmax.f32 %v873, 0.0
        %v1314 = vmax.f32 %v878, 0.0
        %v1315 = vmax.f32 %v883, 0.0
        %v1316 = vmax.f32 %v888, 0.0
        %v1317 = vmax.f32 %v893, 0.0
        %v1318 = vmax.f32 %v898, 0.0
        %v1319 = vmax.f32 %v903, 0.0
        %v1320 = vmax.f32 %v908, 0.0
        %v1321 = vmax.f32 %v913, 0.0
        %v1322 = vmax.f32 %v918, 0.0
        %v1323 = vmax.f32 %v923, 0.0
        %v1324 = vmax.f32 %v928, 0.0
        %v1325 = vmax.f32 %v933, 0.0
        %v1326 = vmax.f32 %v938, 0.0
        %v1327 = vmax.f32 %v943, 0.0
        %v1328 = vmax.f32 %v948, 0.0
        %v1329 = vmax.f32 %v953, 0.0
        %v1330 = vmax.f32 %v958, 0.0
        %v1331 = vmax.f32 %v963, 0.0
        %v1332 = vmax.f32 %v968, 0.0
        %v1333 = vmax.f32 %v973, 0.0
        %v1334 = vmax.f32 %v978, 0.0
        %v1335 = vmax.f32 %v983, 0.0
        %v1336 = vmax.f32 %v988, 0.0
        %v1337 = vmax.f32 %v993, 0.0
        %v1338 = vmax.f32 %v998, 0.0
        %v1339 = vmax.f32 %v1003, 0.0
        %v1340 = vmax.f32 %v1008, 0.0
        %v1341 = vmax.f32 %v1013, 0.0
        %v1342 = vmax.f32 %v1018, 0.0
        %v1343 = vmax.f32 %v1023, 0.0
        %v1344 = vmax.f32 %v1028, 0.0
        %v1345 = vmax.f32 %v1033, 0.0
        %v1346 = vmax.f32 %v1038, 0.0
        %v1347 = vmax.f32 %v1043, 0.0
        %v1348 = vmax.f32 %v1048, 0.0
        %v1349 = vmax.f32 %v1053, 0.0
        %v1350 = vmax.f32 %v1058, 0.0
        %v1351 = vmax.f32 %v1063, 0.0
        %v1352 = vmax.f32 %v1068, 0.0
        %v1353 = vmax.f32 %v1073, 0.0
        %v1354 = vmax.f32 %v1078, 0.0
        %v1355 = vmax.f32 %v1083, 0.0
        %v1356 = vmax.f32 %v1088, 0.0
        %v1357 = vmax.f32 %v1093, 0.0
        %v1358 = vmax.f32 %v1098, 0.0
        %v1359 = vmax.f32 %v1103, 0.0
        %v1360 = vmax.f32 %v1108, 0.0
        %v1361 = vmax.f32 %v1113, 0.0
        %v1362 = vmax.f32 %v1118, 0.0
        %v1363 = vmax.f32 %v1123, 0.0
        %v1364 = vmax.f32 %v1128, 0.0
        %v1365 = vmax.f32 %v1133, 0.0
        %v1366 = vmax.f32 %v1138, 0.0
        %v1367 = vmax.f32 %v1143, 0.0
        %v1368 = vmax.f32 %v1148, 0.0
        %v1369 = vmax.f32 %v1153, 0.0
        %v1370 = vmax.f32 %v1158, 0.0
        %v1371 = vmax.f32 %v1163, 0.0
        %v1372 = vmax.f32 %v1168, 0.0
        %v1373 = vmax.f32 %v1173, 0.0
        %v1374 = vmax.f32 %v1178, 0.0
        %v1375 = vmax.f32 %v1183, 0.0
        %v1376 = vmax.f32 %v1188, 0.0
        %v1377 = vmax.f32 %v1193, 0.0
        %v1378 = vmax.f32 %v1198, 0.0
        %v1379 = vmax.f32 %v1203, 0.0
        %v1380 = vmax.f32 %v1208, 0.0
        %v1381 = vmax.f32 %v1213, 0.0
        %v1382 = vmax.f32 %v1218, 0.0
        %v1383 = vmax.f32 %v1223, 0.0
        %v1384 = vmax.f32 %v1228, 0.0
        %v1385 = vmax.f32 %v1233, 0.0
        %v1386 = vmax.f32 %v1238, 0.0
        %v1387 = vmax.f32 %v1243, 0.0
        %v1388 = vmax.f32 %v1248, 0.0
        %v1389 = vmax.f32 %v1253, 0.0
        %v1390 = vmax.f32 %v1258, 0.0
        %v1391 = vmax.f32 %v1263, 0.0
        %v1392 = vmax.f32 %v1268, 0.0
        %v1393 = vmax.f32 %v1273, 0.0
        %v1394 = vmax.f32 %v1278, 0.0
        %v1395 = vmax.f32 %v1283, 0.0
        %v1396 = vmax.f32 %v1288, 0.0
        %v1397 = vmax.f32 %v1293, 0.0
        %v1398 = vmax.f32 %v1298, 0.0
        %1399 = vst [vmem:[#allocation2] sm:$0xff] %v1301
        %1400 = vst [vmem:[#allocation2 + $0x8] sm:$0xff] %v1302
        %1401 = vst [vmem:[#allocation2 + $0x10] sm:$0xff] %v1303
        %1402 = vst [vmem:[#allocation2 + $0x18] sm:$0xff] %v1304
        %1403 = vst [vmem:[#allocation2 + $0x20] sm:$0xff] %v1305
        %1404 = vst [vmem:[#allocation2 + $0x28] sm:$0xff] %v1306
        %1405 = vst [vmem:[#allocation2 + $0x30] sm:$0xff] %v1307
        %1406 = vst [vmem:[#allocation2 + $0x38] sm:$0xff] %v1308
        %1407 = vst [vmem:[#allocation2 + $0x40] sm:$0xff] %v1309
        %1408 = vst [vmem:[#allocation2 + $0x48] sm:$0xff] %v1310
        %1409 = vst [vmem:[#allocation2 + $0x50] sm:$0xff] %v1311
        %1410 = vst [vmem:[#allocation2 + $0x58] sm:$0xff] %v1312
        %1411 = vst [vmem:[#allocation2 + $0x60] sm:$0xff] %v1313
        %1412 = vst [vmem:[#allocation2 + $0x68] sm:$0xff] %v1314
        %1413 = vst [vmem:[#allocation2 + $0x70] sm:$0xff] %v1315
        %1414 = vst [vmem:[#allocation2 + $0x78] sm:$0xff] %v1316
        %1415 = vst [vmem:[#allocation2 + $0x80] sm:$0xff] %v1317
        %1416 = vst [vmem:[#allocation2 + $0x88] sm:$0xff] %v1318
        %1417 = vst [vmem:[#allocation2 + $0x90] sm:$0xff] %v1319
        %1418 = vst [vmem:[#allocation2 + $0x98] sm:$0xff] %v1320
        %1419 = vst [vmem:[#allocation2 + $0xa0] sm:$0xff] %v1321
        %1420 = vst [vmem:[#allocation2 + $0xa8] sm:$0xff] %v1322
        %1421 = vst [vmem:[#allocation2 + $0xb0] sm:$0xff] %v1323
        %1422 = vst [vmem:[#allocation2 + $0xb8] sm:$0xff] %v1324
        %1423 = vst [vmem:[#allocation2 + $0xc0] sm:$0xff] %v1325
        %1424 = vst [vmem:[#allocation2 + $0xc8] sm:$0xff] %v1326
        %1425 = vst [vmem:[#allocation2 + $0xd0] sm:$0xff] %v1327
        %1426 = vst [vmem:[#allocation2 + $0xd8] sm:$0xff] %v1328
        %1427 = vst [vmem:[#allocation2 + $0xe0] sm:$0xff] %v1329
        %1428 = vst [vmem:[#allocation2 + $0xe8] sm:$0xff] %v1330
        %1429 = vst [vmem:[#allocation2 + $0xf0] sm:$0xff] %v1331
        %1430 = vst [vmem:[#allocation2 + $0xf8] sm:$0xff] %v1332
        %1431 = vst [vmem:[#allocation2 + $0x100] sm:$0xff] %v1333
        %1432 = vst [vmem:[#allocation2 + $0x108] sm:$0xff] %v1334
        %1433 = vst [vmem:[#allocation2 + $0x110] sm:$0xff] %v1335
        %1434 = vst [vmem:[#allocation2 + $0x118] sm:$0xff] %v1336
        %1435 = vst [vmem:[#allocation2 + $0x120] sm:$0xff] %v1337
        %1436 = vst [vmem:[#allocation2 + $0x128] sm:$0xff] %v1338
        %1437 = vst [vmem:[#allocation2 + $0x130] sm:$0xff] %v1339
        %1438 = vst [vmem:[#allocation2 + $0x138] sm:$0xff] %v1340
        %1439 = vst [vmem:[#allocation2 + $0x140] sm:$0xff] %v1341
        %1440 = vst [vmem:[#allocation2 + $0x148] sm:$0xff] %v1342
        %1441 = vst [vmem:[#allocation2 + $0x150] sm:$0xff] %v1343
        %1442 = vst [vmem:[#allocation2 + $0x158] sm:$0xff] %v1344
        %1443 = vst [vmem:[#allocation2 + $0x160] sm:$0xff] %v1345
        %1444 = vst [vmem:[#allocation2 + $0x168] sm:$0xff] %v1346
        %1445 = vst [vmem:[#allocation2 + $0x170] sm:$0xff] %v1347
        %1446 = vst [vmem:[#allocation2 + $0x178] sm:$0xff] %v1348
        %1447 = vst [vmem:[#allocation2 + $0x180] sm:$0xff] %v1349
        %1448 = vst [vmem:[#allocation2 + $0x188] sm:$0xff] %v1350
        %1449 = vst [vmem:[#allocation2 + $0x190] sm:$0xff] %v1351
        %1450 = vst [vmem:[#allocation2 + $0x198] sm:$0xff] %v1352
        %1451 = vst [vmem:[#allocation2 + $0x1a0] sm:$0xff] %v1353
        %1452 = vst [vmem:[#allocation2 + $0x1a8] sm:$0xff] %v1354
        %1453 = vst [vmem:[#allocation2 + $0x1b0] sm:$0xff] %v1355
        %1454 = vst [vmem:[#allocation2 + $0x1b8] sm:$0xff] %v1356
        %1455 = vst [vmem:[#allocation2 + $0x1c0] sm:$0xff] %v1357
        %1456 = vst [vmem:[#allocation2 + $0x1c8] sm:$0xff] %v1358
        %1457 = vst [vmem:[#allocation2 + $0x1d0] sm:$0xff] %v1359
        %1458 = vst [vmem:[#allocation2 + $0x1d8] sm:$0xff] %v1360
        %1459 = vst [vmem:[#allocation2 + $0x1e0] sm:$0xff] %v1361
        %1460 = vst [vmem:[#allocation2 + $0x1e8] sm:$0xff] %v1362
        %1461 = vst [vmem:[#allocation2 + $0x1f0] sm:$0xff] %v1363
        %1462 = vst [vmem:[#allocation2 + $0x1f8] sm:$0xff] %v1364
        %1463 = vst [vmem:[#allocation2 + $0x200] sm:$0xff] %v1365
        %1464 = vst [vmem:[#allocation2 + $0x208] sm:$0xff] %v1366
        %1465 = vst [vmem:[#allocation2 + $0x210] sm:$0xff] %v1367
        %1466 = vst [vmem:[#allocation2 + $0x218] sm:$0xff] %v1368
        %1467 = vst [vmem:[#allocation2 + $0x220] sm:$0xff] %v1369
        %1468 = vst [vmem:[#allocation2 + $0x228] sm:$0xff] %v1370
        %1469 = vst [vmem:[#allocation2 + $0x230] sm:$0xff] %v1371
        %1470 = vst [vmem:[#allocation2 + $0x238] sm:$0xff] %v1372
        %1471 = vst [vmem:[#allocation2 + $0x240] sm:$0xff] %v1373
        %1472 = vst [vmem:[#allocation2 + $0x248] sm:$0xff] %v1374
        %1473 = vst [vmem:[#allocation2 + $0x250] sm:$0xff] %v1375
        %1474 = vst [vmem:[#allocation2 + $0x258] sm:$0xff] %v1376
        %1475 = vst [vmem:[#allocation2 + $0x260] sm:$0xff] %v1377
        %1476 = vst [vmem:[#allocation2 + $0x268] sm:$0xff] %v1378
        %1477 = vst [vmem:[#allocation2 + $0x270] sm:$0xff] %v1379
        %1478 = vst [vmem:[#allocation2 + $0x278] sm:$0xff] %v1380
        %1479 = vst [vmem:[#allocation2 + $0x280] sm:$0xff] %v1381
        %1480 = vst [vmem:[#allocation2 + $0x288] sm:$0xff] %v1382
        %1481 = vst [vmem:[#allocation2 + $0x290] sm:$0xff] %v1383
        %1482 = vst [vmem:[#allocation2 + $0x298] sm:$0xff] %v1384
        %1483 = vst [vmem:[#allocation2 + $0x2a0] sm:$0xff] %v1385
        %1484 = vst [vmem:[#allocation2 + $0x2a8] sm:$0xff] %v1386
        %1485 = vst [vmem:[#allocation2 + $0x2b0] sm:$0xff] %v1387
        %1486 = vst [vmem:[#allocation2 + $0x2b8] sm:$0xff] %v1388
        %1487 = vst [vmem:[#allocation2 + $0x2c0] sm:$0xff] %v1389
        %1488 = vst [vmem:[#allocation2 + $0x2c8] sm:$0xff] %v1390
        %1489 = vst [vmem:[#allocation2 + $0x2d0] sm:$0xff] %v1391
        %1490 = vst [vmem:[#allocation2 + $0x2d8] sm:$0xff] %v1392
        %1491 = vst [vmem:[#allocation2 + $0x2e0] sm:$0xff] %v1393
        %1492 = vst [vmem:[#allocation2 + $0x2e8] sm:$0xff] %v1394
        %1493 = vst [vmem:[#allocation2 + $0x2f0] sm:$0xff] %v1395
        %1494 = vst [vmem:[#allocation2 + $0x2f8] sm:$0xff] %v1396
        %1495 = vst [vmem:[#allocation2 + $0x300] sm:$0xff] %v1397
        %1496 = vst [vmem:[#allocation2 + $0x308] sm:$0xff] %v1398
        %v1497 = vld [vmem:[#allocation2] ss:$2 sm:$0xff]
        %s1498 = scalar_lea.vmem [#allocation2], 16
        %v1499 = vld [vmem:[%s1498] ss:$2 sm:$0x3f]
        %s1500 = scalar_lea.vmem [#allocation2], 1
        %v1501 = vld [vmem:[%s1500] ss:$2 sm:$0xff]
        %s1502 = scalar_lea.vmem [#allocation2], 17
        %v1503 = vld [vmem:[%s1502] ss:$2 sm:$0x3f]
        %v1504 = vadd.f32 %v1497, %v1501
        %v1505 = vadd.f32 %v1499, %v1503
        %s1506 = scalar_lea.vmem [#allocation2], 28
        %v1507 = vld [vmem:[%s1506] ss:$2 sm:$0xff]
        %s1508 = scalar_lea.vmem [#allocation2], 44
        %v1509 = vld [vmem:[%s1508] ss:$2 sm:$0x3f]
        %v1510 = vadd.f32 %v1504, %v1507
        %v1511 = vadd.f32 %v1505, %v1509
        %s1512 = scalar_lea.vmem [#allocation2], 29
        %v1513 = vld [vmem:[%s1512] ss:$2 sm:$0xff]
        %s1514 = scalar_lea.vmem [#allocation2], 45
        %v1515 = vld [vmem:[%s1514] ss:$2 sm:$0x3f]
        %v1516 = vadd.f32 %v1510, %v1513
        %v1517 = vadd.f32 %v1511, %v1515
        %v1518 = vmul.f32 %v1516, 0.25
        %v1519 = vmul.f32 %v1517, 0.25
        %1520 = vst [vmem:[#allocation3] sm:$0xff] %v1518
        %1521 = vst [vmem:[#allocation3 + $0x8] sm:$0x3f] %v1519
        %s1522 = scalar_lea.vmem [#allocation2], 56
        %v1523 = vld [vmem:[%s1522] ss:$2 sm:$0xff]
        %s1524 = scalar_lea.vmem [#allocation2], 72
        %v1525 = vld [vmem:[%s1524] ss:$2 sm:$0x3f]
        %s1526 = scalar_lea.vmem [#allocation2], 57
        %v1527 = vld [vmem:[%s1526] ss:$2 sm:$0xff]
        %s1528 = scalar_lea.vmem [#allocation2], 73
        %v1529 = vld [vmem:[%s1528] ss:$2 sm:$0x3f]
        %v1530 = vadd.f32 %v1523, %v1527
        %v1531 = vadd.f32 %v1525, %v1529
        %s1532 = scalar_lea.vmem [#allocation2], 84
        %v1533 = vld [vmem:[%s1532] ss:$2 sm:$0xff]
        %s1534 = scalar_lea.vmem [#allocation2], 100
        %v1535 = vld [vmem:[%s1534] ss:$2 sm:$0x3f]
        %v1536 = vadd.f32 %v1530, %v1533
        %v1537 = vadd.f32 %v1531, %v1535
        %s1538 = scalar_lea.vmem [#allocation2], 85
        %v1539 = vld [vmem:[%s1538] ss:$2 sm:$0xff]
        %s1540 = scalar_lea.vmem [#allocation2], 101
        %v1541 = vld [vmem:[%s1540] ss:$2 sm:$0x3f]
        %v1542 = vadd.f32 %v1536, %v1539
        %v1543 = vadd.f32 %v1537, %v1541
        %v1544 = vmul.f32 %v1542, 0.25
        %v1545 = vmul.f32 %v1543, 0.25
        %1546 = vst [vmem:[#allocation3 + $0xe] sm:$0xff] %v1544
        %1547 = vst [vmem:[#allocation3 + $0x16] sm:$0x3f] %v1545
        %s1548 = scalar_lea.vmem [#allocation2], 112
        %v1549 = vld [vmem:[%s1548] ss:$2 sm:$0xff]
        %s1550 = scalar_lea.vmem [#allocation2], 128
        %v1551 = vld [vmem:[%s1550] ss:$2 sm:$0x3f]
        %s1552 = scalar_lea.vmem [#allocation2], 113
        %v1553 = vld [vmem:[%s1552] ss:$2 sm:$0xff]
        %s1554 = scalar_lea.vmem [#allocation2], 129
        %v1555 = vld [vmem:[%s1554] ss:$2 sm:$0x3f]
        %v1556 = vadd.f32 %v1549, %v1553
        %v1557 = vadd.f32 %v1551, %v1555
        %s1558 = scalar_lea.vmem [#allocation2], 140
        %v1559 = vld [vmem:[%s1558] ss:$2 sm:$0xff]
        %s1560 = scalar_lea.vmem [#allocation2], 156
        %v1561 = vld [vmem:[%s1560] ss:$2 sm:$0x3f]
        %v1562 = vadd.f32 %v1556, %v1559
        %v1563 = vadd.f32 %v1557, %v1561
        %s1564 = scalar_lea.vmem [#allocation2], 141
        %v1565 = vld [vmem:[%s1564] ss:$2 sm:$0xff]
        %s1566 = scalar_lea.vmem [#allocation2], 157
        %v1567 = vld [vmem:[%s1566] ss:$2 sm:$0x3f]
        %v1568 = vadd.f32 %v1562, %v1565
        %v1569 = vadd.f32 %v1563, %v1567
        %v1570 = vmul.f32 %v1568, 0.25
        %v1571 = vmul.f32 %v1569, 0.25
        %1572 = vst [vmem:[#allocation3 + $0x1c] sm:$0xff] %v1570
        %1573 = vst [vmem:[#allocation3 + $0x24] sm:$0x3f] %v1571
        %s1574 = scalar_lea.vmem [#allocation2], 168
        %v1575 = vld [vmem:[%s1574] ss:$2 sm:$0xff]
        %s1576 = scalar_lea.vmem [#allocation2], 184
        %v1577 = vld [vmem:[%s1576] ss:$2 sm:$0x3f]
        %s1578 = scalar_lea.vmem [#allocation2], 169
        %v1579 = vld [vmem:[%s1578] ss:$2 sm:$0xff]
        %s1580 = scalar_lea.vmem [#allocation2], 185
        %v1581 = vld [vmem:[%s1580] ss:$2 sm:$0x3f]
        %v1582 = vadd.f32 %v1575, %v1579
        %v1583 = vadd.f32 %v1577, %v1581
        %s1584 = scalar_lea.vmem [#allocation2], 196
        %v1585 = vld [vmem:[%s1584] ss:$2 sm:$0xff]
        %s1586 = scalar_lea.vmem [#allocation2], 212
        %v1587 = vld [vmem:[%s1586] ss:$2 sm:$0x3f]
        %v1588 = vadd.f32 %v1582, %v1585
        %v1589 = vadd.f32 %v1583, %v1587
        %s1590 = scalar_lea.vmem [#allocation2], 197
        %v1591 = vld [vmem:[%s1590] ss:$2 sm:$0xff]
        %s1592 = scalar_lea.vmem [#allocation2], 213
        %v1593 = vld [vmem:[%s1592] ss:$2 sm:$0x3f]
        %v1594 = vadd.f32 %v1588, %v1591
        %v1595 = vadd.f32 %v1589, %v1593
        %v1596 = vmul.f32 %v1594, 0.25
        %v1597 = vmul.f32 %v1595, 0.25
        %1598 = vst [vmem:[#allocation3 + $0x2a] sm:$0xff] %v1596
        %1599 = vst [vmem:[#allocation3 + $0x32] sm:$0x3f] %v1597
        %s1600 = scalar_lea.vmem [#allocation2], 224
        %v1601 = vld [vmem:[%s1600] ss:$2 sm:$0xff]
        %s1602 = scalar_lea.vmem [#allocation2], 240
        %v1603 = vld [vmem:[%s1602] ss:$2 sm:$0x3f]
        %s1604 = scalar_lea.vmem [#allocation2], 225
        %v1605 = vld [vmem:[%s1604] ss:$2 sm:$0xff]
        %s1606 = scalar_lea.vmem [#allocation2], 241
        %v1607 = vld [vmem:[%s1606] ss:$2 sm:$0x3f]
        %v1608 = vadd.f32 %v1601, %v1605
        %v1609 = vadd.f32 %v1603, %v1607
        %s1610 = scalar_lea.vmem [#allocation2], 252
        %v1611 = vld [vmem:[%s1610] ss:$2 sm:$0xff]
        %s1612 = scalar_lea.vmem [#allocation2], 268
        %v1613 = vld [vmem:[%s1612] ss:$2 sm:$0x3f]
        %v1614 = vadd.f32 %v1608, %v1611
        %v1615 = vadd.f32 %v1609, %v1613
        %s1616 = scalar_lea.vmem [#allocation2], 253
        %v1617 = vld [vmem:[%s1616] ss:$2 sm:$0xff]
        %s1618 = scalar_lea.vmem [#allocation2], 269
        %v1619 = vld [vmem:[%s1618] ss:$2 sm:$0x3f]
        %v1620 = vadd.f32 %v1614, %v1617
        %v1621 = vadd.f32 %v1615, %v1619
        %v1622 = vmul.f32 %v1620, 0.25
        %v1623 = vmul.f32 %v1621, 0.25
        %1624 = vst [vmem:[#allocation3 + $0x38] sm:$0xff] %v1622
        %1625 = vst [vmem:[#allocation3 + $0x40] sm:$0x3f] %v1623
        %s1626 = scalar_lea.vmem [#allocation2], 280
        %v1627 = vld [vmem:[%s1626] ss:$2 sm:$0xff]
        %s1628 = scalar_lea.vmem [#allocation2], 296
        %v1629 = vld [vmem:[%s1628] ss:$2 sm:$0x3f]
        %s1630 = scalar_lea.vmem [#allocation2], 281
        %v1631 = vld [vmem:[%s1630] ss:$2 sm:$0xff]
        %s1632 = scalar_lea.vmem [#allocation2], 297
        %v1633 = vld [vmem:[%s1632] ss:$2 sm:$0x3f]
        %v1634 = vadd.f32 %v1627, %v1631
        %v1635 = vadd.f32 %v1629, %v1633
        %s1636 = scalar_lea.vmem [#allocation2], 308
        %v1637 = vld [vmem:[%s1636] ss:$2 sm:$0xff]
        %s1638 = scalar_lea.vmem [#allocation2], 324
        %v1639 = vld [vmem:[%s1638] ss:$2 sm:$0x3f]
        %v1640 = vadd.f32 %v1634, %v1637
        %v1641 = vadd.f32 %v1635, %v1639
        %s1642 = scalar_lea.vmem [#allocation2], 309
        %v1643 = vld [vmem:[%s1642] ss:$2 sm:$0xff]
        %s1644 = scalar_lea.vmem [#allocation2], 325
        %v1645 = vld [vmem:[%s1644] ss:$2 sm:$0x3f]
        %v1646 = vadd.f32 %v1640, %v1643
        %v1647 = vadd.f32 %v1641, %v1645
        %v1648 = vmul.f32 %v1646, 0.25
        %v1649 = vmul.f32 %v1647, 0.25
        %1650 = vst [vmem:[#allocation3 + $0x46] sm:$0xff] %v1648
        %1651 = vst [vmem:[#allocation3 + $0x4e] sm:$0x3f] %v1649
        %s1652 = scalar_lea.vmem [#allocation2], 336
        %v1653 = vld [vmem:[%s1652] ss:$2 sm:$0xff]
        %s1654 = scalar_lea.vmem [#allocation2], 352
        %v1655 = vld [vmem:[%s1654] ss:$2 sm:$0x3f]
        %s1656 = scalar_lea.vmem [#allocation2], 337
        %v1657 = vld [vmem:[%s1656] ss:$2 sm:$0xff]
        %s1658 = scalar_lea.vmem [#allocation2], 353
        %v1659 = vld [vmem:[%s1658] ss:$2 sm:$0x3f]
        %v1660 = vadd.f32 %v1653, %v1657
        %v1661 = vadd.f32 %v1655, %v1659
        %s1662 = scalar_lea.vmem [#allocation2], 364
        %v1663 = vld [vmem:[%s1662] ss:$2 sm:$0xff]
        %s1664 = scalar_lea.vmem [#allocation2], 380
        %v1665 = vld [vmem:[%s1664] ss:$2 sm:$0x3f]
        %v1666 = vadd.f32 %v1660, %v1663
        %v1667 = vadd.f32 %v1661, %v1665
        %s1668 = scalar_lea.vmem [#allocation2], 365
        %v1669 = vld [vmem:[%s1668] ss:$2 sm:$0xff]
        %s1670 = scalar_lea.vmem [#allocation2], 381
        %v1671 = vld [vmem:[%s1670] ss:$2 sm:$0x3f]
        %v1672 = vadd.f32 %v1666, %v1669
        %v1673 = vadd.f32 %v1667, %v1671
        %v1674 = vmul.f32 %v1672, 0.25
        %v1675 = vmul.f32 %v1673, 0.25
        %1676 = vst [vmem:[#allocation3 + $0x54] sm:$0xff] %v1674
        %1677 = vst [vmem:[#allocation3 + $0x5c] sm:$0x3f] %v1675
        %s1678 = scalar_lea.vmem [#allocation2], 392
        %v1679 = vld [vmem:[%s1678] ss:$2 sm:$0xff]
        %s1680 = scalar_lea.vmem [#allocation2], 408
        %v1681 = vld [vmem:[%s1680] ss:$2 sm:$0x3f]
        %s1682 = scalar_lea.vmem [#allocation2], 393
        %v1683 = vld [vmem:[%s1682] ss:$2 sm:$0xff]
        %s1684 = scalar_lea.vmem [#allocation2], 409
        %v1685 = vld [vmem:[%s1684] ss:$2 sm:$0x3f]
        %v1686 = vadd.f32 %v1679, %v1683
        %v1687 = vadd.f32 %v1681, %v1685
        %s1688 = scalar_lea.vmem [#allocation2], 420
        %v1689 = vld [vmem:[%s1688] ss:$2 sm:$0xff]
        %s1690 = scalar_lea.vmem [#allocation2], 436
        %v1691 = vld [vmem:[%s1690] ss:$2 sm:$0x3f]
        %v1692 = vadd.f32 %v1686, %v1689
        %v1693 = vadd.f32 %v1687, %v1691
        %s1694 = scalar_lea.vmem [#allocation2], 421
        %v1695 = vld [vmem:[%s1694] ss:$2 sm:$0xff]
        %s1696 = scalar_lea.vmem [#allocation2], 437
        %v1697 = vld [vmem:[%s1696] ss:$2 sm:$0x3f]
        %v1698 = vadd.f32 %v1692, %v1695
        %v1699 = vadd.f32 %v1693, %v1697
        %v1700 = vmul.f32 %v1698, 0.25
        %v1701 = vmul.f32 %v1699, 0.25
        %1702 = vst [vmem:[#allocation3 + $0x62] sm:$0xff] %v1700
        %1703 = vst [vmem:[#allocation3 + $0x6a] sm:$0x3f] %v1701
        %s1704 = scalar_lea.vmem [#allocation2], 448
        %v1705 = vld [vmem:[%s1704] ss:$2 sm:$0xff]
        %s1706 = scalar_lea.vmem [#allocation2], 464
        %v1707 = vld [vmem:[%s1706] ss:$2 sm:$0x3f]
        %s1708 = scalar_lea.vmem [#allocation2], 449
        %v1709 = vld [vmem:[%s1708] ss:$2 sm:$0xff]
        %s1710 = scalar_lea.vmem [#allocation2], 465
        %v1711 = vld [vmem:[%s1710] ss:$2 sm:$0x3f]
        %v1712 = vadd.f32 %v1705, %v1709
        %v1713 = vadd.f32 %v1707, %v1711
        %s1714 = scalar_lea.vmem [#allocation2], 476
        %v1715 = vld [vmem:[%s1714] ss:$2 sm:$0xff]
        %s1716 = scalar_lea.vmem [#allocation2], 492
        %v1717 = vld [vmem:[%s1716] ss:$2 sm:$0x3f]
        %v1718 = vadd.f32 %v1712, %v1715
        %v1719 = vadd.f32 %v1713, %v1717
        %s1720 = scalar_lea.vmem [#allocation2], 477
        %v1721 = vld [vmem:[%s1720] ss:$2 sm:$0xff]
        %s1722 = scalar_lea.vmem [#allocation2], 493
        %v1723 = vld [vmem:[%s1722] ss:$2 sm:$0x3f]
        %v1724 = vadd.f32 %v1718, %v1721
        %v1725 = vadd.f32 %v1719, %v1723
        %v1726 = vmul.f32 %v1724, 0.25
        %v1727 = vmul.f32 %v1725, 0.25
        %1728 = vst [vmem:[#allocation3 + $0x70] sm:$0xff] %v1726
        %1729 = vst [vmem:[#allocation3 + $0x78] sm:$0x3f] %v1727
        %s1730 = scalar_lea.vmem [#allocation2], 504
        %v1731 = vld [vmem:[%s1730] ss:$2 sm:$0xff]
        %s1732 = scalar_lea.vmem [#allocation2], 520
        %v1733 = vld [vmem:[%s1732] ss:$2 sm:$0x3f]
        %s1734 = scalar_lea.vmem [#allocation2], 505
        %v1735 = vld [vmem:[%s1734] ss:$2 sm:$0xff]
        %s1736 = scalar_lea.vmem [#allocation2], 521
        %v1737 = vld [vmem:[%s1736] ss:$2 sm:$0x3f]
        %v1738 = vadd.f32 %v1731, %v1735
        %v1739 = vadd.f32 %v1733, %v1737
        %s1740 = scalar_lea.vmem [#allocation2], 532
        %v1741 = vld [vmem:[%s1740] ss:$2 sm:$0xff]
        %s1742 = scalar_lea.vmem [#allocation2], 548
        %v1743 = vld [vmem:[%s1742] ss:$2 sm:$0x3f]
        %v1744 = vadd.f32 %v1738, %v1741
        %v1745 = vadd.f32 %v1739, %v1743
        %s1746 = scalar_lea.vmem [#allocation2], 533
        %v1747 = vld [vmem:[%s1746] ss:$2 sm:$0xff]
        %s1748 = scalar_lea.vmem [#allocation2], 549
        %v1749 = vld [vmem:[%s1748] ss:$2 sm:$0x3f]
        %v1750 = vadd.f32 %v1744, %v1747
        %v1751 = vadd.f32 %v1745, %v1749
        %v1752 = vmul.f32 %v1750, 0.25
        %v1753 = vmul.f32 %v1751, 0.25
        %1754 = vst [vmem:[#allocation3 + $0x7e] sm:$0xff] %v1752
        %1755 = vst [vmem:[#allocation3 + $0x86] sm:$0x3f] %v1753
        %s1756 = scalar_lea.vmem [#allocation2], 560
        %v1757 = vld [vmem:[%s1756] ss:$2 sm:$0xff]
        %s1758 = scalar_lea.vmem [#allocation2], 576
        %v1759 = vld [vmem:[%s1758] ss:$2 sm:$0x3f]
        %s1760 = scalar_lea.vmem [#allocation2], 561
        %v1761 = vld [vmem:[%s1760] ss:$2 sm:$0xff]
        %s1762 = scalar_lea.vmem [#allocation2], 577
        %v1763 = vld [vmem:[%s1762] ss:$2 sm:$0x3f]
        %v1764 = vadd.f32 %v1757, %v1761
        %v1765 = vadd.f32 %v1759, %v1763
        %s1766 = scalar_lea.vmem [#allocation2], 588
        %v1767 = vld [vmem:[%s1766] ss:$2 sm:$0xff]
        %s1768 = scalar_lea.vmem [#allocation2], 604
        %v1769 = vld [vmem:[%s1768] ss:$2 sm:$0x3f]
        %v1770 = vadd.f32 %v1764, %v1767
        %v1771 = vadd.f32 %v1765, %v1769
        %s1772 = scalar_lea.vmem [#allocation2], 589
        %v1773 = vld [vmem:[%s1772] ss:$2 sm:$0xff]
        %s1774 = scalar_lea.vmem [#allocation2], 605
        %v1775 = vld [vmem:[%s1774] ss:$2 sm:$0x3f]
        %v1776 = vadd.f32 %v1770, %v1773
        %v1777 = vadd.f32 %v1771, %v1775
        %v1778 = vmul.f32 %v1776, 0.25
        %v1779 = vmul.f32 %v1777, 0.25
        %1780 = vst [vmem:[#allocation3 + $0x8c] sm:$0xff] %v1778
        %1781 = vst [vmem:[#allocation3 + $0x94] sm:$0x3f] %v1779
        %s1782 = scalar_lea.vmem [#allocation2], 616
        %v1783 = vld [vmem:[%s1782] ss:$2 sm:$0xff]
        %s1784 = scalar_lea.vmem [#allocation2], 632
        %v1785 = vld [vmem:[%s1784] ss:$2 sm:$0x3f]
        %s1786 = scalar_lea.vmem [#allocation2], 617
        %v1787 = vld [vmem:[%s1786] ss:$2 sm:$0xff]
        %s1788 = scalar_lea.vmem [#allocation2], 633
        %v1789 = vld [vmem:[%s1788] ss:$2 sm:$0x3f]
        %v1790 = vadd.f32 %v1783, %v1787
        %v1791 = vadd.f32 %v1785, %v1789
        %s1792 = scalar_lea.vmem [#allocation2], 644
        %v1793 = vld [vmem:[%s1792] ss:$2 sm:$0xff]
        %s1794 = scalar_lea.vmem [#allocation2], 660
        %v1795 = vld [vmem:[%s1794] ss:$2 sm:$0x3f]
        %v1796 = vadd.f32 %v1790, %v1793
        %v1797 = vadd.f32 %v1791, %v1795
        %s1798 = scalar_lea.vmem [#allocation2], 645
        %v1799 = vld [vmem:[%s1798] ss:$2 sm:$0xff]
        %s1800 = scalar_lea.vmem [#allocation2], 661
        %v1801 = vld [vmem:[%s1800] ss:$2 sm:$0x3f]
        %v1802 = vadd.f32 %v1796, %v1799
        %v1803 = vadd.f32 %v1797, %v1801
        %v1804 = vmul.f32 %v1802, 0.25
        %v1805 = vmul.f32 %v1803, 0.25
        %1806 = vst [vmem:[#allocation3 + $0x9a] sm:$0xff] %v1804
        %1807 = vst [vmem:[#allocation3 + $0xa2] sm:$0x3f] %v1805
        %s1808 = scalar_lea.vmem [#allocation2], 672
        %v1809 = vld [vmem:[%s1808] ss:$2 sm:$0xff]
        %s1810 = scalar_lea.vmem [#allocation2], 688
        %v1811 = vld [vmem:[%s1810] ss:$2 sm:$0x3f]
        %s1812 = scalar_lea.vmem [#allocation2], 673
        %v1813 = vld [vmem:[%s1812] ss:$2 sm:$0xff]
        %s1814 = scalar_lea.vmem [#allocation2], 689
        %v1815 = vld [vmem:[%s1814] ss:$2 sm:$0x3f]
        %v1816 = vadd.f32 %v1809, %v1813
        %v1817 = vadd.f32 %v1811, %v1815
        %s1818 = scalar_lea.vmem [#allocation2], 700
        %v1819 = vld [vmem:[%s1818] ss:$2 sm:$0xff]
        %s1820 = scalar_lea.vmem [#allocation2], 716
        %v1821 = vld [vmem:[%s1820] ss:$2 sm:$0x3f]
        %v1822 = vadd.f32 %v1816, %v1819
        %v1823 = vadd.f32 %v1817, %v1821
        %s1824 = scalar_lea.vmem [#allocation2], 701
        %v1825 = vld [vmem:[%s1824] ss:$2 sm:$0xff]
        %s1826 = scalar_lea.vmem [#allocation2], 717
        %v1827 = vld [vmem:[%s1826] ss:$2 sm:$0x3f]
        %v1828 = vadd.f32 %v1822, %v1825
        %v1829 = vadd.f32 %v1823, %v1827
        %v1830 = vmul.f32 %v1828, 0.25
        %v1831 = vmul.f32 %v1829, 0.25
        %1832 = vst [vmem:[#allocation3 + $0xa8] sm:$0xff] %v1830
        %1833 = vst [vmem:[#allocation3 + $0xb0] sm:$0x3f] %v1831
        %s1834 = scalar_lea.vmem [#allocation2], 728
        %v1835 = vld [vmem:[%s1834] ss:$2 sm:$0xff]
        %s1836 = scalar_lea.vmem [#allocation2], 744
        %v1837 = vld [vmem:[%s1836] ss:$2 sm:$0x3f]
        %s1838 = scalar_lea.vmem [#allocation2], 729
        %v1839 = vld [vmem:[%s1838] ss:$2 sm:$0xff]
        %s1840 = scalar_lea.vmem [#allocation2], 745
        %v1841 = vld [vmem:[%s1840] ss:$2 sm:$0x3f]
        %v1842 = vadd.f32 %v1835, %v1839
        %v1843 = vadd.f32 %v1837, %v1841
        %s1844 = scalar_lea.vmem [#allocation2], 756
        %v1845 = vld [vmem:[%s1844] ss:$2 sm:$0xff]
        %s1846 = scalar_lea.vmem [#allocation2], 772
        %v1847 = vld [vmem:[%s1846] ss:$2 sm:$0x3f]
        %v1848 = vadd.f32 %v1842, %v1845
        %v1849 = vadd.f32 %v1843, %v1847
        %s1850 = scalar_lea.vmem [#allocation2], 757
        %v1851 = vld [vmem:[%s1850] ss:$2 sm:$0xff]
        %s1852 = scalar_lea.vmem [#allocation2], 773
        %v1853 = vld [vmem:[%s1852] ss:$2 sm:$0x3f]
        %v1854 = vadd.f32 %v1848, %v1851
        %v1855 = vadd.f32 %v1849, %v1853
        %v1856 = vmul.f32 %v1854, 0.25
        %v1857 = vmul.f32 %v1855, 0.25
        %1858 = vst [vmem:[#allocation3 + $0xb6] sm:$0xff] %v1856
        %1859 = vst [vmem:[#allocation3 + $0xbe] sm:$0x3f] %v1857
        %1860 = vst [vmem:[#allocation3 + $0xc4] sm:$0xff] 0.0
        %1861 = vst [vmem:[#allocation3 + $0xcc] sm:$0xff] 0.0
        %1862 = vst [vmem:[#allocation3 + $0xd4] sm:$0xff] 0.0
        %1863 = vst [vmem:[#allocation3 + $0xdc] sm:$0xff] 0.0
        %1864 = vst [vmem:[#allocation3 + $0xe4] sm:$0xf] 0.0
        %v1865 = vld [vmem:[#allocation3] sm:$0xff]
        %v1866 = vld [vmem:[#allocation3 + $0x8] sm:$0xff]
        %v1867 = vld [vmem:[#allocation3 + $0x10] sm:$0xff]
        %v1868 = vld [vmem:[#allocation3 + $0x18] sm:$0xff]
        %v1869 = vld [vmem:[#allocation3 + $0x20] sm:$0xff]
        %v1870 = vld [vmem:[#allocation3 + $0x28] sm:$0xff]
        %v1871 = vld [vmem:[#allocation3 + $0x30] sm:$0xff]
        %v1872 = vld [vmem:[#allocation3 + $0x38] sm:$0xff]
        %v1873 = vld [vmem:[#allocation3 + $0x40] sm:$0xff]
        %v1874 = vld [vmem:[#allocation3 + $0x48] sm:$0xff]
        %v1875 = vld [vmem:[#allocation3 + $0x50] sm:$0xff]
        %v1876 = vld [vmem:[#allocation3 + $0x58] sm:$0xff]
        %v1877 = vld [vmem:[#allocation3 + $0x60] sm:$0xff]
        %v1878 = vld [vmem:[#allocation3 + $0x68] sm:$0xff]
        %v1879 = vld [vmem:[#allocation3 + $0x70] sm:$0xff]
        %v1880 = vld [vmem:[#allocation3 + $0x78] sm:$0xff]
        %v1881 = vld [vmem:[#allocation3 + $0x80] sm:$0xff]
        %v1882 = vld [vmem:[#allocation3 + $0x88] sm:$0xff]
        %v1883 = vld [vmem:[#allocation3 + $0x90] sm:$0xff]
        %v1884 = vld [vmem:[#allocation3 + $0x98] sm:$0xff]
        %v1885 = vld [vmem:[#allocation3 + $0xa0] sm:$0xff]
        %v1886 = vld [vmem:[#allocation3 + $0xa8] sm:$0xff]
        %v1887 = vld [vmem:[#allocation3 + $0xb0] sm:$0xff]
        %v1888 = vld [vmem:[#allocation3 + $0xb8] sm:$0xff]
        %v1889 = vld [vmem:[#allocation3 + $0xc0] sm:$0xf]
        %v1890 = vld [vmem:[%s3] sm:$0xff]
        %v1891 = vld [vmem:[%s3 + $0x8] sm:$0xff]
        %v1892 = vld [vmem:[%s3 + $0x10] sm:$0xff]
        %v1893 = vld [vmem:[%s3 + $0x18] sm:$0xff]
        %v1894 = vld [vmem:[%s3 + $0x20] sm:$0xff]
        %v1895 = vld [vmem:[%s3 + $0x28] sm:$0xff]
        %v1896 = vld [vmem:[%s3 + $0x30] sm:$0xff]
        %v1897 = vld [vmem:[%s3 + $0x38] sm:$0xff]
        %v1898 = vld [vmem:[%s3 + $0x40] sm:$0xff]
        %v1899 = vld [vmem:[%s3 + $0x48] sm:$0xff]
        %v1900 = vld [vmem:[%s3 + $0x50] sm:$0xff]
        %v1901 = vld [vmem:[%s3 + $0x58] sm:$0xff]
        %v1902 = vld [vmem:[%s3 + $0x60] sm:$0xff]
        %v1903 = vld [vmem:[%s3 + $0x68] sm:$0xff]
        %v1904 = vld [vmem:[%s3 + $0x70] sm:$0xff]
        %v1905 = vld [vmem:[%s3 + $0x78] sm:$0xff]
        %1906 = vmatprep.subr.mxu0 0.0
        %1907 = vmatpush1.msra.mxu0 %v1890
        %1908 = vmatprep.subr.mxu0 0.0
        %1909 = vmatpush1.msra.mxu0 %v1891
        %1910 = vmatprep.subr.mxu0 0.0
        %1911 = vmatpush1.msra.mxu0 %v1892
        %1912 = vmatprep.subr.mxu0 0.0
        %1913 = vmatpush1.msra.mxu0 %v1893
        %1914 = vmatprep.subr.mxu0 0.0
        %1915 = vmatpush1.msra.mxu0 %v1894
        %1916 = vmatprep.subr.mxu0 0.0
        %1917 = vmatpush1.msra.mxu0 %v1895
        %1918 = vmatprep.subr.mxu0 0.0
        %1919 = vmatpush1.msra.mxu0 %v1896
        %1920 = vmatprep.subr.mxu0 0.0
        %1921 = vmatpush1.msra.mxu0 %v1897
        %1922 = vmatprep.subr.mxu0 0.0
        %1923 = vmatpush1.msra.mxu0 %v1898
        %1924 = vmatprep.subr.mxu0 0.0
        %1925 = vmatpush1.msra.mxu0 %v1899
        %1926 = vmatprep.subr.mxu0 0.0
        %1927 = vmatpush1.msra.mxu0 %v1900
        %1928 = vmatprep.subr.mxu0 0.0
        %1929 = vmatpush1.msra.mxu0 %v1901
        %1930 = vmatprep.subr.mxu0 0.0
        %1931 = vmatpush1.msra.mxu0 %v1902
        %1932 = vmatprep.subr.mxu0 0.0
        %1933 = vmatpush1.msra.mxu0 %v1903
        %1934 = vmatprep.subr.mxu0 0.0
        %1935 = vmatpush1.msra.mxu0 %v1904
        %1936 = vmatprep.subr.mxu0 0.0
        %1937 = vmatpush1.msra.mxu0 %v1905
        %1938 = vmatprep.subr.mxu0 0.0
        %1939 = vmatpush1.msra.mxu0 0.0
        %1940 = vmatprep.subr.mxu0 0.0
        %1941 = vmatpush1.msra.mxu0 0.0
        %1942 = vmatprep.subr.mxu0 0.0
        %1943 = vmatpush1.msra.mxu0 0.0
        %1944 = vmatprep.subr.mxu0 0.0
        %1945 = vmatpush1.msra.mxu0 0.0
        %1946 = vmatprep.subr.mxu0 0.0
        %1947 = vmatpush1.msra.mxu0 0.0
        %1948 = vmatprep.subr.mxu0 0.0
        %1949 = vmatpush1.msra.mxu0 0.0
        %1950 = vmatprep.subr.mxu0 0.0
        %1951 = vmatpush1.msra.mxu0 0.0
        %1952 = vmatprep.subr.mxu0 0.0
        %1953 = vmatpush1.msra.mxu0 0.0
        %1954 = vmatprep.subr.mxu0 0.0
        %1955 = vmatpush1.msra.mxu0 0.0
        %1956 = vmatprep.subr.mxu0 0.0
        %1957 = vmatpush1.msra.mxu0 0.0
        %1958 = vmatprep.subr.mxu0 0.0
        %1959 = vmatpush1.msra.mxu0 0.0
        %1960 = vmatprep.subr.mxu0 0.0
        %1961 = vmatpush1.msra.mxu0 0.0
        %1962 = vmatprep.subr.mxu0 0.0
        %1963 = vmatpush1.msra.mxu0 0.0
        %1964 = vmatprep.subr.mxu0 0.0
        %1965 = vmatpush1.msra.mxu0 0.0
        %1966 = vmatprep.subr.mxu0 0.0
        %1967 = vmatpush1.msra.mxu0 0.0
        %1968 = vmatprep.subr.mxu0 0.0
        %1969 = vmatpush1.msra.mxu0 0.0
        %1970 = vmatprep.mubr.f32.mxu0 0.0
        %1971 = vmatmul.mubr.f32.gmra.mrb[0].mxu0 %v1865
        %v1972 = vpop.f32.mrb[0].mxu0
        %v1973 = vadd.f32 0.0, %v1972
        %v1974 = vpop.f32.mrb[0].mxu0
        %1975 = vmatprep.mubr.f32.mxu0 0.0
        %1976 = vmatmul.mubr.f32.gmra.mrb[0].mxu0 %v1866
        %v1977 = vpop.f32.mrb[0].mxu0
        %v1978 = vadd.f32 0.0, %v1977
        %v1979 = vpop.f32.mrb[0].mxu0
        %1980 = vmatprep.mubr.f32.mxu0 0.0
        %1981 = vmatmul.mubr.f32.gmra.mrb[0].mxu0 %v1867
        %v1982 = vpop.f32.mrb[0].mxu0
        %v1983 = vadd.f32 0.0, %v1982
        %v1984 = vpop.f32.mrb[0].mxu0
        %1985 = vmatprep.mubr.f32.mxu0 0.0
        %1986 = vmatmul.mubr.f32.gmra.mrb[0].mxu0 %v1868
        %v1987 = vpop.f32.mrb[0].mxu0
        %v1988 = vadd.f32 0.0, %v1987
        %v1989 = vpop.f32.mrb[0].mxu0
        %1990 = vmatprep.mubr.f32.mxu0 0.0
        %1991 = vmatmul.mubr.f32.gmra.mrb[0].mxu0 %v1869
        %v1992 = vpop.f32.mrb[0].mxu0
        %v1993 = vadd.f32 0.0, %v1992
        %v1994 = vpop.f32.mrb[0].mxu0
        %1995 = vmatprep.mubr.f32.mxu0 0.0
        %1996 = vmatmul.mubr.f32.gmra.mrb[0].mxu0 %v1870
        %v1997 = vpop.f32.mrb[0].mxu0
        %v1998 = vadd.f32 0.0, %v1997
        %v1999 = vpop.f32.mrb[0].mxu0
        %2000 = vmatprep.mubr.f32.mxu0 0.0
        %2001 = vmatmul.mubr.f32.gmra.mrb[0].mxu0 %v1871
        %v2002 = vpop.f32.mrb[0].mxu0
        %v2003 = vadd.f32 0.0, %v2002
        %v2004 = vpop.f32.mrb[0].mxu0
        %2005 = vmatprep.mubr.f32.mxu0 0.0
        %2006 = vmatmul.mubr.f32.gmra.mrb[0].mxu0 %v1872
        %v2007 = vpop.f32.mrb[0].mxu0
        %v2008 = vadd.f32 0.0, %v2007
        %v2009 = vpop.f32.mrb[0].mxu0
        %2010 = vmatprep.mubr.f32.mxu0 0.0
        %2011 = vmatmul.mubr.f32.gmra.mrb[0].mxu0 %v1873
        %v2012 = vpop.f32.mrb[0].mxu0
        %v2013 = vadd.f32 0.0, %v2012
        %v2014 = vpop.f32.mrb[0].mxu0
        %2015 = vmatprep.mubr.f32.mxu0 0.0
        %2016 = vmatmul.mubr.f32.gmra.mrb[0].mxu0 %v1874
        %v2017 = vpop.f32.mrb[0].mxu0
        %v2018 = vadd.f32 0.0, %v2017
        %v2019 = vpop.f32.mrb[0].mxu0
        %2020 = vmatprep.mubr.f32.mxu0 0.0
        %2021 = vmatmul.mubr.f32.gmra.mrb[0].mxu0 %v1875
        %v2022 = vpop.f32.mrb[0].mxu0
        %v2023 = vadd.f32 0.0, %v2022
        %v2024 = vpop.f32.mrb[0].mxu0
        %2025 = vmatprep.mubr.f32.mxu0 0.0
        %2026 = vmatmul.mubr.f32.gmra.mrb[0].mxu0 %v1876
        %v2027 = vpop.f32.mrb[0].mxu0
        %v2028 = vadd.f32 0.0, %v2027
        %v2029 = vpop.f32.mrb[0].mxu0
        %2030 = vmatprep.mubr.f32.mxu0 0.0
        %2031 = vmatmul.mubr.f32.gmra.mrb[0].mxu0 %v1877
        %v2032 = vpop.f32.mrb[0].mxu0
        %v2033 = vadd.f32 0.0, %v2032
        %v2034 = vpop.f32.mrb[0].mxu0
        %2035 = vmatprep.mubr.f32.mxu0 0.0
        %2036 = vmatmul.mubr.f32.gmra.mrb[0].mxu0 %v1878
        %v2037 = vpop.f32.mrb[0].mxu0
        %v2038 = vadd.f32 0.0, %v2037
        %v2039 = vpop.f32.mrb[0].mxu0
        %2040 = vmatprep.mubr.f32.mxu0 0.0
        %2041 = vmatmul.mubr.f32.gmra.mrb[0].mxu0 %v1879
        %v2042 = vpop.f32.mrb[0].mxu0
        %v2043 = vadd.f32 0.0, %v2042
        %v2044 = vpop.f32.mrb[0].mxu0
        %2045 = vmatprep.mubr.f32.mxu0 0.0
        %2046 = vmatmul.mubr.f32.gmra.mrb[0].mxu0 %v1880
        %v2047 = vpop.f32.mrb[0].mxu0
        %v2048 = vadd.f32 0.0, %v2047
        %v2049 = vpop.f32.mrb[0].mxu0
        %2050 = vmatprep.mubr.f32.mxu0 0.0
        %2051 = vmatmul.mubr.f32.gmra.mrb[0].mxu0 %v1881
        %v2052 = vpop.f32.mrb[0].mxu0
        %v2053 = vadd.f32 0.0, %v2052
        %v2054 = vpop.f32.mrb[0].mxu0
        %2055 = vmatprep.mubr.f32.mxu0 0.0
        %2056 = vmatmul.mubr.f32.gmra.mrb[0].mxu0 %v1882
        %v2057 = vpop.f32.mrb[0].mxu0
        %v2058 = vadd.f32 0.0, %v2057
        %v2059 = vpop.f32.mrb[0].mxu0
        %2060 = vmatprep.mubr.f32.mxu0 0.0
        %2061 = vmatmul.mubr.f32.gmra.mrb[0].mxu0 %v1883
        %v2062 = vpop.f32.mrb[0].mxu0
        %v2063 = vadd.f32 0.0, %v2062
        %v2064 = vpop.f32.mrb[0].mxu0
        %2065 = vmatprep.mubr.f32.mxu0 0.0
        %2066 = vmatmul.mubr.f32.gmra.mrb[0].mxu0 %v1884
        %v2067 = vpop.f32.mrb[0].mxu0
        %v2068 = vadd.f32 0.0, %v2067
        %v2069 = vpop.f32.mrb[0].mxu0
        %2070 = vmatprep.mubr.f32.mxu0 0.0
        %2071 = vmatmul.mubr.f32.gmra.mrb[0].mxu0 %v1885
        %v2072 = vpop.f32.mrb[0].mxu0
        %v2073 = vadd.f32 0.0, %v2072
        %v2074 = vpop.f32.mrb[0].mxu0
        %2075 = vmatprep.mubr.f32.mxu0 0.0
        %2076 = vmatmul.mubr.f32.gmra.mrb[0].mxu0 %v1886
        %v2077 = vpop.f32.mrb[0].mxu0
        %v2078 = vadd.f32 0.0, %v2077
        %v2079 = vpop.f32.mrb[0].mxu0
        %2080 = vmatprep.mubr.f32.mxu0 0.0
        %2081 = vmatmul.mubr.f32.gmra.mrb[0].mxu0 %v1887
        %v2082 = vpop.f32.mrb[0].mxu0
        %v2083 = vadd.f32 0.0, %v2082
        %v2084 = vpop.f32.mrb[0].mxu0
        %2085 = vmatprep.mubr.f32.mxu0 0.0
        %2086 = vmatmul.mubr.f32.gmra.mrb[0].mxu0 %v1888
        %v2087 = vpop.f32.mrb[0].mxu0
        %v2088 = vadd.f32 0.0, %v2087
        %v2089 = vpop.f32.mrb[0].mxu0
        %2090 = vmatprep.mubr.f32.mxu0 0.0
        %2091 = vmatmul.mubr.f32.gmra.mrb[0].mxu0 %v1889
        %v2092 = vpop.f32.mrb[0].mxu0
        %v2093 = vadd.f32 0.0, %v2092
        %v2094 = vpop.f32.mrb[0].mxu0
        %2095 = vdwg.mxu0
        %2096 = vst [vmem:[#allocation4] sm:$0xff] %v1973
        %2097 = vst [vmem:[#allocation4 + $0x8] sm:$0xff] %v1978
        %2098 = vst [vmem:[#allocation4 + $0x10] sm:$0xff] %v1983
        %2099 = vst [vmem:[#allocation4 + $0x18] sm:$0xff] %v1988
        %2100 = vst [vmem:[#allocation4 + $0x20] sm:$0xff] %v1993
        %2101 = vst [vmem:[#allocation4 + $0x28] sm:$0xff] %v1998
        %2102 = vst [vmem:[#allocation4 + $0x30] sm:$0xff] %v2003
        %2103 = vst [vmem:[#allocation4 + $0x38] sm:$0xff] %v2008
        %2104 = vst [vmem:[#allocation4 + $0x40] sm:$0xff] %v2013
        %2105 = vst [vmem:[#allocation4 + $0x48] sm:$0xff] %v2018
        %2106 = vst [vmem:[#allocation4 + $0x50] sm:$0xff] %v2023
        %2107 = vst [vmem:[#allocation4 + $0x58] sm:$0xff] %v2028
        %2108 = vst [vmem:[#allocation4 + $0x60] sm:$0xff] %v2033
        %2109 = vst [vmem:[#allocation4 + $0x68] sm:$0xff] %v2038
        %2110 = vst [vmem:[#allocation4 + $0x70] sm:$0xff] %v2043
        %2111 = vst [vmem:[#allocation4 + $0x78] sm:$0xff] %v2048
        %2112 = vst [vmem:[#allocation4 + $0x80] sm:$0xff] %v2053
        %2113 = vst [vmem:[#allocation4 + $0x88] sm:$0xff] %v2058
        %2114 = vst [vmem:[#allocation4 + $0x90] sm:$0xff] %v2063
        %2115 = vst [vmem:[#allocation4 + $0x98] sm:$0xff] %v2068
        %2116 = vst [vmem:[#allocation4 + $0xa0] sm:$0xff] %v2073
        %2117 = vst [vmem:[#allocation4 + $0xa8] sm:$0xff] %v2078
        %2118 = vst [vmem:[#allocation4 + $0xb0] sm:$0xff] %v2083
        %2119 = vst [vmem:[#allocation4 + $0xb8] sm:$0xff] %v2088
        %2120 = vst [vmem:[#allocation4 + $0xc0] sm:$0xf] %v2093
        %v2121 = vld [vmem:[#allocation3 + $0x1] sm:$0xff]
        %v2122 = vld [vmem:[#allocation3 + $0x9] sm:$0xff]
        %v2123 = vld [vmem:[#allocation3 + $0x11] sm:$0xff]
        %v2124 = vld [vmem:[#allocation3 + $0x19] sm:$0xff]
        %v2125 = vld [vmem:[#allocation3 + $0x21] sm:$0xff]
        %v2126 = vld [vmem:[#allocation3 + $0x29] sm:$0xff]
        %v2127 = vld [vmem:[#allocation3 + $0x31] sm:$0xff]
        %v2128 = vld [vmem:[#allocation3 + $0x39] sm:$0xff]
        %v2129 = vld [vmem:[#allocation3 + $0x41] sm:$0xff]
        %v2130 = vld [vmem:[#allocation3 + $0x49] sm:$0xff]
        %v2131 = vld [vmem:[#allocation3 + $0x51] sm:$0xff]
        %v2132 = vld [vmem:[#allocation3 + $0x59] sm:$0xff]
        %v2133 = vld [vmem:[#allocation3 + $0x61] sm:$0xff]
        %v2134 = vld [vmem:[#allocation3 + $0x69] sm:$0xff]
        %v2135 = vld [vmem:[#allocation3 + $0x71] sm:$0xff]
        %v2136 = vld [vmem:[#allocation3 + $0x79] sm:$0xff]
        %v2137 = vld [vmem:[#allocation3 + $0x81] sm:$0xff]
        %v2138 = vld [vmem:[#allocation3 + $0x89] sm:$0xff]
        %v2139 = vld [vmem:[#allocation3 + $0x91] sm:$0xff]
        %v2140 = vld [vmem:[#allocation3 + $0x99] sm:$0xff]
        %v2141 = vld [vmem:[#allocation3 + $0xa1] sm:$0xff]
        %v2142 = vld [vmem:[#allocation3 + $0xa9] sm:$0xff]
        %v2143 = vld [vmem:[#allocation3 + $0xb1] sm:$0xff]
        %v2144 = vld [vmem:[#allocation3 + $0xb9] sm:$0xff]
        %v2145 = vld [vmem:[#allocation3 + $0xc1] sm:$0xf]
        %s2146 = scalar_lea.vmem %s3, 128
        %v2147 = vld [vmem:[%s2146] sm:$0xff]
        %v2148 = vld [vmem:[%s2146 + $0x8] sm:$0xff]
        %v2149 = vld [vmem:[%s2146 + $0x10] sm:$0xff]
        %v2150 = vld [vmem:[%s2146 + $0x18] sm:$0xff]
        %v2151 = vld [vmem:[%s2146 + $0x20] sm:$0xff]
        %v2152 = vld [vmem:[%s2146 + $0x28] sm:$0xff]
        %v2153 = vld [vmem:[%s2146 + $0x30] sm:$0xff]
        %v2154 = vld [vmem:[%s2146 + $0x38] sm:$0xff]
        %v2155 = vld [vmem:[%s2146 + $0x40] sm:$0xff]
        %v2156 = vld [vmem:[%s2146 + $0x48] sm:$0xff]
        %v2157 = vld [vmem:[%s2146 + $0x50] sm:$0xff]
        %v2158 = vld [vmem:[%s2146 + $0x58] sm:$0xff]
        %v2159 = vld [vmem:[%s2146 + $0x60] sm:$0xff]
        %v2160 = vld [vmem:[%s2146 + $0x68] sm:$0xff]
        %v2161 = vld [vmem:[%s2146 + $0x70] sm:$0xff]
        %v2162 = vld [vmem:[%s2146 + $0x78] sm:$0xff]
        %2163 = vmatprep.subr.mxu0 0.0
        %2164 = vmatpush1.msra.mxu0 %v2147
        %2165 = vmatprep.subr.mxu0 0.0
        %2166 = vmatpush1.msra.mxu0 %v2148
        %2167 = vmatprep.subr.mxu0 0.0
        %2168 = vmatpush1.msra.mxu0 %v2149
        %2169 = vmatprep.subr.mxu0 0.0
        %2170 = vmatpush1.msra.mxu0 %v2150
        %2171 = vmatprep.subr.mxu0 0.0
        %2172 = vmatpush1.msra.mxu0 %v2151
        %2173 = vmatprep.subr.mxu0 0.0
        %2174 = vmatpush1.msra.mxu0 %v2152
        %2175 = vmatprep.subr.mxu0 0.0
        %2176 = vmatpush1.msra.mxu0 %v2153
        %2177 = vmatprep.subr.mxu0 0.0
        %2178 = vmatpush1.msra.mxu0 %v2154
        %2179 = vmatprep.subr.mxu0 0.0
        %2180 = vmatpush1.msra.mxu0 %v2155
        %2181 = vmatprep.subr.mxu0 0.0
        %2182 = vmatpush1.msra.mxu0 %v2156
        %2183 = vmatprep.subr.mxu0 0.0
        %2184 = vmatpush1.msra.mxu0 %v2157
        %2185 = vmatprep.subr.mxu0 0.0
        %2186 = vmatpush1.msra.mxu0 %v2158
        %2187 = vmatprep.subr.mxu0 0.0
        %2188 = vmatpush1.msra.mxu0 %v2159
        %2189 = vmatprep.subr.mxu0 0.0
        %2190 = vmatpush1.msra.mxu0 %v2160
        %2191 = vmatprep.subr.mxu0 0.0
        %2192 = vmatpush1.msra.mxu0 %v2161
        %2193 = vmatprep.subr.mxu0 0.0
        %2194 = vmatpush1.msra.mxu0 %v2162
        %2195 = vmatprep.subr.mxu0 0.0
        %2196 = vmatpush1.msra.mxu0 0.0
        %2197 = vmatprep.subr.mxu0 0.0
        %2198 = vmatpush1.msra.mxu0 0.0
        %2199 = vmatprep.subr.mxu0 0.0
        %2200 = vmatpush1.msra.mxu0 0.0
        %2201 = vmatprep.subr.mxu0 0.0
        %2202 = vmatpush1.msra.mxu0 0.0
        %2203 = vmatprep.subr.mxu0 0.0
        %2204 = vmatpush1.msra.mxu0 0.0
        %2205 = vmatprep.subr.mxu0 0.0
        %2206 = vmatpush1.msra.mxu0 0.0
        %2207 = vmatprep.subr.mxu0 0.0
        %2208 = vmatpush1.msra.mxu0 0.0
        %2209 = vmatprep.subr.mxu0 0.0
        %2210 = vmatpush1.msra.mxu0 0.0
        %2211 = vmatprep.subr.mxu0 0.0
        %2212 = vmatpush1.msra.mxu0 0.0
        %2213 = vmatprep.subr.mxu0 0.0
        %2214 = vmatpush1.msra.mxu0 0.0
        %2215 = vmatprep.subr.mxu0 0.0
        %2216 = vmatpush1.msra.mxu0 0.0
        %2217 = vmatprep.subr.mxu0 0.0
        %2218 = vmatpush1.msra.mxu0 0.0
        %2219 = vmatprep.subr.mxu0 0.0
        %2220 = vmatpush1.msra.mxu0 0.0
        %2221 = vmatprep.subr.mxu0 0.0
        %2222 = vmatpush1.msra.mxu0 0.0
        %2223 = vmatprep.subr.mxu0 0.0
        %2224 = vmatpush1.msra.mxu0 0.0
        %2225 = vmatprep.subr.mxu0 0.0
        %2226 = vmatpush1.msra.mxu0 0.0
        %2227 = vmatprep.mubr.f32.mxu0 0.0
        %2228 = vmatmul.mubr.f32.gmra.mrb[0].mxu0 %v2121
        %v2229 = vpop.f32.mrb[0].mxu0
        %v2230 = vadd.f32 0.0, %v2229
        %v2231 = vpop.f32.mrb[0].mxu0
        %2232 = vmatprep.mubr.f32.mxu0 0.0
        %2233 = vmatmul.mubr.f32.gmra.mrb[0].mxu0 %v2122
        %v2234 = vpop.f32.mrb[0].mxu0
        %v2235 = vadd.f32 0.0, %v2234
        %v2236 = vpop.f32.mrb[0].mxu0
        %2237 = vmatprep.mubr.f32.mxu0 0.0
        %2238 = vmatmul.mubr.f32.gmra.mrb[0].mxu0 %v2123
        %v2239 = vpop.f32.mrb[0].mxu0
        %v2240 = vadd.f32 0.0, %v2239
        %v2241 = vpop.f32.mrb[0].mxu0
        %2242 = vmatprep.mubr.f32.mxu0 0.0
        %2243 = vmatmul.mubr.f32.gmra.mrb[0].mxu0 %v2124
        %v2244 = vpop.f32.mrb[0].mxu0
        %v2245 = vadd.f32 0.0, %v2244
        %v2246 = vpop.f32.mrb[0].mxu0
        %2247 = vmatprep.mubr.f32.mxu0 0.0
        %2248 = vmatmul.mubr.f32.gmra.mrb[0].mxu0 %v2125
        %v2249 = vpop.f32.mrb[0].mxu0
        %v2250 = vadd.f32 0.0, %v2249
        %v2251 = vpop.f32.mrb[0].mxu0
        %2252 = vmatprep.mubr.f32.mxu0 0.0
        %2253 = vmatmul.mubr.f32.gmra.mrb[0].mxu0 %v2126
        %v2254 = vpop.f32.mrb[0].mxu0
        %v2255 = vadd.f32 0.0, %v2254
        %v2256 = vpop.f32.mrb[0].mxu0
        %2257 = vmatprep.mubr.f32.mxu0 0.0
        %2258 = vmatmul.mubr.f32.gmra.mrb[0].mxu0 %v2127
        %v2259 = vpop.f32.mrb[0].mxu0
        %v2260 = vadd.f32 0.0, %v2259
        %v2261 = vpop.f32.mrb[0].mxu0
        %2262 = vmatprep.mubr.f32.mxu0 0.0
        %2263 = vmatmul.mubr.f32.gmra.mrb[0].mxu0 %v2128
        %v2264 = vpop.f32.mrb[0].mxu0
        %v2265 = vadd.f32 0.0, %v2264
        %v2266 = vpop.f32.mrb[0].mxu0
        %2267 = vmatprep.mubr.f32.mxu0 0.0
        %2268 = vmatmul.mubr.f32.gmra.mrb[0].mxu0 %v2129
        %v2269 = vpop.f32.mrb[0].mxu0
        %v2270 = vadd.f32 0.0, %v2269
        %v2271 = vpop.f32.mrb[0].mxu0
        %2272 = vmatprep.mubr.f32.mxu0 0.0
        %2273 = vmatmul.mubr.f32.gmra.mrb[0].mxu0 %v2130
        %v2274 = vpop.f32.mrb[0].mxu0
        %v2275 = vadd.f32 0.0, %v2274
        %v2276 = vpop.f32.mrb[0].mxu0
        %2277 = vmatprep.mubr.f32.mxu0 0.0
        %2278 = vmatmul.mubr.f32.gmra.mrb[0].mxu0 %v2131
        %v2279 = vpop.f32.mrb[0].mxu0
        %v2280 = vadd.f32 0.0, %v2279
        %v2281 = vpop.f32.mrb[0].mxu0
        %2282 = vmatprep.mubr.f32.mxu0 0.0
        %2283 = vmatmul.mubr.f32.gmra.mrb[0].mxu0 %v2132
        %v2284 = vpop.f32.mrb[0].mxu0
        %v2285 = vadd.f32 0.0, %v2284
        %v2286 = vpop.f32.mrb[0].mxu0
        %2287 = vmatprep.mubr.f32.mxu0 0.0
        %2288 = vmatmul.mubr.f32.gmra.mrb[0].mxu0 %v2133
        %v2289 = vpop.f32.mrb[0].mxu0
        %v2290 = vadd.f32 0.0, %v2289
        %v2291 = vpop.f32.mrb[0].mxu0
        %2292 = vmatprep.mubr.f32.mxu0 0.0
        %2293 = vmatmul.mubr.f32.gmra.mrb[0].mxu0 %v2134
        %v2294 = vpop.f32.mrb[0].mxu0
        %v2295 = vadd.f32 0.0, %v2294
        %v2296 = vpop.f32.mrb[0].mxu0
        %2297 = vmatprep.mubr.f32.mxu0 0.0
        %2298 = vmatmul.mubr.f32.gmra.mrb[0].mxu0 %v2135
        %v2299 = vpop.f32.mrb[0].mxu0
        %v2300 = vadd.f32 0.0, %v2299
        %v2301 = vpop.f32.mrb[0].mxu0
        %2302 = vmatprep.mubr.f32.mxu0 0.0
        %2303 = vmatmul.mubr.f32.gmra.mrb[0].mxu0 %v2136
        %v2304 = vpop.f32.mrb[0].mxu0
        %v2305 = vadd.f32 0.0, %v2304
        %v2306 = vpop.f32.mrb[0].mxu0
        %2307 = vmatprep.mubr.f32.mxu0 0.0
        %2308 = vmatmul.mubr.f32.gmra.mrb[0].mxu0 %v2137
        %v2309 = vpop.f32.mrb[0].mxu0
        %v2310 = vadd.f32 0.0, %v2309
        %v2311 = vpop.f32.mrb[0].mxu0
        %2312 = vmatprep.mubr.f32.mxu0 0.0
        %2313 = vmatmul.mubr.f32.gmra.mrb[0].mxu0 %v2138
        %v2314 = vpop.f32.mrb[0].mxu0
        %v2315 = vadd.f32 0.0, %v2314
        %v2316 = vpop.f32.mrb[0].mxu0
        %2317 = vmatprep.mubr.f32.mxu0 0.0
        %2318 = vmatmul.mubr.f32.gmra.mrb[0].mxu0 %v2139
        %v2319 = vpop.f32.mrb[0].mxu0
        %v2320 = vadd.f32 0.0, %v2319
        %v2321 = vpop.f32.mrb[0].mxu0
        %2322 = vmatprep.mubr.f32.mxu0 0.0
        %2323 = vmatmul.mubr.f32.gmra.mrb[0].mxu0 %v2140
        %v2324 = vpop.f32.mrb[0].mxu0
        %v2325 = vadd.f32 0.0, %v2324
        %v2326 = vpop.f32.mrb[0].mxu0
        %2327 = vmatprep.mubr.f32.mxu0 0.0
        %2328 = vmatmul.mubr.f32.gmra.mrb[0].mxu0 %v2141
        %v2329 = vpop.f32.mrb[0].mxu0
        %v2330 = vadd.f32 0.0, %v2329
        %v2331 = vpop.f32.mrb[0].mxu0
        %2332 = vmatprep.mubr.f32.mxu0 0.0
        %2333 = vmatmul.mubr.f32.gmra.mrb[0].mxu0 %v2142
        %v2334 = vpop.f32.mrb[0].mxu0
        %v2335 = vadd.f32 0.0, %v2334
        %v2336 = vpop.f32.mrb[0].mxu0
        %2337 = vmatprep.mubr.f32.mxu0 0.0
        %2338 = vmatmul.mubr.f32.gmra.mrb[0].mxu0 %v2143
        %v2339 = vpop.f32.mrb[0].mxu0
        %v2340 = vadd.f32 0.0, %v2339
        %v2341 = vpop.f32.mrb[0].mxu0
        %2342 = vmatprep.mubr.f32.mxu0 0.0
        %2343 = vmatmul.mubr.f32.gmra.mrb[0].mxu0 %v2144
        %v2344 = vpop.f32.mrb[0].mxu0
        %v2345 = vadd.f32 0.0, %v2344
        %v2346 = vpop.f32.mrb[0].mxu0
        %2347 = vmatprep.mubr.f32.mxu0 0.0
        %2348 = vmatmul.mubr.f32.gmra.mrb[0].mxu0 %v2145
        %v2349 = vpop.f32.mrb[0].mxu0
        %v2350 = vadd.f32 0.0, %v2349
        %v2351 = vpop.f32.mrb[0].mxu0
        %2352 = vdwg.mxu0
        %v2353 = vld [vmem:[#allocation4] sm:$0xff]
        %v2354 = vld [vmem:[#allocation4 + $0x8] sm:$0xff]
        %v2355 = vld [vmem:[#allocation4 + $0x10] sm:$0xff]
        %v2356 = vld [vmem:[#allocation4 + $0x18] sm:$0xff]
        %v2357 = vld [vmem:[#allocation4 + $0x20] sm:$0xff]
        %v2358 = vld [vmem:[#allocation4 + $0x28] sm:$0xff]
        %v2359 = vld [vmem:[#allocation4 + $0x30] sm:$0xff]
        %v2360 = vld [vmem:[#allocation4 + $0x38] sm:$0xff]
        %v2361 = vld [vmem:[#allocation4 + $0x40] sm:$0xff]
        %v2362 = vld [vmem:[#allocation4 + $0x48] sm:$0xff]
        %v2363 = vld [vmem:[#allocation4 + $0x50] sm:$0xff]
        %v2364 = vld [vmem:[#allocation4 + $0x58] sm:$0xff]
        %v2365 = vld [vmem:[#allocation4 + $0x60] sm:$0xff]
        %v2366 = vld [vmem:[#allocation4 + $0x68] sm:$0xff]
        %v2367 = vld [vmem:[#allocation4 + $0x70] sm:$0xff]
        %v2368 = vld [vmem:[#allocation4 + $0x78] sm:$0xff]
        %v2369 = vld [vmem:[#allocation4 + $0x80] sm:$0xff]
        %v2370 = vld [vmem:[#allocation4 + $0x88] sm:$0xff]
        %v2371 = vld [vmem:[#allocation4 + $0x90] sm:$0xff]
        %v2372 = vld [vmem:[#allocation4 + $0x98] sm:$0xff]
        %v2373 = vld [vmem:[#allocation4 + $0xa0] sm:$0xff]
        %v2374 = vld [vmem:[#allocation4 + $0xa8] sm:$0xff]
        %v2375 = vld [vmem:[#allocation4 + $0xb0] sm:$0xff]
        %v2376 = vld [vmem:[#allocation4 + $0xb8] sm:$0xff]
        %v2377 = vld [vmem:[#allocation4 + $0xc0] sm:$0xf]
        %v2378 = vadd.f32 %v2353, %v2230
        %v2379 = vadd.f32 %v2354, %v2235
        %v2380 = vadd.f32 %v2355, %v2240
        %v2381 = vadd.f32 %v2356, %v2245
        %v2382 = vadd.f32 %v2357, %v2250
        %v2383 = vadd.f32 %v2358, %v2255
        %v2384 = vadd.f32 %v2359, %v2260
        %v2385 = vadd.f32 %v2360, %v2265
        %v2386 = vadd.f32 %v2361, %v2270
        %v2387 = vadd.f32 %v2362, %v2275
        %v2388 = vadd.f32 %v2363, %v2280
        %v2389 = vadd.f32 %v2364, %v2285
        %v2390 = vadd.f32 %v2365, %v2290
        %v2391 = vadd.f32 %v2366, %v2295
        %v2392 = vadd.f32 %v2367, %v2300
        %v2393 = vadd.f32 %v2368, %v2305
        %v2394 = vadd.f32 %v2369, %v2310
        %v2395 = vadd.f32 %v2370, %v2315
        %v2396 = vadd.f32 %v2371, %v2320
        %v2397 = vadd.f32 %v2372, %v2325
        %v2398 = vadd.f32 %v2373, %v2330
        %v2399 = vadd.f32 %v2374, %v2335
        %v2400 = vadd.f32 %v2375, %v2340
        %v2401 = vadd.f32 %v2376, %v2345
        %v2402 = vadd.f32 %v2377, %v2350
        %2403 = vst [vmem:[#allocation4] sm:$0xff] %v2378
        %2404 = vst [vmem:[#allocation4 + $0x8] sm:$0xff] %v2379
        %2405 = vst [vmem:[#allocation4 + $0x10] sm:$0xff] %v2380
        %2406 = vst [vmem:[#allocation4 + $0x18] sm:$0xff] %v2381
        %2407 = vst [vmem:[#allocation4 + $0x20] sm:$0xff] %v2382
        %2408 = vst [vmem:[#allocation4 + $0x28] sm:$0xff] %v2383
        %2409 = vst [vmem:[#allocation4 + $0x30] sm:$0xff] %v2384
        %2410 = vst [vmem:[#allocation4 + $0x38] sm:$0xff] %v2385
        %2411 = vst [vmem:[#allocation4 + $0x40] sm:$0xff] %v2386
        %2412 = vst [vmem:[#allocation4 + $0x48] sm:$0xff] %v2387
        %2413 = vst [vmem:[#allocation4 + $0x50] sm:$0xff] %v2388
        %2414 = vst [vmem:[#allocation4 + $0x58] sm:$0xff] %v2389
        %2415 = vst [vmem:[#allocation4 + $0x60] sm:$0xff] %v2390
        %2416 = vst [vmem:[#allocation4 + $0x68] sm:$0xff] %v2391
        %2417 = vst [vmem:[#allocation4 + $0x70] sm:$0xff] %v2392
        %2418 = vst [vmem:[#allocation4 + $0x78] sm:$0xff] %v2393
        %2419 = vst [vmem:[#allocation4 + $0x80] sm:$0xff] %v2394
        %2420 = vst [vmem:[#allocation4 + $0x88] sm:$0xff] %v2395
        %2421 = vst [vmem:[#allocation4 + $0x90] sm:$0xff] %v2396
        %2422 = vst [vmem:[#allocation4 + $0x98] sm:$0xff] %v2397
        %2423 = vst [vmem:[#allocation4 + $0xa0] sm:$0xff] %v2398
        %2424 = vst [vmem:[#allocation4 + $0xa8] sm:$0xff] %v2399
        %2425 = vst [vmem:[#allocation4 + $0xb0] sm:$0xff] %v2400
        %2426 = vst [vmem:[#allocation4 + $0xb8] sm:$0xff] %v2401
        %2427 = vst [vmem:[#allocation4 + $0xc0] sm:$0xf] %v2402
        %v2428 = vld [vmem:[#allocation3 + $0x2] sm:$0xff]
        %v2429 = vld [vmem:[#allocation3 + $0xa] sm:$0xff]
        %v2430 = vld [vmem:[#allocation3 + $0x12] sm:$0xff]
        %v2431 = vld [vmem:[#allocation3 + $0x1a] sm:$0xff]
        %v2432 = vld [vmem:[#allocation3 + $0x22] sm:$0xff]
        %v2433 = vld [vmem:[#allocation3 + $0x2a] sm:$0xff]
        %v2434 = vld [vmem:[#allocation3 + $0x32] sm:$0xff]
        %v2435 = vld [vmem:[#allocation3 + $0x3a] sm:$0xff]
        %v2436 = vld [vmem:[#allocation3 + $0x42] sm:$0xff]
        %v2437 = vld [vmem:[#allocation3 + $0x4a] sm:$0xff]
        %v2438 = vld [vmem:[#allocation3 + $0x52] sm:$0xff]
        %v2439 = vld [vmem:[#allocation3 + $0x5a] sm:$0xff]
        %v2440 = vld [vmem:[#allocation3 + $0x62] sm:$0xff]
        %v2441 = vld [vmem:[#allocation3 + $0x6a] sm:$0xff]
        %v2442 = vld [vmem:[#allocation3 + $0x72] sm:$0xff]
        %v2443 = vld [vmem:[#allocation3 + $0x7a] sm:$0xff]
        %v2444 = vld [vmem:[#allocation3 + $0x82] sm:$0xff]
        %v2445 = vld [vmem:[#allocation3 + $0x8a] sm:$0xff]
        %v2446 = vld [vmem:[#allocation3 + $0x92] sm:$0xff]
        %v2447 = vld [vmem:[#allocation3 + $0x9a] sm:$0xff]
        %v2448 = vld [vmem:[#allocation3 + $0xa2] sm:$0xff]
        %v2449 = vld [vmem:[#allocation3 + $0xaa] sm:$0xff]
        %v2450 = vld [vmem:[#allocation3 + $0xb2] sm:$0xff]
        %v2451 = vld [vmem:[#allocation3 + $0xba] sm:$0xff]
        %v2452 = vld [vmem:[#allocation3 + $0xc2] sm:$0xf]
        %s2453 = scalar_lea.vmem %s3, 256
        %v2454 = vld [vmem:[%s2453] sm:$0xff]
        %v2455 = vld [vmem:[%s2453 + $0x8] sm:$0xff]
        %v2456 = vld [vmem:[%s2453 + $0x10] sm:$0xff]
        %v2457 = vld [vmem:[%s2453 + $0x18] sm:$0xff]
        %v2458 = vld [vmem:[%s2453 + $0x20] sm:$0xff]
        %v2459 = vld [vmem:[%s2453 + $0x28] sm:$0xff]
        %v2460 = vld [vmem:[%s2453 + $0x30] sm:$0xff]
        %v2461 = vld [vmem:[%s2453 + $0x38] sm:$0xff]
        %v2462 = vld [vmem:[%s2453 + $0x40] sm:$0xff]
        %v2463 = vld [vmem:[%s2453 + $0x48] sm:$0xff]
        %v2464 = vld [vmem:[%s2453 + $0x50] sm:$0xff]
        %v2465 = vld [vmem:[%s2453 + $0x58] sm:$0xff]
        %v2466 = vld [vmem:[%s2453 + $0x60] sm:$0xff]
        %v2467 = vld [vmem:[%s2453 + $0x68] sm:$0xff]
        %v2468 = vld [vmem:[%s2453 + $0x70] sm:$0xff]
        %v2469 = vld [vmem:[%s2453 + $0x78] sm:$0xff]
        %2470 = vmatprep.subr.mxu0 0.0
        %2471 = vmatpush1.msra.mxu0 %v2454
        %2472 = vmatprep.subr.mxu0 0.0
        %2473 = vmatpush1.msra.mxu0 %v2455
        %2474 = vmatprep.subr.mxu0 0.0
        %2475 = vmatpush1.msra.mxu0 %v2456
        %2476 = vmatprep.subr.mxu0 0.0
        %2477 = vmatpush1.msra.mxu0 %v2457
        %2478 = vmatprep.subr.mxu0 0.0
        %2479 = vmatpush1.msra.mxu0 %v2458
        %2480 = vmatprep.subr.mxu0 0.0
        %2481 = vmatpush1.msra.mxu0 %v2459
        %2482 = vmatprep.subr.mxu0 0.0
        %2483 = vmatpush1.msra.mxu0 %v2460
        %2484 = vmatprep.subr.mxu0 0.0
        %2485 = vmatpush1.msra.mxu0 %v2461
        %2486 = vmatprep.subr.mxu0 0.0
        %2487 = vmatpush1.msra.mxu0 %v2462
        %2488 = vmatprep.subr.mxu0 0.0
        %2489 = vmatpush1.msra.mxu0 %v2463
        %2490 = vmatprep.subr.mxu0 0.0
        %2491 = vmatpush1.msra.mxu0 %v2464
        %2492 = vmatprep.subr.mxu0 0.0
        %2493 = vmatpush1.msra.mxu0 %v2465
        %2494 = vmatprep.subr.mxu0 0.0
        %2495 = vmatpush1.msra.mxu0 %v2466
        %2496 = vmatprep.subr.mxu0 0.0
        %2497 = vmatpush1.msra.mxu0 %v2467
        %2498 = vmatprep.subr.mxu0 0.0
        %2499 = vmatpush1.msra.mxu0 %v2468
        %2500 = vmatprep.subr.mxu0 0.0
        %2501 = vmatpush1.msra.mxu0 %v2469
        %2502 = vmatprep.subr.mxu0 0.0
        %2503 = vmatpush1.msra.mxu0 0.0
        %2504 = vmatprep.subr.mxu0 0.0
        %2505 = vmatpush1.msra.mxu0 0.0
        %2506 = vmatprep.subr.mxu0 0.0
        %2507 = vmatpush1.msra.mxu0 0.0
        %2508 = vmatprep.subr.mxu0 0.0
        %2509 = vmatpush1.msra.mxu0 0.0
        %2510 = vmatprep.subr.mxu0 0.0
        %2511 = vmatpush1.msra.mxu0 0.0
        %2512 = vmatprep.subr.mxu0 0.0
        %2513 = vmatpush1.msra.mxu0 0.0
        %2514 = vmatprep.subr.mxu0 0.0
        %2515 = vmatpush1.msra.mxu0 0.0
        %2516 = vmatprep.subr.mxu0 0.0
        %2517 = vmatpush1.msra.mxu0 0.0
        %2518 = vmatprep.subr.mxu0 0.0
        %2519 = vmatpush1.msra.mxu0 0.0
        %2520 = vmatprep.subr.mxu0 0.0
        %2521 = vmatpush1.msra.mxu0 0.0
        %2522 = vmatprep.subr.mxu0 0.0
        %2523 = vmatpush1.msra.mxu0 0.0
        %2524 = vmatprep.subr.mxu0 0.0
        %2525 = vmatpush1.msra.mxu0 0.0
        %2526 = vmatprep.subr.mxu0 0.0
        %2527 = vmatpush1.msra.mxu0 0.0
        %2528 = vmatprep.subr.mxu0 0.0
        %2529 = vmatpush1.msra.mxu0 0.0
        %2530 = vmatprep.subr.mxu0 0.0
        %2531 = vmatpush1.msra.mxu0 0.0
        %2532 = vmatprep.subr.mxu0 0.0
        %2533 = vmatpush1.msra.mxu0 0.0
        %2534 = vmatprep.mubr.f32.mxu0 0.0
        %2535 = vmatmul.mubr.f32.gmra.mrb[0].mxu0 %v2428
        %v2536 = vpop.f32.mrb[0].mxu0
        %v2537 = vadd.f32 0.0, %v2536
        %v2538 = vpop.f32.mrb[0].mxu0
        %2539 = vmatprep.mubr.f32.mxu0 0.0
        %2540 = vmatmul.mubr.f32.gmra.mrb[0].mxu0 %v2429
        %v2541 = vpop.f32.mrb[0].mxu0
        %v2542 = vadd.f32 0.0, %v2541
        %v2543 = vpop.f32.mrb[0].mxu0
        %2544 = vmatprep.mubr.f32.mxu0 0.0
        %2545 = vmatmul.mubr.f32.gmra.mrb[0].mxu0 %v2430
        %v2546 = vpop.f32.mrb[0].mxu0
        %v2547 = vadd.f32 0.0, %v2546
        %v2548 = vpop.f32.mrb[0].mxu0
        %2549 = vmatprep.mubr.f32.mxu0 0.0
        %2550 = vmatmul.mubr.f32.gmra.mrb[0].mxu0 %v2431
        %v2551 = vpop.f32.mrb[0].mxu0
        %v2552 = vadd.f32 0.0, %v2551
        %v2553 = vpop.f32.mrb[0].mxu0
        %2554 = vmatprep.mubr.f32.mxu0 0.0
        %2555 = vmatmul.mubr.f32.gmra.mrb[0].mxu0 %v2432
        %v2556 = vpop.f32.mrb[0].mxu0
        %v2557 = vadd.f32 0.0, %v2556
        %v2558 = vpop.f32.mrb[0].mxu0
        %2559 = vmatprep.mubr.f32.mxu0 0.0
        %2560 = vmatmul.mubr.f32.gmra.mrb[0].mxu0 %v2433
        %v2561 = vpop.f32.mrb[0].mxu0
        %v2562 = vadd.f32 0.0, %v2561
        %v2563 = vpop.f32.mrb[0].mxu0
        %2564 = vmatprep.mubr.f32.mxu0 0.0
        %2565 = vmatmul.mubr.f32.gmra.mrb[0].mxu0 %v2434
        %v2566 = vpop.f32.mrb[0].mxu0
        %v2567 = vadd.f32 0.0, %v2566
        %v2568 = vpop.f32.mrb[0].mxu0
        %2569 = vmatprep.mubr.f32.mxu0 0.0
        %2570 = vmatmul.mubr.f32.gmra.mrb[0].mxu0 %v2435
        %v2571 = vpop.f32.mrb[0].mxu0
        %v2572 = vadd.f32 0.0, %v2571
        %v2573 = vpop.f32.mrb[0].mxu0
        %2574 = vmatprep.mubr.f32.mxu0 0.0
        %2575 = vmatmul.mubr.f32.gmra.mrb[0].mxu0 %v2436
        %v2576 = vpop.f32.mrb[0].mxu0
        %v2577 = vadd.f32 0.0, %v2576
        %v2578 = vpop.f32.mrb[0].mxu0
        %2579 = vmatprep.mubr.f32.mxu0 0.0
        %2580 = vmatmul.mubr.f32.gmra.mrb[0].mxu0 %v2437
        %v2581 = vpop.f32.mrb[0].mxu0
        %v2582 = vadd.f32 0.0, %v2581
        %v2583 = vpop.f32.mrb[0].mxu0
        %2584 = vmatprep.mubr.f32.mxu0 0.0
        %2585 = vmatmul.mubr.f32.gmra.mrb[0].mxu0 %v2438
        %v2586 = vpop.f32.mrb[0].mxu0
        %v2587 = vadd.f32 0.0, %v2586
        %v2588 = vpop.f32.mrb[0].mxu0
        %2589 = vmatprep.mubr.f32.mxu0 0.0
        %2590 = vmatmul.mubr.f32.gmra.mrb[0].mxu0 %v2439
        %v2591 = vpop.f32.mrb[0].mxu0
        %v2592 = vadd.f32 0.0, %v2591
        %v2593 = vpop.f32.mrb[0].mxu0
        %2594 = vmatprep.mubr.f32.mxu0 0.0
        %2595 = vmatmul.mubr.f32.gmra.mrb[0].mxu0 %v2440
        %v2596 = vpop.f32.mrb[0].mxu0
        %v2597 = vadd.f32 0.0, %v2596
        %v2598 = vpop.f32.mrb[0].mxu0
        %2599 = vmatprep.mubr.f32.mxu0 0.0
        %2600 = vmatmul.mubr.f32.gmra.mrb[0].mxu0 %v2441
        %v2601 = vpop.f32.mrb[0].mxu0
        %v2602 = vadd.f32 0.0, %v2601
        %v2603 = vpop.f32.mrb[0].mxu0
        %2604 = vmatprep.mubr.f32.mxu0 0.0
        %2605 = vmatmul.mubr.f32.gmra.mrb[0].mxu0 %v2442
        %v2606 = vpop.f32.mrb[0].mxu0
        %v2607 = vadd.f32 0.0, %v2606
        %v2608 = vpop.f32.mrb[0].mxu0
        %2609 = vmatprep.mubr.f32.mxu0 0.0
        %2610 = vmatmul.mubr.f32.gmra.mrb[0].mxu0 %v2443
        %v2611 = vpop.f32.mrb[0].mxu0
        %v2612 = vadd.f32 0.0, %v2611
        %v2613 = vpop.f32.mrb[0].mxu0
        %2614 = vmatprep.mubr.f32.mxu0 0.0
        %2615 = vmatmul.mubr.f32.gmra.mrb[0].mxu0 %v2444
        %v2616 = vpop.f32.mrb[0].mxu0
        %v2617 = vadd.f32 0.0, %v2616
        %v2618 = vpop.f32.mrb[0].mxu0
        %2619 = vmatprep.mubr.f32.mxu0 0.0
        %2620 = vmatmul.mubr.f32.gmra.mrb[0].mxu0 %v2445
        %v2621 = vpop.f32.mrb[0].mxu0
        %v2622 = vadd.f32 0.0, %v2621
        %v2623 = vpop.f32.mrb[0].mxu0
        %2624 = vmatprep.mubr.f32.mxu0 0.0
        %2625 = vmatmul.mubr.f32.gmra.mrb[0].mxu0 %v2446
        %v2626 = vpop.f32.mrb[0].mxu0
        %v2627 = vadd.f32 0.0, %v2626
        %v2628 = vpop.f32.mrb[0].mxu0
        %2629 = vmatprep.mubr.f32.mxu0 0.0
        %2630 = vmatmul.mubr.f32.gmra.mrb[0].mxu0 %v2447
        %v2631 = vpop.f32.mrb[0].mxu0
        %v2632 = vadd.f32 0.0, %v2631
        %v2633 = vpop.f32.mrb[0].mxu0
        %2634 = vmatprep.mubr.f32.mxu0 0.0
        %2635 = vmatmul.mubr.f32.gmra.mrb[0].mxu0 %v2448
        %v2636 = vpop.f32.mrb[0].mxu0
        %v2637 = vadd.f32 0.0, %v2636
        %v2638 = vpop.f32.mrb[0].mxu0
        %2639 = vmatprep.mubr.f32.mxu0 0.0
        %2640 = vmatmul.mubr.f32.gmra.mrb[0].mxu0 %v2449
        %v2641 = vpop.f32.mrb[0].mxu0
        %v2642 = vadd.f32 0.0, %v2641
        %v2643 = vpop.f32.mrb[0].mxu0
        %2644 = vmatprep.mubr.f32.mxu0 0.0
        %2645 = vmatmul.mubr.f32.gmra.mrb[0].mxu0 %v2450
        %v2646 = vpop.f32.mrb[0].mxu0
        %v2647 = vadd.f32 0.0, %v2646
        %v2648 = vpop.f32.mrb[0].mxu0
        %2649 = vmatprep.mubr.f32.mxu0 0.0
        %2650 = vmatmul.mubr.f32.gmra.mrb[0].mxu0 %v2451
        %v2651 = vpop.f32.mrb[0].mxu0
        %v2652 = vadd.f32 0.0, %v2651
        %v2653 = vpop.f32.mrb[0].mxu0
        %2654 = vmatprep.mubr.f32.mxu0 0.0
        %2655 = vmatmul.mubr.f32.gmra.mrb[0].mxu0 %v2452
        %v2656 = vpop.f32.mrb[0].mxu0
        %v2657 = vadd.f32 0.0, %v2656
        %v2658 = vpop.f32.mrb[0].mxu0
        %2659 = vdwg.mxu0
        %v2660 = vld [vmem:[#allocation4] sm:$0xff]
        %v2661 = vld [vmem:[#allocation4 + $0x8] sm:$0xff]
        %v2662 = vld [vmem:[#allocation4 + $0x10] sm:$0xff]
        %v2663 = vld [vmem:[#allocation4 + $0x18] sm:$0xff]
        %v2664 = vld [vmem:[#allocation4 + $0x20] sm:$0xff]
        %v2665 = vld [vmem:[#allocation4 + $0x28] sm:$0xff]
        %v2666 = vld [vmem:[#allocation4 + $0x30] sm:$0xff]
        %v2667 = vld [vmem:[#allocation4 + $0x38] sm:$0xff]
        %v2668 = vld [vmem:[#allocation4 + $0x40] sm:$0xff]
        %v2669 = vld [vmem:[#allocation4 + $0x48] sm:$0xff]
        %v2670 = vld [vmem:[#allocation4 + $0x50] sm:$0xff]
        %v2671 = vld [vmem:[#allocation4 + $0x58] sm:$0xff]
        %v2672 = vld [vmem:[#allocation4 + $0x60] sm:$0xff]
        %v2673 = vld [vmem:[#allocation4 + $0x68] sm:$0xff]
        %v2674 = vld [vmem:[#allocation4 + $0x70] sm:$0xff]
        %v2675 = vld [vmem:[#allocation4 + $0x78] sm:$0xff]
        %v2676 = vld [vmem:[#allocation4 + $0x80] sm:$0xff]
        %v2677 = vld [vmem:[#allocation4 + $0x88] sm:$0xff]
        %v2678 = vld [vmem:[#allocation4 + $0x90] sm:$0xff]
        %v2679 = vld [vmem:[#allocation4 + $0x98] sm:$0xff]
        %v2680 = vld [vmem:[#allocation4 + $0xa0] sm:$0xff]
        %v2681 = vld [vmem:[#allocation4 + $0xa8] sm:$0xff]
        %v2682 = vld [vmem:[#allocation4 + $0xb0] sm:$0xff]
        %v2683 = vld [vmem:[#allocation4 + $0xb8] sm:$0xff]
        %v2684 = vld [vmem:[#allocation4 + $0xc0] sm:$0xf]
        %v2685 = vadd.f32 %v2660, %v2537
        %v2686 = vadd.f32 %v2661, %v2542
        %v2687 = vadd.f32 %v2662, %v2547
        %v2688 = vadd.f32 %v2663, %v2552
        %v2689 = vadd.f32 %v2664, %v2557
        %v2690 = vadd.f32 %v2665, %v2562
        %v2691 = vadd.f32 %v2666, %v2567
        %v2692 = vadd.f32 %v2667, %v2572
        %v2693 = vadd.f32 %v2668, %v2577
        %v2694 = vadd.f32 %v2669, %v2582
        %v2695 = vadd.f32 %v2670, %v2587
        %v2696 = vadd.f32 %v2671, %v2592
        %v2697 = vadd.f32 %v2672, %v2597
        %v2698 = vadd.f32 %v2673, %v2602
        %v2699 = vadd.f32 %v2674, %v2607
        %v2700 = vadd.f32 %v2675, %v2612
        %v2701 = vadd.f32 %v2676, %v2617
        %v2702 = vadd.f32 %v2677, %v2622
        %v2703 = vadd.f32 %v2678, %v2627
        %v2704 = vadd.f32 %v2679, %v2632
        %v2705 = vadd.f32 %v2680, %v2637
        %v2706 = vadd.f32 %v2681, %v2642
        %v2707 = vadd.f32 %v2682, %v2647
        %v2708 = vadd.f32 %v2683, %v2652
        %v2709 = vadd.f32 %v2684, %v2657
        %2710 = vst [vmem:[#allocation4] sm:$0xff] %v2685
        %2711 = vst [vmem:[#allocation4 + $0x8] sm:$0xff] %v2686
        %2712 = vst [vmem:[#allocation4 + $0x10] sm:$0xff] %v2687
        %2713 = vst [vmem:[#allocation4 + $0x18] sm:$0xff] %v2688
        %2714 = vst [vmem:[#allocation4 + $0x20] sm:$0xff] %v2689
        %2715 = vst [vmem:[#allocation4 + $0x28] sm:$0xff] %v2690
        %2716 = vst [vmem:[#allocation4 + $0x30] sm:$0xff] %v2691
        %2717 = vst [vmem:[#allocation4 + $0x38] sm:$0xff] %v2692
        %2718 = vst [vmem:[#allocation4 + $0x40] sm:$0xff] %v2693
        %2719 = vst [vmem:[#allocation4 + $0x48] sm:$0xff] %v2694
        %2720 = vst [vmem:[#allocation4 + $0x50] sm:$0xff] %v2695
        %2721 = vst [vmem:[#allocation4 + $0x58] sm:$0xff] %v2696
        %2722 = vst [vmem:[#allocation4 + $0x60] sm:$0xff] %v2697
        %2723 = vst [vmem:[#allocation4 + $0x68] sm:$0xff] %v2698
        %2724 = vst [vmem:[#allocation4 + $0x70] sm:$0xff] %v2699
        %2725 = vst [vmem:[#allocation4 + $0x78] sm:$0xff] %v2700
        %2726 = vst [vmem:[#allocation4 + $0x80] sm:$0xff] %v2701
        %2727 = vst [vmem:[#allocation4 + $0x88] sm:$0xff] %v2702
        %2728 = vst [vmem:[#allocation4 + $0x90] sm:$0xff] %v2703
        %2729 = vst [vmem:[#allocation4 + $0x98] sm:$0xff] %v2704
        %2730 = vst [vmem:[#allocation4 + $0xa0] sm:$0xff] %v2705
        %2731 = vst [vmem:[#allocation4 + $0xa8] sm:$0xff] %v2706
        %2732 = vst [vmem:[#allocation4 + $0xb0] sm:$0xff] %v2707
        %2733 = vst [vmem:[#allocation4 + $0xb8] sm:$0xff] %v2708
        %2734 = vst [vmem:[#allocation4 + $0xc0] sm:$0xf] %v2709
        %v2735 = vld [vmem:[#allocation3 + $0xe] sm:$0xff]
        %v2736 = vld [vmem:[#allocation3 + $0x16] sm:$0xff]
        %v2737 = vld [vmem:[#allocation3 + $0x1e] sm:$0xff]
        %v2738 = vld [vmem:[#allocation3 + $0x26] sm:$0xff]
        %v2739 = vld [vmem:[#allocation3 + $0x2e] sm:$0xff]
        %v2740 = vld [vmem:[#allocation3 + $0x36] sm:$0xff]
        %v2741 = vld [vmem:[#allocation3 + $0x3e] sm:$0xff]
        %v2742 = vld [vmem:[#allocation3 + $0x46] sm:$0xff]
        %v2743 = vld [vmem:[#allocation3 + $0x4e] sm:$0xff]
        %v2744 = vld [vmem:[#allocation3 + $0x56] sm:$0xff]
        %v2745 = vld [vmem:[#allocation3 + $0x5e] sm:$0xff]
        %v2746 = vld [vmem:[#allocation3 + $0x66] sm:$0xff]
        %v2747 = vld [vmem:[#allocation3 + $0x6e] sm:$0xff]
        %v2748 = vld [vmem:[#allocation3 + $0x76] sm:$0xff]
        %v2749 = vld [vmem:[#allocation3 + $0x7e] sm:$0xff]
        %v2750 = vld [vmem:[#allocation3 + $0x86] sm:$0xff]
        %v2751 = vld [vmem:[#allocation3 + $0x8e] sm:$0xff]
        %v2752 = vld [vmem:[#allocation3 + $0x96] sm:$0xff]
        %v2753 = vld [vmem:[#allocation3 + $0x9e] sm:$0xff]
        %v2754 = vld [vmem:[#allocation3 + $0xa6] sm:$0xff]
        %v2755 = vld [vmem:[#allocation3 + $0xae] sm:$0xff]
        %v2756 = vld [vmem:[#allocation3 + $0xb6] sm:$0xff]
        %v2757 = vld [vmem:[#allocation3 + $0xbe] sm:$0xff]
        %v2758 = vld [vmem:[#allocation3 + $0xc6] sm:$0xff]
        %v2759 = vld [vmem:[#allocation3 + $0xce] sm:$0xf]
        %s2760 = scalar_lea.vmem %s3, 384
        %v2761 = vld [vmem:[%s2760] sm:$0xff]
        %v2762 = vld [vmem:[%s2760 + $0x8] sm:$0xff]
        %v2763 = vld [vmem:[%s2760 + $0x10] sm:$0xff]
        %v2764 = vld [vmem:[%s2760 + $0x18] sm:$0xff]
        %v2765 = vld [vmem:[%s2760 + $0x20] sm:$0xff]
        %v2766 = vld [vmem:[%s2760 + $0x28] sm:$0xff]
        %v2767 = vld [vmem:[%s2760 + $0x30] sm:$0xff]
        %v2768 = vld [vmem:[%s2760 + $0x38] sm:$0xff]
        %v2769 = vld [vmem:[%s2760 + $0x40] sm:$0xff]
        %v2770 = vld [vmem:[%s2760 + $0x48] sm:$0xff]
        %v2771 = vld [vmem:[%s2760 + $0x50] sm:$0xff]
        %v2772 = vld [vmem:[%s2760 + $0x58] sm:$0xff]
        %v2773 = vld [vmem:[%s2760 + $0x60] sm:$0xff]
        %v2774 = vld [vmem:[%s2760 + $0x68] sm:$0xff]
        %v2775 = vld [vmem:[%s2760 + $0x70] sm:$0xff]
        %v2776 = vld [vmem:[%s2760 + $0x78] sm:$0xff]
        %2777 = vmatprep.subr.mxu0 0.0
        %2778 = vmatpush1.msra.mxu0 %v2761
        %2779 = vmatprep.subr.mxu0 0.0
        %2780 = vmatpush1.msra.mxu0 %v2762
        %2781 = vmatprep.subr.mxu0 0.0
        %2782 = vmatpush1.msra.mxu0 %v2763
        %2783 = vmatprep.subr.mxu0 0.0
        %2784 = vmatpush1.msra.mxu0 %v2764
        %2785 = vmatprep.subr.mxu0 0.0
        %2786 = vmatpush1.msra.mxu0 %v2765
        %2787 = vmatprep.subr.mxu0 0.0
        %2788 = vmatpush1.msra.mxu0 %v2766
        %2789 = vmatprep.subr.mxu0 0.0
        %2790 = vmatpush1.msra.mxu0 %v2767
        %2791 = vmatprep.subr.mxu0 0.0
        %2792 = vmatpush1.msra.mxu0 %v2768
        %2793 = vmatprep.subr.mxu0 0.0
        %2794 = vmatpush1.msra.mxu0 %v2769
        %2795 = vmatprep.subr.mxu0 0.0
        %2796 = vmatpush1.msra.mxu0 %v2770
        %2797 = vmatprep.subr.mxu0 0.0
        %2798 = vmatpush1.msra.mxu0 %v2771
        %2799 = vmatprep.subr.mxu0 0.0
        %2800 = vmatpush1.msra.mxu0 %v2772
        %2801 = vmatprep.subr.mxu0 0.0
        %2802 = vmatpush1.msra.mxu0 %v2773
        %2803 = vmatprep.subr.mxu0 0.0
        %2804 = vmatpush1.msra.mxu0 %v2774
        %2805 = vmatprep.subr.mxu0 0.0
        %2806 = vmatpush1.msra.mxu0 %v2775
        %2807 = vmatprep.subr.mxu0 0.0
        %2808 = vmatpush1.msra.mxu0 %v2776
        %2809 = vmatprep.subr.mxu0 0.0
        %2810 = vmatpush1.msra.mxu0 0.0
        %2811 = vmatprep.subr.mxu0 0.0
        %2812 = vmatpush1.msra.mxu0 0.0
        %2813 = vmatprep.subr.mxu0 0.0
        %2814 = vmatpush1.msra.mxu0 0.0
        %2815 = vmatprep.subr.mxu0 0.0
        %2816 = vmatpush1.msra.mxu0 0.0
        %2817 = vmatprep.subr.mxu0 0.0
        %2818 = vmatpush1.msra.mxu0 0.0
        %2819 = vmatprep.subr.mxu0 0.0
        %2820 = vmatpush1.msra.mxu0 0.0
        %2821 = vmatprep.subr.mxu0 0.0
        %2822 = vmatpush1.msra.mxu0 0.0
        %2823 = vmatprep.subr.mxu0 0.0
        %2824 = vmatpush1.msra.mxu0 0.0
        %2825 = vmatprep.subr.mxu0 0.0
        %2826 = vmatpush1.msra.mxu0 0.0
        %2827 = vmatprep.subr.mxu0 0.0
        %2828 = vmatpush1.msra.mxu0 0.0
        %2829 = vmatprep.subr.mxu0 0.0
        %2830 = vmatpush1.msra.mxu0 0.0
        %2831 = vmatprep.subr.mxu0 0.0
        %2832 = vmatpush1.msra.mxu0 0.0
        %2833 = vmatprep.subr.mxu0 0.0
        %2834 = vmatpush1.msra.mxu0 0.0
        %2835 = vmatprep.subr.mxu0 0.0
        %2836 = vmatpush1.msra.mxu0 0.0
        %2837 = vmatprep.subr.mxu0 0.0
        %2838 = vmatpush1.msra.mxu0 0.0
        %2839 = vmatprep.subr.mxu0 0.0
        %2840 = vmatpush1.msra.mxu0 0.0
        %2841 = vmatprep.mubr.f32.mxu0 0.0
        %2842 = vmatmul.mubr.f32.gmra.mrb[0].mxu0 %v2735
        %v2843 = vpop.f32.mrb[0].mxu0
        %v2844 = vadd.f32 0.0, %v2843
        %v2845 = vpop.f32.mrb[0].mxu0
        %2846 = vmatprep.mubr.f32.mxu0 0.0
        %2847 = vmatmul.mubr.f32.gmra.mrb[0].mxu0 %v2736
        %v2848 = vpop.f32.mrb[0].mxu0
        %v2849 = vadd.f32 0.0, %v2848
        %v2850 = vpop.f32.mrb[0].mxu0
        %2851 = vmatprep.mubr.f32.mxu0 0.0
        %2852 = vmatmul.mubr.f32.gmra.mrb[0].mxu0 %v2737
        %v2853 = vpop.f32.mrb[0].mxu0
        %v2854 = vadd.f32 0.0, %v2853
        %v2855 = vpop.f32.mrb[0].mxu0
        %2856 = vmatprep.mubr.f32.mxu0 0.0
        %2857 = vmatmul.mubr.f32.gmra.mrb[0].mxu0 %v2738
        %v2858 = vpop.f32.mrb[0].mxu0
        %v2859 = vadd.f32 0.0, %v2858
        %v2860 = vpop.f32.mrb[0].mxu0
        %2861 = vmatprep.mubr.f32.mxu0 0.0
        %2862 = vmatmul.mubr.f32.gmra.mrb[0].mxu0 %v2739
        %v2863 = vpop.f32.mrb[0].mxu0
        %v2864 = vadd.f32 0.0, %v2863
        %v2865 = vpop.f32.mrb[0].mxu0
        %2866 = vmatprep.mubr.f32.mxu0 0.0
        %2867 = vmatmul.mubr.f32.gmra.mrb[0].mxu0 %v2740
        %v2868 = vpop.f32.mrb[0].mxu0
        %v2869 = vadd.f32 0.0, %v2868
        %v2870 = vpop.f32.mrb[0].mxu0
        %2871 = vmatprep.mubr.f32.mxu0 0.0
        %2872 = vmatmul.mubr.f32.gmra.mrb[0].mxu0 %v2741
        %v2873 = vpop.f32.mrb[0].mxu0
        %v2874 = vadd.f32 0.0, %v2873
        %v2875 = vpop.f32.mrb[0].mxu0
        %2876 = vmatprep.mubr.f32.mxu0 0.0
        %2877 = vmatmul.mubr.f32.gmra.mrb[0].mxu0 %v2742
        %v2878 = vpop.f32.mrb[0].mxu0
        %v2879 = vadd.f32 0.0, %v2878
        %v2880 = vpop.f32.mrb[0].mxu0
        %2881 = vmatprep.mubr.f32.mxu0 0.0
        %2882 = vmatmul.mubr.f32.gmra.mrb[0].mxu0 %v2743
        %v2883 = vpop.f32.mrb[0].mxu0
        %v2884 = vadd.f32 0.0, %v2883
        %v2885 = vpop.f32.mrb[0].mxu0
        %2886 = vmatprep.mubr.f32.mxu0 0.0
        %2887 = vmatmul.mubr.f32.gmra.mrb[0].mxu0 %v2744
        %v2888 = vpop.f32.mrb[0].mxu0
        %v2889 = vadd.f32 0.0, %v2888
        %v2890 = vpop.f32.mrb[0].mxu0
        %2891 = vmatprep.mubr.f32.mxu0 0.0
        %2892 = vmatmul.mubr.f32.gmra.mrb[0].mxu0 %v2745
        %v2893 = vpop.f32.mrb[0].mxu0
        %v2894 = vadd.f32 0.0, %v2893
        %v2895 = vpop.f32.mrb[0].mxu0
        %2896 = vmatprep.mubr.f32.mxu0 0.0
        %2897 = vmatmul.mubr.f32.gmra.mrb[0].mxu0 %v2746
        %v2898 = vpop.f32.mrb[0].mxu0
        %v2899 = vadd.f32 0.0, %v2898
        %v2900 = vpop.f32.mrb[0].mxu0
        %2901 = vmatprep.mubr.f32.mxu0 0.0
        %2902 = vmatmul.mubr.f32.gmra.mrb[0].mxu0 %v2747
        %v2903 = vpop.f32.mrb[0].mxu0
        %v2904 = vadd.f32 0.0, %v2903
        %v2905 = vpop.f32.mrb[0].mxu0
        %2906 = vmatprep.mubr.f32.mxu0 0.0
        %2907 = vmatmul.mubr.f32.gmra.mrb[0].mxu0 %v2748
        %v2908 = vpop.f32.mrb[0].mxu0
        %v2909 = vadd.f32 0.0, %v2908
        %v2910 = vpop.f32.mrb[0].mxu0
        %2911 = vmatprep.mubr.f32.mxu0 0.0
        %2912 = vmatmul.mubr.f32.gmra.mrb[0].mxu0 %v2749
        %v2913 = vpop.f32.mrb[0].mxu0
        %v2914 = vadd.f32 0.0, %v2913
        %v2915 = vpop.f32.mrb[0].mxu0
        %2916 = vmatprep.mubr.f32.mxu0 0.0
        %2917 = vmatmul.mubr.f32.gmra.mrb[0].mxu0 %v2750
        %v2918 = vpop.f32.mrb[0].mxu0
        %v2919 = vadd.f32 0.0, %v2918
        %v2920 = vpop.f32.mrb[0].mxu0
        %2921 = vmatprep.mubr.f32.mxu0 0.0
        %2922 = vmatmul.mubr.f32.gmra.mrb[0].mxu0 %v2751
        %v2923 = vpop.f32.mrb[0].mxu0
        %v2924 = vadd.f32 0.0, %v2923
        %v2925 = vpop.f32.mrb[0].mxu0
        %2926 = vmatprep.mubr.f32.mxu0 0.0
        %2927 = vmatmul.mubr.f32.gmra.mrb[0].mxu0 %v2752
        %v2928 = vpop.f32.mrb[0].mxu0
        %v2929 = vadd.f32 0.0, %v2928
        %v2930 = vpop.f32.mrb[0].mxu0
        %2931 = vmatprep.mubr.f32.mxu0 0.0
        %2932 = vmatmul.mubr.f32.gmra.mrb[0].mxu0 %v2753
        %v2933 = vpop.f32.mrb[0].mxu0
        %v2934 = vadd.f32 0.0, %v2933
        %v2935 = vpop.f32.mrb[0].mxu0
        %2936 = vmatprep.mubr.f32.mxu0 0.0
        %2937 = vmatmul.mubr.f32.gmra.mrb[0].mxu0 %v2754
        %v2938 = vpop.f32.mrb[0].mxu0
        %v2939 = vadd.f32 0.0, %v2938
        %v2940 = vpop.f32.mrb[0].mxu0
        %2941 = vmatprep.mubr.f32.mxu0 0.0
        %2942 = vmatmul.mubr.f32.gmra.mrb[0].mxu0 %v2755
        %v2943 = vpop.f32.mrb[0].mxu0
        %v2944 = vadd.f32 0.0, %v2943
        %v2945 = vpop.f32.mrb[0].mxu0
        %2946 = vmatprep.mubr.f32.mxu0 0.0
        %2947 = vmatmul.mubr.f32.gmra.mrb[0].mxu0 %v2756
        %v2948 = vpop.f32.mrb[0].mxu0
        %v2949 = vadd.f32 0.0, %v2948
        %v2950 = vpop.f32.mrb[0].mxu0
        %2951 = vmatprep.mubr.f32.mxu0 0.0
        %2952 = vmatmul.mubr.f32.gmra.mrb[0].mxu0 %v2757
        %v2953 = vpop.f32.mrb[0].mxu0
        %v2954 = vadd.f32 0.0, %v2953
        %v2955 = vpop.f32.mrb[0].mxu0
        %2956 = vmatprep.mubr.f32.mxu0 0.0
        %2957 = vmatmul.mubr.f32.gmra.mrb[0].mxu0 %v2758
        %v2958 = vpop.f32.mrb[0].mxu0
        %v2959 = vadd.f32 0.0, %v2958
        %v2960 = vpop.f32.mrb[0].mxu0
        %2961 = vmatprep.mubr.f32.mxu0 0.0
        %2962 = vmatmul.mubr.f32.gmra.mrb[0].mxu0 %v2759
        %v2963 = vpop.f32.mrb[0].mxu0
        %v2964 = vadd.f32 0.0, %v2963
        %v2965 = vpop.f32.mrb[0].mxu0
        %2966 = vdwg.mxu0
        %v2967 = vld [vmem:[#allocation4] sm:$0xff]
        %v2968 = vld [vmem:[#allocation4 + $0x8] sm:$0xff]
        %v2969 = vld [vmem:[#allocation4 + $0x10] sm:$0xff]
        %v2970 = vld [vmem:[#allocation4 + $0x18] sm:$0xff]
        %v2971 = vld [vmem:[#allocation4 + $0x20] sm:$0xff]
        %v2972 = vld [vmem:[#allocation4 + $0x28] sm:$0xff]
        %v2973 = vld [vmem:[#allocation4 + $0x30] sm:$0xff]
        %v2974 = vld [vmem:[#allocation4 + $0x38] sm:$0xff]
        %v2975 = vld [vmem:[#allocation4 + $0x40] sm:$0xff]
        %v2976 = vld [vmem:[#allocation4 + $0x48] sm:$0xff]
        %v2977 = vld [vmem:[#allocation4 + $0x50] sm:$0xff]
        %v2978 = vld [vmem:[#allocation4 + $0x58] sm:$0xff]
        %v2979 = vld [vmem:[#allocation4 + $0x60] sm:$0xff]
        %v2980 = vld [vmem:[#allocation4 + $0x68] sm:$0xff]
        %v2981 = vld [vmem:[#allocation4 + $0x70] sm:$0xff]
        %v2982 = vld [vmem:[#allocation4 + $0x78] sm:$0xff]
        %v2983 = vld [vmem:[#allocation4 + $0x80] sm:$0xff]
        %v2984 = vld [vmem:[#allocation4 + $0x88] sm:$0xff]
        %v2985 = vld [vmem:[#allocation4 + $0x90] sm:$0xff]
        %v2986 = vld [vmem:[#allocation4 + $0x98] sm:$0xff]
        %v2987 = vld [vmem:[#allocation4 + $0xa0] sm:$0xff]
        %v2988 = vld [vmem:[#allocation4 + $0xa8] sm:$0xff]
        %v2989 = vld [vmem:[#allocation4 + $0xb0] sm:$0xff]
        %v2990 = vld [vmem:[#allocation4 + $0xb8] sm:$0xff]
        %v2991 = vld [vmem:[#allocation4 + $0xc0] sm:$0xf]
        %v2992 = vadd.f32 %v2967, %v2844
        %v2993 = vadd.f32 %v2968, %v2849
        %v2994 = vadd.f32 %v2969, %v2854
        %v2995 = vadd.f32 %v2970, %v2859
        %v2996 = vadd.f32 %v2971, %v2864
        %v2997 = vadd.f32 %v2972, %v2869
        %v2998 = vadd.f32 %v2973, %v2874
        %v2999 = vadd.f32 %v2974, %v2879
        %v3000 = vadd.f32 %v2975, %v2884
        %v3001 = vadd.f32 %v2976, %v2889
        %v3002 = vadd.f32 %v2977, %v2894
        %v3003 = vadd.f32 %v2978, %v2899
        %v3004 = vadd.f32 %v2979, %v2904
        %v3005 = vadd.f32 %v2980, %v2909
        %v3006 = vadd.f32 %v2981, %v2914
        %v3007 = vadd.f32 %v2982, %v2919
        %v3008 = vadd.f32 %v2983, %v2924
        %v3009 = vadd.f32 %v2984, %v2929
        %v3010 = vadd.f32 %v2985, %v2934
        %v3011 = vadd.f32 %v2986, %v2939
        %v3012 = vadd.f32 %v2987, %v2944
        %v3013 = vadd.f32 %v2988, %v2949
        %v3014 = vadd.f32 %v2989, %v2954
        %v3015 = vadd.f32 %v2990, %v2959
        %v3016 = vadd.f32 %v2991, %v2964
        %3017 = vst [vmem:[#allocation4] sm:$0xff] %v2992
        %3018 = vst [vmem:[#allocation4 + $0x8] sm:$0xff] %v2993
        %3019 = vst [vmem:[#allocation4 + $0x10] sm:$0xff] %v2994
        %3020 = vst [vmem:[#allocation4 + $0x18] sm:$0xff] %v2995
        %3021 = vst [vmem:[#allocation4 + $0x20] sm:$0xff] %v2996
        %3022 = vst [vmem:[#allocation4 + $0x28] sm:$0xff] %v2997
        %3023 = vst [vmem:[#allocation4 + $0x30] sm:$0xff] %v2998
        %3024 = vst [vmem:[#allocation4 + $0x38] sm:$0xff] %v2999
        %3025 = vst [vmem:[#allocation4 + $0x40] sm:$0xff] %v3000
        %3026 = vst [vmem:[#allocation4 + $0x48] sm:$0xff] %v3001
        %3027 = vst [vmem:[#allocation4 + $0x50] sm:$0xff] %v3002
        %3028 = vst [vmem:[#allocation4 + $0x58] sm:$0xff] %v3003
        %3029 = vst [vmem:[#allocation4 + $0x60] sm:$0xff] %v3004
        %3030 = vst [vmem:[#allocation4 + $0x68] sm:$0xff] %v3005
        %3031 = vst [vmem:[#allocation4 + $0x70] sm:$0xff] %v3006
        %3032 = vst [vmem:[#allocation4 + $0x78] sm:$0xff] %v3007
        %3033 = vst [vmem:[#allocation4 + $0x80] sm:$0xff] %v3008
        %3034 = vst [vmem:[#allocation4 + $0x88] sm:$0xff] %v3009
        %3035 = vst [vmem:[#allocation4 + $0x90] sm:$0xff] %v3010
        %3036 = vst [vmem:[#allocation4 + $0x98] sm:$0xff] %v3011
        %3037 = vst [vmem:[#allocation4 + $0xa0] sm:$0xff] %v3012
        %3038 = vst [vmem:[#allocation4 + $0xa8] sm:$0xff] %v3013
        %3039 = vst [vmem:[#allocation4 + $0xb0] sm:$0xff] %v3014
        %3040 = vst [vmem:[#allocation4 + $0xb8] sm:$0xff] %v3015
        %3041 = vst [vmem:[#allocation4 + $0xc0] sm:$0xf] %v3016
        %v3042 = vld [vmem:[#allocation3 + $0xf] sm:$0xff]
        %v3043 = vld [vmem:[#allocation3 + $0x17] sm:$0xff]
        %v3044 = vld [vmem:[#allocation3 + $0x1f] sm:$0xff]
        %v3045 = vld [vmem:[#allocation3 + $0x27] sm:$0xff]
        %v3046 = vld [vmem:[#allocation3 + $0x2f] sm:$0xff]
        %v3047 = vld [vmem:[#allocation3 + $0x37] sm:$0xff]
        %v3048 = vld [vmem:[#allocation3 + $0x3f] sm:$0xff]
        %v3049 = vld [vmem:[#allocation3 + $0x47] sm:$0xff]
        %v3050 = vld [vmem:[#allocation3 + $0x4f] sm:$0xff]
        %v3051 = vld [vmem:[#allocation3 + $0x57] sm:$0xff]
        %v3052 = vld [vmem:[#allocation3 + $0x5f] sm:$0xff]
        %v3053 = vld [vmem:[#allocation3 + $0x67] sm:$0xff]
        %v3054 = vld [vmem:[#allocation3 + $0x6f] sm:$0xff]
        %v3055 = vld [vmem:[#allocation3 + $0x77] sm:$0xff]
        %v3056 = vld [vmem:[#allocation3 + $0x7f] sm:$0xff]
        %v3057 = vld [vmem:[#allocation3 + $0x87] sm:$0xff]
        %v3058 = vld [vmem:[#allocation3 + $0x8f] sm:$0xff]
        %v3059 = vld [vmem:[#allocation3 + $0x97] sm:$0xff]
        %v3060 = vld [vmem:[#allocation3 + $0x9f] sm:$0xff]
        %v3061 = vld [vmem:[#allocation3 + $0xa7] sm:$0xff]
        %v3062 = vld [vmem:[#allocation3 + $0xaf] sm:$0xff]
        %v3063 = vld [vmem:[#allocation3 + $0xb7] sm:$0xff]
        %v3064 = vld [vmem:[#allocation3 + $0xbf] sm:$0xff]
        %v3065 = vld [vmem:[#allocation3 + $0xc7] sm:$0xff]
        %v3066 = vld [vmem:[#allocation3 + $0xcf] sm:$0xf]
        %s3067 = scalar_lea.vmem %s3, 512
        %v3068 = vld [vmem:[%s3067] sm:$0xff]
        %v3069 = vld [vmem:[%s3067 + $0x8] sm:$0xff]
        %v3070 = vld [vmem:[%s3067 + $0x10] sm:$0xff]
        %v3071 = vld [vmem:[%s3067 + $0x18] sm:$0xff]
        %v3072 = vld [vmem:[%s3067 + $0x20] sm:$0xff]
        %v3073 = vld [vmem:[%s3067 + $0x28] sm:$0xff]
        %v3074 = vld [vmem:[%s3067 + $0x30] sm:$0xff]
        %v3075 = vld [vmem:[%s3067 + $0x38] sm:$0xff]
        %v3076 = vld [vmem:[%s3067 + $0x40] sm:$0xff]
        %v3077 = vld [vmem:[%s3067 + $0x48] sm:$0xff]
        %v3078 = vld [vmem:[%s3067 + $0x50] sm:$0xff]
        %v3079 = vld [vmem:[%s3067 + $0x58] sm:$0xff]
        %v3080 = vld [vmem:[%s3067 + $0x60] sm:$0xff]
        %v3081 = vld [vmem:[%s3067 + $0x68] sm:$0xff]
        %v3082 = vld [vmem:[%s3067 + $0x70] sm:$0xff]
        %v3083 = vld [vmem:[%s3067 + $0x78] sm:$0xff]
        %3084 = vmatprep.subr.mxu0 0.0
        %3085 = vmatpush1.msra.mxu0 %v3068
        %3086 = vmatprep.subr.mxu0 0.0
        %3087 = vmatpush1.msra.mxu0 %v3069
        %3088 = vmatprep.subr.mxu0 0.0
        %3089 = vmatpush1.msra.mxu0 %v3070
        %3090 = vmatprep.subr.mxu0 0.0
        %3091 = vmatpush1.msra.mxu0 %v3071
        %3092 = vmatprep.subr.mxu0 0.0
        %3093 = vmatpush1.msra.mxu0 %v3072
        %3094 = vmatprep.subr.mxu0 0.0
        %3095 = vmatpush1.msra.mxu0 %v3073
        %3096 = vmatprep.subr.mxu0 0.0
        %3097 = vmatpush1.msra.mxu0 %v3074
        %3098 = vmatprep.subr.mxu0 0.0
        %3099 = vmatpush1.msra.mxu0 %v3075
        %3100 = vmatprep.subr.mxu0 0.0
        %3101 = vmatpush1.msra.mxu0 %v3076
        %3102 = vmatprep.subr.mxu0 0.0
        %3103 = vmatpush1.msra.mxu0 %v3077
        %3104 = vmatprep.subr.mxu0 0.0
        %3105 = vmatpush1.msra.mxu0 %v3078
        %3106 = vmatprep.subr.mxu0 0.0
        %3107 = vmatpush1.msra.mxu0 %v3079
        %3108 = vmatprep.subr.mxu0 0.0
        %3109 = vmatpush1.msra.mxu0 %v3080
        %3110 = vmatprep.subr.mxu0 0.0
        %3111 = vmatpush1.msra.mxu0 %v3081
        %3112 = vmatprep.subr.mxu0 0.0
        %3113 = vmatpush1.msra.mxu0 %v3082
        %3114 = vmatprep.subr.mxu0 0.0
        %3115 = vmatpush1.msra.mxu0 %v3083
        %3116 = vmatprep.subr.mxu0 0.0
        %3117 = vmatpush1.msra.mxu0 0.0
        %3118 = vmatprep.subr.mxu0 0.0
        %3119 = vmatpush1.msra.mxu0 0.0
        %3120 = vmatprep.subr.mxu0 0.0
        %3121 = vmatpush1.msra.mxu0 0.0
        %3122 = vmatprep.subr.mxu0 0.0
        %3123 = vmatpush1.msra.mxu0 0.0
        %3124 = vmatprep.subr.mxu0 0.0
        %3125 = vmatpush1.msra.mxu0 0.0
        %3126 = vmatprep.subr.mxu0 0.0
        %3127 = vmatpush1.msra.mxu0 0.0
        %3128 = vmatprep.subr.mxu0 0.0
        %3129 = vmatpush1.msra.mxu0 0.0
        %3130 = vmatprep.subr.mxu0 0.0
        %3131 = vmatpush1.msra.mxu0 0.0
        %3132 = vmatprep.subr.mxu0 0.0
        %3133 = vmatpush1.msra.mxu0 0.0
        %3134 = vmatprep.subr.mxu0 0.0
        %3135 = vmatpush1.msra.mxu0 0.0
        %3136 = vmatprep.subr.mxu0 0.0
        %3137 = vmatpush1.msra.mxu0 0.0
        %3138 = vmatprep.subr.mxu0 0.0
        %3139 = vmatpush1.msra.mxu0 0.0
        %3140 = vmatprep.subr.mxu0 0.0
        %3141 = vmatpush1.msra.mxu0 0.0
        %3142 = vmatprep.subr.mxu0 0.0
        %3143 = vmatpush1.msra.mxu0 0.0
        %3144 = vmatprep.subr.mxu0 0.0
        %3145 = vmatpush1.msra.mxu0 0.0
        %3146 = vmatprep.subr.mxu0 0.0
        %3147 = vmatpush1.msra.mxu0 0.0
        %3148 = vmatprep.mubr.f32.mxu0 0.0
        %3149 = vmatmul.mubr.f32.gmra.mrb[0].mxu0 %v3042
        %v3150 = vpop.f32.mrb[0].mxu0
        %v3151 = vadd.f32 0.0, %v3150
        %v3152 = vpop.f32.mrb[0].mxu0
        %3153 = vmatprep.mubr.f32.mxu0 0.0
        %3154 = vmatmul.mubr.f32.gmra.mrb[0].mxu0 %v3043
        %v3155 = vpop.f32.mrb[0].mxu0
        %v3156 = vadd.f32 0.0, %v3155
        %v3157 = vpop.f32.mrb[0].mxu0
        %3158 = vmatprep.mubr.f32.mxu0 0.0
        %3159 = vmatmul.mubr.f32.gmra.mrb[0].mxu0 %v3044
        %v3160 = vpop.f32.mrb[0].mxu0
        %v3161 = vadd.f32 0.0, %v3160
        %v3162 = vpop.f32.mrb[0].mxu0
        %3163 = vmatprep.mubr.f32.mxu0 0.0
        %3164 = vmatmul.mubr.f32.gmra.mrb[0].mxu0 %v3045
        %v3165 = vpop.f32.mrb[0].mxu0
        %v3166 = vadd.f32 0.0, %v3165
        %v3167 = vpop.f32.mrb[0].mxu0
        %3168 = vmatprep.mubr.f32.mxu0 0.0
        %3169 = vmatmul.mubr.f32.gmra.mrb[0].mxu0 %v3046
        %v3170 = vpop.f32.mrb[0].mxu0
        %v3171 = vadd.f32 0.0, %v3170
        %v3172 = vpop.f32.mrb[0].mxu0
        %3173 = vmatprep.mubr.f32.mxu0 0.0
        %3174 = vmatmul.mubr.f32.gmra.mrb[0].mxu0 %v3047
        %v3175 = vpop.f32.mrb[0].mxu0
        %v3176 = vadd.f32 0.0, %v3175
        %v3177 = vpop.f32.mrb[0].mxu0
        %3178 = vmatprep.mubr.f32.mxu0 0.0
        %3179 = vmatmul.mubr.f32.gmra.mrb[0].mxu0 %v3048
        %v3180 = vpop.f32.mrb[0].mxu0
        %v3181 = vadd.f32 0.0, %v3180
        %v3182 = vpop.f32.mrb[0].mxu0
        %3183 = vmatprep.mubr.f32.mxu0 0.0
        %3184 = vmatmul.mubr.f32.gmra.mrb[0].mxu0 %v3049
        %v3185 = vpop.f32.mrb[0].mxu0
        %v3186 = vadd.f32 0.0, %v3185
        %v3187 = vpop.f32.mrb[0].mxu0
        %3188 = vmatprep.mubr.f32.mxu0 0.0
        %3189 = vmatmul.mubr.f32.gmra.mrb[0].mxu0 %v3050
        %v3190 = vpop.f32.mrb[0].mxu0
        %v3191 = vadd.f32 0.0, %v3190
        %v3192 = vpop.f32.mrb[0].mxu0
        %3193 = vmatprep.mubr.f32.mxu0 0.0
        %3194 = vmatmul.mubr.f32.gmra.mrb[0].mxu0 %v3051
        %v3195 = vpop.f32.mrb[0].mxu0
        %v3196 = vadd.f32 0.0, %v3195
        %v3197 = vpop.f32.mrb[0].mxu0
        %3198 = vmatprep.mubr.f32.mxu0 0.0
        %3199 = vmatmul.mubr.f32.gmra.mrb[0].mxu0 %v3052
        %v3200 = vpop.f32.mrb[0].mxu0
        %v3201 = vadd.f32 0.0, %v3200
        %v3202 = vpop.f32.mrb[0].mxu0
        %3203 = vmatprep.mubr.f32.mxu0 0.0
        %3204 = vmatmul.mubr.f32.gmra.mrb[0].mxu0 %v3053
        %v3205 = vpop.f32.mrb[0].mxu0
        %v3206 = vadd.f32 0.0, %v3205
        %v3207 = vpop.f32.mrb[0].mxu0
        %3208 = vmatprep.mubr.f32.mxu0 0.0
        %3209 = vmatmul.mubr.f32.gmra.mrb[0].mxu0 %v3054
        %v3210 = vpop.f32.mrb[0].mxu0
        %v3211 = vadd.f32 0.0, %v3210
        %v3212 = vpop.f32.mrb[0].mxu0
        %3213 = vmatprep.mubr.f32.mxu0 0.0
        %3214 = vmatmul.mubr.f32.gmra.mrb[0].mxu0 %v3055
        %v3215 = vpop.f32.mrb[0].mxu0
        %v3216 = vadd.f32 0.0, %v3215
        %v3217 = vpop.f32.mrb[0].mxu0
        %3218 = vmatprep.mubr.f32.mxu0 0.0
        %3219 = vmatmul.mubr.f32.gmra.mrb[0].mxu0 %v3056
        %v3220 = vpop.f32.mrb[0].mxu0
        %v3221 = vadd.f32 0.0, %v3220
        %v3222 = vpop.f32.mrb[0].mxu0
        %3223 = vmatprep.mubr.f32.mxu0 0.0
        %3224 = vmatmul.mubr.f32.gmra.mrb[0].mxu0 %v3057
        %v3225 = vpop.f32.mrb[0].mxu0
        %v3226 = vadd.f32 0.0, %v3225
        %v3227 = vpop.f32.mrb[0].mxu0
        %3228 = vmatprep.mubr.f32.mxu0 0.0
        %3229 = vmatmul.mubr.f32.gmra.mrb[0].mxu0 %v3058
        %v3230 = vpop.f32.mrb[0].mxu0
        %v3231 = vadd.f32 0.0, %v3230
        %v3232 = vpop.f32.mrb[0].mxu0
        %3233 = vmatprep.mubr.f32.mxu0 0.0
        %3234 = vmatmul.mubr.f32.gmra.mrb[0].mxu0 %v3059
        %v3235 = vpop.f32.mrb[0].mxu0
        %v3236 = vadd.f32 0.0, %v3235
        %v3237 = vpop.f32.mrb[0].mxu0
        %3238 = vmatprep.mubr.f32.mxu0 0.0
        %3239 = vmatmul.mubr.f32.gmra.mrb[0].mxu0 %v3060
        %v3240 = vpop.f32.mrb[0].mxu0
        %v3241 = vadd.f32 0.0, %v3240
        %v3242 = vpop.f32.mrb[0].mxu0
        %3243 = vmatprep.mubr.f32.mxu0 0.0
        %3244 = vmatmul.mubr.f32.gmra.mrb[0].mxu0 %v3061
        %v3245 = vpop.f32.mrb[0].mxu0
        %v3246 = vadd.f32 0.0, %v3245
        %v3247 = vpop.f32.mrb[0].mxu0
        %3248 = vmatprep.mubr.f32.mxu0 0.0
        %3249 = vmatmul.mubr.f32.gmra.mrb[0].mxu0 %v3062
        %v3250 = vpop.f32.mrb[0].mxu0
        %v3251 = vadd.f32 0.0, %v3250
        %v3252 = vpop.f32.mrb[0].mxu0
        %3253 = vmatprep.mubr.f32.mxu0 0.0
        %3254 = vmatmul.mubr.f32.gmra.mrb[0].mxu0 %v3063
        %v3255 = vpop.f32.mrb[0].mxu0
        %v3256 = vadd.f32 0.0, %v3255
        %v3257 = vpop.f32.mrb[0].mxu0
        %3258 = vmatprep.mubr.f32.mxu0 0.0
        %3259 = vmatmul.mubr.f32.gmra.mrb[0].mxu0 %v3064
        %v3260 = vpop.f32.mrb[0].mxu0
        %v3261 = vadd.f32 0.0, %v3260
        %v3262 = vpop.f32.mrb[0].mxu0
        %3263 = vmatprep.mubr.f32.mxu0 0.0
        %3264 = vmatmul.mubr.f32.gmra.mrb[0].mxu0 %v3065
        %v3265 = vpop.f32.mrb[0].mxu0
        %v3266 = vadd.f32 0.0, %v3265
        %v3267 = vpop.f32.mrb[0].mxu0
        %3268 = vmatprep.mubr.f32.mxu0 0.0
        %3269 = vmatmul.mubr.f32.gmra.mrb[0].mxu0 %v3066
        %v3270 = vpop.f32.mrb[0].mxu0
        %v3271 = vadd.f32 0.0, %v3270
        %v3272 = vpop.f32.mrb[0].mxu0
        %3273 = vdwg.mxu0
        %v3274 = vld [vmem:[#allocation4] sm:$0xff]
        %v3275 = vld [vmem:[#allocation4 + $0x8] sm:$0xff]
        %v3276 = vld [vmem:[#allocation4 + $0x10] sm:$0xff]
        %v3277 = vld [vmem:[#allocation4 + $0x18] sm:$0xff]
        %v3278 = vld [vmem:[#allocation4 + $0x20] sm:$0xff]
        %v3279 = vld [vmem:[#allocation4 + $0x28] sm:$0xff]
        %v3280 = vld [vmem:[#allocation4 + $0x30] sm:$0xff]
        %v3281 = vld [vmem:[#allocation4 + $0x38] sm:$0xff]
        %v3282 = vld [vmem:[#allocation4 + $0x40] sm:$0xff]
        %v3283 = vld [vmem:[#allocation4 + $0x48] sm:$0xff]
        %v3284 = vld [vmem:[#allocation4 + $0x50] sm:$0xff]
        %v3285 = vld [vmem:[#allocation4 + $0x58] sm:$0xff]
        %v3286 = vld [vmem:[#allocation4 + $0x60] sm:$0xff]
        %v3287 = vld [vmem:[#allocation4 + $0x68] sm:$0xff]
        %v3288 = vld [vmem:[#allocation4 + $0x70] sm:$0xff]
        %v3289 = vld [vmem:[#allocation4 + $0x78] sm:$0xff]
        %v3290 = vld [vmem:[#allocation4 + $0x80] sm:$0xff]
        %v3291 = vld [vmem:[#allocation4 + $0x88] sm:$0xff]
        %v3292 = vld [vmem:[#allocation4 + $0x90] sm:$0xff]
        %v3293 = vld [vmem:[#allocation4 + $0x98] sm:$0xff]
        %v3294 = vld [vmem:[#allocation4 + $0xa0] sm:$0xff]
        %v3295 = vld [vmem:[#allocation4 + $0xa8] sm:$0xff]
        %v3296 = vld [vmem:[#allocation4 + $0xb0] sm:$0xff]
        %v3297 = vld [vmem:[#allocation4 + $0xb8] sm:$0xff]
        %v3298 = vld [vmem:[#allocation4 + $0xc0] sm:$0xf]
        %v3299 = vadd.f32 %v3274, %v3151
        %v3300 = vadd.f32 %v3275, %v3156
        %v3301 = vadd.f32 %v3276, %v3161
        %v3302 = vadd.f32 %v3277, %v3166
        %v3303 = vadd.f32 %v3278, %v3171
        %v3304 = vadd.f32 %v3279, %v3176
        %v3305 = vadd.f32 %v3280, %v3181
        %v3306 = vadd.f32 %v3281, %v3186
        %v3307 = vadd.f32 %v3282, %v3191
        %v3308 = vadd.f32 %v3283, %v3196
        %v3309 = vadd.f32 %v3284, %v3201
        %v3310 = vadd.f32 %v3285, %v3206
        %v3311 = vadd.f32 %v3286, %v3211
        %v3312 = vadd.f32 %v3287, %v3216
        %v3313 = vadd.f32 %v3288, %v3221
        %v3314 = vadd.f32 %v3289, %v3226
        %v3315 = vadd.f32 %v3290, %v3231
        %v3316 = vadd.f32 %v3291, %v3236
        %v3317 = vadd.f32 %v3292, %v3241
        %v3318 = vadd.f32 %v3293, %v3246
        %v3319 = vadd.f32 %v3294, %v3251
        %v3320 = vadd.f32 %v3295, %v3256
        %v3321 = vadd.f32 %v3296, %v3261
        %v3322 = vadd.f32 %v3297, %v3266
        %v3323 = vadd.f32 %v3298, %v3271
        %3324 = vst [vmem:[#allocation4] sm:$0xff] %v3299
        %3325 = vst [vmem:[#allocation4 + $0x8] sm:$0xff] %v3300
        %3326 = vst [vmem:[#allocation4 + $0x10] sm:$0xff] %v3301
        %3327 = vst [vmem:[#allocation4 + $0x18] sm:$0xff] %v3302
        %3328 = vst [vmem:[#allocation4 + $0x20] sm:$0xff] %v3303
        %3329 = vst [vmem:[#allocation4 + $0x28] sm:$0xff] %v3304
        %3330 = vst [vmem:[#allocation4 + $0x30] sm:$0xff] %v3305
        %3331 = vst [vmem:[#allocation4 + $0x38] sm:$0xff] %v3306
        %3332 = vst [vmem:[#allocation4 + $0x40] sm:$0xff] %v3307
        %3333 = vst [vmem:[#allocation4 + $0x48] sm:$0xff] %v3308
        %3334 = vst [vmem:[#allocation4 + $0x50] sm:$0xff] %v3309
        %3335 = vst [vmem:[#allocation4 + $0x58] sm:$0xff] %v3310
        %3336 = vst [vmem:[#allocation4 + $0x60] sm:$0xff] %v3311
        %3337 = vst [vmem:[#allocation4 + $0x68] sm:$0xff] %v3312
        %3338 = vst [vmem:[#allocation4 + $0x70] sm:$0xff] %v3313
        %3339 = vst [vmem:[#allocation4 + $0x78] sm:$0xff] %v3314
        %3340 = vst [vmem:[#allocation4 + $0x80] sm:$0xff] %v3315
        %3341 = vst [vmem:[#allocation4 + $0x88] sm:$0xff] %v3316
        %3342 = vst [vmem:[#allocation4 + $0x90] sm:$0xff] %v3317
        %3343 = vst [vmem:[#allocation4 + $0x98] sm:$0xff] %v3318
        %3344 = vst [vmem:[#allocation4 + $0xa0] sm:$0xff] %v3319
        %3345 = vst [vmem:[#allocation4 + $0xa8] sm:$0xff] %v3320
        %3346 = vst [vmem:[#allocation4 + $0xb0] sm:$0xff] %v3321
        %3347 = vst [vmem:[#allocation4 + $0xb8] sm:$0xff] %v3322
        %3348 = vst [vmem:[#allocation4 + $0xc0] sm:$0xf] %v3323
        %v3349 = vld [vmem:[#allocation3 + $0x10] sm:$0xff]
        %v3350 = vld [vmem:[#allocation3 + $0x18] sm:$0xff]
        %v3351 = vld [vmem:[#allocation3 + $0x20] sm:$0xff]
        %v3352 = vld [vmem:[#allocation3 + $0x28] sm:$0xff]
        %v3353 = vld [vmem:[#allocation3 + $0x30] sm:$0xff]
        %v3354 = vld [vmem:[#allocation3 + $0x38] sm:$0xff]
        %v3355 = vld [vmem:[#allocation3 + $0x40] sm:$0xff]
        %v3356 = vld [vmem:[#allocation3 + $0x48] sm:$0xff]
        %v3357 = vld [vmem:[#allocation3 + $0x50] sm:$0xff]
        %v3358 = vld [vmem:[#allocation3 + $0x58] sm:$0xff]
        %v3359 = vld [vmem:[#allocation3 + $0x60] sm:$0xff]
        %v3360 = vld [vmem:[#allocation3 + $0x68] sm:$0xff]
        %v3361 = vld [vmem:[#allocation3 + $0x70] sm:$0xff]
        %v3362 = vld [vmem:[#allocation3 + $0x78] sm:$0xff]
        %v3363 = vld [vmem:[#allocation3 + $0x80] sm:$0xff]
        %v3364 = vld [vmem:[#allocation3 + $0x88] sm:$0xff]
        %v3365 = vld [vmem:[#allocation3 + $0x90] sm:$0xff]
        %v3366 = vld [vmem:[#allocation3 + $0x98] sm:$0xff]
        %v3367 = vld [vmem:[#allocation3 + $0xa0] sm:$0xff]
        %v3368 = vld [vmem:[#allocation3 + $0xa8] sm:$0xff]
        %v3369 = vld [vmem:[#allocation3 + $0xb0] sm:$0xff]
        %v3370 = vld [vmem:[#allocation3 + $0xb8] sm:$0xff]
        %v3371 = vld [vmem:[#allocation3 + $0xc0] sm:$0xff]
        %v3372 = vld [vmem:[#allocation3 + $0xc8] sm:$0xff]
        %v3373 = vld [vmem:[#allocation3 + $0xd0] sm:$0xf]
        %s3374 = scalar_lea.vmem %s3, 640
        %v3375 = vld [vmem:[%s3374] sm:$0xff]
        %v3376 = vld [vmem:[%s3374 + $0x8] sm:$0xff]
        %v3377 = vld [vmem:[%s3374 + $0x10] sm:$0xff]
        %v3378 = vld [vmem:[%s3374 + $0x18] sm:$0xff]
        %v3379 = vld [vmem:[%s3374 + $0x20] sm:$0xff]
        %v3380 = vld [vmem:[%s3374 + $0x28] sm:$0xff]
        %v3381 = vld [vmem:[%s3374 + $0x30] sm:$0xff]
        %v3382 = vld [vmem:[%s3374 + $0x38] sm:$0xff]
        %v3383 = vld [vmem:[%s3374 + $0x40] sm:$0xff]
        %v3384 = vld [vmem:[%s3374 + $0x48] sm:$0xff]
        %v3385 = vld [vmem:[%s3374 + $0x50] sm:$0xff]
        %v3386 = vld [vmem:[%s3374 + $0x58] sm:$0xff]
        %v3387 = vld [vmem:[%s3374 + $0x60] sm:$0xff]
        %v3388 = vld [vmem:[%s3374 + $0x68] sm:$0xff]
        %v3389 = vld [vmem:[%s3374 + $0x70] sm:$0xff]
        %v3390 = vld [vmem:[%s3374 + $0x78] sm:$0xff]
        %3391 = vmatprep.subr.mxu0 0.0
        %3392 = vmatpush1.msra.mxu0 %v3375
        %3393 = vmatprep.subr.mxu0 0.0
        %3394 = vmatpush1.msra.mxu0 %v3376
        %3395 = vmatprep.subr.mxu0 0.0
        %3396 = vmatpush1.msra.mxu0 %v3377
        %3397 = vmatprep.subr.mxu0 0.0
        %3398 = vmatpush1.msra.mxu0 %v3378
        %3399 = vmatprep.subr.mxu0 0.0
        %3400 = vmatpush1.msra.mxu0 %v3379
        %3401 = vmatprep.subr.mxu0 0.0
        %3402 = vmatpush1.msra.mxu0 %v3380
        %3403 = vmatprep.subr.mxu0 0.0
        %3404 = vmatpush1.msra.mxu0 %v3381
        %3405 = vmatprep.subr.mxu0 0.0
        %3406 = vmatpush1.msra.mxu0 %v3382
        %3407 = vmatprep.subr.mxu0 0.0
        %3408 = vmatpush1.msra.mxu0 %v3383
        %3409 = vmatprep.subr.mxu0 0.0
        %3410 = vmatpush1.msra.mxu0 %v3384
        %3411 = vmatprep.subr.mxu0 0.0
        %3412 = vmatpush1.msra.mxu0 %v3385
        %3413 = vmatprep.subr.mxu0 0.0
        %3414 = vmatpush1.msra.mxu0 %v3386
        %3415 = vmatprep.subr.mxu0 0.0
        %3416 = vmatpush1.msra.mxu0 %v3387
        %3417 = vmatprep.subr.mxu0 0.0
        %3418 = vmatpush1.msra.mxu0 %v3388
        %3419 = vmatprep.subr.mxu0 0.0
        %3420 = vmatpush1.msra.mxu0 %v3389
        %3421 = vmatprep.subr.mxu0 0.0
        %3422 = vmatpush1.msra.mxu0 %v3390
        %3423 = vmatprep.subr.mxu0 0.0
        %3424 = vmatpush1.msra.mxu0 0.0
        %3425 = vmatprep.subr.mxu0 0.0
        %3426 = vmatpush1.msra.mxu0 0.0
        %3427 = vmatprep.subr.mxu0 0.0
        %3428 = vmatpush1.msra.mxu0 0.0
        %3429 = vmatprep.subr.mxu0 0.0
        %3430 = vmatpush1.msra.mxu0 0.0
        %3431 = vmatprep.subr.mxu0 0.0
        %3432 = vmatpush1.msra.mxu0 0.0
        %3433 = vmatprep.subr.mxu0 0.0
        %3434 = vmatpush1.msra.mxu0 0.0
        %3435 = vmatprep.subr.mxu0 0.0
        %3436 = vmatpush1.msra.mxu0 0.0
        %3437 = vmatprep.subr.mxu0 0.0
        %3438 = vmatpush1.msra.mxu0 0.0
        %3439 = vmatprep.subr.mxu0 0.0
        %3440 = vmatpush1.msra.mxu0 0.0
        %3441 = vmatprep.subr.mxu0 0.0
        %3442 = vmatpush1.msra.mxu0 0.0
        %3443 = vmatprep.subr.mxu0 0.0
        %3444 = vmatpush1.msra.mxu0 0.0
        %3445 = vmatprep.subr.mxu0 0.0
        %3446 = vmatpush1.msra.mxu0 0.0
        %3447 = vmatprep.subr.mxu0 0.0
        %3448 = vmatpush1.msra.mxu0 0.0
        %3449 = vmatprep.subr.mxu0 0.0
        %3450 = vmatpush1.msra.mxu0 0.0
        %3451 = vmatprep.subr.mxu0 0.0
        %3452 = vmatpush1.msra.mxu0 0.0
        %3453 = vmatprep.subr.mxu0 0.0
        %3454 = vmatpush1.msra.mxu0 0.0
        %3455 = vmatprep.mubr.f32.mxu0 0.0
        %3456 = vmatmul.mubr.f32.gmra.mrb[0].mxu0 %v3349
        %v3457 = vpop.f32.mrb[0].mxu0
        %v3458 = vadd.f32 0.0, %v3457
        %v3459 = vpop.f32.mrb[0].mxu0
        %3460 = vmatprep.mubr.f32.mxu0 0.0
        %3461 = vmatmul.mubr.f32.gmra.mrb[0].mxu0 %v3350
        %v3462 = vpop.f32.mrb[0].mxu0
        %v3463 = vadd.f32 0.0, %v3462
        %v3464 = vpop.f32.mrb[0].mxu0
        %3465 = vmatprep.mubr.f32.mxu0 0.0
        %3466 = vmatmul.mubr.f32.gmra.mrb[0].mxu0 %v3351
        %v3467 = vpop.f32.mrb[0].mxu0
        %v3468 = vadd.f32 0.0, %v3467
        %v3469 = vpop.f32.mrb[0].mxu0
        %3470 = vmatprep.mubr.f32.mxu0 0.0
        %3471 = vmatmul.mubr.f32.gmra.mrb[0].mxu0 %v3352
        %v3472 = vpop.f32.mrb[0].mxu0
        %v3473 = vadd.f32 0.0, %v3472
        %v3474 = vpop.f32.mrb[0].mxu0
        %3475 = vmatprep.mubr.f32.mxu0 0.0
        %3476 = vmatmul.mubr.f32.gmra.mrb[0].mxu0 %v3353
        %v3477 = vpop.f32.mrb[0].mxu0
        %v3478 = vadd.f32 0.0, %v3477
        %v3479 = vpop.f32.mrb[0].mxu0
        %3480 = vmatprep.mubr.f32.mxu0 0.0
        %3481 = vmatmul.mubr.f32.gmra.mrb[0].mxu0 %v3354
        %v3482 = vpop.f32.mrb[0].mxu0
        %v3483 = vadd.f32 0.0, %v3482
        %v3484 = vpop.f32.mrb[0].mxu0
        %3485 = vmatprep.mubr.f32.mxu0 0.0
        %3486 = vmatmul.mubr.f32.gmra.mrb[0].mxu0 %v3355
        %v3487 = vpop.f32.mrb[0].mxu0
        %v3488 = vadd.f32 0.0, %v3487
        %v3489 = vpop.f32.mrb[0].mxu0
        %3490 = vmatprep.mubr.f32.mxu0 0.0
        %3491 = vmatmul.mubr.f32.gmra.mrb[0].mxu0 %v3356
        %v3492 = vpop.f32.mrb[0].mxu0
        %v3493 = vadd.f32 0.0, %v3492
        %v3494 = vpop.f32.mrb[0].mxu0
        %3495 = vmatprep.mubr.f32.mxu0 0.0
        %3496 = vmatmul.mubr.f32.gmra.mrb[0].mxu0 %v3357
        %v3497 = vpop.f32.mrb[0].mxu0
        %v3498 = vadd.f32 0.0, %v3497
        %v3499 = vpop.f32.mrb[0].mxu0
        %3500 = vmatprep.mubr.f32.mxu0 0.0
        %3501 = vmatmul.mubr.f32.gmra.mrb[0].mxu0 %v3358
        %v3502 = vpop.f32.mrb[0].mxu0
        %v3503 = vadd.f32 0.0, %v3502
        %v3504 = vpop.f32.mrb[0].mxu0
        %3505 = vmatprep.mubr.f32.mxu0 0.0
        %3506 = vmatmul.mubr.f32.gmra.mrb[0].mxu0 %v3359
        %v3507 = vpop.f32.mrb[0].mxu0
        %v3508 = vadd.f32 0.0, %v3507
        %v3509 = vpop.f32.mrb[0].mxu0
        %3510 = vmatprep.mubr.f32.mxu0 0.0
        %3511 = vmatmul.mubr.f32.gmra.mrb[0].mxu0 %v3360
        %v3512 = vpop.f32.mrb[0].mxu0
        %v3513 = vadd.f32 0.0, %v3512
        %v3514 = vpop.f32.mrb[0].mxu0
        %3515 = vmatprep.mubr.f32.mxu0 0.0
        %3516 = vmatmul.mubr.f32.gmra.mrb[0].mxu0 %v3361
        %v3517 = vpop.f32.mrb[0].mxu0
        %v3518 = vadd.f32 0.0, %v3517
        %v3519 = vpop.f32.mrb[0].mxu0
        %3520 = vmatprep.mubr.f32.mxu0 0.0
        %3521 = vmatmul.mubr.f32.gmra.mrb[0].mxu0 %v3362
        %v3522 = vpop.f32.mrb[0].mxu0
        %v3523 = vadd.f32 0.0, %v3522
        %v3524 = vpop.f32.mrb[0].mxu0
        %3525 = vmatprep.mubr.f32.mxu0 0.0
        %3526 = vmatmul.mubr.f32.gmra.mrb[0].mxu0 %v3363
        %v3527 = vpop.f32.mrb[0].mxu0
        %v3528 = vadd.f32 0.0, %v3527
        %v3529 = vpop.f32.mrb[0].mxu0
        %3530 = vmatprep.mubr.f32.mxu0 0.0
        %3531 = vmatmul.mubr.f32.gmra.mrb[0].mxu0 %v3364
        %v3532 = vpop.f32.mrb[0].mxu0
        %v3533 = vadd.f32 0.0, %v3532
        %v3534 = vpop.f32.mrb[0].mxu0
        %3535 = vmatprep.mubr.f32.mxu0 0.0
        %3536 = vmatmul.mubr.f32.gmra.mrb[0].mxu0 %v3365
        %v3537 = vpop.f32.mrb[0].mxu0
        %v3538 = vadd.f32 0.0, %v3537
        %v3539 = vpop.f32.mrb[0].mxu0
        %3540 = vmatprep.mubr.f32.mxu0 0.0
        %3541 = vmatmul.mubr.f32.gmra.mrb[0].mxu0 %v3366
        %v3542 = vpop.f32.mrb[0].mxu0
        %v3543 = vadd.f32 0.0, %v3542
        %v3544 = vpop.f32.mrb[0].mxu0
        %3545 = vmatprep.mubr.f32.mxu0 0.0
        %3546 = vmatmul.mubr.f32.gmra.mrb[0].mxu0 %v3367
        %v3547 = vpop.f32.mrb[0].mxu0
        %v3548 = vadd.f32 0.0, %v3547
        %v3549 = vpop.f32.mrb[0].mxu0
        %3550 = vmatprep.mubr.f32.mxu0 0.0
        %3551 = vmatmul.mubr.f32.gmra.mrb[0].mxu0 %v3368
        %v3552 = vpop.f32.mrb[0].mxu0
        %v3553 = vadd.f32 0.0, %v3552
        %v3554 = vpop.f32.mrb[0].mxu0
        %3555 = vmatprep.mubr.f32.mxu0 0.0
        %3556 = vmatmul.mubr.f32.gmra.mrb[0].mxu0 %v3369
        %v3557 = vpop.f32.mrb[0].mxu0
        %v3558 = vadd.f32 0.0, %v3557
        %v3559 = vpop.f32.mrb[0].mxu0
        %3560 = vmatprep.mubr.f32.mxu0 0.0
        %3561 = vmatmul.mubr.f32.gmra.mrb[0].mxu0 %v3370
        %v3562 = vpop.f32.mrb[0].mxu0
        %v3563 = vadd.f32 0.0, %v3562
        %v3564 = vpop.f32.mrb[0].mxu0
        %3565 = vmatprep.mubr.f32.mxu0 0.0
        %3566 = vmatmul.mubr.f32.gmra.mrb[0].mxu0 %v3371
        %v3567 = vpop.f32.mrb[0].mxu0
        %v3568 = vadd.f32 0.0, %v3567
        %v3569 = vpop.f32.mrb[0].mxu0
        %3570 = vmatprep.mubr.f32.mxu0 0.0
        %3571 = vmatmul.mubr.f32.gmra.mrb[0].mxu0 %v3372
        %v3572 = vpop.f32.mrb[0].mxu0
        %v3573 = vadd.f32 0.0, %v3572
        %v3574 = vpop.f32.mrb[0].mxu0
        %3575 = vmatprep.mubr.f32.mxu0 0.0
        %3576 = vmatmul.mubr.f32.gmra.mrb[0].mxu0 %v3373
        %v3577 = vpop.f32.mrb[0].mxu0
        %v3578 = vadd.f32 0.0, %v3577
        %v3579 = vpop.f32.mrb[0].mxu0
        %3580 = vdwg.mxu0
        %v3581 = vld [vmem:[#allocation4] sm:$0xff]
        %v3582 = vld [vmem:[#allocation4 + $0x8] sm:$0xff]
        %v3583 = vld [vmem:[#allocation4 + $0x10] sm:$0xff]
        %v3584 = vld [vmem:[#allocation4 + $0x18] sm:$0xff]
        %v3585 = vld [vmem:[#allocation4 + $0x20] sm:$0xff]
        %v3586 = vld [vmem:[#allocation4 + $0x28] sm:$0xff]
        %v3587 = vld [vmem:[#allocation4 + $0x30] sm:$0xff]
        %v3588 = vld [vmem:[#allocation4 + $0x38] sm:$0xff]
        %v3589 = vld [vmem:[#allocation4 + $0x40] sm:$0xff]
        %v3590 = vld [vmem:[#allocation4 + $0x48] sm:$0xff]
        %v3591 = vld [vmem:[#allocation4 + $0x50] sm:$0xff]
        %v3592 = vld [vmem:[#allocation4 + $0x58] sm:$0xff]
        %v3593 = vld [vmem:[#allocation4 + $0x60] sm:$0xff]
        %v3594 = vld [vmem:[#allocation4 + $0x68] sm:$0xff]
        %v3595 = vld [vmem:[#allocation4 + $0x70] sm:$0xff]
        %v3596 = vld [vmem:[#allocation4 + $0x78] sm:$0xff]
        %v3597 = vld [vmem:[#allocation4 + $0x80] sm:$0xff]
        %v3598 = vld [vmem:[#allocation4 + $0x88] sm:$0xff]
        %v3599 = vld [vmem:[#allocation4 + $0x90] sm:$0xff]
        %v3600 = vld [vmem:[#allocation4 + $0x98] sm:$0xff]
        %v3601 = vld [vmem:[#allocation4 + $0xa0] sm:$0xff]
        %v3602 = vld [vmem:[#allocation4 + $0xa8] sm:$0xff]
        %v3603 = vld [vmem:[#allocation4 + $0xb0] sm:$0xff]
        %v3604 = vld [vmem:[#allocation4 + $0xb8] sm:$0xff]
        %v3605 = vld [vmem:[#allocation4 + $0xc0] sm:$0xf]
        %v3606 = vadd.f32 %v3581, %v3458
        %v3607 = vadd.f32 %v3582, %v3463
        %v3608 = vadd.f32 %v3583, %v3468
        %v3609 = vadd.f32 %v3584, %v3473
        %v3610 = vadd.f32 %v3585, %v3478
        %v3611 = vadd.f32 %v3586, %v3483
        %v3612 = vadd.f32 %v3587, %v3488
        %v3613 = vadd.f32 %v3588, %v3493
        %v3614 = vadd.f32 %v3589, %v3498
        %v3615 = vadd.f32 %v3590, %v3503
        %v3616 = vadd.f32 %v3591, %v3508
        %v3617 = vadd.f32 %v3592, %v3513
        %v3618 = vadd.f32 %v3593, %v3518
        %v3619 = vadd.f32 %v3594, %v3523
        %v3620 = vadd.f32 %v3595, %v3528
        %v3621 = vadd.f32 %v3596, %v3533
        %v3622 = vadd.f32 %v3597, %v3538
        %v3623 = vadd.f32 %v3598, %v3543
        %v3624 = vadd.f32 %v3599, %v3548
        %v3625 = vadd.f32 %v3600, %v3553
        %v3626 = vadd.f32 %v3601, %v3558
        %v3627 = vadd.f32 %v3602, %v3563
        %v3628 = vadd.f32 %v3603, %v3568
        %v3629 = vadd.f32 %v3604, %v3573
        %v3630 = vadd.f32 %v3605, %v3578
        %3631 = vst [vmem:[#allocation4] sm:$0xff] %v3606
        %3632 = vst [vmem:[#allocation4 + $0x8] sm:$0xff] %v3607
        %3633 = vst [vmem:[#allocation4 + $0x10] sm:$0xff] %v3608
        %3634 = vst [vmem:[#allocation4 + $0x18] sm:$0xff] %v3609
        %3635 = vst [vmem:[#allocation4 + $0x20] sm:$0xff] %v3610
        %3636 = vst [vmem:[#allocation4 + $0x28] sm:$0xff] %v3611
        %3637 = vst [vmem:[#allocation4 + $0x30] sm:$0xff] %v3612
        %3638 = vst [vmem:[#allocation4 + $0x38] sm:$0xff] %v3613
        %3639 = vst [vmem:[#allocation4 + $0x40] sm:$0xff] %v3614
        %3640 = vst [vmem:[#allocation4 + $0x48] sm:$0xff] %v3615
        %3641 = vst [vmem:[#allocation4 + $0x50] sm:$0xff] %v3616
        %3642 = vst [vmem:[#allocation4 + $0x58] sm:$0xff] %v3617
        %3643 = vst [vmem:[#allocation4 + $0x60] sm:$0xff] %v3618
        %3644 = vst [vmem:[#allocation4 + $0x68] sm:$0xff] %v3619
        %3645 = vst [vmem:[#allocation4 + $0x70] sm:$0xff] %v3620
        %3646 = vst [vmem:[#allocation4 + $0x78] sm:$0xff] %v3621
        %3647 = vst [vmem:[#allocation4 + $0x80] sm:$0xff] %v3622
        %3648 = vst [vmem:[#allocation4 + $0x88] sm:$0xff] %v3623
        %3649 = vst [vmem:[#allocation4 + $0x90] sm:$0xff] %v3624
        %3650 = vst [vmem:[#allocation4 + $0x98] sm:$0xff] %v3625
        %3651 = vst [vmem:[#allocation4 + $0xa0] sm:$0xff] %v3626
        %3652 = vst [vmem:[#allocation4 + $0xa8] sm:$0xff] %v3627
        %3653 = vst [vmem:[#allocation4 + $0xb0] sm:$0xff] %v3628
        %3654 = vst [vmem:[#allocation4 + $0xb8] sm:$0xff] %v3629
        %3655 = vst [vmem:[#allocation4 + $0xc0] sm:$0xf] %v3630
        %v3656 = vld [vmem:[#allocation3 + $0x1c] sm:$0xff]
        %v3657 = vld [vmem:[#allocation3 + $0x24] sm:$0xff]
        %v3658 = vld [vmem:[#allocation3 + $0x2c] sm:$0xff]
        %v3659 = vld [vmem:[#allocation3 + $0x34] sm:$0xff]
        %v3660 = vld [vmem:[#allocation3 + $0x3c] sm:$0xff]
        %v3661 = vld [vmem:[#allocation3 + $0x44] sm:$0xff]
        %v3662 = vld [vmem:[#allocation3 + $0x4c] sm:$0xff]
        %v3663 = vld [vmem:[#allocation3 + $0x54] sm:$0xff]
        %v3664 = vld [vmem:[#allocation3 + $0x5c] sm:$0xff]
        %v3665 = vld [vmem:[#allocation3 + $0x64] sm:$0xff]
        %v3666 = vld [vmem:[#allocation3 + $0x6c] sm:$0xff]
        %v3667 = vld [vmem:[#allocation3 + $0x74] sm:$0xff]
        %v3668 = vld [vmem:[#allocation3 + $0x7c] sm:$0xff]
        %v3669 = vld [vmem:[#allocation3 + $0x84] sm:$0xff]
        %v3670 = vld [vmem:[#allocation3 + $0x8c] sm:$0xff]
        %v3671 = vld [vmem:[#allocation3 + $0x94] sm:$0xff]
        %v3672 = vld [vmem:[#allocation3 + $0x9c] sm:$0xff]
        %v3673 = vld [vmem:[#allocation3 + $0xa4] sm:$0xff]
        %v3674 = vld [vmem:[#allocation3 + $0xac] sm:$0xff]
        %v3675 = vld [vmem:[#allocation3 + $0xb4] sm:$0xff]
        %v3676 = vld [vmem:[#allocation3 + $0xbc] sm:$0xff]
        %v3677 = vld [vmem:[#allocation3 + $0xc4] sm:$0xff]
        %v3678 = vld [vmem:[#allocation3 + $0xcc] sm:$0xff]
        %v3679 = vld [vmem:[#allocation3 + $0xd4] sm:$0xff]
        %v3680 = vld [vmem:[#allocation3 + $0xdc] sm:$0xf]
        %s3681 = scalar_lea.vmem %s3, 768
        %v3682 = vld [vmem:[%s3681] sm:$0xff]
        %v3683 = vld [vmem:[%s3681 + $0x8] sm:$0xff]
        %v3684 = vld [vmem:[%s3681 + $0x10] sm:$0xff]
        %v3685 = vld [vmem:[%s3681 + $0x18] sm:$0xff]
        %v3686 = vld [vmem:[%s3681 + $0x20] sm:$0xff]
        %v3687 = vld [vmem:[%s3681 + $0x28] sm:$0xff]
        %v3688 = vld [vmem:[%s3681 + $0x30] sm:$0xff]
        %v3689 = vld [vmem:[%s3681 + $0x38] sm:$0xff]
        %v3690 = vld [vmem:[%s3681 + $0x40] sm:$0xff]
        %v3691 = vld [vmem:[%s3681 + $0x48] sm:$0xff]
        %v3692 = vld [vmem:[%s3681 + $0x50] sm:$0xff]
        %v3693 = vld [vmem:[%s3681 + $0x58] sm:$0xff]
        %v3694 = vld [vmem:[%s3681 + $0x60] sm:$0xff]
        %v3695 = vld [vmem:[%s3681 + $0x68] sm:$0xff]
        %v3696 = vld [vmem:[%s3681 + $0x70] sm:$0xff]
        %v3697 = vld [vmem:[%s3681 + $0x78] sm:$0xff]
        %3698 = vmatprep.subr.mxu0 0.0
        %3699 = vmatpush1.msra.mxu0 %v3682
        %3700 = vmatprep.subr.mxu0 0.0
        %3701 = vmatpush1.msra.mxu0 %v3683
        %3702 = vmatprep.subr.mxu0 0.0
        %3703 = vmatpush1.msra.mxu0 %v3684
        %3704 = vmatprep.subr.mxu0 0.0
        %3705 = vmatpush1.msra.mxu0 %v3685
        %3706 = vmatprep.subr.mxu0 0.0
        %3707 = vmatpush1.msra.mxu0 %v3686
        %3708 = vmatprep.subr.mxu0 0.0
        %3709 = vmatpush1.msra.mxu0 %v3687
        %3710 = vmatprep.subr.mxu0 0.0
        %3711 = vmatpush1.msra.mxu0 %v3688
        %3712 = vmatprep.subr.mxu0 0.0
        %3713 = vmatpush1.msra.mxu0 %v3689
        %3714 = vmatprep.subr.mxu0 0.0
        %3715 = vmatpush1.msra.mxu0 %v3690
        %3716 = vmatprep.subr.mxu0 0.0
        %3717 = vmatpush1.msra.mxu0 %v3691
        %3718 = vmatprep.subr.mxu0 0.0
        %3719 = vmatpush1.msra.mxu0 %v3692
        %3720 = vmatprep.subr.mxu0 0.0
        %3721 = vmatpush1.msra.mxu0 %v3693
        %3722 = vmatprep.subr.mxu0 0.0
        %3723 = vmatpush1.msra.mxu0 %v3694
        %3724 = vmatprep.subr.mxu0 0.0
        %3725 = vmatpush1.msra.mxu0 %v3695
        %3726 = vmatprep.subr.mxu0 0.0
        %3727 = vmatpush1.msra.mxu0 %v3696
        %3728 = vmatprep.subr.mxu0 0.0
        %3729 = vmatpush1.msra.mxu0 %v3697
        %3730 = vmatprep.subr.mxu0 0.0
        %3731 = vmatpush1.msra.mxu0 0.0
        %3732 = vmatprep.subr.mxu0 0.0
        %3733 = vmatpush1.msra.mxu0 0.0
        %3734 = vmatprep.subr.mxu0 0.0
        %3735 = vmatpush1.msra.mxu0 0.0
        %3736 = vmatprep.subr.mxu0 0.0
        %3737 = vmatpush1.msra.mxu0 0.0
        %3738 = vmatprep.subr.mxu0 0.0
        %3739 = vmatpush1.msra.mxu0 0.0
        %3740 = vmatprep.subr.mxu0 0.0
        %3741 = vmatpush1.msra.mxu0 0.0
        %3742 = vmatprep.subr.mxu0 0.0
        %3743 = vmatpush1.msra.mxu0 0.0
        %3744 = vmatprep.subr.mxu0 0.0
        %3745 = vmatpush1.msra.mxu0 0.0
        %3746 = vmatprep.subr.mxu0 0.0
        %3747 = vmatpush1.msra.mxu0 0.0
        %3748 = vmatprep.subr.mxu0 0.0
        %3749 = vmatpush1.msra.mxu0 0.0
        %3750 = vmatprep.subr.mxu0 0.0
        %3751 = vmatpush1.msra.mxu0 0.0
        %3752 = vmatprep.subr.mxu0 0.0
        %3753 = vmatpush1.msra.mxu0 0.0
        %3754 = vmatprep.subr.mxu0 0.0
        %3755 = vmatpush1.msra.mxu0 0.0
        %3756 = vmatprep.subr.mxu0 0.0
        %3757 = vmatpush1.msra.mxu0 0.0
        %3758 = vmatprep.subr.mxu0 0.0
        %3759 = vmatpush1.msra.mxu0 0.0
        %3760 = vmatprep.subr.mxu0 0.0
        %3761 = vmatpush1.msra.mxu0 0.0
        %3762 = vmatprep.mubr.f32.mxu0 0.0
        %3763 = vmatmul.mubr.f32.gmra.mrb[0].mxu0 %v3656
        %v3764 = vpop.f32.mrb[0].mxu0
        %v3765 = vadd.f32 0.0, %v3764
        %v3766 = vpop.f32.mrb[0].mxu0
        %3767 = vmatprep.mubr.f32.mxu0 0.0
        %3768 = vmatmul.mubr.f32.gmra.mrb[0].mxu0 %v3657
        %v3769 = vpop.f32.mrb[0].mxu0
        %v3770 = vadd.f32 0.0, %v3769
        %v3771 = vpop.f32.mrb[0].mxu0
        %3772 = vmatprep.mubr.f32.mxu0 0.0
        %3773 = vmatmul.mubr.f32.gmra.mrb[0].mxu0 %v3658
        %v3774 = vpop.f32.mrb[0].mxu0
        %v3775 = vadd.f32 0.0, %v3774
        %v3776 = vpop.f32.mrb[0].mxu0
        %3777 = vmatprep.mubr.f32.mxu0 0.0
        %3778 = vmatmul.mubr.f32.gmra.mrb[0].mxu0 %v3659
        %v3779 = vpop.f32.mrb[0].mxu0
        %v3780 = vadd.f32 0.0, %v3779
        %v3781 = vpop.f32.mrb[0].mxu0
        %3782 = vmatprep.mubr.f32.mxu0 0.0
        %3783 = vmatmul.mubr.f32.gmra.mrb[0].mxu0 %v3660
        %v3784 = vpop.f32.mrb[0].mxu0
        %v3785 = vadd.f32 0.0, %v3784
        %v3786 = vpop.f32.mrb[0].mxu0
        %3787 = vmatprep.mubr.f32.mxu0 0.0
        %3788 = vmatmul.mubr.f32.gmra.mrb[0].mxu0 %v3661
        %v3789 = vpop.f32.mrb[0].mxu0
        %v3790 = vadd.f32 0.0, %v3789
        %v3791 = vpop.f32.mrb[0].mxu0
        %3792 = vmatprep.mubr.f32.mxu0 0.0
        %3793 = vmatmul.mubr.f32.gmra.mrb[0].mxu0 %v3662
        %v3794 = vpop.f32.mrb[0].mxu0
        %v3795 = vadd.f32 0.0, %v3794
        %v3796 = vpop.f32.mrb[0].mxu0
        %3797 = vmatprep.mubr.f32.mxu0 0.0
        %3798 = vmatmul.mubr.f32.gmra.mrb[0].mxu0 %v3663
        %v3799 = vpop.f32.mrb[0].mxu0
        %v3800 = vadd.f32 0.0, %v3799
        %v3801 = vpop.f32.mrb[0].mxu0
        %3802 = vmatprep.mubr.f32.mxu0 0.0
        %3803 = vmatmul.mubr.f32.gmra.mrb[0].mxu0 %v3664
        %v3804 = vpop.f32.mrb[0].mxu0
        %v3805 = vadd.f32 0.0, %v3804
        %v3806 = vpop.f32.mrb[0].mxu0
        %3807 = vmatprep.mubr.f32.mxu0 0.0
        %3808 = vmatmul.mubr.f32.gmra.mrb[0].mxu0 %v3665
        %v3809 = vpop.f32.mrb[0].mxu0
        %v3810 = vadd.f32 0.0, %v3809
        %v3811 = vpop.f32.mrb[0].mxu0
        %3812 = vmatprep.mubr.f32.mxu0 0.0
        %3813 = vmatmul.mubr.f32.gmra.mrb[0].mxu0 %v3666
        %v3814 = vpop.f32.mrb[0].mxu0
        %v3815 = vadd.f32 0.0, %v3814
        %v3816 = vpop.f32.mrb[0].mxu0
        %3817 = vmatprep.mubr.f32.mxu0 0.0
        %3818 = vmatmul.mubr.f32.gmra.mrb[0].mxu0 %v3667
        %v3819 = vpop.f32.mrb[0].mxu0
        %v3820 = vadd.f32 0.0, %v3819
        %v3821 = vpop.f32.mrb[0].mxu0
        %3822 = vmatprep.mubr.f32.mxu0 0.0
        %3823 = vmatmul.mubr.f32.gmra.mrb[0].mxu0 %v3668
        %v3824 = vpop.f32.mrb[0].mxu0
        %v3825 = vadd.f32 0.0, %v3824
        %v3826 = vpop.f32.mrb[0].mxu0
        %3827 = vmatprep.mubr.f32.mxu0 0.0
        %3828 = vmatmul.mubr.f32.gmra.mrb[0].mxu0 %v3669
        %v3829 = vpop.f32.mrb[0].mxu0
        %v3830 = vadd.f32 0.0, %v3829
        %v3831 = vpop.f32.mrb[0].mxu0
        %3832 = vmatprep.mubr.f32.mxu0 0.0
        %3833 = vmatmul.mubr.f32.gmra.mrb[0].mxu0 %v3670
        %v3834 = vpop.f32.mrb[0].mxu0
        %v3835 = vadd.f32 0.0, %v3834
        %v3836 = vpop.f32.mrb[0].mxu0
        %3837 = vmatprep.mubr.f32.mxu0 0.0
        %3838 = vmatmul.mubr.f32.gmra.mrb[0].mxu0 %v3671
        %v3839 = vpop.f32.mrb[0].mxu0
        %v3840 = vadd.f32 0.0, %v3839
        %v3841 = vpop.f32.mrb[0].mxu0
        %3842 = vmatprep.mubr.f32.mxu0 0.0
        %3843 = vmatmul.mubr.f32.gmra.mrb[0].mxu0 %v3672
        %v3844 = vpop.f32.mrb[0].mxu0
        %v3845 = vadd.f32 0.0, %v3844
        %v3846 = vpop.f32.mrb[0].mxu0
        %3847 = vmatprep.mubr.f32.mxu0 0.0
        %3848 = vmatmul.mubr.f32.gmra.mrb[0].mxu0 %v3673
        %v3849 = vpop.f32.mrb[0].mxu0
        %v3850 = vadd.f32 0.0, %v3849
        %v3851 = vpop.f32.mrb[0].mxu0
        %3852 = vmatprep.mubr.f32.mxu0 0.0
        %3853 = vmatmul.mubr.f32.gmra.mrb[0].mxu0 %v3674
        %v3854 = vpop.f32.mrb[0].mxu0
        %v3855 = vadd.f32 0.0, %v3854
        %v3856 = vpop.f32.mrb[0].mxu0
        %3857 = vmatprep.mubr.f32.mxu0 0.0
        %3858 = vmatmul.mubr.f32.gmra.mrb[0].mxu0 %v3675
        %v3859 = vpop.f32.mrb[0].mxu0
        %v3860 = vadd.f32 0.0, %v3859
        %v3861 = vpop.f32.mrb[0].mxu0
        %3862 = vmatprep.mubr.f32.mxu0 0.0
        %3863 = vmatmul.mubr.f32.gmra.mrb[0].mxu0 %v3676
        %v3864 = vpop.f32.mrb[0].mxu0
        %v3865 = vadd.f32 0.0, %v3864
        %v3866 = vpop.f32.mrb[0].mxu0
        %3867 = vmatprep.mubr.f32.mxu0 0.0
        %3868 = vmatmul.mubr.f32.gmra.mrb[0].mxu0 %v3677
        %v3869 = vpop.f32.mrb[0].mxu0
        %v3870 = vadd.f32 0.0, %v3869
        %v3871 = vpop.f32.mrb[0].mxu0
        %3872 = vmatprep.mubr.f32.mxu0 0.0
        %3873 = vmatmul.mubr.f32.gmra.mrb[0].mxu0 %v3678
        %v3874 = vpop.f32.mrb[0].mxu0
        %v3875 = vadd.f32 0.0, %v3874
        %v3876 = vpop.f32.mrb[0].mxu0
        %3877 = vmatprep.mubr.f32.mxu0 0.0
        %3878 = vmatmul.mubr.f32.gmra.mrb[0].mxu0 %v3679
        %v3879 = vpop.f32.mrb[0].mxu0
        %v3880 = vadd.f32 0.0, %v3879
        %v3881 = vpop.f32.mrb[0].mxu0
        %3882 = vmatprep.mubr.f32.mxu0 0.0
        %3883 = vmatmul.mubr.f32.gmra.mrb[0].mxu0 %v3680
        %v3884 = vpop.f32.mrb[0].mxu0
        %v3885 = vadd.f32 0.0, %v3884
        %v3886 = vpop.f32.mrb[0].mxu0
        %3887 = vdwg.mxu0
        %v3888 = vld [vmem:[#allocation4] sm:$0xff]
        %v3889 = vld [vmem:[#allocation4 + $0x8] sm:$0xff]
        %v3890 = vld [vmem:[#allocation4 + $0x10] sm:$0xff]
        %v3891 = vld [vmem:[#allocation4 + $0x18] sm:$0xff]
        %v3892 = vld [vmem:[#allocation4 + $0x20] sm:$0xff]
        %v3893 = vld [vmem:[#allocation4 + $0x28] sm:$0xff]
        %v3894 = vld [vmem:[#allocation4 + $0x30] sm:$0xff]
        %v3895 = vld [vmem:[#allocation4 + $0x38] sm:$0xff]
        %v3896 = vld [vmem:[#allocation4 + $0x40] sm:$0xff]
        %v3897 = vld [vmem:[#allocation4 + $0x48] sm:$0xff]
        %v3898 = vld [vmem:[#allocation4 + $0x50] sm:$0xff]
        %v3899 = vld [vmem:[#allocation4 + $0x58] sm:$0xff]
        %v3900 = vld [vmem:[#allocation4 + $0x60] sm:$0xff]
        %v3901 = vld [vmem:[#allocation4 + $0x68] sm:$0xff]
        %v3902 = vld [vmem:[#allocation4 + $0x70] sm:$0xff]
        %v3903 = vld [vmem:[#allocation4 + $0x78] sm:$0xff]
        %v3904 = vld [vmem:[#allocation4 + $0x80] sm:$0xff]
        %v3905 = vld [vmem:[#allocation4 + $0x88] sm:$0xff]
        %v3906 = vld [vmem:[#allocation4 + $0x90] sm:$0xff]
        %v3907 = vld [vmem:[#allocation4 + $0x98] sm:$0xff]
        %v3908 = vld [vmem:[#allocation4 + $0xa0] sm:$0xff]
        %v3909 = vld [vmem:[#allocation4 + $0xa8] sm:$0xff]
        %v3910 = vld [vmem:[#allocation4 + $0xb0] sm:$0xff]
        %v3911 = vld [vmem:[#allocation4 + $0xb8] sm:$0xff]
        %v3912 = vld [vmem:[#allocation4 + $0xc0] sm:$0xf]
        %v3913 = vadd.f32 %v3888, %v3765
        %v3914 = vadd.f32 %v3889, %v3770
        %v3915 = vadd.f32 %v3890, %v3775
        %v3916 = vadd.f32 %v3891, %v3780
        %v3917 = vadd.f32 %v3892, %v3785
        %v3918 = vadd.f32 %v3893, %v3790
        %v3919 = vadd.f32 %v3894, %v3795
        %v3920 = vadd.f32 %v3895, %v3800
        %v3921 = vadd.f32 %v3896, %v3805
        %v3922 = vadd.f32 %v3897, %v3810
        %v3923 = vadd.f32 %v3898, %v3815
        %v3924 = vadd.f32 %v3899, %v3820
        %v3925 = vadd.f32 %v3900, %v3825
        %v3926 = vadd.f32 %v3901, %v3830
        %v3927 = vadd.f32 %v3902, %v3835
        %v3928 = vadd.f32 %v3903, %v3840
        %v3929 = vadd.f32 %v3904, %v3845
        %v3930 = vadd.f32 %v3905, %v3850
        %v3931 = vadd.f32 %v3906, %v3855
        %v3932 = vadd.f32 %v3907, %v3860
        %v3933 = vadd.f32 %v3908, %v3865
        %v3934 = vadd.f32 %v3909, %v3870
        %v3935 = vadd.f32 %v3910, %v3875
        %v3936 = vadd.f32 %v3911, %v3880
        %v3937 = vadd.f32 %v3912, %v3885
        %3938 = vst [vmem:[#allocation4] sm:$0xff] %v3913
        %3939 = vst [vmem:[#allocation4 + $0x8] sm:$0xff] %v3914
        %3940 = vst [vmem:[#allocation4 + $0x10] sm:$0xff] %v3915
        %3941 = vst [vmem:[#allocation4 + $0x18] sm:$0xff] %v3916
        %3942 = vst [vmem:[#allocation4 + $0x20] sm:$0xff] %v3917
        %3943 = vst [vmem:[#allocation4 + $0x28] sm:$0xff] %v3918
        %3944 = vst [vmem:[#allocation4 + $0x30] sm:$0xff] %v3919
        %3945 = vst [vmem:[#allocation4 + $0x38] sm:$0xff] %v3920
        %3946 = vst [vmem:[#allocation4 + $0x40] sm:$0xff] %v3921
        %3947 = vst [vmem:[#allocation4 + $0x48] sm:$0xff] %v3922
        %3948 = vst [vmem:[#allocation4 + $0x50] sm:$0xff] %v3923
        %3949 = vst [vmem:[#allocation4 + $0x58] sm:$0xff] %v3924
        %3950 = vst [vmem:[#allocation4 + $0x60] sm:$0xff] %v3925
        %3951 = vst [vmem:[#allocation4 + $0x68] sm:$0xff] %v3926
        %3952 = vst [vmem:[#allocation4 + $0x70] sm:$0xff] %v3927
        %3953 = vst [vmem:[#allocation4 + $0x78] sm:$0xff] %v3928
        %3954 = vst [vmem:[#allocation4 + $0x80] sm:$0xff] %v3929
        %3955 = vst [vmem:[#allocation4 + $0x88] sm:$0xff] %v3930
        %3956 = vst [vmem:[#allocation4 + $0x90] sm:$0xff] %v3931
        %3957 = vst [vmem:[#allocation4 + $0x98] sm:$0xff] %v3932
        %3958 = vst [vmem:[#allocation4 + $0xa0] sm:$0xff] %v3933
        %3959 = vst [vmem:[#allocation4 + $0xa8] sm:$0xff] %v3934
        %3960 = vst [vmem:[#allocation4 + $0xb0] sm:$0xff] %v3935
        %3961 = vst [vmem:[#allocation4 + $0xb8] sm:$0xff] %v3936
        %3962 = vst [vmem:[#allocation4 + $0xc0] sm:$0xf] %v3937
        %v3963 = vld [vmem:[#allocation3 + $0x1d] sm:$0xff]
        %v3964 = vld [vmem:[#allocation3 + $0x25] sm:$0xff]
        %v3965 = vld [vmem:[#allocation3 + $0x2d] sm:$0xff]
        %v3966 = vld [vmem:[#allocation3 + $0x35] sm:$0xff]
        %v3967 = vld [vmem:[#allocation3 + $0x3d] sm:$0xff]
        %v3968 = vld [vmem:[#allocation3 + $0x45] sm:$0xff]
        %v3969 = vld [vmem:[#allocation3 + $0x4d] sm:$0xff]
        %v3970 = vld [vmem:[#allocation3 + $0x55] sm:$0xff]
        %v3971 = vld [vmem:[#allocation3 + $0x5d] sm:$0xff]
        %v3972 = vld [vmem:[#allocation3 + $0x65] sm:$0xff]
        %v3973 = vld [vmem:[#allocation3 + $0x6d] sm:$0xff]
        %v3974 = vld [vmem:[#allocation3 + $0x75] sm:$0xff]
        %v3975 = vld [vmem:[#allocation3 + $0x7d] sm:$0xff]
        %v3976 = vld [vmem:[#allocation3 + $0x85] sm:$0xff]
        %v3977 = vld [vmem:[#allocation3 + $0x8d] sm:$0xff]
        %v3978 = vld [vmem:[#allocation3 + $0x95] sm:$0xff]
        %v3979 = vld [vmem:[#allocation3 + $0x9d] sm:$0xff]
        %v3980 = vld [vmem:[#allocation3 + $0xa5] sm:$0xff]
        %v3981 = vld [vmem:[#allocation3 + $0xad] sm:$0xff]
        %v3982 = vld [vmem:[#allocation3 + $0xb5] sm:$0xff]
        %v3983 = vld [vmem:[#allocation3 + $0xbd] sm:$0xff]
        %v3984 = vld [vmem:[#allocation3 + $0xc5] sm:$0xff]
        %v3985 = vld [vmem:[#allocation3 + $0xcd] sm:$0xff]
        %v3986 = vld [vmem:[#allocation3 + $0xd5] sm:$0xff]
        %v3987 = vld [vmem:[#allocation3 + $0xdd] sm:$0xf]
        %s3988 = scalar_lea.vmem %s3, 896
        %v3989 = vld [vmem:[%s3988] sm:$0xff]
        %v3990 = vld [vmem:[%s3988 + $0x8] sm:$0xff]
        %v3991 = vld [vmem:[%s3988 + $0x10] sm:$0xff]
        %v3992 = vld [vmem:[%s3988 + $0x18] sm:$0xff]
        %v3993 = vld [vmem:[%s3988 + $0x20] sm:$0xff]
        %v3994 = vld [vmem:[%s3988 + $0x28] sm:$0xff]
        %v3995 = vld [vmem:[%s3988 + $0x30] sm:$0xff]
        %v3996 = vld [vmem:[%s3988 + $0x38] sm:$0xff]
        %v3997 = vld [vmem:[%s3988 + $0x40] sm:$0xff]
        %v3998 = vld [vmem:[%s3988 + $0x48] sm:$0xff]
        %v3999 = vld [vmem:[%s3988 + $0x50] sm:$0xff]
        %v4000 = vld [vmem:[%s3988 + $0x58] sm:$0xff]
        %v4001 = vld [vmem:[%s3988 + $0x60] sm:$0xff]
        %v4002 = vld [vmem:[%s3988 + $0x68] sm:$0xff]
        %v4003 = vld [vmem:[%s3988 + $0x70] sm:$0xff]
        %v4004 = vld [vmem:[%s3988 + $0x78] sm:$0xff]
        %4005 = vmatprep.subr.mxu0 0.0
        %4006 = vmatpush1.msra.mxu0 %v3989
        %4007 = vmatprep.subr.mxu0 0.0
        %4008 = vmatpush1.msra.mxu0 %v3990
        %4009 = vmatprep.subr.mxu0 0.0
        %4010 = vmatpush1.msra.mxu0 %v3991
        %4011 = vmatprep.subr.mxu0 0.0
        %4012 = vmatpush1.msra.mxu0 %v3992
        %4013 = vmatprep.subr.mxu0 0.0
        %4014 = vmatpush1.msra.mxu0 %v3993
        %4015 = vmatprep.subr.mxu0 0.0
        %4016 = vmatpush1.msra.mxu0 %v3994
        %4017 = vmatprep.subr.mxu0 0.0
        %4018 = vmatpush1.msra.mxu0 %v3995
        %4019 = vmatprep.subr.mxu0 0.0
        %4020 = vmatpush1.msra.mxu0 %v3996
        %4021 = vmatprep.subr.mxu0 0.0
        %4022 = vmatpush1.msra.mxu0 %v3997
        %4023 = vmatprep.subr.mxu0 0.0
        %4024 = vmatpush1.msra.mxu0 %v3998
        %4025 = vmatprep.subr.mxu0 0.0
        %4026 = vmatpush1.msra.mxu0 %v3999
        %4027 = vmatprep.subr.mxu0 0.0
        %4028 = vmatpush1.msra.mxu0 %v4000
        %4029 = vmatprep.subr.mxu0 0.0
        %4030 = vmatpush1.msra.mxu0 %v4001
        %4031 = vmatprep.subr.mxu0 0.0
        %4032 = vmatpush1.msra.mxu0 %v4002
        %4033 = vmatprep.subr.mxu0 0.0
        %4034 = vmatpush1.msra.mxu0 %v4003
        %4035 = vmatprep.subr.mxu0 0.0
        %4036 = vmatpush1.msra.mxu0 %v4004
        %4037 = vmatprep.subr.mxu0 0.0
        %4038 = vmatpush1.msra.mxu0 0.0
        %4039 = vmatprep.subr.mxu0 0.0
        %4040 = vmatpush1.msra.mxu0 0.0
        %4041 = vmatprep.subr.mxu0 0.0
        %4042 = vmatpush1.msra.mxu0 0.0
        %4043 = vmatprep.subr.mxu0 0.0
        %4044 = vmatpush1.msra.mxu0 0.0
        %4045 = vmatprep.subr.mxu0 0.0
        %4046 = vmatpush1.msra.mxu0 0.0
        %4047 = vmatprep.subr.mxu0 0.0
        %4048 = vmatpush1.msra.mxu0 0.0
        %4049 = vmatprep.subr.mxu0 0.0
        %4050 = vmatpush1.msra.mxu0 0.0
        %4051 = vmatprep.subr.mxu0 0.0
        %4052 = vmatpush1.msra.mxu0 0.0
        %4053 = vmatprep.subr.mxu0 0.0
        %4054 = vmatpush1.msra.mxu0 0.0
        %4055 = vmatprep.subr.mxu0 0.0
        %4056 = vmatpush1.msra.mxu0 0.0
        %4057 = vmatprep.subr.mxu0 0.0
        %4058 = vmatpush1.msra.mxu0 0.0
        %4059 = vmatprep.subr.mxu0 0.0
        %4060 = vmatpush1.msra.mxu0 0.0
        %4061 = vmatprep.subr.mxu0 0.0
        %4062 = vmatpush1.msra.mxu0 0.0
        %4063 = vmatprep.subr.mxu0 0.0
        %4064 = vmatpush1.msra.mxu0 0.0
        %4065 = vmatprep.subr.mxu0 0.0
        %4066 = vmatpush1.msra.mxu0 0.0
        %4067 = vmatprep.subr.mxu0 0.0
        %4068 = vmatpush1.msra.mxu0 0.0
        %4069 = vmatprep.mubr.f32.mxu0 0.0
        %4070 = vmatmul.mubr.f32.gmra.mrb[0].mxu0 %v3963
        %v4071 = vpop.f32.mrb[0].mxu0
        %v4072 = vadd.f32 0.0, %v4071
        %v4073 = vpop.f32.mrb[0].mxu0
        %4074 = vmatprep.mubr.f32.mxu0 0.0
        %4075 = vmatmul.mubr.f32.gmra.mrb[0].mxu0 %v3964
        %v4076 = vpop.f32.mrb[0].mxu0
        %v4077 = vadd.f32 0.0, %v4076
        %v4078 = vpop.f32.mrb[0].mxu0
        %4079 = vmatprep.mubr.f32.mxu0 0.0
        %4080 = vmatmul.mubr.f32.gmra.mrb[0].mxu0 %v3965
        %v4081 = vpop.f32.mrb[0].mxu0
        %v4082 = vadd.f32 0.0, %v4081
        %v4083 = vpop.f32.mrb[0].mxu0
        %4084 = vmatprep.mubr.f32.mxu0 0.0
        %4085 = vmatmul.mubr.f32.gmra.mrb[0].mxu0 %v3966
        %v4086 = vpop.f32.mrb[0].mxu0
        %v4087 = vadd.f32 0.0, %v4086
        %v4088 = vpop.f32.mrb[0].mxu0
        %4089 = vmatprep.mubr.f32.mxu0 0.0
        %4090 = vmatmul.mubr.f32.gmra.mrb[0].mxu0 %v3967
        %v4091 = vpop.f32.mrb[0].mxu0
        %v4092 = vadd.f32 0.0, %v4091
        %v4093 = vpop.f32.mrb[0].mxu0
        %4094 = vmatprep.mubr.f32.mxu0 0.0
        %4095 = vmatmul.mubr.f32.gmra.mrb[0].mxu0 %v3968
        %v4096 = vpop.f32.mrb[0].mxu0
        %v4097 = vadd.f32 0.0, %v4096
        %v4098 = vpop.f32.mrb[0].mxu0
        %4099 = vmatprep.mubr.f32.mxu0 0.0
        %4100 = vmatmul.mubr.f32.gmra.mrb[0].mxu0 %v3969
        %v4101 = vpop.f32.mrb[0].mxu0
        %v4102 = vadd.f32 0.0, %v4101
        %v4103 = vpop.f32.mrb[0].mxu0
        %4104 = vmatprep.mubr.f32.mxu0 0.0
        %4105 = vmatmul.mubr.f32.gmra.mrb[0].mxu0 %v3970
        %v4106 = vpop.f32.mrb[0].mxu0
        %v4107 = vadd.f32 0.0, %v4106
        %v4108 = vpop.f32.mrb[0].mxu0
        %4109 = vmatprep.mubr.f32.mxu0 0.0
        %4110 = vmatmul.mubr.f32.gmra.mrb[0].mxu0 %v3971
        %v4111 = vpop.f32.mrb[0].mxu0
        %v4112 = vadd.f32 0.0, %v4111
        %v4113 = vpop.f32.mrb[0].mxu0
        %4114 = vmatprep.mubr.f32.mxu0 0.0
        %4115 = vmatmul.mubr.f32.gmra.mrb[0].mxu0 %v3972
        %v4116 = vpop.f32.mrb[0].mxu0
        %v4117 = vadd.f32 0.0, %v4116
        %v4118 = vpop.f32.mrb[0].mxu0
        %4119 = vmatprep.mubr.f32.mxu0 0.0
        %4120 = vmatmul.mubr.f32.gmra.mrb[0].mxu0 %v3973
        %v4121 = vpop.f32.mrb[0].mxu0
        %v4122 = vadd.f32 0.0, %v4121
        %v4123 = vpop.f32.mrb[0].mxu0
        %4124 = vmatprep.mubr.f32.mxu0 0.0
        %4125 = vmatmul.mubr.f32.gmra.mrb[0].mxu0 %v3974
        %v4126 = vpop.f32.mrb[0].mxu0
        %v4127 = vadd.f32 0.0, %v4126
        %v4128 = vpop.f32.mrb[0].mxu0
        %4129 = vmatprep.mubr.f32.mxu0 0.0
        %4130 = vmatmul.mubr.f32.gmra.mrb[0].mxu0 %v3975
        %v4131 = vpop.f32.mrb[0].mxu0
        %v4132 = vadd.f32 0.0, %v4131
        %v4133 = vpop.f32.mrb[0].mxu0
        %4134 = vmatprep.mubr.f32.mxu0 0.0
        %4135 = vmatmul.mubr.f32.gmra.mrb[0].mxu0 %v3976
        %v4136 = vpop.f32.mrb[0].mxu0
        %v4137 = vadd.f32 0.0, %v4136
        %v4138 = vpop.f32.mrb[0].mxu0
        %4139 = vmatprep.mubr.f32.mxu0 0.0
        %4140 = vmatmul.mubr.f32.gmra.mrb[0].mxu0 %v3977
        %v4141 = vpop.f32.mrb[0].mxu0
        %v4142 = vadd.f32 0.0, %v4141
        %v4143 = vpop.f32.mrb[0].mxu0
        %4144 = vmatprep.mubr.f32.mxu0 0.0
        %4145 = vmatmul.mubr.f32.gmra.mrb[0].mxu0 %v3978
        %v4146 = vpop.f32.mrb[0].mxu0
        %v4147 = vadd.f32 0.0, %v4146
        %v4148 = vpop.f32.mrb[0].mxu0
        %4149 = vmatprep.mubr.f32.mxu0 0.0
        %4150 = vmatmul.mubr.f32.gmra.mrb[0].mxu0 %v3979
        %v4151 = vpop.f32.mrb[0].mxu0
        %v4152 = vadd.f32 0.0, %v4151
        %v4153 = vpop.f32.mrb[0].mxu0
        %4154 = vmatprep.mubr.f32.mxu0 0.0
        %4155 = vmatmul.mubr.f32.gmra.mrb[0].mxu0 %v3980
        %v4156 = vpop.f32.mrb[0].mxu0
        %v4157 = vadd.f32 0.0, %v4156
        %v4158 = vpop.f32.mrb[0].mxu0
        %4159 = vmatprep.mubr.f32.mxu0 0.0
        %4160 = vmatmul.mubr.f32.gmra.mrb[0].mxu0 %v3981
        %v4161 = vpop.f32.mrb[0].mxu0
        %v4162 = vadd.f32 0.0, %v4161
        %v4163 = vpop.f32.mrb[0].mxu0
        %4164 = vmatprep.mubr.f32.mxu0 0.0
        %4165 = vmatmul.mubr.f32.gmra.mrb[0].mxu0 %v3982
        %v4166 = vpop.f32.mrb[0].mxu0
        %v4167 = vadd.f32 0.0, %v4166
        %v4168 = vpop.f32.mrb[0].mxu0
        %4169 = vmatprep.mubr.f32.mxu0 0.0
        %4170 = vmatmul.mubr.f32.gmra.mrb[0].mxu0 %v3983
        %v4171 = vpop.f32.mrb[0].mxu0
        %v4172 = vadd.f32 0.0, %v4171
        %v4173 = vpop.f32.mrb[0].mxu0
        %4174 = vmatprep.mubr.f32.mxu0 0.0
        %4175 = vmatmul.mubr.f32.gmra.mrb[0].mxu0 %v3984
        %v4176 = vpop.f32.mrb[0].mxu0
        %v4177 = vadd.f32 0.0, %v4176
        %v4178 = vpop.f32.mrb[0].mxu0
        %4179 = vmatprep.mubr.f32.mxu0 0.0
        %4180 = vmatmul.mubr.f32.gmra.mrb[0].mxu0 %v3985
        %v4181 = vpop.f32.mrb[0].mxu0
        %v4182 = vadd.f32 0.0, %v4181
        %v4183 = vpop.f32.mrb[0].mxu0
        %4184 = vmatprep.mubr.f32.mxu0 0.0
        %4185 = vmatmul.mubr.f32.gmra.mrb[0].mxu0 %v3986
        %v4186 = vpop.f32.mrb[0].mxu0
        %v4187 = vadd.f32 0.0, %v4186
        %v4188 = vpop.f32.mrb[0].mxu0
        %4189 = vmatprep.mubr.f32.mxu0 0.0
        %4190 = vmatmul.mubr.f32.gmra.mrb[0].mxu0 %v3987
        %v4191 = vpop.f32.mrb[0].mxu0
        %v4192 = vadd.f32 0.0, %v4191
        %v4193 = vpop.f32.mrb[0].mxu0
        %4194 = vdwg.mxu0
        %v4195 = vld [vmem:[#allocation4] sm:$0xff]
        %v4196 = vld [vmem:[#allocation4 + $0x8] sm:$0xff]
        %v4197 = vld [vmem:[#allocation4 + $0x10] sm:$0xff]
        %v4198 = vld [vmem:[#allocation4 + $0x18] sm:$0xff]
        %v4199 = vld [vmem:[#allocation4 + $0x20] sm:$0xff]
        %v4200 = vld [vmem:[#allocation4 + $0x28] sm:$0xff]
        %v4201 = vld [vmem:[#allocation4 + $0x30] sm:$0xff]
        %v4202 = vld [vmem:[#allocation4 + $0x38] sm:$0xff]
        %v4203 = vld [vmem:[#allocation4 + $0x40] sm:$0xff]
        %v4204 = vld [vmem:[#allocation4 + $0x48] sm:$0xff]
        %v4205 = vld [vmem:[#allocation4 + $0x50] sm:$0xff]
        %v4206 = vld [vmem:[#allocation4 + $0x58] sm:$0xff]
        %v4207 = vld [vmem:[#allocation4 + $0x60] sm:$0xff]
        %v4208 = vld [vmem:[#allocation4 + $0x68] sm:$0xff]
        %v4209 = vld [vmem:[#allocation4 + $0x70] sm:$0xff]
        %v4210 = vld [vmem:[#allocation4 + $0x78] sm:$0xff]
        %v4211 = vld [vmem:[#allocation4 + $0x80] sm:$0xff]
        %v4212 = vld [vmem:[#allocation4 + $0x88] sm:$0xff]
        %v4213 = vld [vmem:[#allocation4 + $0x90] sm:$0xff]
        %v4214 = vld [vmem:[#allocation4 + $0x98] sm:$0xff]
        %v4215 = vld [vmem:[#allocation4 + $0xa0] sm:$0xff]
        %v4216 = vld [vmem:[#allocation4 + $0xa8] sm:$0xff]
        %v4217 = vld [vmem:[#allocation4 + $0xb0] sm:$0xff]
        %v4218 = vld [vmem:[#allocation4 + $0xb8] sm:$0xff]
        %v4219 = vld [vmem:[#allocation4 + $0xc0] sm:$0xf]
        %v4220 = vadd.f32 %v4195, %v4072
        %v4221 = vadd.f32 %v4196, %v4077
        %v4222 = vadd.f32 %v4197, %v4082
        %v4223 = vadd.f32 %v4198, %v4087
        %v4224 = vadd.f32 %v4199, %v4092
        %v4225 = vadd.f32 %v4200, %v4097
        %v4226 = vadd.f32 %v4201, %v4102
        %v4227 = vadd.f32 %v4202, %v4107
        %v4228 = vadd.f32 %v4203, %v4112
        %v4229 = vadd.f32 %v4204, %v4117
        %v4230 = vadd.f32 %v4205, %v4122
        %v4231 = vadd.f32 %v4206, %v4127
        %v4232 = vadd.f32 %v4207, %v4132
        %v4233 = vadd.f32 %v4208, %v4137
        %v4234 = vadd.f32 %v4209, %v4142
        %v4235 = vadd.f32 %v4210, %v4147
        %v4236 = vadd.f32 %v4211, %v4152
        %v4237 = vadd.f32 %v4212, %v4157
        %v4238 = vadd.f32 %v4213, %v4162
        %v4239 = vadd.f32 %v4214, %v4167
        %v4240 = vadd.f32 %v4215, %v4172
        %v4241 = vadd.f32 %v4216, %v4177
        %v4242 = vadd.f32 %v4217, %v4182
        %v4243 = vadd.f32 %v4218, %v4187
        %v4244 = vadd.f32 %v4219, %v4192
        %4245 = vst [vmem:[#allocation4] sm:$0xff] %v4220
        %4246 = vst [vmem:[#allocation4 + $0x8] sm:$0xff] %v4221
        %4247 = vst [vmem:[#allocation4 + $0x10] sm:$0xff] %v4222
        %4248 = vst [vmem:[#allocation4 + $0x18] sm:$0xff] %v4223
        %4249 = vst [vmem:[#allocation4 + $0x20] sm:$0xff] %v4224
        %4250 = vst [vmem:[#allocation4 + $0x28] sm:$0xff] %v4225
        %4251 = vst [vmem:[#allocation4 + $0x30] sm:$0xff] %v4226
        %4252 = vst [vmem:[#allocation4 + $0x38] sm:$0xff] %v4227
        %4253 = vst [vmem:[#allocation4 + $0x40] sm:$0xff] %v4228
        %4254 = vst [vmem:[#allocation4 + $0x48] sm:$0xff] %v4229
        %4255 = vst [vmem:[#allocation4 + $0x50] sm:$0xff] %v4230
        %4256 = vst [vmem:[#allocation4 + $0x58] sm:$0xff] %v4231
        %4257 = vst [vmem:[#allocation4 + $0x60] sm:$0xff] %v4232
        %4258 = vst [vmem:[#allocation4 + $0x68] sm:$0xff] %v4233
        %4259 = vst [vmem:[#allocation4 + $0x70] sm:$0xff] %v4234
        %4260 = vst [vmem:[#allocation4 + $0x78] sm:$0xff] %v4235
        %4261 = vst [vmem:[#allocation4 + $0x80] sm:$0xff] %v4236
        %4262 = vst [vmem:[#allocation4 + $0x88] sm:$0xff] %v4237
        %4263 = vst [vmem:[#allocation4 + $0x90] sm:$0xff] %v4238
        %4264 = vst [vmem:[#allocation4 + $0x98] sm:$0xff] %v4239
        %4265 = vst [vmem:[#allocation4 + $0xa0] sm:$0xff] %v4240
        %4266 = vst [vmem:[#allocation4 + $0xa8] sm:$0xff] %v4241
        %4267 = vst [vmem:[#allocation4 + $0xb0] sm:$0xff] %v4242
        %4268 = vst [vmem:[#allocation4 + $0xb8] sm:$0xff] %v4243
        %4269 = vst [vmem:[#allocation4 + $0xc0] sm:$0xf] %v4244
        %v4270 = vld [vmem:[#allocation3 + $0x1e] sm:$0xff]
        %v4271 = vld [vmem:[#allocation3 + $0x26] sm:$0xff]
        %v4272 = vld [vmem:[#allocation3 + $0x2e] sm:$0xff]
        %v4273 = vld [vmem:[#allocation3 + $0x36] sm:$0xff]
        %v4274 = vld [vmem:[#allocation3 + $0x3e] sm:$0xff]
        %v4275 = vld [vmem:[#allocation3 + $0x46] sm:$0xff]
        %v4276 = vld [vmem:[#allocation3 + $0x4e] sm:$0xff]
        %v4277 = vld [vmem:[#allocation3 + $0x56] sm:$0xff]
        %v4278 = vld [vmem:[#allocation3 + $0x5e] sm:$0xff]
        %v4279 = vld [vmem:[#allocation3 + $0x66] sm:$0xff]
        %v4280 = vld [vmem:[#allocation3 + $0x6e] sm:$0xff]
        %v4281 = vld [vmem:[#allocation3 + $0x76] sm:$0xff]
        %v4282 = vld [vmem:[#allocation3 + $0x7e] sm:$0xff]
        %v4283 = vld [vmem:[#allocation3 + $0x86] sm:$0xff]
        %v4284 = vld [vmem:[#allocation3 + $0x8e] sm:$0xff]
        %v4285 = vld [vmem:[#allocation3 + $0x96] sm:$0xff]
        %v4286 = vld [vmem:[#allocation3 + $0x9e] sm:$0xff]
        %v4287 = vld [vmem:[#allocation3 + $0xa6] sm:$0xff]
        %v4288 = vld [vmem:[#allocation3 + $0xae] sm:$0xff]
        %v4289 = vld [vmem:[#allocation3 + $0xb6] sm:$0xff]
        %v4290 = vld [vmem:[#allocation3 + $0xbe] sm:$0xff]
        %v4291 = vld [vmem:[#allocation3 + $0xc6] sm:$0xff]
        %v4292 = vld [vmem:[#allocation3 + $0xce] sm:$0xff]
        %v4293 = vld [vmem:[#allocation3 + $0xd6] sm:$0xff]
        %v4294 = vld [vmem:[#allocation3 + $0xde] sm:$0xf]
        %s4295 = scalar_lea.vmem %s3, 1024
        %v4296 = vld [vmem:[%s4295] sm:$0xff]
        %v4297 = vld [vmem:[%s4295 + $0x8] sm:$0xff]
        %v4298 = vld [vmem:[%s4295 + $0x10] sm:$0xff]
        %v4299 = vld [vmem:[%s4295 + $0x18] sm:$0xff]
        %v4300 = vld [vmem:[%s4295 + $0x20] sm:$0xff]
        %v4301 = vld [vmem:[%s4295 + $0x28] sm:$0xff]
        %v4302 = vld [vmem:[%s4295 + $0x30] sm:$0xff]
        %v4303 = vld [vmem:[%s4295 + $0x38] sm:$0xff]
        %v4304 = vld [vmem:[%s4295 + $0x40] sm:$0xff]
        %v4305 = vld [vmem:[%s4295 + $0x48] sm:$0xff]
        %v4306 = vld [vmem:[%s4295 + $0x50] sm:$0xff]
        %v4307 = vld [vmem:[%s4295 + $0x58] sm:$0xff]
        %v4308 = vld [vmem:[%s4295 + $0x60] sm:$0xff]
        %v4309 = vld [vmem:[%s4295 + $0x68] sm:$0xff]
        %v4310 = vld [vmem:[%s4295 + $0x70] sm:$0xff]
        %v4311 = vld [vmem:[%s4295 + $0x78] sm:$0xff]
        %4312 = vmatprep.subr.mxu0 0.0
        %4313 = vmatpush1.msra.mxu0 %v4296
        %4314 = vmatprep.subr.mxu0 0.0
        %4315 = vmatpush1.msra.mxu0 %v4297
        %4316 = vmatprep.subr.mxu0 0.0
        %4317 = vmatpush1.msra.mxu0 %v4298
        %4318 = vmatprep.subr.mxu0 0.0
        %4319 = vmatpush1.msra.mxu0 %v4299
        %4320 = vmatprep.subr.mxu0 0.0
        %4321 = vmatpush1.msra.mxu0 %v4300
        %4322 = vmatprep.subr.mxu0 0.0
        %4323 = vmatpush1.msra.mxu0 %v4301
        %4324 = vmatprep.subr.mxu0 0.0
        %4325 = vmatpush1.msra.mxu0 %v4302
        %4326 = vmatprep.subr.mxu0 0.0
        %4327 = vmatpush1.msra.mxu0 %v4303
        %4328 = vmatprep.subr.mxu0 0.0
        %4329 = vmatpush1.msra.mxu0 %v4304
        %4330 = vmatprep.subr.mxu0 0.0
        %4331 = vmatpush1.msra.mxu0 %v4305
        %4332 = vmatprep.subr.mxu0 0.0
        %4333 = vmatpush1.msra.mxu0 %v4306
        %4334 = vmatprep.subr.mxu0 0.0
        %4335 = vmatpush1.msra.mxu0 %v4307
        %4336 = vmatprep.subr.mxu0 0.0
        %4337 = vmatpush1.msra.mxu0 %v4308
        %4338 = vmatprep.subr.mxu0 0.0
        %4339 = vmatpush1.msra.mxu0 %v4309
        %4340 = vmatprep.subr.mxu0 0.0
        %4341 = vmatpush1.msra.mxu0 %v4310
        %4342 = vmatprep.subr.mxu0 0.0
        %4343 = vmatpush1.msra.mxu0 %v4311
        %4344 = vmatprep.subr.mxu0 0.0
        %4345 = vmatpush1.msra.mxu0 0.0
        %4346 = vmatprep.subr.mxu0 0.0
        %4347 = vmatpush1.msra.mxu0 0.0
        %4348 = vmatprep.subr.mxu0 0.0
        %4349 = vmatpush1.msra.mxu0 0.0
        %4350 = vmatprep.subr.mxu0 0.0
        %4351 = vmatpush1.msra.mxu0 0.0
        %4352 = vmatprep.subr.mxu0 0.0
        %4353 = vmatpush1.msra.mxu0 0.0
        %4354 = vmatprep.subr.mxu0 0.0
        %4355 = vmatpush1.msra.mxu0 0.0
        %4356 = vmatprep.subr.mxu0 0.0
        %4357 = vmatpush1.msra.mxu0 0.0
        %4358 = vmatprep.subr.mxu0 0.0
        %4359 = vmatpush1.msra.mxu0 0.0
        %4360 = vmatprep.subr.mxu0 0.0
        %4361 = vmatpush1.msra.mxu0 0.0
        %4362 = vmatprep.subr.mxu0 0.0
        %4363 = vmatpush1.msra.mxu0 0.0
        %4364 = vmatprep.subr.mxu0 0.0
        %4365 = vmatpush1.msra.mxu0 0.0
        %4366 = vmatprep.subr.mxu0 0.0
        %4367 = vmatpush1.msra.mxu0 0.0
        %4368 = vmatprep.subr.mxu0 0.0
        %4369 = vmatpush1.msra.mxu0 0.0
        %4370 = vmatprep.subr.mxu0 0.0
        %4371 = vmatpush1.msra.mxu0 0.0
        %4372 = vmatprep.subr.mxu0 0.0
        %4373 = vmatpush1.msra.mxu0 0.0
        %4374 = vmatprep.subr.mxu0 0.0
        %4375 = vmatpush1.msra.mxu0 0.0
        %4376 = vmatprep.mubr.f32.mxu0 0.0
        %4377 = vmatmul.mubr.f32.gmra.mrb[0].mxu0 %v4270
        %v4378 = vpop.f32.mrb[0].mxu0
        %v4379 = vadd.f32 0.0, %v4378
        %v4380 = vpop.f32.mrb[0].mxu0
        %4381 = vmatprep.mubr.f32.mxu0 0.0
        %4382 = vmatmul.mubr.f32.gmra.mrb[0].mxu0 %v4271
        %v4383 = vpop.f32.mrb[0].mxu0
        %v4384 = vadd.f32 0.0, %v4383
        %v4385 = vpop.f32.mrb[0].mxu0
        %4386 = vmatprep.mubr.f32.mxu0 0.0
        %4387 = vmatmul.mubr.f32.gmra.mrb[0].mxu0 %v4272
        %v4388 = vpop.f32.mrb[0].mxu0
        %v4389 = vadd.f32 0.0, %v4388
        %v4390 = vpop.f32.mrb[0].mxu0
        %4391 = vmatprep.mubr.f32.mxu0 0.0
        %4392 = vmatmul.mubr.f32.gmra.mrb[0].mxu0 %v4273
        %v4393 = vpop.f32.mrb[0].mxu0
        %v4394 = vadd.f32 0.0, %v4393
        %v4395 = vpop.f32.mrb[0].mxu0
        %4396 = vmatprep.mubr.f32.mxu0 0.0
        %4397 = vmatmul.mubr.f32.gmra.mrb[0].mxu0 %v4274
        %v4398 = vpop.f32.mrb[0].mxu0
        %v4399 = vadd.f32 0.0, %v4398
        %v4400 = vpop.f32.mrb[0].mxu0
        %4401 = vmatprep.mubr.f32.mxu0 0.0
        %4402 = vmatmul.mubr.f32.gmra.mrb[0].mxu0 %v4275
        %v4403 = vpop.f32.mrb[0].mxu0
        %v4404 = vadd.f32 0.0, %v4403
        %v4405 = vpop.f32.mrb[0].mxu0
        %4406 = vmatprep.mubr.f32.mxu0 0.0
        %4407 = vmatmul.mubr.f32.gmra.mrb[0].mxu0 %v4276
        %v4408 = vpop.f32.mrb[0].mxu0
        %v4409 = vadd.f32 0.0, %v4408
        %v4410 = vpop.f32.mrb[0].mxu0
        %4411 = vmatprep.mubr.f32.mxu0 0.0
        %4412 = vmatmul.mubr.f32.gmra.mrb[0].mxu0 %v4277
        %v4413 = vpop.f32.mrb[0].mxu0
        %v4414 = vadd.f32 0.0, %v4413
        %v4415 = vpop.f32.mrb[0].mxu0
        %4416 = vmatprep.mubr.f32.mxu0 0.0
        %4417 = vmatmul.mubr.f32.gmra.mrb[0].mxu0 %v4278
        %v4418 = vpop.f32.mrb[0].mxu0
        %v4419 = vadd.f32 0.0, %v4418
        %v4420 = vpop.f32.mrb[0].mxu0
        %4421 = vmatprep.mubr.f32.mxu0 0.0
        %4422 = vmatmul.mubr.f32.gmra.mrb[0].mxu0 %v4279
        %v4423 = vpop.f32.mrb[0].mxu0
        %v4424 = vadd.f32 0.0, %v4423
        %v4425 = vpop.f32.mrb[0].mxu0
        %4426 = vmatprep.mubr.f32.mxu0 0.0
        %4427 = vmatmul.mubr.f32.gmra.mrb[0].mxu0 %v4280
        %v4428 = vpop.f32.mrb[0].mxu0
        %v4429 = vadd.f32 0.0, %v4428
        %v4430 = vpop.f32.mrb[0].mxu0
        %4431 = vmatprep.mubr.f32.mxu0 0.0
        %4432 = vmatmul.mubr.f32.gmra.mrb[0].mxu0 %v4281
        %v4433 = vpop.f32.mrb[0].mxu0
        %v4434 = vadd.f32 0.0, %v4433
        %v4435 = vpop.f32.mrb[0].mxu0
        %4436 = vmatprep.mubr.f32.mxu0 0.0
        %4437 = vmatmul.mubr.f32.gmra.mrb[0].mxu0 %v4282
        %v4438 = vpop.f32.mrb[0].mxu0
        %v4439 = vadd.f32 0.0, %v4438
        %v4440 = vpop.f32.mrb[0].mxu0
        %4441 = vmatprep.mubr.f32.mxu0 0.0
        %4442 = vmatmul.mubr.f32.gmra.mrb[0].mxu0 %v4283
        %v4443 = vpop.f32.mrb[0].mxu0
        %v4444 = vadd.f32 0.0, %v4443
        %v4445 = vpop.f32.mrb[0].mxu0
        %4446 = vmatprep.mubr.f32.mxu0 0.0
        %4447 = vmatmul.mubr.f32.gmra.mrb[0].mxu0 %v4284
        %v4448 = vpop.f32.mrb[0].mxu0
        %v4449 = vadd.f32 0.0, %v4448
        %v4450 = vpop.f32.mrb[0].mxu0
        %4451 = vmatprep.mubr.f32.mxu0 0.0
        %4452 = vmatmul.mubr.f32.gmra.mrb[0].mxu0 %v4285
        %v4453 = vpop.f32.mrb[0].mxu0
        %v4454 = vadd.f32 0.0, %v4453
        %v4455 = vpop.f32.mrb[0].mxu0
        %4456 = vmatprep.mubr.f32.mxu0 0.0
        %4457 = vmatmul.mubr.f32.gmra.mrb[0].mxu0 %v4286
        %v4458 = vpop.f32.mrb[0].mxu0
        %v4459 = vadd.f32 0.0, %v4458
        %v4460 = vpop.f32.mrb[0].mxu0
        %4461 = vmatprep.mubr.f32.mxu0 0.0
        %4462 = vmatmul.mubr.f32.gmra.mrb[0].mxu0 %v4287
        %v4463 = vpop.f32.mrb[0].mxu0
        %v4464 = vadd.f32 0.0, %v4463
        %v4465 = vpop.f32.mrb[0].mxu0
        %4466 = vmatprep.mubr.f32.mxu0 0.0
        %4467 = vmatmul.mubr.f32.gmra.mrb[0].mxu0 %v4288
        %v4468 = vpop.f32.mrb[0].mxu0
        %v4469 = vadd.f32 0.0, %v4468
        %v4470 = vpop.f32.mrb[0].mxu0
        %4471 = vmatprep.mubr.f32.mxu0 0.0
        %4472 = vmatmul.mubr.f32.gmra.mrb[0].mxu0 %v4289
        %v4473 = vpop.f32.mrb[0].mxu0
        %v4474 = vadd.f32 0.0, %v4473
        %v4475 = vpop.f32.mrb[0].mxu0
        %4476 = vmatprep.mubr.f32.mxu0 0.0
        %4477 = vmatmul.mubr.f32.gmra.mrb[0].mxu0 %v4290
        %v4478 = vpop.f32.mrb[0].mxu0
        %v4479 = vadd.f32 0.0, %v4478
        %v4480 = vpop.f32.mrb[0].mxu0
        %4481 = vmatprep.mubr.f32.mxu0 0.0
        %4482 = vmatmul.mubr.f32.gmra.mrb[0].mxu0 %v4291
        %v4483 = vpop.f32.mrb[0].mxu0
        %v4484 = vadd.f32 0.0, %v4483
        %v4485 = vpop.f32.mrb[0].mxu0
        %4486 = vmatprep.mubr.f32.mxu0 0.0
        %4487 = vmatmul.mubr.f32.gmra.mrb[0].mxu0 %v4292
        %v4488 = vpop.f32.mrb[0].mxu0
        %v4489 = vadd.f32 0.0, %v4488
        %v4490 = vpop.f32.mrb[0].mxu0
        %4491 = vmatprep.mubr.f32.mxu0 0.0
        %4492 = vmatmul.mubr.f32.gmra.mrb[0].mxu0 %v4293
        %v4493 = vpop.f32.mrb[0].mxu0
        %v4494 = vadd.f32 0.0, %v4493
        %v4495 = vpop.f32.mrb[0].mxu0
        %4496 = vmatprep.mubr.f32.mxu0 0.0
        %4497 = vmatmul.mubr.f32.gmra.mrb[0].mxu0 %v4294
        %v4498 = vpop.f32.mrb[0].mxu0
        %v4499 = vadd.f32 0.0, %v4498
        %v4500 = vpop.f32.mrb[0].mxu0
        %4501 = vdwg.mxu0
        %v4502 = vld [vmem:[#allocation4] sm:$0xff]
        %v4503 = vld [vmem:[#allocation4 + $0x8] sm:$0xff]
        %v4504 = vld [vmem:[#allocation4 + $0x10] sm:$0xff]
        %v4505 = vld [vmem:[#allocation4 + $0x18] sm:$0xff]
        %v4506 = vld [vmem:[#allocation4 + $0x20] sm:$0xff]
        %v4507 = vld [vmem:[#allocation4 + $0x28] sm:$0xff]
        %v4508 = vld [vmem:[#allocation4 + $0x30] sm:$0xff]
        %v4509 = vld [vmem:[#allocation4 + $0x38] sm:$0xff]
        %v4510 = vld [vmem:[#allocation4 + $0x40] sm:$0xff]
        %v4511 = vld [vmem:[#allocation4 + $0x48] sm:$0xff]
        %v4512 = vld [vmem:[#allocation4 + $0x50] sm:$0xff]
        %v4513 = vld [vmem:[#allocation4 + $0x58] sm:$0xff]
        %v4514 = vld [vmem:[#allocation4 + $0x60] sm:$0xff]
        %v4515 = vld [vmem:[#allocation4 + $0x68] sm:$0xff]
        %v4516 = vld [vmem:[#allocation4 + $0x70] sm:$0xff]
        %v4517 = vld [vmem:[#allocation4 + $0x78] sm:$0xff]
        %v4518 = vld [vmem:[#allocation4 + $0x80] sm:$0xff]
        %v4519 = vld [vmem:[#allocation4 + $0x88] sm:$0xff]
        %v4520 = vld [vmem:[#allocation4 + $0x90] sm:$0xff]
        %v4521 = vld [vmem:[#allocation4 + $0x98] sm:$0xff]
        %v4522 = vld [vmem:[#allocation4 + $0xa0] sm:$0xff]
        %v4523 = vld [vmem:[#allocation4 + $0xa8] sm:$0xff]
        %v4524 = vld [vmem:[#allocation4 + $0xb0] sm:$0xff]
        %v4525 = vld [vmem:[#allocation4 + $0xb8] sm:$0xff]
        %v4526 = vld [vmem:[#allocation4 + $0xc0] sm:$0xf]
        %v4527 = vadd.f32 %v4502, %v4379
        %v4528 = vadd.f32 %v4503, %v4384
        %v4529 = vadd.f32 %v4504, %v4389
        %v4530 = vadd.f32 %v4505, %v4394
        %v4531 = vadd.f32 %v4506, %v4399
        %v4532 = vadd.f32 %v4507, %v4404
        %v4533 = vadd.f32 %v4508, %v4409
        %v4534 = vadd.f32 %v4509, %v4414
        %v4535 = vadd.f32 %v4510, %v4419
        %v4536 = vadd.f32 %v4511, %v4424
        %v4537 = vadd.f32 %v4512, %v4429
        %v4538 = vadd.f32 %v4513, %v4434
        %v4539 = vadd.f32 %v4514, %v4439
        %v4540 = vadd.f32 %v4515, %v4444
        %v4541 = vadd.f32 %v4516, %v4449
        %v4542 = vadd.f32 %v4517, %v4454
        %v4543 = vadd.f32 %v4518, %v4459
        %v4544 = vadd.f32 %v4519, %v4464
        %v4545 = vadd.f32 %v4520, %v4469
        %v4546 = vadd.f32 %v4521, %v4474
        %v4547 = vadd.f32 %v4522, %v4479
        %v4548 = vadd.f32 %v4523, %v4484
        %v4549 = vadd.f32 %v4524, %v4489
        %v4550 = vadd.f32 %v4525, %v4494
        %v4551 = vadd.f32 %v4526, %v4499
        %4552 = vst [vmem:[#allocation4] sm:$0xff] %v4527
        %4553 = vst [vmem:[#allocation4 + $0x8] sm:$0xff] %v4528
        %4554 = vst [vmem:[#allocation4 + $0x10] sm:$0xff] %v4529
        %4555 = vst [vmem:[#allocation4 + $0x18] sm:$0xff] %v4530
        %4556 = vst [vmem:[#allocation4 + $0x20] sm:$0xff] %v4531
        %4557 = vst [vmem:[#allocation4 + $0x28] sm:$0xff] %v4532
        %4558 = vst [vmem:[#allocation4 + $0x30] sm:$0xff] %v4533
        %4559 = vst [vmem:[#allocation4 + $0x38] sm:$0xff] %v4534
        %4560 = vst [vmem:[#allocation4 + $0x40] sm:$0xff] %v4535
        %4561 = vst [vmem:[#allocation4 + $0x48] sm:$0xff] %v4536
        %4562 = vst [vmem:[#allocation4 + $0x50] sm:$0xff] %v4537
        %4563 = vst [vmem:[#allocation4 + $0x58] sm:$0xff] %v4538
        %4564 = vst [vmem:[#allocation4 + $0x60] sm:$0xff] %v4539
        %4565 = vst [vmem:[#allocation4 + $0x68] sm:$0xff] %v4540
        %4566 = vst [vmem:[#allocation4 + $0x70] sm:$0xff] %v4541
        %4567 = vst [vmem:[#allocation4 + $0x78] sm:$0xff] %v4542
        %4568 = vst [vmem:[#allocation4 + $0x80] sm:$0xff] %v4543
        %4569 = vst [vmem:[#allocation4 + $0x88] sm:$0xff] %v4544
        %4570 = vst [vmem:[#allocation4 + $0x90] sm:$0xff] %v4545
        %4571 = vst [vmem:[#allocation4 + $0x98] sm:$0xff] %v4546
        %4572 = vst [vmem:[#allocation4 + $0xa0] sm:$0xff] %v4547
        %4573 = vst [vmem:[#allocation4 + $0xa8] sm:$0xff] %v4548
        %4574 = vst [vmem:[#allocation4 + $0xb0] sm:$0xff] %v4549
        %4575 = vst [vmem:[#allocation4 + $0xb8] sm:$0xff] %v4550
        %4576 = vst [vmem:[#allocation4 + $0xc0] sm:$0xf] %v4551
        %v4577 = vld [vmem:[#allocation4] sm:$0xff]
        %v4578 = vld [vmem:[#allocation4 + $0x8] sm:$0xff]
        %v4579 = vld [vmem:[#allocation4 + $0x10] sm:$0xff]
        %v4580 = vld [vmem:[#allocation4 + $0x18] sm:$0xff]
        %v4581 = vld [vmem:[#allocation4 + $0x20] sm:$0xff]
        %v4582 = vld [vmem:[#allocation4 + $0x28] sm:$0xff]
        %v4583 = vld [vmem:[#allocation4 + $0x30] sm:$0xff]
        %v4584 = vld [vmem:[#allocation4 + $0x38] sm:$0xff]
        %v4585 = vld [vmem:[#allocation4 + $0x40] sm:$0xff]
        %v4586 = vld [vmem:[#allocation4 + $0x48] sm:$0xff]
        %v4587 = vld [vmem:[#allocation4 + $0x50] sm:$0xff]
        %v4588 = vld [vmem:[#allocation4 + $0x58] sm:$0xff]
        %v4589 = vld [vmem:[#allocation4 + $0x60] sm:$0xff]
        %v4590 = vld [vmem:[#allocation4 + $0x68] sm:$0xff]
        %v4591 = vld [vmem:[#allocation4 + $0x70] sm:$0xff]
        %v4592 = vld [vmem:[#allocation4 + $0x78] sm:$0xff]
        %v4593 = vld [vmem:[#allocation4 + $0x80] sm:$0xff]
        %v4594 = vld [vmem:[#allocation4 + $0x88] sm:$0xff]
        %v4595 = vld [vmem:[#allocation4 + $0x90] sm:$0xff]
        %v4596 = vld [vmem:[#allocation4 + $0x98] sm:$0xff]
        %v4597 = vld [vmem:[#allocation4 + $0xa0] sm:$0xff]
        %v4598 = vld [vmem:[#allocation4 + $0xa8] sm:$0xff]
        %v4599 = vld [vmem:[#allocation4 + $0xb0] sm:$0xff]
        %v4600 = vld [vmem:[#allocation4 + $0xb8] sm:$0xff]
        %v4601 = vld [vmem:[#allocation4 + $0xc0] sm:$0xf]
        %v4602 = vld [vmem:[%s4] sm:$0x1]
        %v4604 = vlaneseq
        %v4605 = vshrl.u32 %v4604, 7
        %v4606 = vsub.s32 0, %v4605
        %v4607 = vrot.slane %v4602, %v4606
        %v4609 = vadd.f32 %v4577, %v4607
        %v4610 = vadd.f32 %v4578, %v4607
        %v4611 = vadd.f32 %v4579, %v4607
        %v4612 = vadd.f32 %v4580, %v4607
        %v4613 = vadd.f32 %v4581, %v4607
        %v4614 = vadd.f32 %v4582, %v4607
        %v4615 = vadd.f32 %v4583, %v4607
        %v4616 = vadd.f32 %v4584, %v4607
        %v4617 = vadd.f32 %v4585, %v4607
        %v4618 = vadd.f32 %v4586, %v4607
        %v4619 = vadd.f32 %v4587, %v4607
        %v4620 = vadd.f32 %v4588, %v4607
        %v4621 = vadd.f32 %v4589, %v4607
        %v4622 = vadd.f32 %v4590, %v4607
        %v4623 = vadd.f32 %v4591, %v4607
        %v4624 = vadd.f32 %v4592, %v4607
        %v4625 = vadd.f32 %v4593, %v4607
        %v4626 = vadd.f32 %v4594, %v4607
        %v4627 = vadd.f32 %v4595, %v4607
        %v4628 = vadd.f32 %v4596, %v4607
        %v4629 = vadd.f32 %v4597, %v4607
        %v4630 = vadd.f32 %v4598, %v4607
        %v4631 = vadd.f32 %v4599, %v4607
        %v4632 = vadd.f32 %v4600, %v4607
        %v4633 = vadd.f32 %v4601, %v4607
        %v4634 = vmax.f32 %v4609, 0.0
        %v4635 = vmax.f32 %v4610, 0.0
        %v4636 = vmax.f32 %v4611, 0.0
        %v4637 = vmax.f32 %v4612, 0.0
        %v4638 = vmax.f32 %v4613, 0.0
        %v4639 = vmax.f32 %v4614, 0.0
        %v4640 = vmax.f32 %v4615, 0.0
        %v4641 = vmax.f32 %v4616, 0.0
        %v4642 = vmax.f32 %v4617, 0.0
        %v4643 = vmax.f32 %v4618, 0.0
        %v4644 = vmax.f32 %v4619, 0.0
        %v4645 = vmax.f32 %v4620, 0.0
        %v4646 = vmax.f32 %v4621, 0.0
        %v4647 = vmax.f32 %v4622, 0.0
        %v4648 = vmax.f32 %v4623, 0.0
        %v4649 = vmax.f32 %v4624, 0.0
        %v4650 = vmax.f32 %v4625, 0.0
        %v4651 = vmax.f32 %v4626, 0.0
        %v4652 = vmax.f32 %v4627, 0.0
        %v4653 = vmax.f32 %v4628, 0.0
        %v4654 = vmax.f32 %v4629, 0.0
        %v4655 = vmax.f32 %v4630, 0.0
        %v4656 = vmax.f32 %v4631, 0.0
        %v4657 = vmax.f32 %v4632, 0.0
        %v4658 = vmax.f32 %v4633, 0.0
        %4659 = vst [vmem:[#allocation4] sm:$0xff] %v4634
        %4660 = vst [vmem:[#allocation4 + $0x8] sm:$0xff] %v4635
        %4661 = vst [vmem:[#allocation4 + $0x10] sm:$0xff] %v4636
        %4662 = vst [vmem:[#allocation4 + $0x18] sm:$0xff] %v4637
        %4663 = vst [vmem:[#allocation4 + $0x20] sm:$0xff] %v4638
        %4664 = vst [vmem:[#allocation4 + $0x28] sm:$0xff] %v4639
        %4665 = vst [vmem:[#allocation4 + $0x30] sm:$0xff] %v4640
        %4666 = vst [vmem:[#allocation4 + $0x38] sm:$0xff] %v4641
        %4667 = vst [vmem:[#allocation4 + $0x40] sm:$0xff] %v4642
        %4668 = vst [vmem:[#allocation4 + $0x48] sm:$0xff] %v4643
        %4669 = vst [vmem:[#allocation4 + $0x50] sm:$0xff] %v4644
        %4670 = vst [vmem:[#allocation4 + $0x58] sm:$0xff] %v4645
        %4671 = vst [vmem:[#allocation4 + $0x60] sm:$0xff] %v4646
        %4672 = vst [vmem:[#allocation4 + $0x68] sm:$0xff] %v4647
        %4673 = vst [vmem:[#allocation4 + $0x70] sm:$0xff] %v4648
        %4674 = vst [vmem:[#allocation4 + $0x78] sm:$0xff] %v4649
        %4675 = vst [vmem:[#allocation4 + $0x80] sm:$0xff] %v4650
        %4676 = vst [vmem:[#allocation4 + $0x88] sm:$0xff] %v4651
        %4677 = vst [vmem:[#allocation4 + $0x90] sm:$0xff] %v4652
        %4678 = vst [vmem:[#allocation4 + $0x98] sm:$0xff] %v4653
        %4679 = vst [vmem:[#allocation4 + $0xa0] sm:$0xff] %v4654
        %4680 = vst [vmem:[#allocation4 + $0xa8] sm:$0xff] %v4655
        %4681 = vst [vmem:[#allocation4 + $0xb0] sm:$0xff] %v4656
        %4682 = vst [vmem:[#allocation4 + $0xb8] sm:$0xff] %v4657
        %4683 = vst [vmem:[#allocation4 + $0xc0] sm:$0xf] %v4658
        %4684 = vst [vmem:[#allocation5] sm:$0xff] 0.0
        %4685 = vst [vmem:[#allocation5 + $0x8] sm:$0xff] 0.0
        %4686 = vst [vmem:[#allocation5 + $0x10] sm:$0xff] 0.0
        %4687 = vst [vmem:[#allocation5 + $0x18] sm:$0xff] 0.0
        %4688 = vst [vmem:[#allocation5 + $0x20] sm:$0xff] 0.0
        %4689 = vst [vmem:[#allocation5 + $0x28] sm:$0xff] 0.0
        %4690 = vst [vmem:[#allocation5 + $0x30] sm:$0xff] 0.0
        %4691 = vst [vmem:[#allocation5 + $0x38] sm:$0xff] 0.0
        %4692 = vst [vmem:[#allocation5 + $0x40] sm:$0xff] 0.0
        %4693 = vst [vmem:[#allocation5 + $0x48] sm:$0xff] 0.0
        %4694 = vst [vmem:[#allocation5 + $0x50] sm:$0xff] 0.0
        %v4695 = vld [vmem:[#allocation4] ss:$2 sm:$0x3f]
        %s4696 = scalar_lea.vmem [#allocation4], 1
        %v4697 = vld [vmem:[%s4696] ss:$2 sm:$0x3f]
        %v4698 = vadd.f32 %v4695, %v4697
        %s4699 = scalar_lea.vmem [#allocation4], 14
        %v4700 = vld [vmem:[%s4699] ss:$2 sm:$0x3f]
        %v4701 = vadd.f32 %v4698, %v4700
        %s4702 = scalar_lea.vmem [#allocation4], 15
        %v4703 = vld [vmem:[%s4702] ss:$2 sm:$0x3f]
        %v4704 = vadd.f32 %v4701, %v4703
        %v4705 = vmul.f32 %v4704, 0.25
        %4706 = vst [vmem:[#allocation5 + $0x9] sm:$0x3f] %v4705
        %s4707 = scalar_lea.vmem [#allocation4], 28
        %v4708 = vld [vmem:[%s4707] ss:$2 sm:$0x3f]
        %s4709 = scalar_lea.vmem [#allocation4], 29
        %v4710 = vld [vmem:[%s4709] ss:$2 sm:$0x3f]
        %v4711 = vadd.f32 %v4708, %v4710
        %s4712 = scalar_lea.vmem [#allocation4], 42
        %v4713 = vld [vmem:[%s4712] ss:$2 sm:$0x3f]
        %v4714 = vadd.f32 %v4711, %v4713
        %s4715 = scalar_lea.vmem [#allocation4], 43
        %v4716 = vld [vmem:[%s4715] ss:$2 sm:$0x3f]
        %v4717 = vadd.f32 %v4714, %v4716
        %v4718 = vmul.f32 %v4717, 0.25
        %4719 = vst [vmem:[#allocation5 + $0x11] sm:$0x3f] %v4718
        %s4720 = scalar_lea.vmem [#allocation4], 56
        %v4721 = vld [vmem:[%s4720] ss:$2 sm:$0x3f]
        %s4722 = scalar_lea.vmem [#allocation4], 57
        %v4723 = vld [vmem:[%s4722] ss:$2 sm:$0x3f]
        %v4724 = vadd.f32 %v4721, %v4723
        %s4725 = scalar_lea.vmem [#allocation4], 70
        %v4726 = vld [vmem:[%s4725] ss:$2 sm:$0x3f]
        %v4727 = vadd.f32 %v4724, %v4726
        %s4728 = scalar_lea.vmem [#allocation4], 71
        %v4729 = vld [vmem:[%s4728] ss:$2 sm:$0x3f]
        %v4730 = vadd.f32 %v4727, %v4729
        %v4731 = vmul.f32 %v4730, 0.25
        %4732 = vst [vmem:[#allocation5 + $0x19] sm:$0x3f] %v4731
        %s4733 = scalar_lea.vmem [#allocation4], 84
        %v4734 = vld [vmem:[%s4733] ss:$2 sm:$0x3f]
        %s4735 = scalar_lea.vmem [#allocation4], 85
        %v4736 = vld [vmem:[%s4735] ss:$2 sm:$0x3f]
        %v4737 = vadd.f32 %v4734, %v4736
        %s4738 = scalar_lea.vmem [#allocation4], 98
        %v4739 = vld [vmem:[%s4738] ss:$2 sm:$0x3f]
        %v4740 = vadd.f32 %v4737, %v4739
        %s4741 = scalar_lea.vmem [#allocation4], 99
        %v4742 = vld [vmem:[%s4741] ss:$2 sm:$0x3f]
        %v4743 = vadd.f32 %v4740, %v4742
        %v4744 = vmul.f32 %v4743, 0.25
        %4745 = vst [vmem:[#allocation5 + $0x21] sm:$0x3f] %v4744
        %s4746 = scalar_lea.vmem [#allocation4], 112
        %v4747 = vld [vmem:[%s4746] ss:$2 sm:$0x3f]
        %s4748 = scalar_lea.vmem [#allocation4], 113
        %v4749 = vld [vmem:[%s4748] ss:$2 sm:$0x3f]
        %v4750 = vadd.f32 %v4747, %v4749
        %s4751 = scalar_lea.vmem [#allocation4], 126
        %v4752 = vld [vmem:[%s4751] ss:$2 sm:$0x3f]
        %v4753 = vadd.f32 %v4750, %v4752
        %s4754 = scalar_lea.vmem [#allocation4], 127
        %v4755 = vld [vmem:[%s4754] ss:$2 sm:$0x3f]
        %v4756 = vadd.f32 %v4753, %v4755
        %v4757 = vmul.f32 %v4756, 0.25
        %4758 = vst [vmem:[#allocation5 + $0x29] sm:$0x3f] %v4757
        %s4759 = scalar_lea.vmem [#allocation4], 140
        %v4760 = vld [vmem:[%s4759] ss:$2 sm:$0x3f]
        %s4761 = scalar_lea.vmem [#allocation4], 141
        %v4762 = vld [vmem:[%s4761] ss:$2 sm:$0x3f]
        %v4763 = vadd.f32 %v4760, %v4762
        %s4764 = scalar_lea.vmem [#allocation4], 154
        %v4765 = vld [vmem:[%s4764] ss:$2 sm:$0x3f]
        %v4766 = vadd.f32 %v4763, %v4765
        %s4767 = scalar_lea.vmem [#allocation4], 155
        %v4768 = vld [vmem:[%s4767] ss:$2 sm:$0x3f]
        %v4769 = vadd.f32 %v4766, %v4768
        %v4770 = vmul.f32 %v4769, 0.25
        %4771 = vst [vmem:[#allocation5 + $0x31] sm:$0x3f] %v4770
        %v4772 = vld [vmem:[#allocation5] sm:$0xff]
        %v4773 = vld [vmem:[#allocation5 + $0x8] sm:$0xff]
        %v4774 = vld [vmem:[#allocation5 + $0x10] sm:$0xff]
        %v4775 = vld [vmem:[#allocation5 + $0x18] sm:$0xff]
        %v4776 = vld [vmem:[#allocation5 + $0x20] sm:$0xff]
        %v4777 = vld [vmem:[#allocation5 + $0x28] sm:$0xff]
        %v4778 = vld [vmem:[#allocation5 + $0x30] sm:$0xff]
        %v4779 = vld [vmem:[#allocation5 + $0x38] sm:$0xff]
        %v4780 = vld [vmem:[%s5] sm:$0xff]
        %v4781 = vld [vmem:[%s5 + $0x8] sm:$0xff]
        %v4782 = vld [vmem:[%s5 + $0x10] sm:$0xff]
        %v4783 = vld [vmem:[%s5 + $0x18] sm:$0xff]
        %v4784 = vld [vmem:[%s5 + $0x20] sm:$0xff]
        %v4785 = vld [vmem:[%s5 + $0x28] sm:$0xff]
        %v4786 = vld [vmem:[%s5 + $0x30] sm:$0xff]
        %v4787 = vld [vmem:[%s5 + $0x38] sm:$0xff]
        %v4788 = vld [vmem:[%s5 + $0x40] sm:$0xff]
        %v4789 = vld [vmem:[%s5 + $0x48] sm:$0xff]
        %v4790 = vld [vmem:[%s5 + $0x50] sm:$0xff]
        %v4791 = vld [vmem:[%s5 + $0x58] sm:$0xff]
        %v4792 = vld [vmem:[%s5 + $0x60] sm:$0xff]
        %v4793 = vld [vmem:[%s5 + $0x68] sm:$0xff]
        %v4794 = vld [vmem:[%s5 + $0x70] sm:$0xff]
        %v4795 = vld [vmem:[%s5 + $0x78] sm:$0xff]
        %4796 = vmatprep.subr.mxu0 0.0
        %4797 = vmatpush1.msra.mxu0 %v4780
        %4798 = vmatprep.subr.mxu0 0.0
        %4799 = vmatpush1.msra.mxu0 %v4781
        %4800 = vmatprep.subr.mxu0 0.0
        %4801 = vmatpush1.msra.mxu0 %v4782
        %4802 = vmatprep.subr.mxu0 0.0
        %4803 = vmatpush1.msra.mxu0 %v4783
        %4804 = vmatprep.subr.mxu0 0.0
        %4805 = vmatpush1.msra.mxu0 %v4784
        %4806 = vmatprep.subr.mxu0 0.0
        %4807 = vmatpush1.msra.mxu0 %v4785
        %4808 = vmatprep.subr.mxu0 0.0
        %4809 = vmatpush1.msra.mxu0 %v4786
        %4810 = vmatprep.subr.mxu0 0.0
        %4811 = vmatpush1.msra.mxu0 %v4787
        %4812 = vmatprep.subr.mxu0 0.0
        %4813 = vmatpush1.msra.mxu0 %v4788
        %4814 = vmatprep.subr.mxu0 0.0
        %4815 = vmatpush1.msra.mxu0 %v4789
        %4816 = vmatprep.subr.mxu0 0.0
        %4817 = vmatpush1.msra.mxu0 %v4790
        %4818 = vmatprep.subr.mxu0 0.0
        %4819 = vmatpush1.msra.mxu0 %v4791
        %4820 = vmatprep.subr.mxu0 0.0
        %4821 = vmatpush1.msra.mxu0 %v4792
        %4822 = vmatprep.subr.mxu0 0.0
        %4823 = vmatpush1.msra.mxu0 %v4793
        %4824 = vmatprep.subr.mxu0 0.0
        %4825 = vmatpush1.msra.mxu0 %v4794
        %4826 = vmatprep.subr.mxu0 0.0
        %4827 = vmatpush1.msra.mxu0 %v4795
        %4828 = vmatprep.subr.mxu0 0.0
        %4829 = vmatpush1.msra.mxu0 0.0
        %4830 = vmatprep.subr.mxu0 0.0
        %4831 = vmatpush1.msra.mxu0 0.0
        %4832 = vmatprep.subr.mxu0 0.0
        %4833 = vmatpush1.msra.mxu0 0.0
        %4834 = vmatprep.subr.mxu0 0.0
        %4835 = vmatpush1.msra.mxu0 0.0
        %4836 = vmatprep.subr.mxu0 0.0
        %4837 = vmatpush1.msra.mxu0 0.0
        %4838 = vmatprep.subr.mxu0 0.0
        %4839 = vmatpush1.msra.mxu0 0.0
        %4840 = vmatprep.subr.mxu0 0.0
        %4841 = vmatpush1.msra.mxu0 0.0
        %4842 = vmatprep.subr.mxu0 0.0
        %4843 = vmatpush1.msra.mxu0 0.0
        %4844 = vmatprep.subr.mxu0 0.0
        %4845 = vmatpush1.msra.mxu0 0.0
        %4846 = vmatprep.subr.mxu0 0.0
        %4847 = vmatpush1.msra.mxu0 0.0
        %4848 = vmatprep.subr.mxu0 0.0
        %4849 = vmatpush1.msra.mxu0 0.0
        %4850 = vmatprep.subr.mxu0 0.0
        %4851 = vmatpush1.msra.mxu0 0.0
        %4852 = vmatprep.subr.mxu0 0.0
        %4853 = vmatpush1.msra.mxu0 0.0
        %4854 = vmatprep.subr.mxu0 0.0
        %4855 = vmatpush1.msra.mxu0 0.0
        %4856 = vmatprep.subr.mxu0 0.0
        %4857 = vmatpush1.msra.mxu0 0.0
        %4858 = vmatprep.subr.mxu0 0.0
        %4859 = vmatpush1.msra.mxu0 0.0
        %4860 = vmatprep.mubr.f32.mxu0 0.0
        %4861 = vmatmul.mubr.f32.gmra.mrb[0].mxu0 %v4772
        %v4862 = vpop.f32.mrb[0].mxu0
        %v4863 = vadd.f32 0.0, %v4862
        %v4864 = vpop.f32.mrb[0].mxu0
        %4865 = vmatprep.mubr.f32.mxu0 0.0
        %4866 = vmatmul.mubr.f32.gmra.mrb[0].mxu0 %v4773
        %v4867 = vpop.f32.mrb[0].mxu0
        %v4868 = vadd.f32 0.0, %v4867
        %v4869 = vpop.f32.mrb[0].mxu0
        %4870 = vmatprep.mubr.f32.mxu0 0.0
        %4871 = vmatmul.mubr.f32.gmra.mrb[0].mxu0 %v4774
        %v4872 = vpop.f32.mrb[0].mxu0
        %v4873 = vadd.f32 0.0, %v4872
        %v4874 = vpop.f32.mrb[0].mxu0
        %4875 = vmatprep.mubr.f32.mxu0 0.0
        %4876 = vmatmul.mubr.f32.gmra.mrb[0].mxu0 %v4775
        %v4877 = vpop.f32.mrb[0].mxu0
        %v4878 = vadd.f32 0.0, %v4877
        %v4879 = vpop.f32.mrb[0].mxu0
        %4880 = vmatprep.mubr.f32.mxu0 0.0
        %4881 = vmatmul.mubr.f32.gmra.mrb[0].mxu0 %v4776
        %v4882 = vpop.f32.mrb[0].mxu0
        %v4883 = vadd.f32 0.0, %v4882
        %v4884 = vpop.f32.mrb[0].mxu0
        %4885 = vmatprep.mubr.f32.mxu0 0.0
        %4886 = vmatmul.mubr.f32.gmra.mrb[0].mxu0 %v4777
        %v4887 = vpop.f32.mrb[0].mxu0
        %v4888 = vadd.f32 0.0, %v4887
        %v4889 = vpop.f32.mrb[0].mxu0
        %4890 = vmatprep.mubr.f32.mxu0 0.0
        %4891 = vmatmul.mubr.f32.gmra.mrb[0].mxu0 %v4778
        %v4892 = vpop.f32.mrb[0].mxu0
        %v4893 = vadd.f32 0.0, %v4892
        %v4894 = vpop.f32.mrb[0].mxu0
        %4895 = vmatprep.mubr.f32.mxu0 0.0
        %4896 = vmatmul.mubr.f32.gmra.mrb[0].mxu0 %v4779
        %v4897 = vpop.f32.mrb[0].mxu0
        %v4898 = vadd.f32 0.0, %v4897
        %v4899 = vpop.f32.mrb[0].mxu0
        %4900 = vdwg.mxu0
        %4901 = vst [vmem:[#allocation6] sm:$0xff] %v4863
        %4902 = vst [vmem:[#allocation6 + $0x8] sm:$0xff] %v4868
        %4903 = vst [vmem:[#allocation6 + $0x10] sm:$0xff] %v4873
        %4904 = vst [vmem:[#allocation6 + $0x18] sm:$0xff] %v4878
        %4905 = vst [vmem:[#allocation6 + $0x20] sm:$0xff] %v4883
        %4906 = vst [vmem:[#allocation6 + $0x28] sm:$0xff] %v4888
        %4907 = vst [vmem:[#allocation6 + $0x30] sm:$0xff] %v4893
        %4908 = vst [vmem:[#allocation6 + $0x38] sm:$0xff] %v4898
        %v4909 = vld [vmem:[#allocation5 + $0x1] sm:$0xff]
        %v4910 = vld [vmem:[#allocation5 + $0x9] sm:$0xff]
        %v4911 = vld [vmem:[#allocation5 + $0x11] sm:$0xff]
        %v4912 = vld [vmem:[#allocation5 + $0x19] sm:$0xff]
        %v4913 = vld [vmem:[#allocation5 + $0x21] sm:$0xff]
        %v4914 = vld [vmem:[#allocation5 + $0x29] sm:$0xff]
        %v4915 = vld [vmem:[#allocation5 + $0x31] sm:$0xff]
        %v4916 = vld [vmem:[#allocation5 + $0x39] sm:$0xff]
        %s4917 = scalar_lea.vmem %s5, 128
        %v4918 = vld [vmem:[%s4917] sm:$0xff]
        %v4919 = vld [vmem:[%s4917 + $0x8] sm:$0xff]
        %v4920 = vld [vmem:[%s4917 + $0x10] sm:$0xff]
        %v4921 = vld [vmem:[%s4917 + $0x18] sm:$0xff]
        %v4922 = vld [vmem:[%s4917 + $0x20] sm:$0xff]
        %v4923 = vld [vmem:[%s4917 + $0x28] sm:$0xff]
        %v4924 = vld [vmem:[%s4917 + $0x30] sm:$0xff]
        %v4925 = vld [vmem:[%s4917 + $0x38] sm:$0xff]
        %v4926 = vld [vmem:[%s4917 + $0x40] sm:$0xff]
        %v4927 = vld [vmem:[%s4917 + $0x48] sm:$0xff]
        %v4928 = vld [vmem:[%s4917 + $0x50] sm:$0xff]
        %v4929 = vld [vmem:[%s4917 + $0x58] sm:$0xff]
        %v4930 = vld [vmem:[%s4917 + $0x60] sm:$0xff]
        %v4931 = vld [vmem:[%s4917 + $0x68] sm:$0xff]
        %v4932 = vld [vmem:[%s4917 + $0x70] sm:$0xff]
        %v4933 = vld [vmem:[%s4917 + $0x78] sm:$0xff]
        %4934 = vmatprep.subr.mxu0 0.0
        %4935 = vmatpush1.msra.mxu0 %v4918
        %4936 = vmatprep.subr.mxu0 0.0
        %4937 = vmatpush1.msra.mxu0 %v4919
        %4938 = vmatprep.subr.mxu0 0.0
        %4939 = vmatpush1.msra.mxu0 %v4920
        %4940 = vmatprep.subr.mxu0 0.0
        %4941 = vmatpush1.msra.mxu0 %v4921
        %4942 = vmatprep.subr.mxu0 0.0
        %4943 = vmatpush1.msra.mxu0 %v4922
        %4944 = vmatprep.subr.mxu0 0.0
        %4945 = vmatpush1.msra.mxu0 %v4923
        %4946 = vmatprep.subr.mxu0 0.0
        %4947 = vmatpush1.msra.mxu0 %v4924
        %4948 = vmatprep.subr.mxu0 0.0
        %4949 = vmatpush1.msra.mxu0 %v4925
        %4950 = vmatprep.subr.mxu0 0.0
        %4951 = vmatpush1.msra.mxu0 %v4926
        %4952 = vmatprep.subr.mxu0 0.0
        %4953 = vmatpush1.msra.mxu0 %v4927
        %4954 = vmatprep.subr.mxu0 0.0
        %4955 = vmatpush1.msra.mxu0 %v4928
        %4956 = vmatprep.subr.mxu0 0.0
        %4957 = vmatpush1.msra.mxu0 %v4929
        %4958 = vmatprep.subr.mxu0 0.0
        %4959 = vmatpush1.msra.mxu0 %v4930
        %4960 = vmatprep.subr.mxu0 0.0
        %4961 = vmatpush1.msra.mxu0 %v4931
        %4962 = vmatprep.subr.mxu0 0.0
        %4963 = vmatpush1.msra.mxu0 %v4932
        %4964 = vmatprep.subr.mxu0 0.0
        %4965 = vmatpush1.msra.mxu0 %v4933
        %4966 = vmatprep.subr.mxu0 0.0
        %4967 = vmatpush1.msra.mxu0 0.0
        %4968 = vmatprep.subr.mxu0 0.0
        %4969 = vmatpush1.msra.mxu0 0.0
        %4970 = vmatprep.subr.mxu0 0.0
        %4971 = vmatpush1.msra.mxu0 0.0
        %4972 = vmatprep.subr.mxu0 0.0
        %4973 = vmatpush1.msra.mxu0 0.0
        %4974 = vmatprep.subr.mxu0 0.0
        %4975 = vmatpush1.msra.mxu0 0.0
        %4976 = vmatprep.subr.mxu0 0.0
        %4977 = vmatpush1.msra.mxu0 0.0
        %4978 = vmatprep.subr.mxu0 0.0
        %4979 = vmatpush1.msra.mxu0 0.0
        %4980 = vmatprep.subr.mxu0 0.0
        %4981 = vmatpush1.msra.mxu0 0.0
        %4982 = vmatprep.subr.mxu0 0.0
        %4983 = vmatpush1.msra.mxu0 0.0
        %4984 = vmatprep.subr.mxu0 0.0
        %4985 = vmatpush1.msra.mxu0 0.0
        %4986 = vmatprep.subr.mxu0 0.0
        %4987 = vmatpush1.msra.mxu0 0.0
        %4988 = vmatprep.subr.mxu0 0.0
        %4989 = vmatpush1.msra.mxu0 0.0
        %4990 = vmatprep.subr.mxu0 0.0
        %4991 = vmatpush1.msra.mxu0 0.0
        %4992 = vmatprep.subr.mxu0 0.0
        %4993 = vmatpush1.msra.mxu0 0.0
        %4994 = vmatprep.subr.mxu0 0.0
        %4995 = vmatpush1.msra.mxu0 0.0
        %4996 = vmatprep.subr.mxu0 0.0
        %4997 = vmatpush1.msra.mxu0 0.0
        %4998 = vmatprep.mubr.f32.mxu0 0.0
        %4999 = vmatmul.mubr.f32.gmra.mrb[0].mxu0 %v4909
        %v5000 = vpop.f32.mrb[0].mxu0
        %v5001 = vadd.f32 0.0, %v5000
        %v5002 = vpop.f32.mrb[0].mxu0
        %5003 = vmatprep.mubr.f32.mxu0 0.0
        %5004 = vmatmul.mubr.f32.gmra.mrb[0].mxu0 %v4910
        %v5005 = vpop.f32.mrb[0].mxu0
        %v5006 = vadd.f32 0.0, %v5005
        %v5007 = vpop.f32.mrb[0].mxu0
        %5008 = vmatprep.mubr.f32.mxu0 0.0
        %5009 = vmatmul.mubr.f32.gmra.mrb[0].mxu0 %v4911
        %v5010 = vpop.f32.mrb[0].mxu0
        %v5011 = vadd.f32 0.0, %v5010
        %v5012 = vpop.f32.mrb[0].mxu0
        %5013 = vmatprep.mubr.f32.mxu0 0.0
        %5014 = vmatmul.mubr.f32.gmra.mrb[0].mxu0 %v4912
        %v5015 = vpop.f32.mrb[0].mxu0
        %v5016 = vadd.f32 0.0, %v5015
        %v5017 = vpop.f32.mrb[0].mxu0
        %5018 = vmatprep.mubr.f32.mxu0 0.0
        %5019 = vmatmul.mubr.f32.gmra.mrb[0].mxu0 %v4913
        %v5020 = vpop.f32.mrb[0].mxu0
        %v5021 = vadd.f32 0.0, %v5020
        %v5022 = vpop.f32.mrb[0].mxu0
        %5023 = vmatprep.mubr.f32.mxu0 0.0
        %5024 = vmatmul.mubr.f32.gmra.mrb[0].mxu0 %v4914
        %v5025 = vpop.f32.mrb[0].mxu0
        %v5026 = vadd.f32 0.0, %v5025
        %v5027 = vpop.f32.mrb[0].mxu0
        %5028 = vmatprep.mubr.f32.mxu0 0.0
        %5029 = vmatmul.mubr.f32.gmra.mrb[0].mxu0 %v4915
        %v5030 = vpop.f32.mrb[0].mxu0
        %v5031 = vadd.f32 0.0, %v5030
        %v5032 = vpop.f32.mrb[0].mxu0
        %5033 = vmatprep.mubr.f32.mxu0 0.0
        %5034 = vmatmul.mubr.f32.gmra.mrb[0].mxu0 %v4916
        %v5035 = vpop.f32.mrb[0].mxu0
        %v5036 = vadd.f32 0.0, %v5035
        %v5037 = vpop.f32.mrb[0].mxu0
        %5038 = vdwg.mxu0
        %v5039 = vld [vmem:[#allocation6] sm:$0xff]
        %v5040 = vld [vmem:[#allocation6 + $0x8] sm:$0xff]
        %v5041 = vld [vmem:[#allocation6 + $0x10] sm:$0xff]
        %v5042 = vld [vmem:[#allocation6 + $0x18] sm:$0xff]
        %v5043 = vld [vmem:[#allocation6 + $0x20] sm:$0xff]
        %v5044 = vld [vmem:[#allocation6 + $0x28] sm:$0xff]
        %v5045 = vld [vmem:[#allocation6 + $0x30] sm:$0xff]
        %v5046 = vld [vmem:[#allocation6 + $0x38] sm:$0xff]
        %v5047 = vadd.f32 %v5039, %v5001
        %v5048 = vadd.f32 %v5040, %v5006
        %v5049 = vadd.f32 %v5041, %v5011
        %v5050 = vadd.f32 %v5042, %v5016
        %v5051 = vadd.f32 %v5043, %v5021
        %v5052 = vadd.f32 %v5044, %v5026
        %v5053 = vadd.f32 %v5045, %v5031
        %v5054 = vadd.f32 %v5046, %v5036
        %5055 = vst [vmem:[#allocation6] sm:$0xff] %v5047
        %5056 = vst [vmem:[#allocation6 + $0x8] sm:$0xff] %v5048
        %5057 = vst [vmem:[#allocation6 + $0x10] sm:$0xff] %v5049
        %5058 = vst [vmem:[#allocation6 + $0x18] sm:$0xff] %v5050
        %5059 = vst [vmem:[#allocation6 + $0x20] sm:$0xff] %v5051
        %5060 = vst [vmem:[#allocation6 + $0x28] sm:$0xff] %v5052
        %5061 = vst [vmem:[#allocation6 + $0x30] sm:$0xff] %v5053
        %5062 = vst [vmem:[#allocation6 + $0x38] sm:$0xff] %v5054
        %v5063 = vld [vmem:[#allocation5 + $0x2] sm:$0xff]
        %v5064 = vld [vmem:[#allocation5 + $0xa] sm:$0xff]
        %v5065 = vld [vmem:[#allocation5 + $0x12] sm:$0xff]
        %v5066 = vld [vmem:[#allocation5 + $0x1a] sm:$0xff]
        %v5067 = vld [vmem:[#allocation5 + $0x22] sm:$0xff]
        %v5068 = vld [vmem:[#allocation5 + $0x2a] sm:$0xff]
        %v5069 = vld [vmem:[#allocation5 + $0x32] sm:$0xff]
        %v5070 = vld [vmem:[#allocation5 + $0x3a] sm:$0xff]
        %s5071 = scalar_lea.vmem %s5, 256
        %v5072 = vld [vmem:[%s5071] sm:$0xff]
        %v5073 = vld [vmem:[%s5071 + $0x8] sm:$0xff]
        %v5074 = vld [vmem:[%s5071 + $0x10] sm:$0xff]
        %v5075 = vld [vmem:[%s5071 + $0x18] sm:$0xff]
        %v5076 = vld [vmem:[%s5071 + $0x20] sm:$0xff]
        %v5077 = vld [vmem:[%s5071 + $0x28] sm:$0xff]
        %v5078 = vld [vmem:[%s5071 + $0x30] sm:$0xff]
        %v5079 = vld [vmem:[%s5071 + $0x38] sm:$0xff]
        %v5080 = vld [vmem:[%s5071 + $0x40] sm:$0xff]
        %v5081 = vld [vmem:[%s5071 + $0x48] sm:$0xff]
        %v5082 = vld [vmem:[%s5071 + $0x50] sm:$0xff]
        %v5083 = vld [vmem:[%s5071 + $0x58] sm:$0xff]
        %v5084 = vld [vmem:[%s5071 + $0x60] sm:$0xff]
        %v5085 = vld [vmem:[%s5071 + $0x68] sm:$0xff]
        %v5086 = vld [vmem:[%s5071 + $0x70] sm:$0xff]
        %v5087 = vld [vmem:[%s5071 + $0x78] sm:$0xff]
        %5088 = vmatprep.subr.mxu0 0.0
        %5089 = vmatpush1.msra.mxu0 %v5072
        %5090 = vmatprep.subr.mxu0 0.0
        %5091 = vmatpush1.msra.mxu0 %v5073
        %5092 = vmatprep.subr.mxu0 0.0
        %5093 = vmatpush1.msra.mxu0 %v5074
        %5094 = vmatprep.subr.mxu0 0.0
        %5095 = vmatpush1.msra.mxu0 %v5075
        %5096 = vmatprep.subr.mxu0 0.0
        %5097 = vmatpush1.msra.mxu0 %v5076
        %5098 = vmatprep.subr.mxu0 0.0
        %5099 = vmatpush1.msra.mxu0 %v5077
        %5100 = vmatprep.subr.mxu0 0.0
        %5101 = vmatpush1.msra.mxu0 %v5078
        %5102 = vmatprep.subr.mxu0 0.0
        %5103 = vmatpush1.msra.mxu0 %v5079
        %5104 = vmatprep.subr.mxu0 0.0
        %5105 = vmatpush1.msra.mxu0 %v5080
        %5106 = vmatprep.subr.mxu0 0.0
        %5107 = vmatpush1.msra.mxu0 %v5081
        %5108 = vmatprep.subr.mxu0 0.0
        %5109 = vmatpush1.msra.mxu0 %v5082
        %5110 = vmatprep.subr.mxu0 0.0
        %5111 = vmatpush1.msra.mxu0 %v5083
        %5112 = vmatprep.subr.mxu0 0.0
        %5113 = vmatpush1.msra.mxu0 %v5084
        %5114 = vmatprep.subr.mxu0 0.0
        %5115 = vmatpush1.msra.mxu0 %v5085
        %5116 = vmatprep.subr.mxu0 0.0
        %5117 = vmatpush1.msra.mxu0 %v5086
        %5118 = vmatprep.subr.mxu0 0.0
        %5119 = vmatpush1.msra.mxu0 %v5087
        %5120 = vmatprep.subr.mxu0 0.0
        %5121 = vmatpush1.msra.mxu0 0.0
        %5122 = vmatprep.subr.mxu0 0.0
        %5123 = vmatpush1.msra.mxu0 0.0
        %5124 = vmatprep.subr.mxu0 0.0
        %5125 = vmatpush1.msra.mxu0 0.0
        %5126 = vmatprep.subr.mxu0 0.0
        %5127 = vmatpush1.msra.mxu0 0.0
        %5128 = vmatprep.subr.mxu0 0.0
        %5129 = vmatpush1.msra.mxu0 0.0
        %5130 = vmatprep.subr.mxu0 0.0
        %5131 = vmatpush1.msra.mxu0 0.0
        %5132 = vmatprep.subr.mxu0 0.0
        %5133 = vmatpush1.msra.mxu0 0.0
        %5134 = vmatprep.subr.mxu0 0.0
        %5135 = vmatpush1.msra.mxu0 0.0
        %5136 = vmatprep.subr.mxu0 0.0
        %5137 = vmatpush1.msra.mxu0 0.0
        %5138 = vmatprep.subr.mxu0 0.0
        %5139 = vmatpush1.msra.mxu0 0.0
        %5140 = vmatprep.subr.mxu0 0.0
        %5141 = vmatpush1.msra.mxu0 0.0
        %5142 = vmatprep.subr.mxu0 0.0
        %5143 = vmatpush1.msra.mxu0 0.0
        %5144 = vmatprep.subr.mxu0 0.0
        %5145 = vmatpush1.msra.mxu0 0.0
        %5146 = vmatprep.subr.mxu0 0.0
        %5147 = vmatpush1.msra.mxu0 0.0
        %5148 = vmatprep.subr.mxu0 0.0
        %5149 = vmatpush1.msra.mxu0 0.0
        %5150 = vmatprep.subr.mxu0 0.0
        %5151 = vmatpush1.msra.mxu0 0.0
        %5152 = vmatprep.mubr.f32.mxu0 0.0
        %5153 = vmatmul.mubr.f32.gmra.mrb[0].mxu0 %v5063
        %v5154 = vpop.f32.mrb[0].mxu0
        %v5155 = vadd.f32 0.0, %v5154
        %v5156 = vpop.f32.mrb[0].mxu0
        %5157 = vmatprep.mubr.f32.mxu0 0.0
        %5158 = vmatmul.mubr.f32.gmra.mrb[0].mxu0 %v5064
        %v5159 = vpop.f32.mrb[0].mxu0
        %v5160 = vadd.f32 0.0, %v5159
        %v5161 = vpop.f32.mrb[0].mxu0
        %5162 = vmatprep.mubr.f32.mxu0 0.0
        %5163 = vmatmul.mubr.f32.gmra.mrb[0].mxu0 %v5065
        %v5164 = vpop.f32.mrb[0].mxu0
        %v5165 = vadd.f32 0.0, %v5164
        %v5166 = vpop.f32.mrb[0].mxu0
        %5167 = vmatprep.mubr.f32.mxu0 0.0
        %5168 = vmatmul.mubr.f32.gmra.mrb[0].mxu0 %v5066
        %v5169 = vpop.f32.mrb[0].mxu0
        %v5170 = vadd.f32 0.0, %v5169
        %v5171 = vpop.f32.mrb[0].mxu0
        %5172 = vmatprep.mubr.f32.mxu0 0.0
        %5173 = vmatmul.mubr.f32.gmra.mrb[0].mxu0 %v5067
        %v5174 = vpop.f32.mrb[0].mxu0
        %v5175 = vadd.f32 0.0, %v5174
        %v5176 = vpop.f32.mrb[0].mxu0
        %5177 = vmatprep.mubr.f32.mxu0 0.0
        %5178 = vmatmul.mubr.f32.gmra.mrb[0].mxu0 %v5068
        %v5179 = vpop.f32.mrb[0].mxu0
        %v5180 = vadd.f32 0.0, %v5179
        %v5181 = vpop.f32.mrb[0].mxu0
        %5182 = vmatprep.mubr.f32.mxu0 0.0
        %5183 = vmatmul.mubr.f32.gmra.mrb[0].mxu0 %v5069
        %v5184 = vpop.f32.mrb[0].mxu0
        %v5185 = vadd.f32 0.0, %v5184
        %v5186 = vpop.f32.mrb[0].mxu0
        %5187 = vmatprep.mubr.f32.mxu0 0.0
        %5188 = vmatmul.mubr.f32.gmra.mrb[0].mxu0 %v5070
        %v5189 = vpop.f32.mrb[0].mxu0
        %v5190 = vadd.f32 0.0, %v5189
        %v5191 = vpop.f32.mrb[0].mxu0
        %5192 = vdwg.mxu0
        %v5193 = vld [vmem:[#allocation6] sm:$0xff]
        %v5194 = vld [vmem:[#allocation6 + $0x8] sm:$0xff]
        %v5195 = vld [vmem:[#allocation6 + $0x10] sm:$0xff]
        %v5196 = vld [vmem:[#allocation6 + $0x18] sm:$0xff]
        %v5197 = vld [vmem:[#allocation6 + $0x20] sm:$0xff]
        %v5198 = vld [vmem:[#allocation6 + $0x28] sm:$0xff]
        %v5199 = vld [vmem:[#allocation6 + $0x30] sm:$0xff]
        %v5200 = vld [vmem:[#allocation6 + $0x38] sm:$0xff]
        %v5201 = vadd.f32 %v5193, %v5155
        %v5202 = vadd.f32 %v5194, %v5160
        %v5203 = vadd.f32 %v5195, %v5165
        %v5204 = vadd.f32 %v5196, %v5170
        %v5205 = vadd.f32 %v5197, %v5175
        %v5206 = vadd.f32 %v5198, %v5180
        %v5207 = vadd.f32 %v5199, %v5185
        %v5208 = vadd.f32 %v5200, %v5190
        %5209 = vst [vmem:[#allocation6] sm:$0xff] %v5201
        %5210 = vst [vmem:[#allocation6 + $0x8] sm:$0xff] %v5202
        %5211 = vst [vmem:[#allocation6 + $0x10] sm:$0xff] %v5203
        %5212 = vst [vmem:[#allocation6 + $0x18] sm:$0xff] %v5204
        %5213 = vst [vmem:[#allocation6 + $0x20] sm:$0xff] %v5205
        %5214 = vst [vmem:[#allocation6 + $0x28] sm:$0xff] %v5206
        %5215 = vst [vmem:[#allocation6 + $0x30] sm:$0xff] %v5207
        %5216 = vst [vmem:[#allocation6 + $0x38] sm:$0xff] %v5208
        %v5217 = vld [vmem:[#allocation5 + $0x8] sm:$0xff]
        %v5218 = vld [vmem:[#allocation5 + $0x10] sm:$0xff]
        %v5219 = vld [vmem:[#allocation5 + $0x18] sm:$0xff]
        %v5220 = vld [vmem:[#allocation5 + $0x20] sm:$0xff]
        %v5221 = vld [vmem:[#allocation5 + $0x28] sm:$0xff]
        %v5222 = vld [vmem:[#allocation5 + $0x30] sm:$0xff]
        %v5223 = vld [vmem:[#allocation5 + $0x38] sm:$0xff]
        %v5224 = vld [vmem:[#allocation5 + $0x40] sm:$0xff]
        %s5225 = scalar_lea.vmem %s5, 384
        %v5226 = vld [vmem:[%s5225] sm:$0xff]
        %v5227 = vld [vmem:[%s5225 + $0x8] sm:$0xff]
        %v5228 = vld [vmem:[%s5225 + $0x10] sm:$0xff]
        %v5229 = vld [vmem:[%s5225 + $0x18] sm:$0xff]
        %v5230 = vld [vmem:[%s5225 + $0x20] sm:$0xff]
        %v5231 = vld [vmem:[%s5225 + $0x28] sm:$0xff]
        %v5232 = vld [vmem:[%s5225 + $0x30] sm:$0xff]
        %v5233 = vld [vmem:[%s5225 + $0x38] sm:$0xff]
        %v5234 = vld [vmem:[%s5225 + $0x40] sm:$0xff]
        %v5235 = vld [vmem:[%s5225 + $0x48] sm:$0xff]
        %v5236 = vld [vmem:[%s5225 + $0x50] sm:$0xff]
        %v5237 = vld [vmem:[%s5225 + $0x58] sm:$0xff]
        %v5238 = vld [vmem:[%s5225 + $0x60] sm:$0xff]
        %v5239 = vld [vmem:[%s5225 + $0x68] sm:$0xff]
        %v5240 = vld [vmem:[%s5225 + $0x70] sm:$0xff]
        %v5241 = vld [vmem:[%s5225 + $0x78] sm:$0xff]
        %5242 = vmatprep.subr.mxu0 0.0
        %5243 = vmatpush1.msra.mxu0 %v5226
        %5244 = vmatprep.subr.mxu0 0.0
        %5245 = vmatpush1.msra.mxu0 %v5227
        %5246 = vmatprep.subr.mxu0 0.0
        %5247 = vmatpush1.msra.mxu0 %v5228
        %5248 = vmatprep.subr.mxu0 0.0
        %5249 = vmatpush1.msra.mxu0 %v5229
        %5250 = vmatprep.subr.mxu0 0.0
        %5251 = vmatpush1.msra.mxu0 %v5230
        %5252 = vmatprep.subr.mxu0 0.0
        %5253 = vmatpush1.msra.mxu0 %v5231
        %5254 = vmatprep.subr.mxu0 0.0
        %5255 = vmatpush1.msra.mxu0 %v5232
        %5256 = vmatprep.subr.mxu0 0.0
        %5257 = vmatpush1.msra.mxu0 %v5233
        %5258 = vmatprep.subr.mxu0 0.0
        %5259 = vmatpush1.msra.mxu0 %v5234
        %5260 = vmatprep.subr.mxu0 0.0
        %5261 = vmatpush1.msra.mxu0 %v5235
        %5262 = vmatprep.subr.mxu0 0.0
        %5263 = vmatpush1.msra.mxu0 %v5236
        %5264 = vmatprep.subr.mxu0 0.0
        %5265 = vmatpush1.msra.mxu0 %v5237
        %5266 = vmatprep.subr.mxu0 0.0
        %5267 = vmatpush1.msra.mxu0 %v5238
        %5268 = vmatprep.subr.mxu0 0.0
        %5269 = vmatpush1.msra.mxu0 %v5239
        %5270 = vmatprep.subr.mxu0 0.0
        %5271 = vmatpush1.msra.mxu0 %v5240
        %5272 = vmatprep.subr.mxu0 0.0
        %5273 = vmatpush1.msra.mxu0 %v5241
        %5274 = vmatprep.subr.mxu0 0.0
        %5275 = vmatpush1.msra.mxu0 0.0
        %5276 = vmatprep.subr.mxu0 0.0
        %5277 = vmatpush1.msra.mxu0 0.0
        %5278 = vmatprep.subr.mxu0 0.0
        %5279 = vmatpush1.msra.mxu0 0.0
        %5280 = vmatprep.subr.mxu0 0.0
        %5281 = vmatpush1.msra.mxu0 0.0
        %5282 = vmatprep.subr.mxu0 0.0
        %5283 = vmatpush1.msra.mxu0 0.0
        %5284 = vmatprep.subr.mxu0 0.0
        %5285 = vmatpush1.msra.mxu0 0.0
        %5286 = vmatprep.subr.mxu0 0.0
        %5287 = vmatpush1.msra.mxu0 0.0
        %5288 = vmatprep.subr.mxu0 0.0
        %5289 = vmatpush1.msra.mxu0 0.0
        %5290 = vmatprep.subr.mxu0 0.0
        %5291 = vmatpush1.msra.mxu0 0.0
        %5292 = vmatprep.subr.mxu0 0.0
        %5293 = vmatpush1.msra.mxu0 0.0
        %5294 = vmatprep.subr.mxu0 0.0
        %5295 = vmatpush1.msra.mxu0 0.0
        %5296 = vmatprep.subr.mxu0 0.0
        %5297 = vmatpush1.msra.mxu0 0.0
        %5298 = vmatprep.subr.mxu0 0.0
        %5299 = vmatpush1.msra.mxu0 0.0
        %5300 = vmatprep.subr.mxu0 0.0
        %5301 = vmatpush1.msra.mxu0 0.0
        %5302 = vmatprep.subr.mxu0 0.0
        %5303 = vmatpush1.msra.mxu0 0.0
        %5304 = vmatprep.subr.mxu0 0.0
        %5305 = vmatpush1.msra.mxu0 0.0
        %5306 = vmatprep.mubr.f32.mxu0 0.0
        %5307 = vmatmul.mubr.f32.gmra.mrb[0].mxu0 %v5217
        %v5308 = vpop.f32.mrb[0].mxu0
        %v5309 = vadd.f32 0.0, %v5308
        %v5310 = vpop.f32.mrb[0].mxu0
        %5311 = vmatprep.mubr.f32.mxu0 0.0
        %5312 = vmatmul.mubr.f32.gmra.mrb[0].mxu0 %v5218
        %v5313 = vpop.f32.mrb[0].mxu0
        %v5314 = vadd.f32 0.0, %v5313
        %v5315 = vpop.f32.mrb[0].mxu0
        %5316 = vmatprep.mubr.f32.mxu0 0.0
        %5317 = vmatmul.mubr.f32.gmra.mrb[0].mxu0 %v5219
        %v5318 = vpop.f32.mrb[0].mxu0
        %v5319 = vadd.f32 0.0, %v5318
        %v5320 = vpop.f32.mrb[0].mxu0
        %5321 = vmatprep.mubr.f32.mxu0 0.0
        %5322 = vmatmul.mubr.f32.gmra.mrb[0].mxu0 %v5220
        %v5323 = vpop.f32.mrb[0].mxu0
        %v5324 = vadd.f32 0.0, %v5323
        %v5325 = vpop.f32.mrb[0].mxu0
        %5326 = vmatprep.mubr.f32.mxu0 0.0
        %5327 = vmatmul.mubr.f32.gmra.mrb[0].mxu0 %v5221
        %v5328 = vpop.f32.mrb[0].mxu0
        %v5329 = vadd.f32 0.0, %v5328
        %v5330 = vpop.f32.mrb[0].mxu0
        %5331 = vmatprep.mubr.f32.mxu0 0.0
        %5332 = vmatmul.mubr.f32.gmra.mrb[0].mxu0 %v5222
        %v5333 = vpop.f32.mrb[0].mxu0
        %v5334 = vadd.f32 0.0, %v5333
        %v5335 = vpop.f32.mrb[0].mxu0
        %5336 = vmatprep.mubr.f32.mxu0 0.0
        %5337 = vmatmul.mubr.f32.gmra.mrb[0].mxu0 %v5223
        %v5338 = vpop.f32.mrb[0].mxu0
        %v5339 = vadd.f32 0.0, %v5338
        %v5340 = vpop.f32.mrb[0].mxu0
        %5341 = vmatprep.mubr.f32.mxu0 0.0
        %5342 = vmatmul.mubr.f32.gmra.mrb[0].mxu0 %v5224
        %v5343 = vpop.f32.mrb[0].mxu0
        %v5344 = vadd.f32 0.0, %v5343
        %v5345 = vpop.f32.mrb[0].mxu0
        %5346 = vdwg.mxu0
        %v5347 = vld [vmem:[#allocation6] sm:$0xff]
        %v5348 = vld [vmem:[#allocation6 + $0x8] sm:$0xff]
        %v5349 = vld [vmem:[#allocation6 + $0x10] sm:$0xff]
        %v5350 = vld [vmem:[#allocation6 + $0x18] sm:$0xff]
        %v5351 = vld [vmem:[#allocation6 + $0x20] sm:$0xff]
        %v5352 = vld [vmem:[#allocation6 + $0x28] sm:$0xff]
        %v5353 = vld [vmem:[#allocation6 + $0x30] sm:$0xff]
        %v5354 = vld [vmem:[#allocation6 + $0x38] sm:$0xff]
        %v5355 = vadd.f32 %v5347, %v5309
        %v5356 = vadd.f32 %v5348, %v5314
        %v5357 = vadd.f32 %v5349, %v5319
        %v5358 = vadd.f32 %v5350, %v5324
        %v5359 = vadd.f32 %v5351, %v5329
        %v5360 = vadd.f32 %v5352, %v5334
        %v5361 = vadd.f32 %v5353, %v5339
        %v5362 = vadd.f32 %v5354, %v5344
        %5363 = vst [vmem:[#allocation6] sm:$0xff] %v5355
        %5364 = vst [vmem:[#allocation6 + $0x8] sm:$0xff] %v5356
        %5365 = vst [vmem:[#allocation6 + $0x10] sm:$0xff] %v5357
        %5366 = vst [vmem:[#allocation6 + $0x18] sm:$0xff] %v5358
        %5367 = vst [vmem:[#allocation6 + $0x20] sm:$0xff] %v5359
        %5368 = vst [vmem:[#allocation6 + $0x28] sm:$0xff] %v5360
        %5369 = vst [vmem:[#allocation6 + $0x30] sm:$0xff] %v5361
        %5370 = vst [vmem:[#allocation6 + $0x38] sm:$0xff] %v5362
        %v5371 = vld [vmem:[#allocation5 + $0x9] sm:$0xff]
        %v5372 = vld [vmem:[#allocation5 + $0x11] sm:$0xff]
        %v5373 = vld [vmem:[#allocation5 + $0x19] sm:$0xff]
        %v5374 = vld [vmem:[#allocation5 + $0x21] sm:$0xff]
        %v5375 = vld [vmem:[#allocation5 + $0x29] sm:$0xff]
        %v5376 = vld [vmem:[#allocation5 + $0x31] sm:$0xff]
        %v5377 = vld [vmem:[#allocation5 + $0x39] sm:$0xff]
        %v5378 = vld [vmem:[#allocation5 + $0x41] sm:$0xff]
        %s5379 = scalar_lea.vmem %s5, 512
        %v5380 = vld [vmem:[%s5379] sm:$0xff]
        %v5381 = vld [vmem:[%s5379 + $0x8] sm:$0xff]
        %v5382 = vld [vmem:[%s5379 + $0x10] sm:$0xff]
        %v5383 = vld [vmem:[%s5379 + $0x18] sm:$0xff]
        %v5384 = vld [vmem:[%s5379 + $0x20] sm:$0xff]
        %v5385 = vld [vmem:[%s5379 + $0x28] sm:$0xff]
        %v5386 = vld [vmem:[%s5379 + $0x30] sm:$0xff]
        %v5387 = vld [vmem:[%s5379 + $0x38] sm:$0xff]
        %v5388 = vld [vmem:[%s5379 + $0x40] sm:$0xff]
        %v5389 = vld [vmem:[%s5379 + $0x48] sm:$0xff]
        %v5390 = vld [vmem:[%s5379 + $0x50] sm:$0xff]
        %v5391 = vld [vmem:[%s5379 + $0x58] sm:$0xff]
        %v5392 = vld [vmem:[%s5379 + $0x60] sm:$0xff]
        %v5393 = vld [vmem:[%s5379 + $0x68] sm:$0xff]
        %v5394 = vld [vmem:[%s5379 + $0x70] sm:$0xff]
        %v5395 = vld [vmem:[%s5379 + $0x78] sm:$0xff]
        %5396 = vmatprep.subr.mxu0 0.0
        %5397 = vmatpush1.msra.mxu0 %v5380
        %5398 = vmatprep.subr.mxu0 0.0
        %5399 = vmatpush1.msra.mxu0 %v5381
        %5400 = vmatprep.subr.mxu0 0.0
        %5401 = vmatpush1.msra.mxu0 %v5382
        %5402 = vmatprep.subr.mxu0 0.0
        %5403 = vmatpush1.msra.mxu0 %v5383
        %5404 = vmatprep.subr.mxu0 0.0
        %5405 = vmatpush1.msra.mxu0 %v5384
        %5406 = vmatprep.subr.mxu0 0.0
        %5407 = vmatpush1.msra.mxu0 %v5385
        %5408 = vmatprep.subr.mxu0 0.0
        %5409 = vmatpush1.msra.mxu0 %v5386
        %5410 = vmatprep.subr.mxu0 0.0
        %5411 = vmatpush1.msra.mxu0 %v5387
        %5412 = vmatprep.subr.mxu0 0.0
        %5413 = vmatpush1.msra.mxu0 %v5388
        %5414 = vmatprep.subr.mxu0 0.0
        %5415 = vmatpush1.msra.mxu0 %v5389
        %5416 = vmatprep.subr.mxu0 0.0
        %5417 = vmatpush1.msra.mxu0 %v5390
        %5418 = vmatprep.subr.mxu0 0.0
        %5419 = vmatpush1.msra.mxu0 %v5391
        %5420 = vmatprep.subr.mxu0 0.0
        %5421 = vmatpush1.msra.mxu0 %v5392
        %5422 = vmatprep.subr.mxu0 0.0
        %5423 = vmatpush1.msra.mxu0 %v5393
        %5424 = vmatprep.subr.mxu0 0.0
        %5425 = vmatpush1.msra.mxu0 %v5394
        %5426 = vmatprep.subr.mxu0 0.0
        %5427 = vmatpush1.msra.mxu0 %v5395
        %5428 = vmatprep.subr.mxu0 0.0
        %5429 = vmatpush1.msra.mxu0 0.0
        %5430 = vmatprep.subr.mxu0 0.0
        %5431 = vmatpush1.msra.mxu0 0.0
        %5432 = vmatprep.subr.mxu0 0.0
        %5433 = vmatpush1.msra.mxu0 0.0
        %5434 = vmatprep.subr.mxu0 0.0
        %5435 = vmatpush1.msra.mxu0 0.0
        %5436 = vmatprep.subr.mxu0 0.0
        %5437 = vmatpush1.msra.mxu0 0.0
        %5438 = vmatprep.subr.mxu0 0.0
        %5439 = vmatpush1.msra.mxu0 0.0
        %5440 = vmatprep.subr.mxu0 0.0
        %5441 = vmatpush1.msra.mxu0 0.0
        %5442 = vmatprep.subr.mxu0 0.0
        %5443 = vmatpush1.msra.mxu0 0.0
        %5444 = vmatprep.subr.mxu0 0.0
        %5445 = vmatpush1.msra.mxu0 0.0
        %5446 = vmatprep.subr.mxu0 0.0
        %5447 = vmatpush1.msra.mxu0 0.0
        %5448 = vmatprep.subr.mxu0 0.0
        %5449 = vmatpush1.msra.mxu0 0.0
        %5450 = vmatprep.subr.mxu0 0.0
        %5451 = vmatpush1.msra.mxu0 0.0
        %5452 = vmatprep.subr.mxu0 0.0
        %5453 = vmatpush1.msra.mxu0 0.0
        %5454 = vmatprep.subr.mxu0 0.0
        %5455 = vmatpush1.msra.mxu0 0.0
        %5456 = vmatprep.subr.mxu0 0.0
        %5457 = vmatpush1.msra.mxu0 0.0
        %5458 = vmatprep.subr.mxu0 0.0
        %5459 = vmatpush1.msra.mxu0 0.0
        %5460 = vmatprep.mubr.f32.mxu0 0.0
        %5461 = vmatmul.mubr.f32.gmra.mrb[0].mxu0 %v5371
        %v5462 = vpop.f32.mrb[0].mxu0
        %v5463 = vadd.f32 0.0, %v5462
        %v5464 = vpop.f32.mrb[0].mxu0
        %5465 = vmatprep.mubr.f32.mxu0 0.0
        %5466 = vmatmul.mubr.f32.gmra.mrb[0].mxu0 %v5372
        %v5467 = vpop.f32.mrb[0].mxu0
        %v5468 = vadd.f32 0.0, %v5467
        %v5469 = vpop.f32.mrb[0].mxu0
        %5470 = vmatprep.mubr.f32.mxu0 0.0
        %5471 = vmatmul.mubr.f32.gmra.mrb[0].mxu0 %v5373
        %v5472 = vpop.f32.mrb[0].mxu0
        %v5473 = vadd.f32 0.0, %v5472
        %v5474 = vpop.f32.mrb[0].mxu0
        %5475 = vmatprep.mubr.f32.mxu0 0.0
        %5476 = vmatmul.mubr.f32.gmra.mrb[0].mxu0 %v5374
        %v5477 = vpop.f32.mrb[0].mxu0
        %v5478 = vadd.f32 0.0, %v5477
        %v5479 = vpop.f32.mrb[0].mxu0
        %5480 = vmatprep.mubr.f32.mxu0 0.0
        %5481 = vmatmul.mubr.f32.gmra.mrb[0].mxu0 %v5375
        %v5482 = vpop.f32.mrb[0].mxu0
        %v5483 = vadd.f32 0.0, %v5482
        %v5484 = vpop.f32.mrb[0].mxu0
        %5485 = vmatprep.mubr.f32.mxu0 0.0
        %5486 = vmatmul.mubr.f32.gmra.mrb[0].mxu0 %v5376
        %v5487 = vpop.f32.mrb[0].mxu0
        %v5488 = vadd.f32 0.0, %v5487
        %v5489 = vpop.f32.mrb[0].mxu0
        %5490 = vmatprep.mubr.f32.mxu0 0.0
        %5491 = vmatmul.mubr.f32.gmra.mrb[0].mxu0 %v5377
        %v5492 = vpop.f32.mrb[0].mxu0
        %v5493 = vadd.f32 0.0, %v5492
        %v5494 = vpop.f32.mrb[0].mxu0
        %5495 = vmatprep.mubr.f32.mxu0 0.0
        %5496 = vmatmul.mubr.f32.gmra.mrb[0].mxu0 %v5378
        %v5497 = vpop.f32.mrb[0].mxu0
        %v5498 = vadd.f32 0.0, %v5497
        %v5499 = vpop.f32.mrb[0].mxu0
        %5500 = vdwg.mxu0
        %v5501 = vld [vmem:[#allocation6] sm:$0xff]
        %v5502 = vld [vmem:[#allocation6 + $0x8] sm:$0xff]
        %v5503 = vld [vmem:[#allocation6 + $0x10] sm:$0xff]
        %v5504 = vld [vmem:[#allocation6 + $0x18] sm:$0xff]
        %v5505 = vld [vmem:[#allocation6 + $0x20] sm:$0xff]
        %v5506 = vld [vmem:[#allocation6 + $0x28] sm:$0xff]
        %v5507 = vld [vmem:[#allocation6 + $0x30] sm:$0xff]
        %v5508 = vld [vmem:[#allocation6 + $0x38] sm:$0xff]
        %v5509 = vadd.f32 %v5501, %v5463
        %v5510 = vadd.f32 %v5502, %v5468
        %v5511 = vadd.f32 %v5503, %v5473
        %v5512 = vadd.f32 %v5504, %v5478
        %v5513 = vadd.f32 %v5505, %v5483
        %v5514 = vadd.f32 %v5506, %v5488
        %v5515 = vadd.f32 %v5507, %v5493
        %v5516 = vadd.f32 %v5508, %v5498
        %5517 = vst [vmem:[#allocation6] sm:$0xff] %v5509
        %5518 = vst [vmem:[#allocation6 + $0x8] sm:$0xff] %v5510
        %5519 = vst [vmem:[#allocation6 + $0x10] sm:$0xff] %v5511
        %5520 = vst [vmem:[#allocation6 + $0x18] sm:$0xff] %v5512
        %5521 = vst [vmem:[#allocation6 + $0x20] sm:$0xff] %v5513
        %5522 = vst [vmem:[#allocation6 + $0x28] sm:$0xff] %v5514
        %5523 = vst [vmem:[#allocation6 + $0x30] sm:$0xff] %v5515
        %5524 = vst [vmem:[#allocation6 + $0x38] sm:$0xff] %v5516
        %v5525 = vld [vmem:[#allocation5 + $0xa] sm:$0xff]
        %v5526 = vld [vmem:[#allocation5 + $0x12] sm:$0xff]
        %v5527 = vld [vmem:[#allocation5 + $0x1a] sm:$0xff]
        %v5528 = vld [vmem:[#allocation5 + $0x22] sm:$0xff]
        %v5529 = vld [vmem:[#allocation5 + $0x2a] sm:$0xff]
        %v5530 = vld [vmem:[#allocation5 + $0x32] sm:$0xff]
        %v5531 = vld [vmem:[#allocation5 + $0x3a] sm:$0xff]
        %v5532 = vld [vmem:[#allocation5 + $0x42] sm:$0xff]
        %s5533 = scalar_lea.vmem %s5, 640
        %v5534 = vld [vmem:[%s5533] sm:$0xff]
        %v5535 = vld [vmem:[%s5533 + $0x8] sm:$0xff]
        %v5536 = vld [vmem:[%s5533 + $0x10] sm:$0xff]
        %v5537 = vld [vmem:[%s5533 + $0x18] sm:$0xff]
        %v5538 = vld [vmem:[%s5533 + $0x20] sm:$0xff]
        %v5539 = vld [vmem:[%s5533 + $0x28] sm:$0xff]
        %v5540 = vld [vmem:[%s5533 + $0x30] sm:$0xff]
        %v5541 = vld [vmem:[%s5533 + $0x38] sm:$0xff]
        %v5542 = vld [vmem:[%s5533 + $0x40] sm:$0xff]
        %v5543 = vld [vmem:[%s5533 + $0x48] sm:$0xff]
        %v5544 = vld [vmem:[%s5533 + $0x50] sm:$0xff]
        %v5545 = vld [vmem:[%s5533 + $0x58] sm:$0xff]
        %v5546 = vld [vmem:[%s5533 + $0x60] sm:$0xff]
        %v5547 = vld [vmem:[%s5533 + $0x68] sm:$0xff]
        %v5548 = vld [vmem:[%s5533 + $0x70] sm:$0xff]
        %v5549 = vld [vmem:[%s5533 + $0x78] sm:$0xff]
        %5550 = vmatprep.subr.mxu0 0.0
        %5551 = vmatpush1.msra.mxu0 %v5534
        %5552 = vmatprep.subr.mxu0 0.0
        %5553 = vmatpush1.msra.mxu0 %v5535
        %5554 = vmatprep.subr.mxu0 0.0
        %5555 = vmatpush1.msra.mxu0 %v5536
        %5556 = vmatprep.subr.mxu0 0.0
        %5557 = vmatpush1.msra.mxu0 %v5537
        %5558 = vmatprep.subr.mxu0 0.0
        %5559 = vmatpush1.msra.mxu0 %v5538
        %5560 = vmatprep.subr.mxu0 0.0
        %5561 = vmatpush1.msra.mxu0 %v5539
        %5562 = vmatprep.subr.mxu0 0.0
        %5563 = vmatpush1.msra.mxu0 %v5540
        %5564 = vmatprep.subr.mxu0 0.0
        %5565 = vmatpush1.msra.mxu0 %v5541
        %5566 = vmatprep.subr.mxu0 0.0
        %5567 = vmatpush1.msra.mxu0 %v5542
        %5568 = vmatprep.subr.mxu0 0.0
        %5569 = vmatpush1.msra.mxu0 %v5543
        %5570 = vmatprep.subr.mxu0 0.0
        %5571 = vmatpush1.msra.mxu0 %v5544
        %5572 = vmatprep.subr.mxu0 0.0
        %5573 = vmatpush1.msra.mxu0 %v5545
        %5574 = vmatprep.subr.mxu0 0.0
        %5575 = vmatpush1.msra.mxu0 %v5546
        %5576 = vmatprep.subr.mxu0 0.0
        %5577 = vmatpush1.msra.mxu0 %v5547
        %5578 = vmatprep.subr.mxu0 0.0
        %5579 = vmatpush1.msra.mxu0 %v5548
        %5580 = vmatprep.subr.mxu0 0.0
        %5581 = vmatpush1.msra.mxu0 %v5549
        %5582 = vmatprep.subr.mxu0 0.0
        %5583 = vmatpush1.msra.mxu0 0.0
        %5584 = vmatprep.subr.mxu0 0.0
        %5585 = vmatpush1.msra.mxu0 0.0
        %5586 = vmatprep.subr.mxu0 0.0
        %5587 = vmatpush1.msra.mxu0 0.0
        %5588 = vmatprep.subr.mxu0 0.0
        %5589 = vmatpush1.msra.mxu0 0.0
        %5590 = vmatprep.subr.mxu0 0.0
        %5591 = vmatpush1.msra.mxu0 0.0
        %5592 = vmatprep.subr.mxu0 0.0
        %5593 = vmatpush1.msra.mxu0 0.0
        %5594 = vmatprep.subr.mxu0 0.0
        %5595 = vmatpush1.msra.mxu0 0.0
        %5596 = vmatprep.subr.mxu0 0.0
        %5597 = vmatpush1.msra.mxu0 0.0
        %5598 = vmatprep.subr.mxu0 0.0
        %5599 = vmatpush1.msra.mxu0 0.0
        %5600 = vmatprep.subr.mxu0 0.0
        %5601 = vmatpush1.msra.mxu0 0.0
        %5602 = vmatprep.subr.mxu0 0.0
        %5603 = vmatpush1.msra.mxu0 0.0
        %5604 = vmatprep.subr.mxu0 0.0
        %5605 = vmatpush1.msra.mxu0 0.0
        %5606 = vmatprep.subr.mxu0 0.0
        %5607 = vmatpush1.msra.mxu0 0.0
        %5608 = vmatprep.subr.mxu0 0.0
        %5609 = vmatpush1.msra.mxu0 0.0
        %5610 = vmatprep.subr.mxu0 0.0
        %5611 = vmatpush1.msra.mxu0 0.0
        %5612 = vmatprep.subr.mxu0 0.0
        %5613 = vmatpush1.msra.mxu0 0.0
        %5614 = vmatprep.mubr.f32.mxu0 0.0
        %5615 = vmatmul.mubr.f32.gmra.mrb[0].mxu0 %v5525
        %v5616 = vpop.f32.mrb[0].mxu0
        %v5617 = vadd.f32 0.0, %v5616
        %v5618 = vpop.f32.mrb[0].mxu0
        %5619 = vmatprep.mubr.f32.mxu0 0.0
        %5620 = vmatmul.mubr.f32.gmra.mrb[0].mxu0 %v5526
        %v5621 = vpop.f32.mrb[0].mxu0
        %v5622 = vadd.f32 0.0, %v5621
        %v5623 = vpop.f32.mrb[0].mxu0
        %5624 = vmatprep.mubr.f32.mxu0 0.0
        %5625 = vmatmul.mubr.f32.gmra.mrb[0].mxu0 %v5527
        %v5626 = vpop.f32.mrb[0].mxu0
        %v5627 = vadd.f32 0.0, %v5626
        %v5628 = vpop.f32.mrb[0].mxu0
        %5629 = vmatprep.mubr.f32.mxu0 0.0
        %5630 = vmatmul.mubr.f32.gmra.mrb[0].mxu0 %v5528
        %v5631 = vpop.f32.mrb[0].mxu0
        %v5632 = vadd.f32 0.0, %v5631
        %v5633 = vpop.f32.mrb[0].mxu0
        %5634 = vmatprep.mubr.f32.mxu0 0.0
        %5635 = vmatmul.mubr.f32.gmra.mrb[0].mxu0 %v5529
        %v5636 = vpop.f32.mrb[0].mxu0
        %v5637 = vadd.f32 0.0, %v5636
        %v5638 = vpop.f32.mrb[0].mxu0
        %5639 = vmatprep.mubr.f32.mxu0 0.0
        %5640 = vmatmul.mubr.f32.gmra.mrb[0].mxu0 %v5530
        %v5641 = vpop.f32.mrb[0].mxu0
        %v5642 = vadd.f32 0.0, %v5641
        %v5643 = vpop.f32.mrb[0].mxu0
        %5644 = vmatprep.mubr.f32.mxu0 0.0
        %5645 = vmatmul.mubr.f32.gmra.mrb[0].mxu0 %v5531
        %v5646 = vpop.f32.mrb[0].mxu0
        %v5647 = vadd.f32 0.0, %v5646
        %v5648 = vpop.f32.mrb[0].mxu0
        %5649 = vmatprep.mubr.f32.mxu0 0.0
        %5650 = vmatmul.mubr.f32.gmra.mrb[0].mxu0 %v5532
        %v5651 = vpop.f32.mrb[0].mxu0
        %v5652 = vadd.f32 0.0, %v5651
        %v5653 = vpop.f32.mrb[0].mxu0
        %5654 = vdwg.mxu0
        %v5655 = vld [vmem:[#allocation6] sm:$0xff]
        %v5656 = vld [vmem:[#allocation6 + $0x8] sm:$0xff]
        %v5657 = vld [vmem:[#allocation6 + $0x10] sm:$0xff]
        %v5658 = vld [vmem:[#allocation6 + $0x18] sm:$0xff]
        %v5659 = vld [vmem:[#allocation6 + $0x20] sm:$0xff]
        %v5660 = vld [vmem:[#allocation6 + $0x28] sm:$0xff]
        %v5661 = vld [vmem:[#allocation6 + $0x30] sm:$0xff]
        %v5662 = vld [vmem:[#allocation6 + $0x38] sm:$0xff]
        %v5663 = vadd.f32 %v5655, %v5617
        %v5664 = vadd.f32 %v5656, %v5622
        %v5665 = vadd.f32 %v5657, %v5627
        %v5666 = vadd.f32 %v5658, %v5632
        %v5667 = vadd.f32 %v5659, %v5637
        %v5668 = vadd.f32 %v5660, %v5642
        %v5669 = vadd.f32 %v5661, %v5647
        %v5670 = vadd.f32 %v5662, %v5652
        %5671 = vst [vmem:[#allocation6] sm:$0xff] %v5663
        %5672 = vst [vmem:[#allocation6 + $0x8] sm:$0xff] %v5664
        %5673 = vst [vmem:[#allocation6 + $0x10] sm:$0xff] %v5665
        %5674 = vst [vmem:[#allocation6 + $0x18] sm:$0xff] %v5666
        %5675 = vst [vmem:[#allocation6 + $0x20] sm:$0xff] %v5667
        %5676 = vst [vmem:[#allocation6 + $0x28] sm:$0xff] %v5668
        %5677 = vst [vmem:[#allocation6 + $0x30] sm:$0xff] %v5669
        %5678 = vst [vmem:[#allocation6 + $0x38] sm:$0xff] %v5670
        %v5679 = vld [vmem:[#allocation5 + $0x10] sm:$0xff]
        %v5680 = vld [vmem:[#allocation5 + $0x18] sm:$0xff]
        %v5681 = vld [vmem:[#allocation5 + $0x20] sm:$0xff]
        %v5682 = vld [vmem:[#allocation5 + $0x28] sm:$0xff]
        %v5683 = vld [vmem:[#allocation5 + $0x30] sm:$0xff]
        %v5684 = vld [vmem:[#allocation5 + $0x38] sm:$0xff]
        %v5685 = vld [vmem:[#allocation5 + $0x40] sm:$0xff]
        %v5686 = vld [vmem:[#allocation5 + $0x48] sm:$0xff]
        %s5687 = scalar_lea.vmem %s5, 768
        %v5688 = vld [vmem:[%s5687] sm:$0xff]
        %v5689 = vld [vmem:[%s5687 + $0x8] sm:$0xff]
        %v5690 = vld [vmem:[%s5687 + $0x10] sm:$0xff]
        %v5691 = vld [vmem:[%s5687 + $0x18] sm:$0xff]
        %v5692 = vld [vmem:[%s5687 + $0x20] sm:$0xff]
        %v5693 = vld [vmem:[%s5687 + $0x28] sm:$0xff]
        %v5694 = vld [vmem:[%s5687 + $0x30] sm:$0xff]
        %v5695 = vld [vmem:[%s5687 + $0x38] sm:$0xff]
        %v5696 = vld [vmem:[%s5687 + $0x40] sm:$0xff]
        %v5697 = vld [vmem:[%s5687 + $0x48] sm:$0xff]
        %v5698 = vld [vmem:[%s5687 + $0x50] sm:$0xff]
        %v5699 = vld [vmem:[%s5687 + $0x58] sm:$0xff]
        %v5700 = vld [vmem:[%s5687 + $0x60] sm:$0xff]
        %v5701 = vld [vmem:[%s5687 + $0x68] sm:$0xff]
        %v5702 = vld [vmem:[%s5687 + $0x70] sm:$0xff]
        %v5703 = vld [vmem:[%s5687 + $0x78] sm:$0xff]
        %5704 = vmatprep.subr.mxu0 0.0
        %5705 = vmatpush1.msra.mxu0 %v5688
        %5706 = vmatprep.subr.mxu0 0.0
        %5707 = vmatpush1.msra.mxu0 %v5689
        %5708 = vmatprep.subr.mxu0 0.0
        %5709 = vmatpush1.msra.mxu0 %v5690
        %5710 = vmatprep.subr.mxu0 0.0
        %5711 = vmatpush1.msra.mxu0 %v5691
        %5712 = vmatprep.subr.mxu0 0.0
        %5713 = vmatpush1.msra.mxu0 %v5692
        %5714 = vmatprep.subr.mxu0 0.0
        %5715 = vmatpush1.msra.mxu0 %v5693
        %5716 = vmatprep.subr.mxu0 0.0
        %5717 = vmatpush1.msra.mxu0 %v5694
        %5718 = vmatprep.subr.mxu0 0.0
        %5719 = vmatpush1.msra.mxu0 %v5695
        %5720 = vmatprep.subr.mxu0 0.0
        %5721 = vmatpush1.msra.mxu0 %v5696
        %5722 = vmatprep.subr.mxu0 0.0
        %5723 = vmatpush1.msra.mxu0 %v5697
        %5724 = vmatprep.subr.mxu0 0.0
        %5725 = vmatpush1.msra.mxu0 %v5698
        %5726 = vmatprep.subr.mxu0 0.0
        %5727 = vmatpush1.msra.mxu0 %v5699
        %5728 = vmatprep.subr.mxu0 0.0
        %5729 = vmatpush1.msra.mxu0 %v5700
        %5730 = vmatprep.subr.mxu0 0.0
        %5731 = vmatpush1.msra.mxu0 %v5701
        %5732 = vmatprep.subr.mxu0 0.0
        %5733 = vmatpush1.msra.mxu0 %v5702
        %5734 = vmatprep.subr.mxu0 0.0
        %5735 = vmatpush1.msra.mxu0 %v5703
        %5736 = vmatprep.subr.mxu0 0.0
        %5737 = vmatpush1.msra.mxu0 0.0
        %5738 = vmatprep.subr.mxu0 0.0
        %5739 = vmatpush1.msra.mxu0 0.0
        %5740 = vmatprep.subr.mxu0 0.0
        %5741 = vmatpush1.msra.mxu0 0.0
        %5742 = vmatprep.subr.mxu0 0.0
        %5743 = vmatpush1.msra.mxu0 0.0
        %5744 = vmatprep.subr.mxu0 0.0
        %5745 = vmatpush1.msra.mxu0 0.0
        %5746 = vmatprep.subr.mxu0 0.0
        %5747 = vmatpush1.msra.mxu0 0.0
        %5748 = vmatprep.subr.mxu0 0.0
        %5749 = vmatpush1.msra.mxu0 0.0
        %5750 = vmatprep.subr.mxu0 0.0
        %5751 = vmatpush1.msra.mxu0 0.0
        %5752 = vmatprep.subr.mxu0 0.0
        %5753 = vmatpush1.msra.mxu0 0.0
        %5754 = vmatprep.subr.mxu0 0.0
        %5755 = vmatpush1.msra.mxu0 0.0
        %5756 = vmatprep.subr.mxu0 0.0
        %5757 = vmatpush1.msra.mxu0 0.0
        %5758 = vmatprep.subr.mxu0 0.0
        %5759 = vmatpush1.msra.mxu0 0.0
        %5760 = vmatprep.subr.mxu0 0.0
        %5761 = vmatpush1.msra.mxu0 0.0
        %5762 = vmatprep.subr.mxu0 0.0
        %5763 = vmatpush1.msra.mxu0 0.0
        %5764 = vmatprep.subr.mxu0 0.0
        %5765 = vmatpush1.msra.mxu0 0.0
        %5766 = vmatprep.subr.mxu0 0.0
        %5767 = vmatpush1.msra.mxu0 0.0
        %5768 = vmatprep.mubr.f32.mxu0 0.0
        %5769 = vmatmul.mubr.f32.gmra.mrb[0].mxu0 %v5679
        %v5770 = vpop.f32.mrb[0].mxu0
        %v5771 = vadd.f32 0.0, %v5770
        %v5772 = vpop.f32.mrb[0].mxu0
        %5773 = vmatprep.mubr.f32.mxu0 0.0
        %5774 = vmatmul.mubr.f32.gmra.mrb[0].mxu0 %v5680
        %v5775 = vpop.f32.mrb[0].mxu0
        %v5776 = vadd.f32 0.0, %v5775
        %v5777 = vpop.f32.mrb[0].mxu0
        %5778 = vmatprep.mubr.f32.mxu0 0.0
        %5779 = vmatmul.mubr.f32.gmra.mrb[0].mxu0 %v5681
        %v5780 = vpop.f32.mrb[0].mxu0
        %v5781 = vadd.f32 0.0, %v5780
        %v5782 = vpop.f32.mrb[0].mxu0
        %5783 = vmatprep.mubr.f32.mxu0 0.0
        %5784 = vmatmul.mubr.f32.gmra.mrb[0].mxu0 %v5682
        %v5785 = vpop.f32.mrb[0].mxu0
        %v5786 = vadd.f32 0.0, %v5785
        %v5787 = vpop.f32.mrb[0].mxu0
        %5788 = vmatprep.mubr.f32.mxu0 0.0
        %5789 = vmatmul.mubr.f32.gmra.mrb[0].mxu0 %v5683
        %v5790 = vpop.f32.mrb[0].mxu0
        %v5791 = vadd.f32 0.0, %v5790
        %v5792 = vpop.f32.mrb[0].mxu0
        %5793 = vmatprep.mubr.f32.mxu0 0.0
        %5794 = vmatmul.mubr.f32.gmra.mrb[0].mxu0 %v5684
        %v5795 = vpop.f32.mrb[0].mxu0
        %v5796 = vadd.f32 0.0, %v5795
        %v5797 = vpop.f32.mrb[0].mxu0
        %5798 = vmatprep.mubr.f32.mxu0 0.0
        %5799 = vmatmul.mubr.f32.gmra.mrb[0].mxu0 %v5685
        %v5800 = vpop.f32.mrb[0].mxu0
        %v5801 = vadd.f32 0.0, %v5800
        %v5802 = vpop.f32.mrb[0].mxu0
        %5803 = vmatprep.mubr.f32.mxu0 0.0
        %5804 = vmatmul.mubr.f32.gmra.mrb[0].mxu0 %v5686
        %v5805 = vpop.f32.mrb[0].mxu0
        %v5806 = vadd.f32 0.0, %v5805
        %v5807 = vpop.f32.mrb[0].mxu0
        %5808 = vdwg.mxu0
        %v5809 = vld [vmem:[#allocation6] sm:$0xff]
        %v5810 = vld [vmem:[#allocation6 + $0x8] sm:$0xff]
        %v5811 = vld [vmem:[#allocation6 + $0x10] sm:$0xff]
        %v5812 = vld [vmem:[#allocation6 + $0x18] sm:$0xff]
        %v5813 = vld [vmem:[#allocation6 + $0x20] sm:$0xff]
        %v5814 = vld [vmem:[#allocation6 + $0x28] sm:$0xff]
        %v5815 = vld [vmem:[#allocation6 + $0x30] sm:$0xff]
        %v5816 = vld [vmem:[#allocation6 + $0x38] sm:$0xff]
        %v5817 = vadd.f32 %v5809, %v5771
        %v5818 = vadd.f32 %v5810, %v5776
        %v5819 = vadd.f32 %v5811, %v5781
        %v5820 = vadd.f32 %v5812, %v5786
        %v5821 = vadd.f32 %v5813, %v5791
        %v5822 = vadd.f32 %v5814, %v5796
        %v5823 = vadd.f32 %v5815, %v5801
        %v5824 = vadd.f32 %v5816, %v5806
        %5825 = vst [vmem:[#allocation6] sm:$0xff] %v5817
        %5826 = vst [vmem:[#allocation6 + $0x8] sm:$0xff] %v5818
        %5827 = vst [vmem:[#allocation6 + $0x10] sm:$0xff] %v5819
        %5828 = vst [vmem:[#allocation6 + $0x18] sm:$0xff] %v5820
        %5829 = vst [vmem:[#allocation6 + $0x20] sm:$0xff] %v5821
        %5830 = vst [vmem:[#allocation6 + $0x28] sm:$0xff] %v5822
        %5831 = vst [vmem:[#allocation6 + $0x30] sm:$0xff] %v5823
        %5832 = vst [vmem:[#allocation6 + $0x38] sm:$0xff] %v5824
        %v5833 = vld [vmem:[#allocation5 + $0x11] sm:$0xff]
        %v5834 = vld [vmem:[#allocation5 + $0x19] sm:$0xff]
        %v5835 = vld [vmem:[#allocation5 + $0x21] sm:$0xff]
        %v5836 = vld [vmem:[#allocation5 + $0x29] sm:$0xff]
        %v5837 = vld [vmem:[#allocation5 + $0x31] sm:$0xff]
        %v5838 = vld [vmem:[#allocation5 + $0x39] sm:$0xff]
        %v5839 = vld [vmem:[#allocation5 + $0x41] sm:$0xff]
        %v5840 = vld [vmem:[#allocation5 + $0x49] sm:$0xff]
        %s5841 = scalar_lea.vmem %s5, 896
        %v5842 = vld [vmem:[%s5841] sm:$0xff]
        %v5843 = vld [vmem:[%s5841 + $0x8] sm:$0xff]
        %v5844 = vld [vmem:[%s5841 + $0x10] sm:$0xff]
        %v5845 = vld [vmem:[%s5841 + $0x18] sm:$0xff]
        %v5846 = vld [vmem:[%s5841 + $0x20] sm:$0xff]
        %v5847 = vld [vmem:[%s5841 + $0x28] sm:$0xff]
        %v5848 = vld [vmem:[%s5841 + $0x30] sm:$0xff]
        %v5849 = vld [vmem:[%s5841 + $0x38] sm:$0xff]
        %v5850 = vld [vmem:[%s5841 + $0x40] sm:$0xff]
        %v5851 = vld [vmem:[%s5841 + $0x48] sm:$0xff]
        %v5852 = vld [vmem:[%s5841 + $0x50] sm:$0xff]
        %v5853 = vld [vmem:[%s5841 + $0x58] sm:$0xff]
        %v5854 = vld [vmem:[%s5841 + $0x60] sm:$0xff]
        %v5855 = vld [vmem:[%s5841 + $0x68] sm:$0xff]
        %v5856 = vld [vmem:[%s5841 + $0x70] sm:$0xff]
        %v5857 = vld [vmem:[%s5841 + $0x78] sm:$0xff]
        %5858 = vmatprep.subr.mxu0 0.0
        %5859 = vmatpush1.msra.mxu0 %v5842
        %5860 = vmatprep.subr.mxu0 0.0
        %5861 = vmatpush1.msra.mxu0 %v5843
        %5862 = vmatprep.subr.mxu0 0.0
        %5863 = vmatpush1.msra.mxu0 %v5844
        %5864 = vmatprep.subr.mxu0 0.0
        %5865 = vmatpush1.msra.mxu0 %v5845
        %5866 = vmatprep.subr.mxu0 0.0
        %5867 = vmatpush1.msra.mxu0 %v5846
        %5868 = vmatprep.subr.mxu0 0.0
        %5869 = vmatpush1.msra.mxu0 %v5847
        %5870 = vmatprep.subr.mxu0 0.0
        %5871 = vmatpush1.msra.mxu0 %v5848
        %5872 = vmatprep.subr.mxu0 0.0
        %5873 = vmatpush1.msra.mxu0 %v5849
        %5874 = vmatprep.subr.mxu0 0.0
        %5875 = vmatpush1.msra.mxu0 %v5850
        %5876 = vmatprep.subr.mxu0 0.0
        %5877 = vmatpush1.msra.mxu0 %v5851
        %5878 = vmatprep.subr.mxu0 0.0
        %5879 = vmatpush1.msra.mxu0 %v5852
        %5880 = vmatprep.subr.mxu0 0.0
        %5881 = vmatpush1.msra.mxu0 %v5853
        %5882 = vmatprep.subr.mxu0 0.0
        %5883 = vmatpush1.msra.mxu0 %v5854
        %5884 = vmatprep.subr.mxu0 0.0
        %5885 = vmatpush1.msra.mxu0 %v5855
        %5886 = vmatprep.subr.mxu0 0.0
        %5887 = vmatpush1.msra.mxu0 %v5856
        %5888 = vmatprep.subr.mxu0 0.0
        %5889 = vmatpush1.msra.mxu0 %v5857
        %5890 = vmatprep.subr.mxu0 0.0
        %5891 = vmatpush1.msra.mxu0 0.0
        %5892 = vmatprep.subr.mxu0 0.0
        %5893 = vmatpush1.msra.mxu0 0.0
        %5894 = vmatprep.subr.mxu0 0.0
        %5895 = vmatpush1.msra.mxu0 0.0
        %5896 = vmatprep.subr.mxu0 0.0
        %5897 = vmatpush1.msra.mxu0 0.0
        %5898 = vmatprep.subr.mxu0 0.0
        %5899 = vmatpush1.msra.mxu0 0.0
        %5900 = vmatprep.subr.mxu0 0.0
        %5901 = vmatpush1.msra.mxu0 0.0
        %5902 = vmatprep.subr.mxu0 0.0
        %5903 = vmatpush1.msra.mxu0 0.0
        %5904 = vmatprep.subr.mxu0 0.0
        %5905 = vmatpush1.msra.mxu0 0.0
        %5906 = vmatprep.subr.mxu0 0.0
        %5907 = vmatpush1.msra.mxu0 0.0
        %5908 = vmatprep.subr.mxu0 0.0
        %5909 = vmatpush1.msra.mxu0 0.0
        %5910 = vmatprep.subr.mxu0 0.0
        %5911 = vmatpush1.msra.mxu0 0.0
        %5912 = vmatprep.subr.mxu0 0.0
        %5913 = vmatpush1.msra.mxu0 0.0
        %5914 = vmatprep.subr.mxu0 0.0
        %5915 = vmatpush1.msra.mxu0 0.0
        %5916 = vmatprep.subr.mxu0 0.0
        %5917 = vmatpush1.msra.mxu0 0.0
        %5918 = vmatprep.subr.mxu0 0.0
        %5919 = vmatpush1.msra.mxu0 0.0
        %5920 = vmatprep.subr.mxu0 0.0
        %5921 = vmatpush1.msra.mxu0 0.0
        %5922 = vmatprep.mubr.f32.mxu0 0.0
        %5923 = vmatmul.mubr.f32.gmra.mrb[0].mxu0 %v5833
        %v5924 = vpop.f32.mrb[0].mxu0
        %v5925 = vadd.f32 0.0, %v5924
        %v5926 = vpop.f32.mrb[0].mxu0
        %5927 = vmatprep.mubr.f32.mxu0 0.0
        %5928 = vmatmul.mubr.f32.gmra.mrb[0].mxu0 %v5834
        %v5929 = vpop.f32.mrb[0].mxu0
        %v5930 = vadd.f32 0.0, %v5929
        %v5931 = vpop.f32.mrb[0].mxu0
        %5932 = vmatprep.mubr.f32.mxu0 0.0
        %5933 = vmatmul.mubr.f32.gmra.mrb[0].mxu0 %v5835
        %v5934 = vpop.f32.mrb[0].mxu0
        %v5935 = vadd.f32 0.0, %v5934
        %v5936 = vpop.f32.mrb[0].mxu0
        %5937 = vmatprep.mubr.f32.mxu0 0.0
        %5938 = vmatmul.mubr.f32.gmra.mrb[0].mxu0 %v5836
        %v5939 = vpop.f32.mrb[0].mxu0
        %v5940 = vadd.f32 0.0, %v5939
        %v5941 = vpop.f32.mrb[0].mxu0
        %5942 = vmatprep.mubr.f32.mxu0 0.0
        %5943 = vmatmul.mubr.f32.gmra.mrb[0].mxu0 %v5837
        %v5944 = vpop.f32.mrb[0].mxu0
        %v5945 = vadd.f32 0.0, %v5944
        %v5946 = vpop.f32.mrb[0].mxu0
        %5947 = vmatprep.mubr.f32.mxu0 0.0
        %5948 = vmatmul.mubr.f32.gmra.mrb[0].mxu0 %v5838
        %v5949 = vpop.f32.mrb[0].mxu0
        %v5950 = vadd.f32 0.0, %v5949
        %v5951 = vpop.f32.mrb[0].mxu0
        %5952 = vmatprep.mubr.f32.mxu0 0.0
        %5953 = vmatmul.mubr.f32.gmra.mrb[0].mxu0 %v5839
        %v5954 = vpop.f32.mrb[0].mxu0
        %v5955 = vadd.f32 0.0, %v5954
        %v5956 = vpop.f32.mrb[0].mxu0
        %5957 = vmatprep.mubr.f32.mxu0 0.0
        %5958 = vmatmul.mubr.f32.gmra.mrb[0].mxu0 %v5840
        %v5959 = vpop.f32.mrb[0].mxu0
        %v5960 = vadd.f32 0.0, %v5959
        %v5961 = vpop.f32.mrb[0].mxu0
        %5962 = vdwg.mxu0
        %v5963 = vld [vmem:[#allocation6] sm:$0xff]
        %v5964 = vld [vmem:[#allocation6 + $0x8] sm:$0xff]
        %v5965 = vld [vmem:[#allocation6 + $0x10] sm:$0xff]
        %v5966 = vld [vmem:[#allocation6 + $0x18] sm:$0xff]
        %v5967 = vld [vmem:[#allocation6 + $0x20] sm:$0xff]
        %v5968 = vld [vmem:[#allocation6 + $0x28] sm:$0xff]
        %v5969 = vld [vmem:[#allocation6 + $0x30] sm:$0xff]
        %v5970 = vld [vmem:[#allocation6 + $0x38] sm:$0xff]
        %v5971 = vadd.f32 %v5963, %v5925
        %v5972 = vadd.f32 %v5964, %v5930
        %v5973 = vadd.f32 %v5965, %v5935
        %v5974 = vadd.f32 %v5966, %v5940
        %v5975 = vadd.f32 %v5967, %v5945
        %v5976 = vadd.f32 %v5968, %v5950
        %v5977 = vadd.f32 %v5969, %v5955
        %v5978 = vadd.f32 %v5970, %v5960
        %5979 = vst [vmem:[#allocation6] sm:$0xff] %v5971
        %5980 = vst [vmem:[#allocation6 + $0x8] sm:$0xff] %v5972
        %5981 = vst [vmem:[#allocation6 + $0x10] sm:$0xff] %v5973
        %5982 = vst [vmem:[#allocation6 + $0x18] sm:$0xff] %v5974
        %5983 = vst [vmem:[#allocation6 + $0x20] sm:$0xff] %v5975
        %5984 = vst [vmem:[#allocation6 + $0x28] sm:$0xff] %v5976
        %5985 = vst [vmem:[#allocation6 + $0x30] sm:$0xff] %v5977
        %5986 = vst [vmem:[#allocation6 + $0x38] sm:$0xff] %v5978
        %v5987 = vld [vmem:[#allocation5 + $0x12] sm:$0xff]
        %v5988 = vld [vmem:[#allocation5 + $0x1a] sm:$0xff]
        %v5989 = vld [vmem:[#allocation5 + $0x22] sm:$0xff]
        %v5990 = vld [vmem:[#allocation5 + $0x2a] sm:$0xff]
        %v5991 = vld [vmem:[#allocation5 + $0x32] sm:$0xff]
        %v5992 = vld [vmem:[#allocation5 + $0x3a] sm:$0xff]
        %v5993 = vld [vmem:[#allocation5 + $0x42] sm:$0xff]
        %v5994 = vld [vmem:[#allocation5 + $0x4a] sm:$0xff]
        %s5995 = scalar_lea.vmem %s5, 1024
        %v5996 = vld [vmem:[%s5995] sm:$0xff]
        %v5997 = vld [vmem:[%s5995 + $0x8] sm:$0xff]
        %v5998 = vld [vmem:[%s5995 + $0x10] sm:$0xff]
        %v5999 = vld [vmem:[%s5995 + $0x18] sm:$0xff]
        %v6000 = vld [vmem:[%s5995 + $0x20] sm:$0xff]
        %v6001 = vld [vmem:[%s5995 + $0x28] sm:$0xff]
        %v6002 = vld [vmem:[%s5995 + $0x30] sm:$0xff]
        %v6003 = vld [vmem:[%s5995 + $0x38] sm:$0xff]
        %v6004 = vld [vmem:[%s5995 + $0x40] sm:$0xff]
        %v6005 = vld [vmem:[%s5995 + $0x48] sm:$0xff]
        %v6006 = vld [vmem:[%s5995 + $0x50] sm:$0xff]
        %v6007 = vld [vmem:[%s5995 + $0x58] sm:$0xff]
        %v6008 = vld [vmem:[%s5995 + $0x60] sm:$0xff]
        %v6009 = vld [vmem:[%s5995 + $0x68] sm:$0xff]
        %v6010 = vld [vmem:[%s5995 + $0x70] sm:$0xff]
        %v6011 = vld [vmem:[%s5995 + $0x78] sm:$0xff]
        %6012 = vmatprep.subr.mxu0 0.0
        %6013 = vmatpush1.msra.mxu0 %v5996
        %6014 = vmatprep.subr.mxu0 0.0
        %6015 = vmatpush1.msra.mxu0 %v5997
        %6016 = vmatprep.subr.mxu0 0.0
        %6017 = vmatpush1.msra.mxu0 %v5998
        %6018 = vmatprep.subr.mxu0 0.0
        %6019 = vmatpush1.msra.mxu0 %v5999
        %6020 = vmatprep.subr.mxu0 0.0
        %6021 = vmatpush1.msra.mxu0 %v6000
        %6022 = vmatprep.subr.mxu0 0.0
        %6023 = vmatpush1.msra.mxu0 %v6001
        %6024 = vmatprep.subr.mxu0 0.0
        %6025 = vmatpush1.msra.mxu0 %v6002
        %6026 = vmatprep.subr.mxu0 0.0
        %6027 = vmatpush1.msra.mxu0 %v6003
        %6028 = vmatprep.subr.mxu0 0.0
        %6029 = vmatpush1.msra.mxu0 %v6004
        %6030 = vmatprep.subr.mxu0 0.0
        %6031 = vmatpush1.msra.mxu0 %v6005
        %6032 = vmatprep.subr.mxu0 0.0
        %6033 = vmatpush1.msra.mxu0 %v6006
        %6034 = vmatprep.subr.mxu0 0.0
        %6035 = vmatpush1.msra.mxu0 %v6007
        %6036 = vmatprep.subr.mxu0 0.0
        %6037 = vmatpush1.msra.mxu0 %v6008
        %6038 = vmatprep.subr.mxu0 0.0
        %6039 = vmatpush1.msra.mxu0 %v6009
        %6040 = vmatprep.subr.mxu0 0.0
        %6041 = vmatpush1.msra.mxu0 %v6010
        %6042 = vmatprep.subr.mxu0 0.0
        %6043 = vmatpush1.msra.mxu0 %v6011
        %6044 = vmatprep.subr.mxu0 0.0
        %6045 = vmatpush1.msra.mxu0 0.0
        %6046 = vmatprep.subr.mxu0 0.0
        %6047 = vmatpush1.msra.mxu0 0.0
        %6048 = vmatprep.subr.mxu0 0.0
        %6049 = vmatpush1.msra.mxu0 0.0
        %6050 = vmatprep.subr.mxu0 0.0
        %6051 = vmatpush1.msra.mxu0 0.0
        %6052 = vmatprep.subr.mxu0 0.0
        %6053 = vmatpush1.msra.mxu0 0.0
        %6054 = vmatprep.subr.mxu0 0.0
        %6055 = vmatpush1.msra.mxu0 0.0
        %6056 = vmatprep.subr.mxu0 0.0
        %6057 = vmatpush1.msra.mxu0 0.0
        %6058 = vmatprep.subr.mxu0 0.0
        %6059 = vmatpush1.msra.mxu0 0.0
        %6060 = vmatprep.subr.mxu0 0.0
        %6061 = vmatpush1.msra.mxu0 0.0
        %6062 = vmatprep.subr.mxu0 0.0
        %6063 = vmatpush1.msra.mxu0 0.0
        %6064 = vmatprep.subr.mxu0 0.0
        %6065 = vmatpush1.msra.mxu0 0.0
        %6066 = vmatprep.subr.mxu0 0.0
        %6067 = vmatpush1.msra.mxu0 0.0
        %6068 = vmatprep.subr.mxu0 0.0
        %6069 = vmatpush1.msra.mxu0 0.0
        %6070 = vmatprep.subr.mxu0 0.0
        %6071 = vmatpush1.msra.mxu0 0.0
        %6072 = vmatprep.subr.mxu0 0.0
        %6073 = vmatpush1.msra.mxu0 0.0
        %6074 = vmatprep.subr.mxu0 0.0
        %6075 = vmatpush1.msra.mxu0 0.0
        %6076 = vmatprep.mubr.f32.mxu0 0.0
        %6077 = vmatmul.mubr.f32.gmra.mrb[0].mxu0 %v5987
        %v6078 = vpop.f32.mrb[0].mxu0
        %v6079 = vadd.f32 0.0, %v6078
        %v6080 = vpop.f32.mrb[0].mxu0
        %6081 = vmatprep.mubr.f32.mxu0 0.0
        %6082 = vmatmul.mubr.f32.gmra.mrb[0].mxu0 %v5988
        %v6083 = vpop.f32.mrb[0].mxu0
        %v6084 = vadd.f32 0.0, %v6083
        %v6085 = vpop.f32.mrb[0].mxu0
        %6086 = vmatprep.mubr.f32.mxu0 0.0
        %6087 = vmatmul.mubr.f32.gmra.mrb[0].mxu0 %v5989
        %v6088 = vpop.f32.mrb[0].mxu0
        %v6089 = vadd.f32 0.0, %v6088
        %v6090 = vpop.f32.mrb[0].mxu0
        %6091 = vmatprep.mubr.f32.mxu0 0.0
        %6092 = vmatmul.mubr.f32.gmra.mrb[0].mxu0 %v5990
        %v6093 = vpop.f32.mrb[0].mxu0
        %v6094 = vadd.f32 0.0, %v6093
        %v6095 = vpop.f32.mrb[0].mxu0
        %6096 = vmatprep.mubr.f32.mxu0 0.0
        %6097 = vmatmul.mubr.f32.gmra.mrb[0].mxu0 %v5991
        %v6098 = vpop.f32.mrb[0].mxu0
        %v6099 = vadd.f32 0.0, %v6098
        %v6100 = vpop.f32.mrb[0].mxu0
        %6101 = vmatprep.mubr.f32.mxu0 0.0
        %6102 = vmatmul.mubr.f32.gmra.mrb[0].mxu0 %v5992
        %v6103 = vpop.f32.mrb[0].mxu0
        %v6104 = vadd.f32 0.0, %v6103
        %v6105 = vpop.f32.mrb[0].mxu0
        %6106 = vmatprep.mubr.f32.mxu0 0.0
        %6107 = vmatmul.mubr.f32.gmra.mrb[0].mxu0 %v5993
        %v6108 = vpop.f32.mrb[0].mxu0
        %v6109 = vadd.f32 0.0, %v6108
        %v6110 = vpop.f32.mrb[0].mxu0
        %6111 = vmatprep.mubr.f32.mxu0 0.0
        %6112 = vmatmul.mubr.f32.gmra.mrb[0].mxu0 %v5994
        %v6113 = vpop.f32.mrb[0].mxu0
        %v6114 = vadd.f32 0.0, %v6113
        %v6115 = vpop.f32.mrb[0].mxu0
        %6116 = vdwg.mxu0
        %v6117 = vld [vmem:[#allocation6] sm:$0xff]
        %v6118 = vld [vmem:[#allocation6 + $0x8] sm:$0xff]
        %v6119 = vld [vmem:[#allocation6 + $0x10] sm:$0xff]
        %v6120 = vld [vmem:[#allocation6 + $0x18] sm:$0xff]
        %v6121 = vld [vmem:[#allocation6 + $0x20] sm:$0xff]
        %v6122 = vld [vmem:[#allocation6 + $0x28] sm:$0xff]
        %v6123 = vld [vmem:[#allocation6 + $0x30] sm:$0xff]
        %v6124 = vld [vmem:[#allocation6 + $0x38] sm:$0xff]
        %v6125 = vadd.f32 %v6117, %v6079
        %v6126 = vadd.f32 %v6118, %v6084
        %v6127 = vadd.f32 %v6119, %v6089
        %v6128 = vadd.f32 %v6120, %v6094
        %v6129 = vadd.f32 %v6121, %v6099
        %v6130 = vadd.f32 %v6122, %v6104
        %v6131 = vadd.f32 %v6123, %v6109
        %v6132 = vadd.f32 %v6124, %v6114
        %6133 = vst [vmem:[#allocation6] sm:$0xff] %v6125
        %6134 = vst [vmem:[#allocation6 + $0x8] sm:$0xff] %v6126
        %6135 = vst [vmem:[#allocation6 + $0x10] sm:$0xff] %v6127
        %6136 = vst [vmem:[#allocation6 + $0x18] sm:$0xff] %v6128
        %6137 = vst [vmem:[#allocation6 + $0x20] sm:$0xff] %v6129
        %6138 = vst [vmem:[#allocation6 + $0x28] sm:$0xff] %v6130
        %6139 = vst [vmem:[#allocation6 + $0x30] sm:$0xff] %v6131
        %6140 = vst [vmem:[#allocation6 + $0x38] sm:$0xff] %v6132
        %v6141 = vld [vmem:[#allocation6] sm:$0xff]
        %v6142 = vld [vmem:[#allocation6 + $0x8] sm:$0xff]
        %v6143 = vld [vmem:[#allocation6 + $0x10] sm:$0xff]
        %v6144 = vld [vmem:[#allocation6 + $0x18] sm:$0xff]
        %v6145 = vld [vmem:[#allocation6 + $0x20] sm:$0xff]
        %v6146 = vld [vmem:[#allocation6 + $0x28] sm:$0xff]
        %v6147 = vld [vmem:[#allocation6 + $0x30] sm:$0xff]
        %v6148 = vld [vmem:[#allocation6 + $0x38] sm:$0xff]
        %v6149 = vld [vmem:[%s6] sm:$0x1]
        %v6151 = vlaneseq
        %v6152 = vshrl.u32 %v6151, 7
        %v6153 = vsub.s32 0, %v6152
        %v6154 = vrot.slane %v6149, %v6153
        %v6156 = vadd.f32 %v6141, %v6154
        %v6157 = vadd.f32 %v6142, %v6154
        %v6158 = vadd.f32 %v6143, %v6154
        %v6159 = vadd.f32 %v6144, %v6154
        %v6160 = vadd.f32 %v6145, %v6154
        %v6161 = vadd.f32 %v6146, %v6154
        %v6162 = vadd.f32 %v6147, %v6154
        %v6163 = vadd.f32 %v6148, %v6154
        %v6164 = vmax.f32 %v6156, 0.0
        %v6165 = vmax.f32 %v6157, 0.0
        %v6166 = vmax.f32 %v6158, 0.0
        %v6167 = vmax.f32 %v6159, 0.0
        %v6168 = vmax.f32 %v6160, 0.0
        %v6169 = vmax.f32 %v6161, 0.0
        %v6170 = vmax.f32 %v6162, 0.0
        %v6171 = vmax.f32 %v6163, 0.0
        %v6172 = vld [vmem:[#allocation5 + $0x9] sm:$0xff]
        %v6173 = vld [vmem:[#allocation5 + $0x11] sm:$0xff]
        %v6174 = vld [vmem:[#allocation5 + $0x19] sm:$0xff]
        %v6175 = vld [vmem:[#allocation5 + $0x21] sm:$0xff]
        %v6176 = vld [vmem:[#allocation5 + $0x29] sm:$0xff]
        %v6177 = vld [vmem:[#allocation5 + $0x31] sm:$0xff]
        %v6178 = vld [vmem:[#allocation5 + $0x39] sm:$0xff]
        %v6179 = vld [vmem:[#allocation5 + $0x41] sm:$0xff]
        %v6180 = vadd.f32 %v6164, %v6172
        %v6181 = vadd.f32 %v6165, %v6173
        %v6182 = vadd.f32 %v6166, %v6174
        %v6183 = vadd.f32 %v6167, %v6175
        %v6184 = vadd.f32 %v6168, %v6176
        %v6185 = vadd.f32 %v6169, %v6177
        %v6186 = vadd.f32 %v6170, %v6178
        %v6187 = vadd.f32 %v6171, %v6179
        %6188 = vst [vmem:[#allocation6] sm:$0xff] %v6180
        %6189 = vst [vmem:[#allocation6 + $0x8] sm:$0xff] %v6181
        %6190 = vst [vmem:[#allocation6 + $0x10] sm:$0xff] %v6182
        %6191 = vst [vmem:[#allocation6 + $0x18] sm:$0xff] %v6183
        %6192 = vst [vmem:[#allocation6 + $0x20] sm:$0xff] %v6184
        %6193 = vst [vmem:[#allocation6 + $0x28] sm:$0xff] %v6185
        %6194 = vst [vmem:[#allocation6 + $0x30] sm:$0xff] %v6186
        %6195 = vst [vmem:[#allocation6 + $0x38] sm:$0xff] %v6187
        %6196 = vst [vmem:[#allocation7] sm:$0xff] 0.0
        %6197 = vst [vmem:[#allocation7 + $0x8] sm:$0xff] 0.0
        %6198 = vst [vmem:[#allocation7 + $0x10] sm:$0xff] 0.0
        %v6199 = vld [vmem:[#allocation6] ss:$2 sm:$0x7]
        %s6200 = scalar_lea.vmem [#allocation6], 1
        %v6201 = vld [vmem:[%s6200] ss:$2 sm:$0x7]
        %v6202 = vadd.f32 %v6199, %v6201
        %s6203 = scalar_lea.vmem [#allocation6], 8
        %v6204 = vld [vmem:[%s6203] ss:$2 sm:$0x7]
        %v6205 = vadd.f32 %v6202, %v6204
        %s6206 = scalar_lea.vmem [#allocation6], 9
        %v6207 = vld [vmem:[%s6206] ss:$2 sm:$0x7]
        %v6208 = vadd.f32 %v6205, %v6207
        %v6209 = vmul.f32 %v6208, 0.25
        %6210 = vst [vmem:[#allocation7] sm:$0x7] %v6209
        %s6211 = scalar_lea.vmem [#allocation6], 16
        %v6212 = vld [vmem:[%s6211] ss:$2 sm:$0x7]
        %s6213 = scalar_lea.vmem [#allocation6], 17
        %v6214 = vld [vmem:[%s6213] ss:$2 sm:$0x7]
        %v6215 = vadd.f32 %v6212, %v6214
        %s6216 = scalar_lea.vmem [#allocation6], 24
        %v6217 = vld [vmem:[%s6216] ss:$2 sm:$0x7]
        %v6218 = vadd.f32 %v6215, %v6217
        %s6219 = scalar_lea.vmem [#allocation6], 25
        %v6220 = vld [vmem:[%s6219] ss:$2 sm:$0x7]
        %v6221 = vadd.f32 %v6218, %v6220
        %v6222 = vmul.f32 %v6221, 0.25
        %6223 = vst [vmem:[#allocation7 + $0x3] sm:$0x7] %v6222
        %s6224 = scalar_lea.vmem [#allocation6], 32
        %v6225 = vld [vmem:[%s6224] ss:$2 sm:$0x7]
        %s6226 = scalar_lea.vmem [#allocation6], 33
        %v6227 = vld [vmem:[%s6226] ss:$2 sm:$0x7]
        %v6228 = vadd.f32 %v6225, %v6227
        %s6229 = scalar_lea.vmem [#allocation6], 40
        %v6230 = vld [vmem:[%s6229] ss:$2 sm:$0x7]
        %v6231 = vadd.f32 %v6228, %v6230
        %s6232 = scalar_lea.vmem [#allocation6], 41
        %v6233 = vld [vmem:[%s6232] ss:$2 sm:$0x7]
        %v6234 = vadd.f32 %v6231, %v6233
        %v6235 = vmul.f32 %v6234, 0.25
        %6236 = vst [vmem:[#allocation7 + $0x6] sm:$0x7] %v6235
        %v6237 = vld [vmem:[#allocation7] sm:$0xff]
        %v6238 = vld [vmem:[#allocation7 + $0x8] sm:$0xff]
        %v6239 = vld [vmem:[%s7] sm:$0xff]
        %v6240 = vld [vmem:[%s7 + $0x8] sm:$0xff]
        %v6241 = vld [vmem:[%s7 + $0x10] sm:$0xff]
        %v6242 = vld [vmem:[%s7 + $0x18] sm:$0xff]
        %v6243 = vld [vmem:[%s7 + $0x20] sm:$0xff]
        %v6244 = vld [vmem:[%s7 + $0x28] sm:$0xff]
        %v6245 = vld [vmem:[%s7 + $0x30] sm:$0xff]
        %v6246 = vld [vmem:[%s7 + $0x38] sm:$0xff]
        %v6247 = vld [vmem:[%s7 + $0x40] sm:$0xff]
        %v6248 = vld [vmem:[%s7 + $0x48] sm:$0xff]
        %v6249 = vld [vmem:[%s7 + $0x50] sm:$0xff]
        %v6250 = vld [vmem:[%s7 + $0x58] sm:$0xff]
        %v6251 = vld [vmem:[%s7 + $0x60] sm:$0xff]
        %v6252 = vld [vmem:[%s7 + $0x68] sm:$0xff]
        %v6253 = vld [vmem:[%s7 + $0x70] sm:$0xff]
        %v6254 = vld [vmem:[%s7 + $0x78] sm:$0xff]
        %v6255 = vld [vmem:[#allocation7 + $0x1] sm:$0xff]
        %v6256 = vld [vmem:[#allocation7 + $0x9] sm:$0xff]
        %s6257 = scalar_lea.vmem %s7, 128
        %v6258 = vld [vmem:[%s6257] sm:$0xff]
        %v6259 = vld [vmem:[%s6257 + $0x8] sm:$0xff]
        %v6260 = vld [vmem:[%s6257 + $0x10] sm:$0xff]
        %v6261 = vld [vmem:[%s6257 + $0x18] sm:$0xff]
        %v6262 = vld [vmem:[%s6257 + $0x20] sm:$0xff]
        %v6263 = vld [vmem:[%s6257 + $0x28] sm:$0xff]
        %v6264 = vld [vmem:[%s6257 + $0x30] sm:$0xff]
        %v6265 = vld [vmem:[%s6257 + $0x38] sm:$0xff]
        %v6266 = vld [vmem:[%s6257 + $0x40] sm:$0xff]
        %v6267 = vld [vmem:[%s6257 + $0x48] sm:$0xff]
        %v6268 = vld [vmem:[%s6257 + $0x50] sm:$0xff]
        %v6269 = vld [vmem:[%s6257 + $0x58] sm:$0xff]
        %v6270 = vld [vmem:[%s6257 + $0x60] sm:$0xff]
        %v6271 = vld [vmem:[%s6257 + $0x68] sm:$0xff]
        %v6272 = vld [vmem:[%s6257 + $0x70] sm:$0xff]
        %v6273 = vld [vmem:[%s6257 + $0x78] sm:$0xff]
        %6274 = vmatprep.subr.mxu0 0.0
        %6275 = vmatpush1.msra.mxu0 %v6258
        %6276 = vmatprep.subr.mxu0 0.0
        %6277 = vmatpush1.msra.mxu0 %v6259
        %6278 = vmatprep.subr.mxu0 0.0
        %6279 = vmatpush1.msra.mxu0 %v6260
        %6280 = vmatprep.subr.mxu0 0.0
        %6281 = vmatpush1.msra.mxu0 %v6261
        %6282 = vmatprep.subr.mxu0 0.0
        %6283 = vmatpush1.msra.mxu0 %v6262
        %6284 = vmatprep.subr.mxu0 0.0
        %6285 = vmatpush1.msra.mxu0 %v6263
        %6286 = vmatprep.subr.mxu0 0.0
        %6287 = vmatpush1.msra.mxu0 %v6264
        %6288 = vmatprep.subr.mxu0 0.0
        %6289 = vmatpush1.msra.mxu0 %v6265
        %6290 = vmatprep.subr.mxu0 0.0
        %6291 = vmatpush1.msra.mxu0 %v6266
        %6292 = vmatprep.subr.mxu0 0.0
        %6293 = vmatpush1.msra.mxu0 %v6267
        %6294 = vmatprep.subr.mxu0 0.0
        %6295 = vmatpush1.msra.mxu0 %v6268
        %6296 = vmatprep.subr.mxu0 0.0
        %6297 = vmatpush1.msra.mxu0 %v6269
        %6298 = vmatprep.subr.mxu0 0.0
        %6299 = vmatpush1.msra.mxu0 %v6270
        %6300 = vmatprep.subr.mxu0 0.0
        %6301 = vmatpush1.msra.mxu0 %v6271
        %6302 = vmatprep.subr.mxu0 0.0
        %6303 = vmatpush1.msra.mxu0 %v6272
        %6304 = vmatprep.subr.mxu0 0.0
        %6305 = vmatpush1.msra.mxu0 %v6273
        %6306 = vmatprep.subr.mxu0 0.0
        %6307 = vmatpush1.msra.mxu0 0.0
        %6308 = vmatprep.subr.mxu0 0.0
        %6309 = vmatpush1.msra.mxu0 0.0
        %6310 = vmatprep.subr.mxu0 0.0
        %6311 = vmatpush1.msra.mxu0 0.0
        %6312 = vmatprep.subr.mxu0 0.0
        %6313 = vmatpush1.msra.mxu0 0.0
        %6314 = vmatprep.subr.mxu0 0.0
        %6315 = vmatpush1.msra.mxu0 0.0
        %6316 = vmatprep.subr.mxu0 0.0
        %6317 = vmatpush1.msra.mxu0 0.0
        %6318 = vmatprep.subr.mxu0 0.0
        %6319 = vmatpush1.msra.mxu0 0.0
        %6320 = vmatprep.subr.mxu0 0.0
        %6321 = vmatpush1.msra.mxu0 0.0
        %6322 = vmatprep.subr.mxu0 0.0
        %6323 = vmatpush1.msra.mxu0 0.0
        %6324 = vmatprep.subr.mxu0 0.0
        %6325 = vmatpush1.msra.mxu0 0.0
        %6326 = vmatprep.subr.mxu0 0.0
        %6327 = vmatpush1.msra.mxu0 0.0
        %6328 = vmatprep.subr.mxu0 0.0
        %6329 = vmatpush1.msra.mxu0 0.0
        %6330 = vmatprep.subr.mxu0 0.0
        %6331 = vmatpush1.msra.mxu0 0.0
        %6332 = vmatprep.subr.mxu0 0.0
        %6333 = vmatpush1.msra.mxu0 0.0
        %6334 = vmatprep.subr.mxu0 0.0
        %6335 = vmatpush1.msra.mxu0 0.0
        %6336 = vmatprep.subr.mxu0 0.0
        %6337 = vmatpush1.msra.mxu0 0.0
        %6338 = vmatprep.mubr.f32.mxu0 0.0
        %6339 = vmatmul.mubr.f32.gmra.mrb[0].mxu0 %v6255
        %v6340 = vpop.f32.mrb[0].mxu0
        %v6341 = vadd.f32 0.0, %v6340
        %v6342 = vpop.f32.mrb[0].mxu0
        %6343 = vmatprep.mubr.f32.mxu0 0.0
        %6344 = vmatmul.mubr.f32.gmra.mrb[0].mxu0 %v6256
        %v6345 = vpop.f32.mrb[0].mxu0
        %v6346 = vpop.f32.mrb[0].mxu0
        %6347 = vdwg.mxu0
        %6348 = vmatprep.subr.mxu0 0.0
        %6349 = vmatpush1.msra.mxu0 %v6239
        %6350 = vmatprep.subr.mxu0 0.0
        %6351 = vmatpush1.msra.mxu0 %v6240
        %6352 = vmatprep.subr.mxu0 0.0
        %6353 = vmatpush1.msra.mxu0 %v6241
        %6354 = vmatprep.subr.mxu0 0.0
        %6355 = vmatpush1.msra.mxu0 %v6242
        %6356 = vmatprep.subr.mxu0 0.0
        %6357 = vmatpush1.msra.mxu0 %v6243
        %6358 = vmatprep.subr.mxu0 0.0
        %6359 = vmatpush1.msra.mxu0 %v6244
        %6360 = vmatprep.subr.mxu0 0.0
        %6361 = vmatpush1.msra.mxu0 %v6245
        %6362 = vmatprep.subr.mxu0 0.0
        %6363 = vmatpush1.msra.mxu0 %v6246
        %6364 = vmatprep.subr.mxu0 0.0
        %6365 = vmatpush1.msra.mxu0 %v6247
        %6366 = vmatprep.subr.mxu0 0.0
        %6367 = vmatpush1.msra.mxu0 %v6248
        %6368 = vmatprep.subr.mxu0 0.0
        %6369 = vmatpush1.msra.mxu0 %v6249
        %6370 = vmatprep.subr.mxu0 0.0
        %6371 = vmatpush1.msra.mxu0 %v6250
        %6372 = vmatprep.subr.mxu0 0.0
        %6373 = vmatpush1.msra.mxu0 %v6251
        %6374 = vmatprep.subr.mxu0 0.0
        %6375 = vmatpush1.msra.mxu0 %v6252
        %6376 = vmatprep.subr.mxu0 0.0
        %6377 = vmatpush1.msra.mxu0 %v6253
        %6378 = vmatprep.subr.mxu0 0.0
        %6379 = vmatpush1.msra.mxu0 %v6254
        %6380 = vmatprep.subr.mxu0 0.0
        %6381 = vmatpush1.msra.mxu0 0.0
        %6382 = vmatprep.subr.mxu0 0.0
        %6383 = vmatpush1.msra.mxu0 0.0
        %6384 = vmatprep.subr.mxu0 0.0
        %6385 = vmatpush1.msra.mxu0 0.0
        %6386 = vmatprep.subr.mxu0 0.0
        %6387 = vmatpush1.msra.mxu0 0.0
        %6388 = vmatprep.subr.mxu0 0.0
        %6389 = vmatpush1.msra.mxu0 0.0
        %6390 = vmatprep.subr.mxu0 0.0
        %6391 = vmatpush1.msra.mxu0 0.0
        %6392 = vmatprep.subr.mxu0 0.0
        %6393 = vmatpush1.msra.mxu0 0.0
        %6394 = vmatprep.subr.mxu0 0.0
        %6395 = vmatpush1.msra.mxu0 0.0
        %6396 = vmatprep.subr.mxu0 0.0
        %6397 = vmatpush1.msra.mxu0 0.0
        %6398 = vmatprep.subr.mxu0 0.0
        %6399 = vmatpush1.msra.mxu0 0.0
        %6400 = vmatprep.subr.mxu0 0.0
        %6401 = vmatpush1.msra.mxu0 0.0
        %6402 = vmatprep.subr.mxu0 0.0
        %6403 = vmatpush1.msra.mxu0 0.0
        %6404 = vmatprep.subr.mxu0 0.0
        %6405 = vmatpush1.msra.mxu0 0.0
        %6406 = vmatprep.subr.mxu0 0.0
        %6407 = vmatpush1.msra.mxu0 0.0
        %6408 = vmatprep.subr.mxu0 0.0
        %6409 = vmatpush1.msra.mxu0 0.0
        %6410 = vmatprep.subr.mxu0 0.0
        %6411 = vmatpush1.msra.mxu0 0.0
        %6412 = vmatprep.mubr.f32.mxu0 0.0
        %6413 = vmatmul.mubr.f32.gmra.mrb[0].mxu0 %v6237
        %v6414 = vpop.f32.mrb[0].mxu0
        %v6415 = vadd.f32 %v6341, %v6414
        %v6416 = vpop.f32.mrb[0].mxu0
        %6417 = vmatprep.mubr.f32.mxu0 0.0
        %6418 = vmatmul.mubr.f32.gmra.mrb[0].mxu0 %v6238
        %v6419 = vpop.f32.mrb[0].mxu0
        %v6420 = vpop.f32.mrb[0].mxu0
        %6421 = vdwg.mxu0
        %v6422 = vld [vmem:[#allocation7 + $0x2] sm:$0xff]
        %v6423 = vld [vmem:[#allocation7 + $0xa] sm:$0xff]
        %s6424 = scalar_lea.vmem %s7, 256
        %v6425 = vld [vmem:[%s6424] sm:$0xff]
        %v6426 = vld [vmem:[%s6424 + $0x8] sm:$0xff]
        %v6427 = vld [vmem:[%s6424 + $0x10] sm:$0xff]
        %v6428 = vld [vmem:[%s6424 + $0x18] sm:$0xff]
        %v6429 = vld [vmem:[%s6424 + $0x20] sm:$0xff]
        %v6430 = vld [vmem:[%s6424 + $0x28] sm:$0xff]
        %v6431 = vld [vmem:[%s6424 + $0x30] sm:$0xff]
        %v6432 = vld [vmem:[%s6424 + $0x38] sm:$0xff]
        %v6433 = vld [vmem:[%s6424 + $0x40] sm:$0xff]
        %v6434 = vld [vmem:[%s6424 + $0x48] sm:$0xff]
        %v6435 = vld [vmem:[%s6424 + $0x50] sm:$0xff]
        %v6436 = vld [vmem:[%s6424 + $0x58] sm:$0xff]
        %v6437 = vld [vmem:[%s6424 + $0x60] sm:$0xff]
        %v6438 = vld [vmem:[%s6424 + $0x68] sm:$0xff]
        %v6439 = vld [vmem:[%s6424 + $0x70] sm:$0xff]
        %v6440 = vld [vmem:[%s6424 + $0x78] sm:$0xff]
        %6441 = vmatprep.subr.mxu0 0.0
        %6442 = vmatpush1.msra.mxu0 %v6425
        %6443 = vmatprep.subr.mxu0 0.0
        %6444 = vmatpush1.msra.mxu0 %v6426
        %6445 = vmatprep.subr.mxu0 0.0
        %6446 = vmatpush1.msra.mxu0 %v6427
        %6447 = vmatprep.subr.mxu0 0.0
        %6448 = vmatpush1.msra.mxu0 %v6428
        %6449 = vmatprep.subr.mxu0 0.0
        %6450 = vmatpush1.msra.mxu0 %v6429
        %6451 = vmatprep.subr.mxu0 0.0
        %6452 = vmatpush1.msra.mxu0 %v6430
        %6453 = vmatprep.subr.mxu0 0.0
        %6454 = vmatpush1.msra.mxu0 %v6431
        %6455 = vmatprep.subr.mxu0 0.0
        %6456 = vmatpush1.msra.mxu0 %v6432
        %6457 = vmatprep.subr.mxu0 0.0
        %6458 = vmatpush1.msra.mxu0 %v6433
        %6459 = vmatprep.subr.mxu0 0.0
        %6460 = vmatpush1.msra.mxu0 %v6434
        %6461 = vmatprep.subr.mxu0 0.0
        %6462 = vmatpush1.msra.mxu0 %v6435
        %6463 = vmatprep.subr.mxu0 0.0
        %6464 = vmatpush1.msra.mxu0 %v6436
        %6465 = vmatprep.subr.mxu0 0.0
        %6466 = vmatpush1.msra.mxu0 %v6437
        %6467 = vmatprep.subr.mxu0 0.0
        %6468 = vmatpush1.msra.mxu0 %v6438
        %6469 = vmatprep.subr.mxu0 0.0
        %6470 = vmatpush1.msra.mxu0 %v6439
        %6471 = vmatprep.subr.mxu0 0.0
        %6472 = vmatpush1.msra.mxu0 %v6440
        %6473 = vmatprep.subr.mxu0 0.0
        %6474 = vmatpush1.msra.mxu0 0.0
        %6475 = vmatprep.subr.mxu0 0.0
        %6476 = vmatpush1.msra.mxu0 0.0
        %6477 = vmatprep.subr.mxu0 0.0
        %6478 = vmatpush1.msra.mxu0 0.0
        %6479 = vmatprep.subr.mxu0 0.0
        %6480 = vmatpush1.msra.mxu0 0.0
        %6481 = vmatprep.subr.mxu0 0.0
        %6482 = vmatpush1.msra.mxu0 0.0
        %6483 = vmatprep.subr.mxu0 0.0
        %6484 = vmatpush1.msra.mxu0 0.0
        %6485 = vmatprep.subr.mxu0 0.0
        %6486 = vmatpush1.msra.mxu0 0.0
        %6487 = vmatprep.subr.mxu0 0.0
        %6488 = vmatpush1.msra.mxu0 0.0
        %6489 = vmatprep.subr.mxu0 0.0
        %6490 = vmatpush1.msra.mxu0 0.0
        %6491 = vmatprep.subr.mxu0 0.0
        %6492 = vmatpush1.msra.mxu0 0.0
        %6493 = vmatprep.subr.mxu0 0.0
        %6494 = vmatpush1.msra.mxu0 0.0
        %6495 = vmatprep.subr.mxu0 0.0
        %6496 = vmatpush1.msra.mxu0 0.0
        %6497 = vmatprep.subr.mxu0 0.0
        %6498 = vmatpush1.msra.mxu0 0.0
        %6499 = vmatprep.subr.mxu0 0.0
        %6500 = vmatpush1.msra.mxu0 0.0
        %6501 = vmatprep.subr.mxu0 0.0
        %6502 = vmatpush1.msra.mxu0 0.0
        %6503 = vmatprep.subr.mxu0 0.0
        %6504 = vmatpush1.msra.mxu0 0.0
        %6505 = vmatprep.mubr.f32.mxu0 0.0
        %6506 = vmatmul.mubr.f32.gmra.mrb[0].mxu0 %v6422
        %v6507 = vpop.f32.mrb[0].mxu0
        %v6508 = vadd.f32 0.0, %v6507
        %v6509 = vpop.f32.mrb[0].mxu0
        %6510 = vmatprep.mubr.f32.mxu0 0.0
        %6511 = vmatmul.mubr.f32.gmra.mrb[0].mxu0 %v6423
        %v6512 = vpop.f32.mrb[0].mxu0
        %v6513 = vpop.f32.mrb[0].mxu0
        %6514 = vdwg.mxu0
        %v6515 = vadd.f32 %v6415, %v6508
        %v6516 = vld [vmem:[#allocation7 + $0x3] sm:$0xff]
        %v6517 = vld [vmem:[#allocation7 + $0xb] sm:$0xff]
        %s6518 = scalar_lea.vmem %s7, 384
        %v6519 = vld [vmem:[%s6518] sm:$0xff]
        %v6520 = vld [vmem:[%s6518 + $0x8] sm:$0xff]
        %v6521 = vld [vmem:[%s6518 + $0x10] sm:$0xff]
        %v6522 = vld [vmem:[%s6518 + $0x18] sm:$0xff]
        %v6523 = vld [vmem:[%s6518 + $0x20] sm:$0xff]
        %v6524 = vld [vmem:[%s6518 + $0x28] sm:$0xff]
        %v6525 = vld [vmem:[%s6518 + $0x30] sm:$0xff]
        %v6526 = vld [vmem:[%s6518 + $0x38] sm:$0xff]
        %v6527 = vld [vmem:[%s6518 + $0x40] sm:$0xff]
        %v6528 = vld [vmem:[%s6518 + $0x48] sm:$0xff]
        %v6529 = vld [vmem:[%s6518 + $0x50] sm:$0xff]
        %v6530 = vld [vmem:[%s6518 + $0x58] sm:$0xff]
        %v6531 = vld [vmem:[%s6518 + $0x60] sm:$0xff]
        %v6532 = vld [vmem:[%s6518 + $0x68] sm:$0xff]
        %v6533 = vld [vmem:[%s6518 + $0x70] sm:$0xff]
        %v6534 = vld [vmem:[%s6518 + $0x78] sm:$0xff]
        %6535 = vmatprep.subr.mxu0 0.0
        %6536 = vmatpush1.msra.mxu0 %v6519
        %6537 = vmatprep.subr.mxu0 0.0
        %6538 = vmatpush1.msra.mxu0 %v6520
        %6539 = vmatprep.subr.mxu0 0.0
        %6540 = vmatpush1.msra.mxu0 %v6521
        %6541 = vmatprep.subr.mxu0 0.0
        %6542 = vmatpush1.msra.mxu0 %v6522
        %6543 = vmatprep.subr.mxu0 0.0
        %6544 = vmatpush1.msra.mxu0 %v6523
        %6545 = vmatprep.subr.mxu0 0.0
        %6546 = vmatpush1.msra.mxu0 %v6524
        %6547 = vmatprep.subr.mxu0 0.0
        %6548 = vmatpush1.msra.mxu0 %v6525
        %6549 = vmatprep.subr.mxu0 0.0
        %6550 = vmatpush1.msra.mxu0 %v6526
        %6551 = vmatprep.subr.mxu0 0.0
        %6552 = vmatpush1.msra.mxu0 %v6527
        %6553 = vmatprep.subr.mxu0 0.0
        %6554 = vmatpush1.msra.mxu0 %v6528
        %6555 = vmatprep.subr.mxu0 0.0
        %6556 = vmatpush1.msra.mxu0 %v6529
        %6557 = vmatprep.subr.mxu0 0.0
        %6558 = vmatpush1.msra.mxu0 %v6530
        %6559 = vmatprep.subr.mxu0 0.0
        %6560 = vmatpush1.msra.mxu0 %v6531
        %6561 = vmatprep.subr.mxu0 0.0
        %6562 = vmatpush1.msra.mxu0 %v6532
        %6563 = vmatprep.subr.mxu0 0.0
        %6564 = vmatpush1.msra.mxu0 %v6533
        %6565 = vmatprep.subr.mxu0 0.0
        %6566 = vmatpush1.msra.mxu0 %v6534
        %6567 = vmatprep.subr.mxu0 0.0
        %6568 = vmatpush1.msra.mxu0 0.0
        %6569 = vmatprep.subr.mxu0 0.0
        %6570 = vmatpush1.msra.mxu0 0.0
        %6571 = vmatprep.subr.mxu0 0.0
        %6572 = vmatpush1.msra.mxu0 0.0
        %6573 = vmatprep.subr.mxu0 0.0
        %6574 = vmatpush1.msra.mxu0 0.0
        %6575 = vmatprep.subr.mxu0 0.0
        %6576 = vmatpush1.msra.mxu0 0.0
        %6577 = vmatprep.subr.mxu0 0.0
        %6578 = vmatpush1.msra.mxu0 0.0
        %6579 = vmatprep.subr.mxu0 0.0
        %6580 = vmatpush1.msra.mxu0 0.0
        %6581 = vmatprep.subr.mxu0 0.0
        %6582 = vmatpush1.msra.mxu0 0.0
        %6583 = vmatprep.subr.mxu0 0.0
        %6584 = vmatpush1.msra.mxu0 0.0
        %6585 = vmatprep.subr.mxu0 0.0
        %6586 = vmatpush1.msra.mxu0 0.0
        %6587 = vmatprep.subr.mxu0 0.0
        %6588 = vmatpush1.msra.mxu0 0.0
        %6589 = vmatprep.subr.mxu0 0.0
        %6590 = vmatpush1.msra.mxu0 0.0
        %6591 = vmatprep.subr.mxu0 0.0
        %6592 = vmatpush1.msra.mxu0 0.0
        %6593 = vmatprep.subr.mxu0 0.0
        %6594 = vmatpush1.msra.mxu0 0.0
        %6595 = vmatprep.subr.mxu0 0.0
        %6596 = vmatpush1.msra.mxu0 0.0
        %6597 = vmatprep.subr.mxu0 0.0
        %6598 = vmatpush1.msra.mxu0 0.0
        %6599 = vmatprep.mubr.f32.mxu0 0.0
        %6600 = vmatmul.mubr.f32.gmra.mrb[0].mxu0 %v6516
        %v6601 = vpop.f32.mrb[0].mxu0
        %v6602 = vadd.f32 0.0, %v6601
        %v6603 = vpop.f32.mrb[0].mxu0
        %6604 = vmatprep.mubr.f32.mxu0 0.0
        %6605 = vmatmul.mubr.f32.gmra.mrb[0].mxu0 %v6517
        %v6606 = vpop.f32.mrb[0].mxu0
        %v6607 = vpop.f32.mrb[0].mxu0
        %6608 = vdwg.mxu0
        %v6609 = vadd.f32 %v6515, %v6602
        %v6610 = vld [vmem:[#allocation7 + $0x4] sm:$0xff]
        %v6611 = vld [vmem:[#allocation7 + $0xc] sm:$0xff]
        %s6612 = scalar_lea.vmem %s7, 512
        %v6613 = vld [vmem:[%s6612] sm:$0xff]
        %v6614 = vld [vmem:[%s6612 + $0x8] sm:$0xff]
        %v6615 = vld [vmem:[%s6612 + $0x10] sm:$0xff]
        %v6616 = vld [vmem:[%s6612 + $0x18] sm:$0xff]
        %v6617 = vld [vmem:[%s6612 + $0x20] sm:$0xff]
        %v6618 = vld [vmem:[%s6612 + $0x28] sm:$0xff]
        %v6619 = vld [vmem:[%s6612 + $0x30] sm:$0xff]
        %v6620 = vld [vmem:[%s6612 + $0x38] sm:$0xff]
        %v6621 = vld [vmem:[%s6612 + $0x40] sm:$0xff]
        %v6622 = vld [vmem:[%s6612 + $0x48] sm:$0xff]
        %v6623 = vld [vmem:[%s6612 + $0x50] sm:$0xff]
        %v6624 = vld [vmem:[%s6612 + $0x58] sm:$0xff]
        %v6625 = vld [vmem:[%s6612 + $0x60] sm:$0xff]
        %v6626 = vld [vmem:[%s6612 + $0x68] sm:$0xff]
        %v6627 = vld [vmem:[%s6612 + $0x70] sm:$0xff]
        %v6628 = vld [vmem:[%s6612 + $0x78] sm:$0xff]
        %6629 = vmatprep.subr.mxu0 0.0
        %6630 = vmatpush1.msra.mxu0 %v6613
        %6631 = vmatprep.subr.mxu0 0.0
        %6632 = vmatpush1.msra.mxu0 %v6614
        %6633 = vmatprep.subr.mxu0 0.0
        %6634 = vmatpush1.msra.mxu0 %v6615
        %6635 = vmatprep.subr.mxu0 0.0
        %6636 = vmatpush1.msra.mxu0 %v6616
        %6637 = vmatprep.subr.mxu0 0.0
        %6638 = vmatpush1.msra.mxu0 %v6617
        %6639 = vmatprep.subr.mxu0 0.0
        %6640 = vmatpush1.msra.mxu0 %v6618
        %6641 = vmatprep.subr.mxu0 0.0
        %6642 = vmatpush1.msra.mxu0 %v6619
        %6643 = vmatprep.subr.mxu0 0.0
        %6644 = vmatpush1.msra.mxu0 %v6620
        %6645 = vmatprep.subr.mxu0 0.0
        %6646 = vmatpush1.msra.mxu0 %v6621
        %6647 = vmatprep.subr.mxu0 0.0
        %6648 = vmatpush1.msra.mxu0 %v6622
        %6649 = vmatprep.subr.mxu0 0.0
        %6650 = vmatpush1.msra.mxu0 %v6623
        %6651 = vmatprep.subr.mxu0 0.0
        %6652 = vmatpush1.msra.mxu0 %v6624
        %6653 = vmatprep.subr.mxu0 0.0
        %6654 = vmatpush1.msra.mxu0 %v6625
        %6655 = vmatprep.subr.mxu0 0.0
        %6656 = vmatpush1.msra.mxu0 %v6626
        %6657 = vmatprep.subr.mxu0 0.0
        %6658 = vmatpush1.msra.mxu0 %v6627
        %6659 = vmatprep.subr.mxu0 0.0
        %6660 = vmatpush1.msra.mxu0 %v6628
        %6661 = vmatprep.subr.mxu0 0.0
        %6662 = vmatpush1.msra.mxu0 0.0
        %6663 = vmatprep.subr.mxu0 0.0
        %6664 = vmatpush1.msra.mxu0 0.0
        %6665 = vmatprep.subr.mxu0 0.0
        %6666 = vmatpush1.msra.mxu0 0.0
        %6667 = vmatprep.subr.mxu0 0.0
        %6668 = vmatpush1.msra.mxu0 0.0
        %6669 = vmatprep.subr.mxu0 0.0
        %6670 = vmatpush1.msra.mxu0 0.0
        %6671 = vmatprep.subr.mxu0 0.0
        %6672 = vmatpush1.msra.mxu0 0.0
        %6673 = vmatprep.subr.mxu0 0.0
        %6674 = vmatpush1.msra.mxu0 0.0
        %6675 = vmatprep.subr.mxu0 0.0
        %6676 = vmatpush1.msra.mxu0 0.0
        %6677 = vmatprep.subr.mxu0 0.0
        %6678 = vmatpush1.msra.mxu0 0.0
        %6679 = vmatprep.subr.mxu0 0.0
        %6680 = vmatpush1.msra.mxu0 0.0
        %6681 = vmatprep.subr.mxu0 0.0
        %6682 = vmatpush1.msra.mxu0 0.0
        %6683 = vmatprep.subr.mxu0 0.0
        %6684 = vmatpush1.msra.mxu0 0.0
        %6685 = vmatprep.subr.mxu0 0.0
        %6686 = vmatpush1.msra.mxu0 0.0
        %6687 = vmatprep.subr.mxu0 0.0
        %6688 = vmatpush1.msra.mxu0 0.0
        %6689 = vmatprep.subr.mxu0 0.0
        %6690 = vmatpush1.msra.mxu0 0.0
        %6691 = vmatprep.subr.mxu0 0.0
        %6692 = vmatpush1.msra.mxu0 0.0
        %6693 = vmatprep.mubr.f32.mxu0 0.0
        %6694 = vmatmul.mubr.f32.gmra.mrb[0].mxu0 %v6610
        %v6695 = vpop.f32.mrb[0].mxu0
        %v6696 = vadd.f32 0.0, %v6695
        %v6697 = vpop.f32.mrb[0].mxu0
        %6698 = vmatprep.mubr.f32.mxu0 0.0
        %6699 = vmatmul.mubr.f32.gmra.mrb[0].mxu0 %v6611
        %v6700 = vpop.f32.mrb[0].mxu0
        %v6701 = vpop.f32.mrb[0].mxu0
        %6702 = vdwg.mxu0
        %v6703 = vadd.f32 %v6609, %v6696
        %v6704 = vld [vmem:[#allocation7 + $0x5] sm:$0xff]
        %v6705 = vld [vmem:[#allocation7 + $0xd] sm:$0xff]
        %s6706 = scalar_lea.vmem %s7, 640
        %v6707 = vld [vmem:[%s6706] sm:$0xff]
        %v6708 = vld [vmem:[%s6706 + $0x8] sm:$0xff]
        %v6709 = vld [vmem:[%s6706 + $0x10] sm:$0xff]
        %v6710 = vld [vmem:[%s6706 + $0x18] sm:$0xff]
        %v6711 = vld [vmem:[%s6706 + $0x20] sm:$0xff]
        %v6712 = vld [vmem:[%s6706 + $0x28] sm:$0xff]
        %v6713 = vld [vmem:[%s6706 + $0x30] sm:$0xff]
        %v6714 = vld [vmem:[%s6706 + $0x38] sm:$0xff]
        %v6715 = vld [vmem:[%s6706 + $0x40] sm:$0xff]
        %v6716 = vld [vmem:[%s6706 + $0x48] sm:$0xff]
        %v6717 = vld [vmem:[%s6706 + $0x50] sm:$0xff]
        %v6718 = vld [vmem:[%s6706 + $0x58] sm:$0xff]
        %v6719 = vld [vmem:[%s6706 + $0x60] sm:$0xff]
        %v6720 = vld [vmem:[%s6706 + $0x68] sm:$0xff]
        %v6721 = vld [vmem:[%s6706 + $0x70] sm:$0xff]
        %v6722 = vld [vmem:[%s6706 + $0x78] sm:$0xff]
        %6723 = vmatprep.subr.mxu0 0.0
        %6724 = vmatpush1.msra.mxu0 %v6707
        %6725 = vmatprep.subr.mxu0 0.0
        %6726 = vmatpush1.msra.mxu0 %v6708
        %6727 = vmatprep.subr.mxu0 0.0
        %6728 = vmatpush1.msra.mxu0 %v6709
        %6729 = vmatprep.subr.mxu0 0.0
        %6730 = vmatpush1.msra.mxu0 %v6710
        %6731 = vmatprep.subr.mxu0 0.0
        %6732 = vmatpush1.msra.mxu0 %v6711
        %6733 = vmatprep.subr.mxu0 0.0
        %6734 = vmatpush1.msra.mxu0 %v6712
        %6735 = vmatprep.subr.mxu0 0.0
        %6736 = vmatpush1.msra.mxu0 %v6713
        %6737 = vmatprep.subr.mxu0 0.0
        %6738 = vmatpush1.msra.mxu0 %v6714
        %6739 = vmatprep.subr.mxu0 0.0
        %6740 = vmatpush1.msra.mxu0 %v6715
        %6741 = vmatprep.subr.mxu0 0.0
        %6742 = vmatpush1.msra.mxu0 %v6716
        %6743 = vmatprep.subr.mxu0 0.0
        %6744 = vmatpush1.msra.mxu0 %v6717
        %6745 = vmatprep.subr.mxu0 0.0
        %6746 = vmatpush1.msra.mxu0 %v6718
        %6747 = vmatprep.subr.mxu0 0.0
        %6748 = vmatpush1.msra.mxu0 %v6719
        %6749 = vmatprep.subr.mxu0 0.0
        %6750 = vmatpush1.msra.mxu0 %v6720
        %6751 = vmatprep.subr.mxu0 0.0
        %6752 = vmatpush1.msra.mxu0 %v6721
        %6753 = vmatprep.subr.mxu0 0.0
        %6754 = vmatpush1.msra.mxu0 %v6722
        %6755 = vmatprep.subr.mxu0 0.0
        %6756 = vmatpush1.msra.mxu0 0.0
        %6757 = vmatprep.subr.mxu0 0.0
        %6758 = vmatpush1.msra.mxu0 0.0
        %6759 = vmatprep.subr.mxu0 0.0
        %6760 = vmatpush1.msra.mxu0 0.0
        %6761 = vmatprep.subr.mxu0 0.0
        %6762 = vmatpush1.msra.mxu0 0.0
        %6763 = vmatprep.subr.mxu0 0.0
        %6764 = vmatpush1.msra.mxu0 0.0
        %6765 = vmatprep.subr.mxu0 0.0
        %6766 = vmatpush1.msra.mxu0 0.0
        %6767 = vmatprep.subr.mxu0 0.0
        %6768 = vmatpush1.msra.mxu0 0.0
        %6769 = vmatprep.subr.mxu0 0.0
        %6770 = vmatpush1.msra.mxu0 0.0
        %6771 = vmatprep.subr.mxu0 0.0
        %6772 = vmatpush1.msra.mxu0 0.0
        %6773 = vmatprep.subr.mxu0 0.0
        %6774 = vmatpush1.msra.mxu0 0.0
        %6775 = vmatprep.subr.mxu0 0.0
        %6776 = vmatpush1.msra.mxu0 0.0
        %6777 = vmatprep.subr.mxu0 0.0
        %6778 = vmatpush1.msra.mxu0 0.0
        %6779 = vmatprep.subr.mxu0 0.0
        %6780 = vmatpush1.msra.mxu0 0.0
        %6781 = vmatprep.subr.mxu0 0.0
        %6782 = vmatpush1.msra.mxu0 0.0
        %6783 = vmatprep.subr.mxu0 0.0
        %6784 = vmatpush1.msra.mxu0 0.0
        %6785 = vmatprep.subr.mxu0 0.0
        %6786 = vmatpush1.msra.mxu0 0.0
        %6787 = vmatprep.mubr.f32.mxu0 0.0
        %6788 = vmatmul.mubr.f32.gmra.mrb[0].mxu0 %v6704
        %v6789 = vpop.f32.mrb[0].mxu0
        %v6790 = vadd.f32 0.0, %v6789
        %v6791 = vpop.f32.mrb[0].mxu0
        %6792 = vmatprep.mubr.f32.mxu0 0.0
        %6793 = vmatmul.mubr.f32.gmra.mrb[0].mxu0 %v6705
        %v6794 = vpop.f32.mrb[0].mxu0
        %v6795 = vpop.f32.mrb[0].mxu0
        %6796 = vdwg.mxu0
        %v6797 = vadd.f32 %v6703, %v6790
        %v6798 = vld [vmem:[#allocation7 + $0x6] sm:$0xff]
        %v6799 = vld [vmem:[#allocation7 + $0xe] sm:$0xff]
        %s6800 = scalar_lea.vmem %s7, 768
        %v6801 = vld [vmem:[%s6800] sm:$0xff]
        %v6802 = vld [vmem:[%s6800 + $0x8] sm:$0xff]
        %v6803 = vld [vmem:[%s6800 + $0x10] sm:$0xff]
        %v6804 = vld [vmem:[%s6800 + $0x18] sm:$0xff]
        %v6805 = vld [vmem:[%s6800 + $0x20] sm:$0xff]
        %v6806 = vld [vmem:[%s6800 + $0x28] sm:$0xff]
        %v6807 = vld [vmem:[%s6800 + $0x30] sm:$0xff]
        %v6808 = vld [vmem:[%s6800 + $0x38] sm:$0xff]
        %v6809 = vld [vmem:[%s6800 + $0x40] sm:$0xff]
        %v6810 = vld [vmem:[%s6800 + $0x48] sm:$0xff]
        %v6811 = vld [vmem:[%s6800 + $0x50] sm:$0xff]
        %v6812 = vld [vmem:[%s6800 + $0x58] sm:$0xff]
        %v6813 = vld [vmem:[%s6800 + $0x60] sm:$0xff]
        %v6814 = vld [vmem:[%s6800 + $0x68] sm:$0xff]
        %v6815 = vld [vmem:[%s6800 + $0x70] sm:$0xff]
        %v6816 = vld [vmem:[%s6800 + $0x78] sm:$0xff]
        %6817 = vmatprep.subr.mxu0 0.0
        %6818 = vmatpush1.msra.mxu0 %v6801
        %6819 = vmatprep.subr.mxu0 0.0
        %6820 = vmatpush1.msra.mxu0 %v6802
        %6821 = vmatprep.subr.mxu0 0.0
        %6822 = vmatpush1.msra.mxu0 %v6803
        %6823 = vmatprep.subr.mxu0 0.0
        %6824 = vmatpush1.msra.mxu0 %v6804
        %6825 = vmatprep.subr.mxu0 0.0
        %6826 = vmatpush1.msra.mxu0 %v6805
        %6827 = vmatprep.subr.mxu0 0.0
        %6828 = vmatpush1.msra.mxu0 %v6806
        %6829 = vmatprep.subr.mxu0 0.0
        %6830 = vmatpush1.msra.mxu0 %v6807
        %6831 = vmatprep.subr.mxu0 0.0
        %6832 = vmatpush1.msra.mxu0 %v6808
        %6833 = vmatprep.subr.mxu0 0.0
        %6834 = vmatpush1.msra.mxu0 %v6809
        %6835 = vmatprep.subr.mxu0 0.0
        %6836 = vmatpush1.msra.mxu0 %v6810
        %6837 = vmatprep.subr.mxu0 0.0
        %6838 = vmatpush1.msra.mxu0 %v6811
        %6839 = vmatprep.subr.mxu0 0.0
        %6840 = vmatpush1.msra.mxu0 %v6812
        %6841 = vmatprep.subr.mxu0 0.0
        %6842 = vmatpush1.msra.mxu0 %v6813
        %6843 = vmatprep.subr.mxu0 0.0
        %6844 = vmatpush1.msra.mxu0 %v6814
        %6845 = vmatprep.subr.mxu0 0.0
        %6846 = vmatpush1.msra.mxu0 %v6815
        %6847 = vmatprep.subr.mxu0 0.0
        %6848 = vmatpush1.msra.mxu0 %v6816
        %6849 = vmatprep.subr.mxu0 0.0
        %6850 = vmatpush1.msra.mxu0 0.0
        %6851 = vmatprep.subr.mxu0 0.0
        %6852 = vmatpush1.msra.mxu0 0.0
        %6853 = vmatprep.subr.mxu0 0.0
        %6854 = vmatpush1.msra.mxu0 0.0
        %6855 = vmatprep.subr.mxu0 0.0
        %6856 = vmatpush1.msra.mxu0 0.0
        %6857 = vmatprep.subr.mxu0 0.0
        %6858 = vmatpush1.msra.mxu0 0.0
        %6859 = vmatprep.subr.mxu0 0.0
        %6860 = vmatpush1.msra.mxu0 0.0
        %6861 = vmatprep.subr.mxu0 0.0
        %6862 = vmatpush1.msra.mxu0 0.0
        %6863 = vmatprep.subr.mxu0 0.0
        %6864 = vmatpush1.msra.mxu0 0.0
        %6865 = vmatprep.subr.mxu0 0.0
        %6866 = vmatpush1.msra.mxu0 0.0
        %6867 = vmatprep.subr.mxu0 0.0
        %6868 = vmatpush1.msra.mxu0 0.0
        %6869 = vmatprep.subr.mxu0 0.0
        %6870 = vmatpush1.msra.mxu0 0.0
        %6871 = vmatprep.subr.mxu0 0.0
        %6872 = vmatpush1.msra.mxu0 0.0
        %6873 = vmatprep.subr.mxu0 0.0
        %6874 = vmatpush1.msra.mxu0 0.0
        %6875 = vmatprep.subr.mxu0 0.0
        %6876 = vmatpush1.msra.mxu0 0.0
        %6877 = vmatprep.subr.mxu0 0.0
        %6878 = vmatpush1.msra.mxu0 0.0
        %6879 = vmatprep.subr.mxu0 0.0
        %6880 = vmatpush1.msra.mxu0 0.0
        %6881 = vmatprep.mubr.f32.mxu0 0.0
        %6882 = vmatmul.mubr.f32.gmra.mrb[0].mxu0 %v6798
        %v6883 = vpop.f32.mrb[0].mxu0
        %v6884 = vadd.f32 0.0, %v6883
        %v6885 = vpop.f32.mrb[0].mxu0
        %6886 = vmatprep.mubr.f32.mxu0 0.0
        %6887 = vmatmul.mubr.f32.gmra.mrb[0].mxu0 %v6799
        %v6888 = vpop.f32.mrb[0].mxu0
        %v6889 = vpop.f32.mrb[0].mxu0
        %6890 = vdwg.mxu0
        %v6891 = vadd.f32 %v6797, %v6884
        %v6892 = vld [vmem:[#allocation7 + $0x7] sm:$0xff]
        %v6893 = vld [vmem:[#allocation7 + $0xf] sm:$0xff]
        %s6894 = scalar_lea.vmem %s7, 896
        %v6895 = vld [vmem:[%s6894] sm:$0xff]
        %v6896 = vld [vmem:[%s6894 + $0x8] sm:$0xff]
        %v6897 = vld [vmem:[%s6894 + $0x10] sm:$0xff]
        %v6898 = vld [vmem:[%s6894 + $0x18] sm:$0xff]
        %v6899 = vld [vmem:[%s6894 + $0x20] sm:$0xff]
        %v6900 = vld [vmem:[%s6894 + $0x28] sm:$0xff]
        %v6901 = vld [vmem:[%s6894 + $0x30] sm:$0xff]
        %v6902 = vld [vmem:[%s6894 + $0x38] sm:$0xff]
        %v6903 = vld [vmem:[%s6894 + $0x40] sm:$0xff]
        %v6904 = vld [vmem:[%s6894 + $0x48] sm:$0xff]
        %v6905 = vld [vmem:[%s6894 + $0x50] sm:$0xff]
        %v6906 = vld [vmem:[%s6894 + $0x58] sm:$0xff]
        %v6907 = vld [vmem:[%s6894 + $0x60] sm:$0xff]
        %v6908 = vld [vmem:[%s6894 + $0x68] sm:$0xff]
        %v6909 = vld [vmem:[%s6894 + $0x70] sm:$0xff]
        %v6910 = vld [vmem:[%s6894 + $0x78] sm:$0xff]
        %6911 = vmatprep.subr.mxu0 0.0
        %6912 = vmatpush1.msra.mxu0 %v6895
        %6913 = vmatprep.subr.mxu0 0.0
        %6914 = vmatpush1.msra.mxu0 %v6896
        %6915 = vmatprep.subr.mxu0 0.0
        %6916 = vmatpush1.msra.mxu0 %v6897
        %6917 = vmatprep.subr.mxu0 0.0
        %6918 = vmatpush1.msra.mxu0 %v6898
        %6919 = vmatprep.subr.mxu0 0.0
        %6920 = vmatpush1.msra.mxu0 %v6899
        %6921 = vmatprep.subr.mxu0 0.0
        %6922 = vmatpush1.msra.mxu0 %v6900
        %6923 = vmatprep.subr.mxu0 0.0
        %6924 = vmatpush1.msra.mxu0 %v6901
        %6925 = vmatprep.subr.mxu0 0.0
        %6926 = vmatpush1.msra.mxu0 %v6902
        %6927 = vmatprep.subr.mxu0 0.0
        %6928 = vmatpush1.msra.mxu0 %v6903
        %6929 = vmatprep.subr.mxu0 0.0
        %6930 = vmatpush1.msra.mxu0 %v6904
        %6931 = vmatprep.subr.mxu0 0.0
        %6932 = vmatpush1.msra.mxu0 %v6905
        %6933 = vmatprep.subr.mxu0 0.0
        %6934 = vmatpush1.msra.mxu0 %v6906
        %6935 = vmatprep.subr.mxu0 0.0
        %6936 = vmatpush1.msra.mxu0 %v6907
        %6937 = vmatprep.subr.mxu0 0.0
        %6938 = vmatpush1.msra.mxu0 %v6908
        %6939 = vmatprep.subr.mxu0 0.0
        %6940 = vmatpush1.msra.mxu0 %v6909
        %6941 = vmatprep.subr.mxu0 0.0
        %6942 = vmatpush1.msra.mxu0 %v6910
        %6943 = vmatprep.subr.mxu0 0.0
        %6944 = vmatpush1.msra.mxu0 0.0
        %6945 = vmatprep.subr.mxu0 0.0
        %6946 = vmatpush1.msra.mxu0 0.0
        %6947 = vmatprep.subr.mxu0 0.0
        %6948 = vmatpush1.msra.mxu0 0.0
        %6949 = vmatprep.subr.mxu0 0.0
        %6950 = vmatpush1.msra.mxu0 0.0
        %6951 = vmatprep.subr.mxu0 0.0
        %6952 = vmatpush1.msra.mxu0 0.0
        %6953 = vmatprep.subr.mxu0 0.0
        %6954 = vmatpush1.msra.mxu0 0.0
        %6955 = vmatprep.subr.mxu0 0.0
        %6956 = vmatpush1.msra.mxu0 0.0
        %6957 = vmatprep.subr.mxu0 0.0
        %6958 = vmatpush1.msra.mxu0 0.0
        %6959 = vmatprep.subr.mxu0 0.0
        %6960 = vmatpush1.msra.mxu0 0.0
        %6961 = vmatprep.subr.mxu0 0.0
        %6962 = vmatpush1.msra.mxu0 0.0
        %6963 = vmatprep.subr.mxu0 0.0
        %6964 = vmatpush1.msra.mxu0 0.0
        %6965 = vmatprep.subr.mxu0 0.0
        %6966 = vmatpush1.msra.mxu0 0.0
        %6967 = vmatprep.subr.mxu0 0.0
        %6968 = vmatpush1.msra.mxu0 0.0
        %6969 = vmatprep.subr.mxu0 0.0
        %6970 = vmatpush1.msra.mxu0 0.0
        %6971 = vmatprep.subr.mxu0 0.0
        %6972 = vmatpush1.msra.mxu0 0.0
        %6973 = vmatprep.subr.mxu0 0.0
        %6974 = vmatpush1.msra.mxu0 0.0
        %6975 = vmatprep.mubr.f32.mxu0 0.0
        %6976 = vmatmul.mubr.f32.gmra.mrb[0].mxu0 %v6892
        %v6977 = vpop.f32.mrb[0].mxu0
        %v6978 = vadd.f32 0.0, %v6977
        %v6979 = vpop.f32.mrb[0].mxu0
        %6980 = vmatprep.mubr.f32.mxu0 0.0
        %6981 = vmatmul.mubr.f32.gmra.mrb[0].mxu0 %v6893
        %v6982 = vpop.f32.mrb[0].mxu0
        %v6983 = vpop.f32.mrb[0].mxu0
        %6984 = vdwg.mxu0
        %v6985 = vadd.f32 %v6891, %v6978
        %v6986 = vld [vmem:[#allocation7 + $0x8] sm:$0xff]
        %v6987 = vld [vmem:[#allocation7 + $0x10] sm:$0xff]
        %s6988 = scalar_lea.vmem %s7, 1024
        %v6989 = vld [vmem:[%s6988] sm:$0xff]
        %v6990 = vld [vmem:[%s6988 + $0x8] sm:$0xff]
        %v6991 = vld [vmem:[%s6988 + $0x10] sm:$0xff]
        %v6992 = vld [vmem:[%s6988 + $0x18] sm:$0xff]
        %v6993 = vld [vmem:[%s6988 + $0x20] sm:$0xff]
        %v6994 = vld [vmem:[%s6988 + $0x28] sm:$0xff]
        %v6995 = vld [vmem:[%s6988 + $0x30] sm:$0xff]
        %v6996 = vld [vmem:[%s6988 + $0x38] sm:$0xff]
        %v6997 = vld [vmem:[%s6988 + $0x40] sm:$0xff]
        %v6998 = vld [vmem:[%s6988 + $0x48] sm:$0xff]
        %v6999 = vld [vmem:[%s6988 + $0x50] sm:$0xff]
        %v7000 = vld [vmem:[%s6988 + $0x58] sm:$0xff]
        %v7001 = vld [vmem:[%s6988 + $0x60] sm:$0xff]
        %v7002 = vld [vmem:[%s6988 + $0x68] sm:$0xff]
        %v7003 = vld [vmem:[%s6988 + $0x70] sm:$0xff]
        %v7004 = vld [vmem:[%s6988 + $0x78] sm:$0xff]
        %7005 = vmatprep.subr.mxu0 0.0
        %7006 = vmatpush1.msra.mxu0 %v6989
        %7007 = vmatprep.subr.mxu0 0.0
        %7008 = vmatpush1.msra.mxu0 %v6990
        %7009 = vmatprep.subr.mxu0 0.0
        %7010 = vmatpush1.msra.mxu0 %v6991
        %7011 = vmatprep.subr.mxu0 0.0
        %7012 = vmatpush1.msra.mxu0 %v6992
        %7013 = vmatprep.subr.mxu0 0.0
        %7014 = vmatpush1.msra.mxu0 %v6993
        %7015 = vmatprep.subr.mxu0 0.0
        %7016 = vmatpush1.msra.mxu0 %v6994
        %7017 = vmatprep.subr.mxu0 0.0
        %7018 = vmatpush1.msra.mxu0 %v6995
        %7019 = vmatprep.subr.mxu0 0.0
        %7020 = vmatpush1.msra.mxu0 %v6996
        %7021 = vmatprep.subr.mxu0 0.0
        %7022 = vmatpush1.msra.mxu0 %v6997
        %7023 = vmatprep.subr.mxu0 0.0
        %7024 = vmatpush1.msra.mxu0 %v6998
        %7025 = vmatprep.subr.mxu0 0.0
        %7026 = vmatpush1.msra.mxu0 %v6999
        %7027 = vmatprep.subr.mxu0 0.0
        %7028 = vmatpush1.msra.mxu0 %v7000
        %7029 = vmatprep.subr.mxu0 0.0
        %7030 = vmatpush1.msra.mxu0 %v7001
        %7031 = vmatprep.subr.mxu0 0.0
        %7032 = vmatpush1.msra.mxu0 %v7002
        %7033 = vmatprep.subr.mxu0 0.0
        %7034 = vmatpush1.msra.mxu0 %v7003
        %7035 = vmatprep.subr.mxu0 0.0
        %7036 = vmatpush1.msra.mxu0 %v7004
        %7037 = vmatprep.subr.mxu0 0.0
        %7038 = vmatpush1.msra.mxu0 0.0
        %7039 = vmatprep.subr.mxu0 0.0
        %7040 = vmatpush1.msra.mxu0 0.0
        %7041 = vmatprep.subr.mxu0 0.0
        %7042 = vmatpush1.msra.mxu0 0.0
        %7043 = vmatprep.subr.mxu0 0.0
        %7044 = vmatpush1.msra.mxu0 0.0
        %7045 = vmatprep.subr.mxu0 0.0
        %7046 = vmatpush1.msra.mxu0 0.0
        %7047 = vmatprep.subr.mxu0 0.0
        %7048 = vmatpush1.msra.mxu0 0.0
        %7049 = vmatprep.subr.mxu0 0.0
        %7050 = vmatpush1.msra.mxu0 0.0
        %7051 = vmatprep.subr.mxu0 0.0
        %7052 = vmatpush1.msra.mxu0 0.0
        %7053 = vmatprep.subr.mxu0 0.0
        %7054 = vmatpush1.msra.mxu0 0.0
        %7055 = vmatprep.subr.mxu0 0.0
        %7056 = vmatpush1.msra.mxu0 0.0
        %7057 = vmatprep.subr.mxu0 0.0
        %7058 = vmatpush1.msra.mxu0 0.0
        %7059 = vmatprep.subr.mxu0 0.0
        %7060 = vmatpush1.msra.mxu0 0.0
        %7061 = vmatprep.subr.mxu0 0.0
        %7062 = vmatpush1.msra.mxu0 0.0
        %7063 = vmatprep.subr.mxu0 0.0
        %7064 = vmatpush1.msra.mxu0 0.0
        %7065 = vmatprep.subr.mxu0 0.0
        %7066 = vmatpush1.msra.mxu0 0.0
        %7067 = vmatprep.subr.mxu0 0.0
        %7068 = vmatpush1.msra.mxu0 0.0
        %7069 = vmatprep.mubr.f32.mxu0 0.0
        %7070 = vmatmul.mubr.f32.gmra.mrb[0].mxu0 %v6986
        %v7071 = vpop.f32.mrb[0].mxu0
        %v7072 = vadd.f32 0.0, %v7071
        %v7073 = vpop.f32.mrb[0].mxu0
        %7074 = vmatprep.mubr.f32.mxu0 0.0
        %7075 = vmatmul.mubr.f32.gmra.mrb[0].mxu0 %v6987
        %v7076 = vpop.f32.mrb[0].mxu0
        %v7077 = vpop.f32.mrb[0].mxu0
        %7078 = vdwg.mxu0
        %v7079 = vadd.f32 %v6985, %v7072
        %v7080 = vld [vmem:[%s8] sm:$0x1]
        %v7081 = vadd.f32 %v7079, %v7080
        %7082 = vst [vmem:[%s325] sm:$0x1] %v7081
        %s7083 = sand.u32 %s225, 1
        %s7084 = scalar_lea.sflag [#allocation9], %s7083
        %s7085 = sand.u32 %s225, 1
        %s7086 = scalar_lea.vmem [#allocation8], %s7085
        // Predicated region
        $region57: #{example_net9_forward.1} parent=55 // pred_check
          %p7087 = pneg %p235
        $region58: #{example_net9_forward.1} parent=55 // pred_check_branch
          %7089 = sbr.rel (%p7087) target = $region60
        $region59: #{example_net9_forward.1} parent=55 // pred_region
          %s7091 = ssub.s32 16, 16
          %7092 = vsyncadd %s7084, %s7091
          %s7093 = smul.addr %s23, 16
          %s7094 = scalar_lea.hbm %s9, %s7093
          %s7096 = sshll.u32 %s7086, 4
          %s7097 = int_to_ptr.vmem [resolvable:$true] %s7096
          %7099 = dma.vmem_to_hbm [thread:$0]  %s7097, 16, %s7094, %s7084
        $region60: #{example_net9_forward.1} parent=55 // pred_fallthru
          _
      $region56: #{example_net9_forward.1} parent=5 // pred_fallthru
        _
      %p7100 = scmp.le.s32.totalorder 2, %s18
      // Predicated region
      $region61: #{example_net9_forward.1} parent=5 // pred_check
        %p7101 = pneg %p7100
      $region62: #{example_net9_forward.1} parent=5 // pred_check_branch
        %7103 = sbr.rel (%p7101) target = $region64
      $region63: #{example_net9_forward.1} parent=5 // pred_region
        %s7104 = ssub.s32 %s18, 2
        // Predicated region
        $region65: #{example_net9_forward.1} parent=63 // pred_check
          %p7105 = pneg %p241
        $region66: #{example_net9_forward.1} parent=63 // pred_check_branch
          %7107 = sbr.rel (%p7105) target = $region68
        $region67: #{example_net9_forward.1} parent=63 // pred_region
          %s7108 = sand.u32 %s226, 1
          %s7109 = scalar_lea.sflag [#allocation9], %s7108
          %s7110 = sand.u32 %s226, 1
          %s7111 = scalar_lea.vmem [#allocation8], %s7110
          %7112 = dma.done %s7109, 16
        $region68: #{example_net9_forward.1} parent=63 // pred_fallthru
          _
      $region64: #{example_net9_forward.1} parent=5 // pred_fallthru
        _
    $region6: #{example_net9_forward.1} parent=1 // loop_footer
      %s22 = sadd.s32 1, %s18
    $region7: #{example_net9_forward.1} parent=1 // loop_footer_branch
      %17 = sbr.rel target = $region3
    $region8: #{example_net9_forward.1} parent=1 // loop_exit
      _
    %7113 = vsyncpa [#allocation9], 1
    %s7114 = scalar_lea.sflag [#allocation9], 1
    %7115 = vsyncpa %s7114, 1

</llo_original>
